<compile_context>
chip_gen: v6e
topology: v6e:2x2x1
jax: 0.10.0
libtpu: 0.0.40
codegen_flags: <defaults>
</compile_context>

<pallas_src>
import jax
import jax.numpy as jnp
from jax.experimental import pallas as pl
from jax.experimental.pallas import tpu as pltpu

# ---------------- static configuration ----------------
LATENT_SIZE = 125            # latent_size + 3 == 128 (lane friendly)
HIDDEN = 256                 # dims = [256, 256]
C_TOTAL = 704                # fc_encoder input size (hard-coded in the module)
D = H = W = 8                # feature-volume spatial size (powers of two)
DHW = D * H * W
N_POINTS = 256


def _pick_tile_n():
    """256-row tiles on single-TensorCore chips (v5e/v6e); 128-row tiles on
    v7x so grid=(2,) 'parallel' feeds both TensorCores."""
    try:
        kind = jax.devices()[0].device_kind.lower()
    except Exception:
        return 128
    if "v7" in kind or "7x" in kind:
        return 128
    return 256


TILE_N = _pick_tile_n()


# ---------------- Pallas kernel ----------------
def _trilinear_onehot(xyz):
    """Build the [tile_n, DHW] trilinear interpolation weight matrix in-kernel.

    Matches F.grid_sample(..., mode='bilinear', align_corners=True) for 5-D
    inputs, grid channel order (x, y, z) -> (W, H, D).  Built separably in
    value from one lane-iota decomposition (all ops stay [n, DHW]-wide f32,
    no relayouts).
    """
    n = xyz.shape[0]
    gx = xyz[:, 0:1]
    gy = xyz[:, 1:2]
    gz = xyz[:, 2:3]
    # align_corners=True: [-1, 1] -> [0, size - 1]
    fx = (gx + 1.0) * 0.5 * (W - 1)
    fy = (gy + 1.0) * 0.5 * (H - 1)
    fz = (gz + 1.0) * 0.5 * (D - 1)
    x0 = jnp.floor(fx)
    y0 = jnp.floor(fy)
    z0 = jnp.floor(fz)
    tx = fx - x0
    ty = fy - y0
    tz = fz - z0
    # TODO(synk): out-of-range coords are clamped (border) rather than
    # zero-padded (padding_mode='zeros'); identical for in-range query points.
    x0i = jnp.clip(x0.astype(jnp.int32), 0, W - 1)
    y0i = jnp.clip(y0.astype(jnp.int32), 0, H - 1)
    z0i = jnp.clip(z0.astype(jnp.int32), 0, D - 1)
    x1i = jnp.minimum(x0i + 1, W - 1)
    y1i = jnp.minimum(y0i + 1, H - 1)
    z1i = jnp.minimum(z0i + 1, D - 1)

    # flat index = z*(H*W) + y*W + x ; W = H = 8 (powers of two) -> shift/mask.
    iota = jax.lax.broadcasted_iota(jnp.int32, (n, DHW), 1)
    ix = iota & (W - 1)
    iy = (iota >> 3) & (H - 1)
    iz = iota >> 6
    wx = jnp.where(ix == x0i, 1.0 - tx, 0.0) + jnp.where(ix == x1i, tx, 0.0)
    wy = jnp.where(iy == y0i, 1.0 - ty, 0.0) + jnp.where(iy == y1i, ty, 0.0)
    wz = jnp.where(iz == z0i, 1.0 - tz, 0.0) + jnp.where(iz == z1i, tz, 0.0)
    return wx * wy * wz                                          # [n, DHW] f32


def deepsdf_kernel(xyz_ref, volf_ref, w0x_ref, bf_ref,
                   w1_ref, b1_ref, w2t_ref, b2_ref, out_ref):
    xyz = xyz_ref[...]                                           # [tile_n, 3] f32

    # --- grid_sample + fc_encoder + lin0(latent part), all folded into one
    #     one-hot matmul against the pre-folded volume (bf16 on the MXU) ---
    sel = _trilinear_onehot(xyz)                                 # [tile_n, DHW]
    h = jnp.dot(sel.astype(jnp.bfloat16), volf_ref[...],
                preferred_element_type=jnp.float32)              # [tile_n, 256]

    # --- lin0: xyz part (rank-1 updates, VPU, f32) + folded bias, then ReLU ---
    h = (h
         + xyz[:, 0:1] * w0x_ref[0:1, :]
         + xyz[:, 1:2] * w0x_ref[1:2, :]
         + xyz[:, 2:3] * w0x_ref[2:3, :]
         + bf_ref[...])
    h = jnp.maximum(h, 0.0)

    # --- lin1 + ReLU (bf16 operands, f32 accumulate) ---
    h = jnp.dot(h.astype(jnp.bfloat16), w1_ref[...],
                preferred_element_type=jnp.float32) + b1_ref[...]
    h = jnp.maximum(h, 0.0)

    # --- lin2 (out_dim = 1) as a lane reduction, then self.th (tanh) ---
    o = jnp.sum(h * w2t_ref[...], axis=1, keepdims=True) + b2_ref[...]
    out_ref[...] = jnp.tanh(o)


# ---------------- wrapper ----------------
def fold_params(vol_t, params):
    """Fold fc_encoder and lin0's latent half into the flattened volume.
    Do this once per (volume, weights) pair, outside the per-query jit."""
    wfc, bfc, w0l, w0x, b0, w1, b1, w2t, b2 = params
    vol_fold = ((vol_t @ wfc) @ w0l).astype(jnp.bfloat16)        # [DHW, 256]
    b_fold = bfc @ w0l + b0                                      # [1, 256] f32
    return (vol_fold, w0x, b_fold, w1.astype(jnp.bfloat16), b1, w2t, b2)


@jax.jit
def deepsdf_pallas(xyz, vol_fold, w0x, b_fold, w1_bf, b1, w2t, b2):
    n = xyz.shape[0]
    pad = (-n) % TILE_N
    if pad:                                   # static at trace time
        xyz = jnp.pad(xyz, ((0, pad), (0, 0)))
    n_pad = xyz.shape[0]
    full = lambda i: (0, 0)
    out = pl.pallas_call(
        deepsdf_kernel,
        out_shape=jax.ShapeDtypeStruct((n_pad, 1), jnp.float32),
        grid=(n_pad // TILE_N,),
        in_specs=[
            pl.BlockSpec((TILE_N, 3), lambda i: (i, 0)),         # xyz
            pl.BlockSpec((DHW, HIDDEN), full),                   # folded volume (bf16)
            pl.BlockSpec((3, HIDDEN), full),                     # lin0 W (xyz part)
            pl.BlockSpec((1, HIDDEN), full),                     # folded bias
            pl.BlockSpec((HIDDEN, HIDDEN), full),                # lin1 W (bf16)
            pl.BlockSpec((1, HIDDEN), full),                     # lin1 b
            pl.BlockSpec((1, HIDDEN), full),                     # lin2 W (transposed)
            pl.BlockSpec((1, 1), full),                          # lin2 b
        ],
        out_specs=pl.BlockSpec((TILE_N, 1), lambda i: (i, 0)),
        compiler_params=pltpu.CompilerParams(
            dimension_semantics=("parallel",)),
    )(xyz, vol_fold, w0x, b_fold, w1_bf, b1, w2t, b2)
    return out[:n]


# ---------------- deterministic parameter init (PyTorch-Linear-style) ----------------
def init_params(key):
    def linear(k, fan_in, fan_out):
        kw, kb = jax.random.split(k)
        bound = 1.0 / jnp.sqrt(jnp.float32(fan_in))
        w = jax.random.uniform(kw, (fan_in, fan_out), jnp.float32, -bound, bound)
        b = jax.random.uniform(kb, (1, fan_out), jnp.float32, -bound, bound)
        return w, b

    k = jax.random.split(key, 4)
    wfc, bfc = linear(k[0], C_TOTAL, LATENT_SIZE)          # fc_encoder
    w0, b0 = linear(k[1], LATENT_SIZE + 3, HIDDEN)         # lin0
    w1, b1 = linear(k[2], HIDDEN, HIDDEN)                  # lin1
    w2, b2 = linear(k[3], HIDDEN, 1)                       # lin2
    w0l, w0x = w0[:LATENT_SIZE], w0[LATENT_SIZE:]
    return (wfc, bfc, w0l, w0x, b0, w1, b1, w2.T, b2)


# ---------------- pure-JAX reference (for verification, f32, unfolded) ----------------
def _ref_grid_sample(vol, xyz):
    """vol: [C, D, H, W], xyz: [N, 3] in (-1, 1). Returns [N, C]."""
    _, d, h, w = vol.shape
    fx = (xyz[:, 0] + 1.0) * 0.5 * (w - 1)
    fy = (xyz[:, 1] + 1.0) * 0.5 * (h - 1)
    fz = (xyz[:, 2] + 1.0) * 0.5 * (d - 1)
    x0 = jnp.clip(jnp.floor(fx).astype(jnp.int32), 0, w - 1)
    y0 = jnp.clip(jnp.floor(fy).astype(jnp.int32), 0, h - 1)
    z0 = jnp.clip(jnp.floor(fz).astype(jnp.int32), 0, d - 1)
    x1 = jnp.clip(x0 + 1, 0, w - 1)
    y1 = jnp.clip(y0 + 1, 0, h - 1)
    z1 = jnp.clip(z0 + 1, 0, d - 1)
    tx = fx - jnp.floor(fx)
    ty = fy - jnp.floor(fy)
    tz = fz - jnp.floor(fz)
    out = 0.0
    for zi, wz in ((z0, 1 - tz), (z1, tz)):
        for yi, wy in ((y0, 1 - ty), (y1, ty)):
            for xi, wx in ((x0, 1 - tx), (x1, tx)):
                out = out + vol[:, zi, yi, xi].T * (wz * wy * wx)[:, None]
    return out


def deepsdf_reference(latent_list, xyz, params):
    wfc, bfc, w0l, w0x, b0, w1, b1, w2t, b2 = params
    feats = jnp.concatenate(
        [_ref_grid_sample(v[0], xyz) for v in latent_list], axis=1)   # [N, 704]
    lat = feats @ wfc + bfc
    x = jnp.concatenate([lat, xyz], axis=1)                           # [N, 128]
    h = jnp.maximum(x @ jnp.concatenate([w0l, w0x], axis=0) + b0, 0.0)
    h = jnp.maximum(h @ w1 + b1, 0.0)
    return jnp.tanh(h @ w2t.T + b2)


# ---------------- main ----------------
if __name__ == "__main__":
    key = jax.random.PRNGKey(0)
    k_lat, k_xyz, k_par = jax.random.split(key, 3)

    # "latent": list of 3D feature volumes [1, C_i, D, H, W]; channels sum to 704.
    chans = (256, 256, 192)
    lat_keys = jax.random.split(k_lat, len(chans))
    latent = [jax.random.normal(kk, (1, c, D, H, W), jnp.float32)
              for kk, c in zip(lat_keys, chans)]

    # query points strictly inside (-1, 1)
    xyz = jax.random.uniform(k_xyz, (N_POINTS, 3), jnp.float32, -0.95, 0.95)
    params = init_params(k_par)

    # glue: concatenate volumes along channels, flatten spatial dims, fold weights.
    vol = jnp.concatenate([l[0] for l in latent], axis=0)   # [704, D, H, W]
    vol_t = vol.reshape(C_TOTAL, DHW).T                     # [DHW, 704]
    folded = fold_params(vol_t, params)                     # done once per volume

    out = jax.block_until_ready(deepsdf_pallas(xyz, *folded))
    assert out.shape == (N_POINTS, 1)

    ref = deepsdf_reference(latent, xyz, params)
    if not jnp.allclose(out, ref, atol=3e-2, rtol=3e-2):
        raise AssertionError("Pallas output does not match JAX reference")

    print("KERNEL_OK")
</pallas_src>

<mosaic_0001>
module attributes {stable_mosaic.version = 11 : i64} {
  func.func @deepsdf_kernel(%arg0: i32, %arg1: memref<256x3xf32, #tpu.memory_space<vmem>>, %arg2: memref<512x256xbf16, #tpu.memory_space<vmem>>, %arg3: memref<3x256xf32, #tpu.memory_space<vmem>>, %arg4: memref<1x256xf32, #tpu.memory_space<vmem>>, %arg5: memref<256x256xbf16, #tpu.memory_space<vmem>>, %arg6: memref<1x256xf32, #tpu.memory_space<vmem>>, %arg7: memref<1x256xf32, #tpu.memory_space<vmem>>, %arg8: memref<1x1xf32, #tpu.memory_space<vmem>>, %arg9: memref<256x1xf32, #tpu.memory_space<vmem>>) attributes {dimension_semantics = [#tpu.dimension_semantics<parallel>], iteration_bounds = array<i64: 1>, scalar_prefetch = 0 : i64, scratch_operands = 0 : i64, tpu.core_type = #tpu.core_type<tc>, window_params = [{transform_indices = @transform_0, window_bounds = array<i64: 256, 3>}, {pipeline_mode = #tpu.pipeline_mode<synchronous>, transform_indices = @transform_1, window_bounds = array<i64: 512, 256>}, {pipeline_mode = #tpu.pipeline_mode<synchronous>, transform_indices = @transform_2, window_bounds = array<i64: 3, 256>}, {pipeline_mode = #tpu.pipeline_mode<synchronous>, transform_indices = @transform_3, window_bounds = array<i64: 1, 256>}, {pipeline_mode = #tpu.pipeline_mode<synchronous>, transform_indices = @transform_4, window_bounds = array<i64: 256, 256>}, {pipeline_mode = #tpu.pipeline_mode<synchronous>, transform_indices = @transform_5, window_bounds = array<i64: 1, 256>}, {pipeline_mode = #tpu.pipeline_mode<synchronous>, transform_indices = @transform_6, window_bounds = array<i64: 1, 256>}, {pipeline_mode = #tpu.pipeline_mode<synchronous>, transform_indices = @transform_7, window_bounds = array<i64: 1, 1>}, {transform_indices = @transform_8, window_bounds = array<i64: 256, 1>}]} {
    %c0 = arith.constant 0 : index
    %c0_0 = arith.constant 0 : index
    %0 = vector.load %arg1[%c0, %c0_0] : memref<256x3xf32, #tpu.memory_space<vmem>>, vector<256x3xf32>
    %1 = vector.extract_strided_slice %0 {offsets = [0, 0], sizes = [256, 1], strides = [1, 1]} : vector<256x3xf32> to vector<256x1xf32>
    %2 = vector.extract_strided_slice %0 {offsets = [0, 1], sizes = [256, 1], strides = [1, 1]} : vector<256x3xf32> to vector<256x1xf32>
    %3 = vector.extract_strided_slice %0 {offsets = [0, 2], sizes = [256, 1], strides = [1, 1]} : vector<256x3xf32> to vector<256x1xf32>
    %cst = arith.constant 1.000000e+00 : f32
    %4 = vector.broadcast %cst : f32 to vector<256x1xf32>
    %5 = arith.addf %1, %4 : vector<256x1xf32>
    %cst_1 = arith.constant 5.000000e-01 : f32
    %6 = vector.broadcast %cst_1 : f32 to vector<256x1xf32>
    %7 = arith.mulf %5, %6 : vector<256x1xf32>
    %cst_2 = arith.constant 7.000000e+00 : f32
    %8 = vector.broadcast %cst_2 : f32 to vector<256x1xf32>
    %9 = arith.mulf %7, %8 : vector<256x1xf32>
    %cst_3 = arith.constant 1.000000e+00 : f32
    %10 = vector.broadcast %cst_3 : f32 to vector<256x1xf32>
    %11 = arith.addf %2, %10 : vector<256x1xf32>
    %cst_4 = arith.constant 5.000000e-01 : f32
    %12 = vector.broadcast %cst_4 : f32 to vector<256x1xf32>
    %13 = arith.mulf %11, %12 : vector<256x1xf32>
    %cst_5 = arith.constant 7.000000e+00 : f32
    %14 = vector.broadcast %cst_5 : f32 to vector<256x1xf32>
    %15 = arith.mulf %13, %14 : vector<256x1xf32>
    %cst_6 = arith.constant 1.000000e+00 : f32
    %16 = vector.broadcast %cst_6 : f32 to vector<256x1xf32>
    %17 = arith.addf %3, %16 : vector<256x1xf32>
    %cst_7 = arith.constant 5.000000e-01 : f32
    %18 = vector.broadcast %cst_7 : f32 to vector<256x1xf32>
    %19 = arith.mulf %17, %18 : vector<256x1xf32>
    %cst_8 = arith.constant 7.000000e+00 : f32
    %20 = vector.broadcast %cst_8 : f32 to vector<256x1xf32>
    %21 = arith.mulf %19, %20 : vector<256x1xf32>
    %22 = math.floor %9 : vector<256x1xf32>
    %23 = math.floor %15 : vector<256x1xf32>
    %24 = math.floor %21 : vector<256x1xf32>
    %25 = arith.subf %9, %22 : vector<256x1xf32>
    %26 = arith.subf %15, %23 : vector<256x1xf32>
    %27 = arith.subf %21, %24 : vector<256x1xf32>
    %28 = arith.fptosi %22 : vector<256x1xf32> to vector<256x1xi32>
    %c0_i32 = arith.constant 0 : i32
    %c7_i32 = arith.constant 7 : i32
    %29 = vector.broadcast %c0_i32 : i32 to vector<256x1xi32>
    %30 = arith.maxsi %29, %28 : vector<256x1xi32>
    %31 = vector.broadcast %c7_i32 : i32 to vector<256x1xi32>
    %32 = arith.minsi %31, %30 : vector<256x1xi32>
    %33 = arith.fptosi %23 : vector<256x1xf32> to vector<256x1xi32>
    %c0_i32_9 = arith.constant 0 : i32
    %c7_i32_10 = arith.constant 7 : i32
    %34 = vector.broadcast %c0_i32_9 : i32 to vector<256x1xi32>
    %35 = arith.maxsi %34, %33 : vector<256x1xi32>
    %36 = vector.broadcast %c7_i32_10 : i32 to vector<256x1xi32>
    %37 = arith.minsi %36, %35 : vector<256x1xi32>
    %38 = arith.fptosi %24 : vector<256x1xf32> to vector<256x1xi32>
    %c0_i32_11 = arith.constant 0 : i32
    %c7_i32_12 = arith.constant 7 : i32
    %39 = vector.broadcast %c0_i32_11 : i32 to vector<256x1xi32>
    %40 = arith.maxsi %39, %38 : vector<256x1xi32>
    %41 = vector.broadcast %c7_i32_12 : i32 to vector<256x1xi32>
    %42 = arith.minsi %41, %40 : vector<256x1xi32>
    %c1_i32 = arith.constant 1 : i32
    %43 = vector.broadcast %c1_i32 : i32 to vector<256x1xi32>
    %44 = arith.addi %32, %43 : vector<256x1xi32>
    %c7_i32_13 = arith.constant 7 : i32
    %45 = vector.broadcast %c7_i32_13 : i32 to vector<256x1xi32>
    %46 = arith.minsi %44, %45 : vector<256x1xi32>
    %c1_i32_14 = arith.constant 1 : i32
    %47 = vector.broadcast %c1_i32_14 : i32 to vector<256x1xi32>
    %48 = arith.addi %37, %47 : vector<256x1xi32>
    %c7_i32_15 = arith.constant 7 : i32
    %49 = vector.broadcast %c7_i32_15 : i32 to vector<256x1xi32>
    %50 = arith.minsi %48, %49 : vector<256x1xi32>
    %c1_i32_16 = arith.constant 1 : i32
    %51 = vector.broadcast %c1_i32_16 : i32 to vector<256x1xi32>
    %52 = arith.addi %42, %51 : vector<256x1xi32>
    %c7_i32_17 = arith.constant 7 : i32
    %53 = vector.broadcast %c7_i32_17 : i32 to vector<256x1xi32>
    %54 = arith.minsi %52, %53 : vector<256x1xi32>
    %55 = tpu.iota {dimensions = array<i32: 1>} : vector<256x512xi32>
    %c7_i32_18 = arith.constant 7 : i32
    %56 = vector.broadcast %c7_i32_18 : i32 to vector<256x512xi32>
    %57 = arith.andi %55, %56 : vector<256x512xi32>
    %c3_i32 = arith.constant 3 : i32
    %58 = vector.broadcast %c3_i32 : i32 to vector<256x512xi32>
    %59 = arith.shrsi %55, %58 : vector<256x512xi32>
    %c7_i32_19 = arith.constant 7 : i32
    %60 = vector.broadcast %c7_i32_19 : i32 to vector<256x512xi32>
    %61 = arith.andi %59, %60 : vector<256x512xi32>
    %c6_i32 = arith.constant 6 : i32
    %62 = vector.broadcast %c6_i32 : i32 to vector<256x512xi32>
    %63 = arith.shrsi %55, %62 : vector<256x512xi32>
    %64 = vector.broadcast %32 : vector<256x1xi32> to vector<256x512xi32>
    %65 = arith.cmpi eq, %57, %64 : vector<256x512xi32>
    %cst_20 = arith.constant 1.000000e+00 : f32
    %66 = vector.broadcast %cst_20 : f32 to vector<256x1xf32>
    %67 = arith.subf %66, %25 : vector<256x1xf32>
    %cst_21 = arith.constant 0.000000e+00 : f32
    %68 = vector.shape_cast %67 : vector<256x1xf32> to vector<256x1xf32>
    %69 = vector.broadcast %68 : vector<256x1xf32> to vector<256x512xf32>
    %70 = vector.broadcast %cst_21 : f32 to vector<256x512xf32>
    %71 = arith.select %65, %69, %70 : vector<256x512xi1>, vector<256x512xf32>
    %72 = vector.broadcast %46 : vector<256x1xi32> to vector<256x512xi32>
    %73 = arith.cmpi eq, %57, %72 : vector<256x512xi32>
    %cst_22 = arith.constant 0.000000e+00 : f32
    %74 = vector.shape_cast %25 : vector<256x1xf32> to vector<256x1xf32>
    %75 = vector.broadcast %74 : vector<256x1xf32> to vector<256x512xf32>
    %76 = vector.broadcast %cst_22 : f32 to vector<256x512xf32>
    %77 = arith.select %73, %75, %76 : vector<256x512xi1>, vector<256x512xf32>
    %78 = arith.addf %71, %77 : vector<256x512xf32>
    %79 = vector.broadcast %37 : vector<256x1xi32> to vector<256x512xi32>
    %80 = arith.cmpi eq, %61, %79 : vector<256x512xi32>
    %cst_23 = arith.constant 1.000000e+00 : f32
    %81 = vector.broadcast %cst_23 : f32 to vector<256x1xf32>
    %82 = arith.subf %81, %26 : vector<256x1xf32>
    %cst_24 = arith.constant 0.000000e+00 : f32
    %83 = vector.shape_cast %82 : vector<256x1xf32> to vector<256x1xf32>
    %84 = vector.broadcast %83 : vector<256x1xf32> to vector<256x512xf32>
    %85 = vector.broadcast %cst_24 : f32 to vector<256x512xf32>
    %86 = arith.select %80, %84, %85 : vector<256x512xi1>, vector<256x512xf32>
    %87 = vector.broadcast %50 : vector<256x1xi32> to vector<256x512xi32>
    %88 = arith.cmpi eq, %61, %87 : vector<256x512xi32>
    %cst_25 = arith.constant 0.000000e+00 : f32
    %89 = vector.shape_cast %26 : vector<256x1xf32> to vector<256x1xf32>
    %90 = vector.broadcast %89 : vector<256x1xf32> to vector<256x512xf32>
    %91 = vector.broadcast %cst_25 : f32 to vector<256x512xf32>
    %92 = arith.select %88, %90, %91 : vector<256x512xi1>, vector<256x512xf32>
    %93 = arith.addf %86, %92 : vector<256x512xf32>
    %94 = vector.broadcast %42 : vector<256x1xi32> to vector<256x512xi32>
    %95 = arith.cmpi eq, %63, %94 : vector<256x512xi32>
    %cst_26 = arith.constant 1.000000e+00 : f32
    %96 = vector.broadcast %cst_26 : f32 to vector<256x1xf32>
    %97 = arith.subf %96, %27 : vector<256x1xf32>
    %cst_27 = arith.constant 0.000000e+00 : f32
    %98 = vector.shape_cast %97 : vector<256x1xf32> to vector<256x1xf32>
    %99 = vector.broadcast %98 : vector<256x1xf32> to vector<256x512xf32>
    %100 = vector.broadcast %cst_27 : f32 to vector<256x512xf32>
    %101 = arith.select %95, %99, %100 : vector<256x512xi1>, vector<256x512xf32>
    %102 = vector.broadcast %54 : vector<256x1xi32> to vector<256x512xi32>
    %103 = arith.cmpi eq, %63, %102 : vector<256x512xi32>
    %cst_28 = arith.constant 0.000000e+00 : f32
    %104 = vector.shape_cast %27 : vector<256x1xf32> to vector<256x1xf32>
    %105 = vector.broadcast %104 : vector<256x1xf32> to vector<256x512xf32>
    %106 = vector.broadcast %cst_28 : f32 to vector<256x512xf32>
    %107 = arith.select %103, %105, %106 : vector<256x512xi1>, vector<256x512xf32>
    %108 = arith.addf %101, %107 : vector<256x512xf32>
    %109 = arith.mulf %78, %93 : vector<256x512xf32>
    %110 = arith.mulf %109, %108 : vector<256x512xf32>
    %111 = arith.truncf %110 : vector<256x512xf32> to vector<256x512xbf16>
    %c0_29 = arith.constant 0 : index
    %c0_30 = arith.constant 0 : index
    %112 = vector.load %arg2[%c0_29, %c0_30] : memref<512x256xbf16, #tpu.memory_space<vmem>>, vector<512x256xbf16>
    %cst_31 = arith.constant dense<0.000000e+00> : vector<256x256xf32>
    %113 = tpu.matmul %111, %112, %cst_31 {dimension_numbers = #tpu.dot_dimension_numbers<[1], [0], [0], [1], [0, 0, 1, 1], [], []>} : vector<256x512xbf16>, vector<512x256xbf16>, vector<256x256xf32> -> vector<256x256xf32>
    %114 = vector.extract_strided_slice %0 {offsets = [0, 0], sizes = [256, 1], strides = [1, 1]} : vector<256x3xf32> to vector<256x1xf32>
    %c0_32 = arith.constant 0 : index
    %c0_33 = arith.constant 0 : index
    %115 = vector.load %arg3[%c0_32, %c0_33] : memref<3x256xf32, #tpu.memory_space<vmem>>, vector<1x256xf32>
    %116 = vector.broadcast %114 : vector<256x1xf32> to vector<256x256xf32>
    %117 = vector.broadcast %115 : vector<1x256xf32> to vector<256x256xf32>
    %118 = arith.mulf %116, %117 : vector<256x256xf32>
    %119 = arith.addf %113, %118 : vector<256x256xf32>
    %120 = vector.extract_strided_slice %0 {offsets = [0, 1], sizes = [256, 1], strides = [1, 1]} : vector<256x3xf32> to vector<256x1xf32>
    %c1 = arith.constant 1 : index
    %c0_34 = arith.constant 0 : index
    %121 = vector.load %arg3[%c1, %c0_34] : memref<3x256xf32, #tpu.memory_space<vmem>>, vector<1x256xf32>
    %122 = vector.broadcast %120 : vector<256x1xf32> to vector<256x256xf32>
    %123 = vector.broadcast %121 : vector<1x256xf32> to vector<256x256xf32>
    %124 = arith.mulf %122, %123 : vector<256x256xf32>
    %125 = arith.addf %119, %124 : vector<256x256xf32>
    %126 = vector.extract_strided_slice %0 {offsets = [0, 2], sizes = [256, 1], strides = [1, 1]} : vector<256x3xf32> to vector<256x1xf32>
    %c2 = arith.constant 2 : index
    %c0_35 = arith.constant 0 : index
    %127 = vector.load %arg3[%c2, %c0_35] : memref<3x256xf32, #tpu.memory_space<vmem>>, vector<1x256xf32>
    %128 = vector.broadcast %126 : vector<256x1xf32> to vector<256x256xf32>
    %129 = vector.broadcast %127 : vector<1x256xf32> to vector<256x256xf32>
    %130 = arith.mulf %128, %129 : vector<256x256xf32>
    %131 = arith.addf %125, %130 : vector<256x256xf32>
    %c0_36 = arith.constant 0 : index
    %c0_37 = arith.constant 0 : index
    %132 = vector.load %arg4[%c0_36, %c0_37] : memref<1x256xf32, #tpu.memory_space<vmem>>, vector<1x256xf32>
    %133 = vector.broadcast %132 : vector<1x256xf32> to vector<256x256xf32>
    %134 = arith.addf %131, %133 : vector<256x256xf32>
    %cst_38 = arith.constant 0.000000e+00 : f32
    %135 = vector.broadcast %cst_38 : f32 to vector<256x256xf32>
    %136 = arith.maximumf %134, %135 : vector<256x256xf32>
    %137 = arith.truncf %136 : vector<256x256xf32> to vector<256x256xbf16>
    %c0_39 = arith.constant 0 : index
    %c0_40 = arith.constant 0 : index
    %138 = vector.load %arg5[%c0_39, %c0_40] : memref<256x256xbf16, #tpu.memory_space<vmem>>, vector<256x256xbf16>
    %cst_41 = arith.constant dense<0.000000e+00> : vector<256x256xf32>
    %139 = tpu.matmul %137, %138, %cst_41 {dimension_numbers = #tpu.dot_dimension_numbers<[1], [0], [0], [1], [0, 0, 1, 1], [], []>} : vector<256x256xbf16>, vector<256x256xbf16>, vector<256x256xf32> -> vector<256x256xf32>
    %c0_42 = arith.constant 0 : index
    %c0_43 = arith.constant 0 : index
    %140 = vector.load %arg6[%c0_42, %c0_43] : memref<1x256xf32, #tpu.memory_space<vmem>>, vector<1x256xf32>
    %141 = vector.broadcast %140 : vector<1x256xf32> to vector<256x256xf32>
    %142 = arith.addf %139, %141 : vector<256x256xf32>
    %cst_44 = arith.constant 0.000000e+00 : f32
    %143 = vector.broadcast %cst_44 : f32 to vector<256x256xf32>
    %144 = arith.maximumf %142, %143 : vector<256x256xf32>
    %c0_45 = arith.constant 0 : index
    %c0_46 = arith.constant 0 : index
    %145 = vector.load %arg7[%c0_45, %c0_46] : memref<1x256xf32, #tpu.memory_space<vmem>>, vector<1x256xf32>
    %146 = vector.broadcast %145 : vector<1x256xf32> to vector<256x256xf32>
    %147 = arith.mulf %144, %146 : vector<256x256xf32>
    %cst_47 = arith.constant dense<0.000000e+00> : vector<256xf32>
    %148 = vector.multi_reduction <add>, %147, %cst_47 [1] : vector<256x256xf32> to vector<256xf32>
    %149 = vector.shape_cast %148 : vector<256xf32> to vector<256x1xf32>
    %c0_48 = arith.constant 0 : index
    %c0_49 = arith.constant 0 : index
    %150 = vector.load %arg8[%c0_48, %c0_49] : memref<1x1xf32, #tpu.memory_space<vmem>>, vector<1x1xf32>
    %151 = vector.broadcast %150 : vector<1x1xf32> to vector<256x1xf32>
    %152 = arith.addf %149, %151 : vector<256x1xf32>
    %153 = math.tanh %152 : vector<256x1xf32>
    %c0_50 = arith.constant 0 : index
    %c0_51 = arith.constant 0 : index
    %154 = vector.load %arg9[%c0_50, %c0_51] : memref<256x1xf32, #tpu.memory_space<vmem>>, vector<256x1xf32>
    tpu.vector_store %arg9[%c0_50, %c0_51], %153 {strides = array<i32>} : memref<256x1xf32, #tpu.memory_space<vmem>>, vector<256x1xf32>,
    return
  }
  func.func @transform_0(%arg0: i32) -> (i32, i32) {
    %c0_i32 = arith.constant 0 : i32
    %c0_i32_0 = arith.constant 0 : i32
    return %arg0, %c0_i32 : i32, i32
  }
  func.func @transform_1(%arg0: i32) -> (i32, i32) {
    %c0_i32 = arith.constant 0 : i32
    %c0_i32_0 = arith.constant 0 : i32
    %c0_i32_1 = arith.constant 0 : i32
    return %c0_i32, %c0_i32_0 : i32, i32
  }
  func.func @transform_2(%arg0: i32) -> (i32, i32) {
    %c0_i32 = arith.constant 0 : i32
    %c0_i32_0 = arith.constant 0 : i32
    %c0_i32_1 = arith.constant 0 : i32
    return %c0_i32, %c0_i32_0 : i32, i32
  }
  func.func @transform_3(%arg0: i32) -> (i32, i32) {
    %c0_i32 = arith.constant 0 : i32
    %c0_i32_0 = arith.constant 0 : i32
    %c0_i32_1 = arith.constant 0 : i32
    return %c0_i32, %c0_i32_0 : i32, i32
  }
  func.func @transform_4(%arg0: i32) -> (i32, i32) {
    %c0_i32 = arith.constant 0 : i32
    %c0_i32_0 = arith.constant 0 : i32
    %c0_i32_1 = arith.constant 0 : i32
    return %c0_i32, %c0_i32_0 : i32, i32
  }
  func.func @transform_5(%arg0: i32) -> (i32, i32) {
    %c0_i32 = arith.constant 0 : i32
    %c0_i32_0 = arith.constant 0 : i32
    %c0_i32_1 = arith.constant 0 : i32
    return %c0_i32, %c0_i32_0 : i32, i32
  }
  func.func @transform_6(%arg0: i32) -> (i32, i32) {
    %c0_i32 = arith.constant 0 : i32
    %c0_i32_0 = arith.constant 0 : i32
    %c0_i32_1 = arith.constant 0 : i32
    return %c0_i32, %c0_i32_0 : i32, i32
  }
  func.func @transform_7(%arg0: i32) -> (i32, i32) {
    %c0_i32 = arith.constant 0 : i32
    %c0_i32_0 = arith.constant 0 : i32
    %c0_i32_1 = arith.constant 0 : i32
    return %c0_i32, %c0_i32_0 : i32, i32
  }
  func.func @transform_8(%arg0: i32) -> (i32, i32) {
    %c0_i32 = arith.constant 0 : i32
    %c0_i32_0 = arith.constant 0 : i32
    return %arg0, %c0_i32 : i32, i32
  }
}

</mosaic_0001>

<llo_original>
// kernel: deepsdf_pallas.1
$region0: #{deepsdf_pallas.1}
  #allocation0 [shape = 'u32[]', space=smem, size = 0x4, offset = 0x4, fixed_abs, tag = 'smem constant byte address 0x4 - core index']
  #allocation1 [shape = 'u32[144,128]{1,0:T(1,128)}', space=vmem, size = 0x12000, scoped, tag = 'internal scratch']
  #allocation2 [shape = 'f32[1,1]{1,0:T(1,128)S(1)}', space=vmem, size = 0x200, scoped, tag = 'scoped memory for deepsdf_pallas.1']
  %s0 = inlined_call_operand.vmem [shape: f32[256,3], index: 0, kind: input, shape index: {}]
  %s1 = inlined_call_operand.hbm [shape: bf16[512,256], index: 1, kind: input, shape index: {}]
  %s2 = inlined_call_operand.vmem [shape: f32[3,256], index: 2, kind: input, shape index: {}]
  %s3 = inlined_call_operand.vmem [shape: f32[1,256], index: 3, kind: input, shape index: {}]
  %s4 = inlined_call_operand.vmem [shape: bf16[256,256], index: 4, kind: input, shape index: {}]
  %s5 = inlined_call_operand.vmem [shape: f32[1,256], index: 5, kind: input, shape index: {}]
  %s6 = inlined_call_operand.vmem [shape: f32[1,256], index: 6, kind: input, shape index: {}]
  %s7 = inlined_call_operand.<no memory space> [shape: f32[1,1], index: 7, kind: input, shape index: {}]
  %s8 = inlined_call_operand.vmem [shape: f32[256,1], index: 8, kind: output, shape index: {}]
  %s9 = sld [smem:[#allocation0]]
  $region46: #{deepsdf_pallas.1} parent=0
    _
  %s11 = ssub.s32 1, %s9
  %s12 = scalar_select 0, %s11, %s9
  %v13 = vstv %s7
  %14 = vst [vmem:[#allocation2] sm:$0x1] %v13
  $region1: #{deepsdf_pallas.1} parent=0
    #allocation3 [shape = 'u8[262144]{0}', space=vmem, size = 0x40000, scoped, tag = 'input window, operand 1, single buffered']
    #allocation4 [shape = 's32[1]{0}', space=sflag, size = 0x4, scoped, tag = 'scoped memory for deepsdf_pallas.1']
    %15 = vsyncpa [#allocation4], 0
    // Predicated region
    $region2: #{deepsdf_pallas.1} parent=1 // pred_check
      _
    $region3: #{deepsdf_pallas.1} parent=1 // pred_check_branch
      %17 = sbr.rel (0) target = $region5
    $region4: #{deepsdf_pallas.1} parent=1 // pred_region
      _
    $region5: #{deepsdf_pallas.1} parent=1 // pred_fallthru
      _
    // Predicated region
    $region6: #{deepsdf_pallas.1} parent=1 // pred_check
      _
    $region7: #{deepsdf_pallas.1} parent=1 // pred_check_branch
      %19 = sbr.rel (0) target = $region9
    $region8: #{deepsdf_pallas.1} parent=1 // pred_region
      %s21 = ssub.s32 8192, 8192
      %22 = vsyncadd [#allocation4], %s21
      %s23 = sshll.u32 [#allocation3], 4
      %s24 = int_to_ptr.vmem [resolvable:$true] %s23
      %29 = dma.hbm_to_vmem [thread:$0]  %s1, 8192, %s24, [#allocation4], 128, 128, 8
    $region9: #{deepsdf_pallas.1} parent=1 // pred_fallthru
      _
    // Predicated region
    $region10: #{deepsdf_pallas.1} parent=1 // pred_check
      _
    $region11: #{deepsdf_pallas.1} parent=1 // pred_check_branch
      %31 = sbr.rel (0) target = $region13
    $region12: #{deepsdf_pallas.1} parent=1 // pred_region
      _
    $region13: #{deepsdf_pallas.1} parent=1 // pred_fallthru
      _
    // Predicated region
    $region14: #{deepsdf_pallas.1} parent=1 // pred_check
      _
    $region15: #{deepsdf_pallas.1} parent=1 // pred_check_branch
      %33 = sbr.rel (0) target = $region17
    $region16: #{deepsdf_pallas.1} parent=1 // pred_region
      _
    $region17: #{deepsdf_pallas.1} parent=1 // pred_fallthru
      _
    // Predicated region
    $region18: #{deepsdf_pallas.1} parent=1 // pred_check
      _
    $region19: #{deepsdf_pallas.1} parent=1 // pred_check_branch
      %35 = sbr.rel (0) target = $region21
    $region20: #{deepsdf_pallas.1} parent=1 // pred_region
      _
    $region21: #{deepsdf_pallas.1} parent=1 // pred_fallthru
      _
    // Predicated region
    $region22: #{deepsdf_pallas.1} parent=1 // pred_check
      _
    $region23: #{deepsdf_pallas.1} parent=1 // pred_check_branch
      %37 = sbr.rel (0) target = $region25
    $region24: #{deepsdf_pallas.1} parent=1 // pred_region
      _
    $region25: #{deepsdf_pallas.1} parent=1 // pred_fallthru
      _
    // Predicated region
    $region26: #{deepsdf_pallas.1} parent=1 // pred_check
      _
    $region27: #{deepsdf_pallas.1} parent=1 // pred_check_branch
      %39 = sbr.rel (0) target = $region29
    $region28: #{deepsdf_pallas.1} parent=1 // pred_region
      _
    $region29: #{deepsdf_pallas.1} parent=1 // pred_fallthru
      _
    // Predicated region
    $region30: #{deepsdf_pallas.1} parent=1 // pred_check
      _
    $region31: #{deepsdf_pallas.1} parent=1 // pred_check_branch
      %41 = sbr.rel (0) target = $region33
    $region32: #{deepsdf_pallas.1} parent=1 // pred_region
      _
    $region33: #{deepsdf_pallas.1} parent=1 // pred_fallthru
      _
    // Predicated region
    $region34: #{deepsdf_pallas.1} parent=1 // pred_check
      _
    $region35: #{deepsdf_pallas.1} parent=1 // pred_check_branch
      %43 = sbr.rel (0) target = $region37
    $region36: #{deepsdf_pallas.1} parent=1 // pred_region
      %44 = dma.done [#allocation4], 8192
    $region37: #{deepsdf_pallas.1} parent=1 // pred_fallthru
      _
    %v45 = vld [vmem:[%s0] sm:$0xff]
    %v46 = vld [vmem:[%s0 + $0x8] sm:$0xff]
    %v47 = vld [vmem:[%s0 + $0x10] sm:$0xff]
    %v48 = vld [vmem:[%s0 + $0x18] sm:$0xff]
    %v49 = vld [vmem:[%s0 + $0x20] sm:$0xff]
    %v50 = vld [vmem:[%s0 + $0x28] sm:$0xff]
    %v51 = vld [vmem:[%s0 + $0x30] sm:$0xff]
    %v52 = vld [vmem:[%s0 + $0x38] sm:$0xff]
    %v53 = vld [vmem:[%s0 + $0x40] sm:$0xff]
    %v54 = vld [vmem:[%s0 + $0x48] sm:$0xff]
    %v55 = vld [vmem:[%s0 + $0x50] sm:$0xff]
    %v56 = vld [vmem:[%s0 + $0x58] sm:$0xff]
    %v57 = vld [vmem:[%s0 + $0x60] sm:$0xff]
    %v58 = vld [vmem:[%s0 + $0x68] sm:$0xff]
    %v59 = vld [vmem:[%s0 + $0x70] sm:$0xff]
    %v60 = vld [vmem:[%s0 + $0x78] sm:$0xff]
    %v61 = vld [vmem:[%s0 + $0x80] sm:$0xff]
    %v62 = vld [vmem:[%s0 + $0x88] sm:$0xff]
    %v63 = vld [vmem:[%s0 + $0x90] sm:$0xff]
    %v64 = vld [vmem:[%s0 + $0x98] sm:$0xff]
    %v65 = vld [vmem:[%s0 + $0xa0] sm:$0xff]
    %v66 = vld [vmem:[%s0 + $0xa8] sm:$0xff]
    %v67 = vld [vmem:[%s0 + $0xb0] sm:$0xff]
    %v68 = vld [vmem:[%s0 + $0xb8] sm:$0xff]
    %v69 = vld [vmem:[%s0 + $0xc0] sm:$0xff]
    %v70 = vld [vmem:[%s0 + $0xc8] sm:$0xff]
    %v71 = vld [vmem:[%s0 + $0xd0] sm:$0xff]
    %v72 = vld [vmem:[%s0 + $0xd8] sm:$0xff]
    %v73 = vld [vmem:[%s0 + $0xe0] sm:$0xff]
    %v74 = vld [vmem:[%s0 + $0xe8] sm:$0xff]
    %v75 = vld [vmem:[%s0 + $0xf0] sm:$0xff]
    %v76 = vld [vmem:[%s0 + $0xf8] sm:$0xff]
    %v77 = vadd.f32 %v45, 1.0
    %v78 = vadd.f32 %v46, 1.0
    %v79 = vadd.f32 %v47, 1.0
    %v80 = vadd.f32 %v48, 1.0
    %v81 = vadd.f32 %v49, 1.0
    %v82 = vadd.f32 %v50, 1.0
    %v83 = vadd.f32 %v51, 1.0
    %v84 = vadd.f32 %v52, 1.0
    %v85 = vadd.f32 %v53, 1.0
    %v86 = vadd.f32 %v54, 1.0
    %v87 = vadd.f32 %v55, 1.0
    %v88 = vadd.f32 %v56, 1.0
    %v89 = vadd.f32 %v57, 1.0
    %v90 = vadd.f32 %v58, 1.0
    %v91 = vadd.f32 %v59, 1.0
    %v92 = vadd.f32 %v60, 1.0
    %v93 = vadd.f32 %v61, 1.0
    %v94 = vadd.f32 %v62, 1.0
    %v95 = vadd.f32 %v63, 1.0
    %v96 = vadd.f32 %v64, 1.0
    %v97 = vadd.f32 %v65, 1.0
    %v98 = vadd.f32 %v66, 1.0
    %v99 = vadd.f32 %v67, 1.0
    %v100 = vadd.f32 %v68, 1.0
    %v101 = vadd.f32 %v69, 1.0
    %v102 = vadd.f32 %v70, 1.0
    %v103 = vadd.f32 %v71, 1.0
    %v104 = vadd.f32 %v72, 1.0
    %v105 = vadd.f32 %v73, 1.0
    %v106 = vadd.f32 %v74, 1.0
    %v107 = vadd.f32 %v75, 1.0
    %v108 = vadd.f32 %v76, 1.0
    %v109 = vmul.f32 %v77, 0.5
    %v110 = vmul.f32 %v78, 0.5
    %v111 = vmul.f32 %v79, 0.5
    %v112 = vmul.f32 %v80, 0.5
    %v113 = vmul.f32 %v81, 0.5
    %v114 = vmul.f32 %v82, 0.5
    %v115 = vmul.f32 %v83, 0.5
    %v116 = vmul.f32 %v84, 0.5
    %v117 = vmul.f32 %v85, 0.5
    %v118 = vmul.f32 %v86, 0.5
    %v119 = vmul.f32 %v87, 0.5
    %v120 = vmul.f32 %v88, 0.5
    %v121 = vmul.f32 %v89, 0.5
    %v122 = vmul.f32 %v90, 0.5
    %v123 = vmul.f32 %v91, 0.5
    %v124 = vmul.f32 %v92, 0.5
    %v125 = vmul.f32 %v93, 0.5
    %v126 = vmul.f32 %v94, 0.5
    %v127 = vmul.f32 %v95, 0.5
    %v128 = vmul.f32 %v96, 0.5
    %v129 = vmul.f32 %v97, 0.5
    %v130 = vmul.f32 %v98, 0.5
    %v131 = vmul.f32 %v99, 0.5
    %v132 = vmul.f32 %v100, 0.5
    %v133 = vmul.f32 %v101, 0.5
    %v134 = vmul.f32 %v102, 0.5
    %v135 = vmul.f32 %v103, 0.5
    %v136 = vmul.f32 %v104, 0.5
    %v137 = vmul.f32 %v105, 0.5
    %v138 = vmul.f32 %v106, 0.5
    %v139 = vmul.f32 %v107, 0.5
    %v140 = vmul.f32 %v108, 0.5
    %v141 = vmul.f32 %v109, 7.0
    %v142 = vmul.f32 %v110, 7.0
    %v143 = vmul.f32 %v111, 7.0
    %v144 = vmul.f32 %v112, 7.0
    %v145 = vmul.f32 %v113, 7.0
    %v146 = vmul.f32 %v114, 7.0
    %v147 = vmul.f32 %v115, 7.0
    %v148 = vmul.f32 %v116, 7.0
    %v149 = vmul.f32 %v117, 7.0
    %v150 = vmul.f32 %v118, 7.0
    %v151 = vmul.f32 %v119, 7.0
    %v152 = vmul.f32 %v120, 7.0
    %v153 = vmul.f32 %v121, 7.0
    %v154 = vmul.f32 %v122, 7.0
    %v155 = vmul.f32 %v123, 7.0
    %v156 = vmul.f32 %v124, 7.0
    %v157 = vmul.f32 %v125, 7.0
    %v158 = vmul.f32 %v126, 7.0
    %v159 = vmul.f32 %v127, 7.0
    %v160 = vmul.f32 %v128, 7.0
    %v161 = vmul.f32 %v129, 7.0
    %v162 = vmul.f32 %v130, 7.0
    %v163 = vmul.f32 %v131, 7.0
    %v164 = vmul.f32 %v132, 7.0
    %v165 = vmul.f32 %v133, 7.0
    %v166 = vmul.f32 %v134, 7.0
    %v167 = vmul.f32 %v135, 7.0
    %v168 = vmul.f32 %v136, 7.0
    %v169 = vmul.f32 %v137, 7.0
    %v170 = vmul.f32 %v138, 7.0
    %v171 = vmul.f32 %v139, 7.0
    %v172 = vmul.f32 %v140, 7.0
    %v173 = vfloor.f32 %v141
    %v174 = vfloor.f32 %v142
    %v175 = vfloor.f32 %v143
    %v176 = vfloor.f32 %v144
    %v177 = vfloor.f32 %v145
    %v178 = vfloor.f32 %v146
    %v179 = vfloor.f32 %v147
    %v180 = vfloor.f32 %v148
    %v181 = vfloor.f32 %v149
    %v182 = vfloor.f32 %v150
    %v183 = vfloor.f32 %v151
    %v184 = vfloor.f32 %v152
    %v185 = vfloor.f32 %v153
    %v186 = vfloor.f32 %v154
    %v187 = vfloor.f32 %v155
    %v188 = vfloor.f32 %v156
    %v189 = vfloor.f32 %v157
    %v190 = vfloor.f32 %v158
    %v191 = vfloor.f32 %v159
    %v192 = vfloor.f32 %v160
    %v193 = vfloor.f32 %v161
    %v194 = vfloor.f32 %v162
    %v195 = vfloor.f32 %v163
    %v196 = vfloor.f32 %v164
    %v197 = vfloor.f32 %v165
    %v198 = vfloor.f32 %v166
    %v199 = vfloor.f32 %v167
    %v200 = vfloor.f32 %v168
    %v201 = vfloor.f32 %v169
    %v202 = vfloor.f32 %v170
    %v203 = vfloor.f32 %v171
    %v204 = vfloor.f32 %v172
    %v205 = vsub.f32 %v141, %v173
    %v206 = vsub.f32 %v142, %v174
    %v207 = vsub.f32 %v143, %v175
    %v208 = vsub.f32 %v144, %v176
    %v209 = vsub.f32 %v145, %v177
    %v210 = vsub.f32 %v146, %v178
    %v211 = vsub.f32 %v147, %v179
    %v212 = vsub.f32 %v148, %v180
    %v213 = vsub.f32 %v149, %v181
    %v214 = vsub.f32 %v150, %v182
    %v215 = vsub.f32 %v151, %v183
    %v216 = vsub.f32 %v152, %v184
    %v217 = vsub.f32 %v153, %v185
    %v218 = vsub.f32 %v154, %v186
    %v219 = vsub.f32 %v155, %v187
    %v220 = vsub.f32 %v156, %v188
    %v221 = vsub.f32 %v157, %v189
    %v222 = vsub.f32 %v158, %v190
    %v223 = vsub.f32 %v159, %v191
    %v224 = vsub.f32 %v160, %v192
    %v225 = vsub.f32 %v161, %v193
    %v226 = vsub.f32 %v162, %v194
    %v227 = vsub.f32 %v163, %v195
    %v228 = vsub.f32 %v164, %v196
    %v229 = vsub.f32 %v165, %v197
    %v230 = vsub.f32 %v166, %v198
    %v231 = vsub.f32 %v167, %v199
    %v232 = vsub.f32 %v168, %v200
    %v233 = vsub.f32 %v169, %v201
    %v234 = vsub.f32 %v170, %v202
    %v235 = vsub.f32 %v171, %v203
    %v236 = vsub.f32 %v172, %v204
    %v237 = vcvt.f32.s32.to.zero.pseudo %v173
    %v238 = vcvt.f32.s32.to.zero.pseudo %v174
    %v239 = vcvt.f32.s32.to.zero.pseudo %v175
    %v240 = vcvt.f32.s32.to.zero.pseudo %v176
    %v241 = vcvt.f32.s32.to.zero.pseudo %v177
    %v242 = vcvt.f32.s32.to.zero.pseudo %v178
    %v243 = vcvt.f32.s32.to.zero.pseudo %v179
    %v244 = vcvt.f32.s32.to.zero.pseudo %v180
    %v245 = vcvt.f32.s32.to.zero.pseudo %v181
    %v246 = vcvt.f32.s32.to.zero.pseudo %v182
    %v247 = vcvt.f32.s32.to.zero.pseudo %v183
    %v248 = vcvt.f32.s32.to.zero.pseudo %v184
    %v249 = vcvt.f32.s32.to.zero.pseudo %v185
    %v250 = vcvt.f32.s32.to.zero.pseudo %v186
    %v251 = vcvt.f32.s32.to.zero.pseudo %v187
    %v252 = vcvt.f32.s32.to.zero.pseudo %v188
    %v253 = vcvt.f32.s32.to.zero.pseudo %v189
    %v254 = vcvt.f32.s32.to.zero.pseudo %v190
    %v255 = vcvt.f32.s32.to.zero.pseudo %v191
    %v256 = vcvt.f32.s32.to.zero.pseudo %v192
    %v257 = vcvt.f32.s32.to.zero.pseudo %v193
    %v258 = vcvt.f32.s32.to.zero.pseudo %v194
    %v259 = vcvt.f32.s32.to.zero.pseudo %v195
    %v260 = vcvt.f32.s32.to.zero.pseudo %v196
    %v261 = vcvt.f32.s32.to.zero.pseudo %v197
    %v262 = vcvt.f32.s32.to.zero.pseudo %v198
    %v263 = vcvt.f32.s32.to.zero.pseudo %v199
    %v264 = vcvt.f32.s32.to.zero.pseudo %v200
    %v265 = vcvt.f32.s32.to.zero.pseudo %v201
    %v266 = vcvt.f32.s32.to.zero.pseudo %v202
    %v267 = vcvt.f32.s32.to.zero.pseudo %v203
    %v268 = vcvt.f32.s32.to.zero.pseudo %v204
    %vm269 = vcmp.gt.s32.totalorder %v237, 0
    %v270 = vsel %vm269, %v237, 0
    %vm271 = vcmp.gt.s32.totalorder %v238, 0
    %v272 = vsel %vm271, %v238, 0
    %vm273 = vcmp.gt.s32.totalorder %v239, 0
    %v274 = vsel %vm273, %v239, 0
    %vm275 = vcmp.gt.s32.totalorder %v240, 0
    %v276 = vsel %vm275, %v240, 0
    %vm277 = vcmp.gt.s32.totalorder %v241, 0
    %v278 = vsel %vm277, %v241, 0
    %vm279 = vcmp.gt.s32.totalorder %v242, 0
    %v280 = vsel %vm279, %v242, 0
    %vm281 = vcmp.gt.s32.totalorder %v243, 0
    %v282 = vsel %vm281, %v243, 0
    %vm283 = vcmp.gt.s32.totalorder %v244, 0
    %v284 = vsel %vm283, %v244, 0
    %vm285 = vcmp.gt.s32.totalorder %v245, 0
    %v286 = vsel %vm285, %v245, 0
    %vm287 = vcmp.gt.s32.totalorder %v246, 0
    %v288 = vsel %vm287, %v246, 0
    %vm289 = vcmp.gt.s32.totalorder %v247, 0
    %v290 = vsel %vm289, %v247, 0
    %vm291 = vcmp.gt.s32.totalorder %v248, 0
    %v292 = vsel %vm291, %v248, 0
    %vm293 = vcmp.gt.s32.totalorder %v249, 0
    %v294 = vsel %vm293, %v249, 0
    %vm295 = vcmp.gt.s32.totalorder %v250, 0
    %v296 = vsel %vm295, %v250, 0
    %vm297 = vcmp.gt.s32.totalorder %v251, 0
    %v298 = vsel %vm297, %v251, 0
    %vm299 = vcmp.gt.s32.totalorder %v252, 0
    %v300 = vsel %vm299, %v252, 0
    %vm301 = vcmp.gt.s32.totalorder %v253, 0
    %v302 = vsel %vm301, %v253, 0
    %vm303 = vcmp.gt.s32.totalorder %v254, 0
    %v304 = vsel %vm303, %v254, 0
    %vm305 = vcmp.gt.s32.totalorder %v255, 0
    %v306 = vsel %vm305, %v255, 0
    %vm307 = vcmp.gt.s32.totalorder %v256, 0
    %v308 = vsel %vm307, %v256, 0
    %vm309 = vcmp.gt.s32.totalorder %v257, 0
    %v310 = vsel %vm309, %v257, 0
    %vm311 = vcmp.gt.s32.totalorder %v258, 0
    %v312 = vsel %vm311, %v258, 0
    %vm313 = vcmp.gt.s32.totalorder %v259, 0
    %v314 = vsel %vm313, %v259, 0
    %vm315 = vcmp.gt.s32.totalorder %v260, 0
    %v316 = vsel %vm315, %v260, 0
    %vm317 = vcmp.gt.s32.totalorder %v261, 0
    %v318 = vsel %vm317, %v261, 0
    %vm319 = vcmp.gt.s32.totalorder %v262, 0
    %v320 = vsel %vm319, %v262, 0
    %vm321 = vcmp.gt.s32.totalorder %v263, 0
    %v322 = vsel %vm321, %v263, 0
    %vm323 = vcmp.gt.s32.totalorder %v264, 0
    %v324 = vsel %vm323, %v264, 0
    %vm325 = vcmp.gt.s32.totalorder %v265, 0
    %v326 = vsel %vm325, %v265, 0
    %vm327 = vcmp.gt.s32.totalorder %v266, 0
    %v328 = vsel %vm327, %v266, 0
    %vm329 = vcmp.gt.s32.totalorder %v267, 0
    %v330 = vsel %vm329, %v267, 0
    %vm331 = vcmp.gt.s32.totalorder %v268, 0
    %v332 = vsel %vm331, %v268, 0
    %vm333 = vcmp.lt.s32.totalorder %v270, 7
    %v334 = vsel %vm333, %v270, 7
    %vm335 = vcmp.lt.s32.totalorder %v272, 7
    %v336 = vsel %vm335, %v272, 7
    %vm337 = vcmp.lt.s32.totalorder %v274, 7
    %v338 = vsel %vm337, %v274, 7
    %vm339 = vcmp.lt.s32.totalorder %v276, 7
    %v340 = vsel %vm339, %v276, 7
    %vm341 = vcmp.lt.s32.totalorder %v278, 7
    %v342 = vsel %vm341, %v278, 7
    %vm343 = vcmp.lt.s32.totalorder %v280, 7
    %v344 = vsel %vm343, %v280, 7
    %vm345 = vcmp.lt.s32.totalorder %v282, 7
    %v346 = vsel %vm345, %v282, 7
    %vm347 = vcmp.lt.s32.totalorder %v284, 7
    %v348 = vsel %vm347, %v284, 7
    %vm349 = vcmp.lt.s32.totalorder %v286, 7
    %v350 = vsel %vm349, %v286, 7
    %vm351 = vcmp.lt.s32.totalorder %v288, 7
    %v352 = vsel %vm351, %v288, 7
    %vm353 = vcmp.lt.s32.totalorder %v290, 7
    %v354 = vsel %vm353, %v290, 7
    %vm355 = vcmp.lt.s32.totalorder %v292, 7
    %v356 = vsel %vm355, %v292, 7
    %vm357 = vcmp.lt.s32.totalorder %v294, 7
    %v358 = vsel %vm357, %v294, 7
    %vm359 = vcmp.lt.s32.totalorder %v296, 7
    %v360 = vsel %vm359, %v296, 7
    %vm361 = vcmp.lt.s32.totalorder %v298, 7
    %v362 = vsel %vm361, %v298, 7
    %vm363 = vcmp.lt.s32.totalorder %v300, 7
    %v364 = vsel %vm363, %v300, 7
    %vm365 = vcmp.lt.s32.totalorder %v302, 7
    %v366 = vsel %vm365, %v302, 7
    %vm367 = vcmp.lt.s32.totalorder %v304, 7
    %v368 = vsel %vm367, %v304, 7
    %vm369 = vcmp.lt.s32.totalorder %v306, 7
    %v370 = vsel %vm369, %v306, 7
    %vm371 = vcmp.lt.s32.totalorder %v308, 7
    %v372 = vsel %vm371, %v308, 7
    %vm373 = vcmp.lt.s32.totalorder %v310, 7
    %v374 = vsel %vm373, %v310, 7
    %vm375 = vcmp.lt.s32.totalorder %v312, 7
    %v376 = vsel %vm375, %v312, 7
    %vm377 = vcmp.lt.s32.totalorder %v314, 7
    %v378 = vsel %vm377, %v314, 7
    %vm379 = vcmp.lt.s32.totalorder %v316, 7
    %v380 = vsel %vm379, %v316, 7
    %vm381 = vcmp.lt.s32.totalorder %v318, 7
    %v382 = vsel %vm381, %v318, 7
    %vm383 = vcmp.lt.s32.totalorder %v320, 7
    %v384 = vsel %vm383, %v320, 7
    %vm385 = vcmp.lt.s32.totalorder %v322, 7
    %v386 = vsel %vm385, %v322, 7
    %vm387 = vcmp.lt.s32.totalorder %v324, 7
    %v388 = vsel %vm387, %v324, 7
    %vm389 = vcmp.lt.s32.totalorder %v326, 7
    %v390 = vsel %vm389, %v326, 7
    %vm391 = vcmp.lt.s32.totalorder %v328, 7
    %v392 = vsel %vm391, %v328, 7
    %vm393 = vcmp.lt.s32.totalorder %v330, 7
    %v394 = vsel %vm393, %v330, 7
    %vm395 = vcmp.lt.s32.totalorder %v332, 7
    %v396 = vsel %vm395, %v332, 7
    %v397 = vadd.s32 %v334, 1
    %v398 = vadd.s32 %v336, 1
    %v399 = vadd.s32 %v338, 1
    %v400 = vadd.s32 %v340, 1
    %v401 = vadd.s32 %v342, 1
    %v402 = vadd.s32 %v344, 1
    %v403 = vadd.s32 %v346, 1
    %v404 = vadd.s32 %v348, 1
    %v405 = vadd.s32 %v350, 1
    %v406 = vadd.s32 %v352, 1
    %v407 = vadd.s32 %v354, 1
    %v408 = vadd.s32 %v356, 1
    %v409 = vadd.s32 %v358, 1
    %v410 = vadd.s32 %v360, 1
    %v411 = vadd.s32 %v362, 1
    %v412 = vadd.s32 %v364, 1
    %v413 = vadd.s32 %v366, 1
    %v414 = vadd.s32 %v368, 1
    %v415 = vadd.s32 %v370, 1
    %v416 = vadd.s32 %v372, 1
    %v417 = vadd.s32 %v374, 1
    %v418 = vadd.s32 %v376, 1
    %v419 = vadd.s32 %v378, 1
    %v420 = vadd.s32 %v380, 1
    %v421 = vadd.s32 %v382, 1
    %v422 = vadd.s32 %v384, 1
    %v423 = vadd.s32 %v386, 1
    %v424 = vadd.s32 %v388, 1
    %v425 = vadd.s32 %v390, 1
    %v426 = vadd.s32 %v392, 1
    %v427 = vadd.s32 %v394, 1
    %v428 = vadd.s32 %v396, 1
    %vm429 = vcmp.lt.s32.totalorder %v397, 7
    %v430 = vsel %vm429, %v397, 7
    %vm431 = vcmp.lt.s32.totalorder %v398, 7
    %v432 = vsel %vm431, %v398, 7
    %vm433 = vcmp.lt.s32.totalorder %v399, 7
    %v434 = vsel %vm433, %v399, 7
    %vm435 = vcmp.lt.s32.totalorder %v400, 7
    %v436 = vsel %vm435, %v400, 7
    %vm437 = vcmp.lt.s32.totalorder %v401, 7
    %v438 = vsel %vm437, %v401, 7
    %vm439 = vcmp.lt.s32.totalorder %v402, 7
    %v440 = vsel %vm439, %v402, 7
    %vm441 = vcmp.lt.s32.totalorder %v403, 7
    %v442 = vsel %vm441, %v403, 7
    %vm443 = vcmp.lt.s32.totalorder %v404, 7
    %v444 = vsel %vm443, %v404, 7
    %vm445 = vcmp.lt.s32.totalorder %v405, 7
    %v446 = vsel %vm445, %v405, 7
    %vm447 = vcmp.lt.s32.totalorder %v406, 7
    %v448 = vsel %vm447, %v406, 7
    %vm449 = vcmp.lt.s32.totalorder %v407, 7
    %v450 = vsel %vm449, %v407, 7
    %vm451 = vcmp.lt.s32.totalorder %v408, 7
    %v452 = vsel %vm451, %v408, 7
    %vm453 = vcmp.lt.s32.totalorder %v409, 7
    %v454 = vsel %vm453, %v409, 7
    %vm455 = vcmp.lt.s32.totalorder %v410, 7
    %v456 = vsel %vm455, %v410, 7
    %vm457 = vcmp.lt.s32.totalorder %v411, 7
    %v458 = vsel %vm457, %v411, 7
    %vm459 = vcmp.lt.s32.totalorder %v412, 7
    %v460 = vsel %vm459, %v412, 7
    %vm461 = vcmp.lt.s32.totalorder %v413, 7
    %v462 = vsel %vm461, %v413, 7
    %vm463 = vcmp.lt.s32.totalorder %v414, 7
    %v464 = vsel %vm463, %v414, 7
    %vm465 = vcmp.lt.s32.totalorder %v415, 7
    %v466 = vsel %vm465, %v415, 7
    %vm467 = vcmp.lt.s32.totalorder %v416, 7
    %v468 = vsel %vm467, %v416, 7
    %vm469 = vcmp.lt.s32.totalorder %v417, 7
    %v470 = vsel %vm469, %v417, 7
    %vm471 = vcmp.lt.s32.totalorder %v418, 7
    %v472 = vsel %vm471, %v418, 7
    %vm473 = vcmp.lt.s32.totalorder %v419, 7
    %v474 = vsel %vm473, %v419, 7
    %vm475 = vcmp.lt.s32.totalorder %v420, 7
    %v476 = vsel %vm475, %v420, 7
    %vm477 = vcmp.lt.s32.totalorder %v421, 7
    %v478 = vsel %vm477, %v421, 7
    %vm479 = vcmp.lt.s32.totalorder %v422, 7
    %v480 = vsel %vm479, %v422, 7
    %vm481 = vcmp.lt.s32.totalorder %v423, 7
    %v482 = vsel %vm481, %v423, 7
    %vm483 = vcmp.lt.s32.totalorder %v424, 7
    %v484 = vsel %vm483, %v424, 7
    %vm485 = vcmp.lt.s32.totalorder %v425, 7
    %v486 = vsel %vm485, %v425, 7
    %vm487 = vcmp.lt.s32.totalorder %v426, 7
    %v488 = vsel %vm487, %v426, 7
    %vm489 = vcmp.lt.s32.totalorder %v427, 7
    %v490 = vsel %vm489, %v427, 7
    %vm491 = vcmp.lt.s32.totalorder %v428, 7
    %v492 = vsel %vm491, %v428, 7
    %v493 = vlaneseq
    %v494 = vand.u32 %v493, 127
    %v495 = vadd.s32 %v494, 128
    %v496 = vadd.s32 %v494, 256
    %v497 = vadd.s32 %v494, 384
    %v498 = vand.u32 %v494, 7
    %v499 = vand.u32 %v495, 7
    %v500 = vand.u32 %v496, 7
    %v501 = vand.u32 %v497, 7
    %v502 = vshra.s32 %v494, 3
    %v503 = vshra.s32 %v495, 3
    %v504 = vshra.s32 %v496, 3
    %v505 = vshra.s32 %v497, 3
    %v506 = vand.u32 %v502, 7
    %v507 = vand.u32 %v503, 7
    %v508 = vand.u32 %v504, 7
    %v509 = vand.u32 %v505, 7
    %v510 = vshra.s32 %v494, 6
    %v511 = vshra.s32 %v495, 6
    %v512 = vshra.s32 %v496, 6
    %v513 = vshra.s32 %v497, 6
    %514 = vset.pattern.permute.xlu0 0
    %515 = vperm.xlu0 %514, %v334
    %v516 = vpop.permute.xlu0 %515
    %517 = vset.pattern.permute.xlu0 0
    %518 = vperm.xlu0 %517, %v336
    %v519 = vpop.permute.xlu0 %518
    %520 = vset.pattern.permute.xlu0 0
    %521 = vperm.xlu0 %520, %v338
    %v522 = vpop.permute.xlu0 %521
    %523 = vset.pattern.permute.xlu0 0
    %524 = vperm.xlu0 %523, %v340
    %v525 = vpop.permute.xlu0 %524
    %526 = vset.pattern.permute.xlu0 0
    %527 = vperm.xlu0 %526, %v342
    %v528 = vpop.permute.xlu0 %527
    %529 = vset.pattern.permute.xlu0 0
    %530 = vperm.xlu0 %529, %v344
    %v531 = vpop.permute.xlu0 %530
    %532 = vset.pattern.permute.xlu0 0
    %533 = vperm.xlu0 %532, %v346
    %v534 = vpop.permute.xlu0 %533
    %535 = vset.pattern.permute.xlu0 0
    %536 = vperm.xlu0 %535, %v348
    %v537 = vpop.permute.xlu0 %536
    %538 = vset.pattern.permute.xlu0 0
    %539 = vperm.xlu0 %538, %v350
    %v540 = vpop.permute.xlu0 %539
    %541 = vset.pattern.permute.xlu0 0
    %542 = vperm.xlu0 %541, %v352
    %v543 = vpop.permute.xlu0 %542
    %544 = vset.pattern.permute.xlu0 0
    %545 = vperm.xlu0 %544, %v354
    %v546 = vpop.permute.xlu0 %545
    %547 = vset.pattern.permute.xlu0 0
    %548 = vperm.xlu0 %547, %v356
    %v549 = vpop.permute.xlu0 %548
    %550 = vset.pattern.permute.xlu0 0
    %551 = vperm.xlu0 %550, %v358
    %v552 = vpop.permute.xlu0 %551
    %553 = vset.pattern.permute.xlu0 0
    %554 = vperm.xlu0 %553, %v360
    %v555 = vpop.permute.xlu0 %554
    %556 = vset.pattern.permute.xlu0 0
    %557 = vperm.xlu0 %556, %v362
    %v558 = vpop.permute.xlu0 %557
    %559 = vset.pattern.permute.xlu0 0
    %560 = vperm.xlu0 %559, %v364
    %v561 = vpop.permute.xlu0 %560
    %562 = vset.pattern.permute.xlu0 0
    %563 = vperm.xlu0 %562, %v366
    %v564 = vpop.permute.xlu0 %563
    %565 = vset.pattern.permute.xlu0 0
    %566 = vperm.xlu0 %565, %v368
    %v567 = vpop.permute.xlu0 %566
    %568 = vset.pattern.permute.xlu0 0
    %569 = vperm.xlu0 %568, %v370
    %v570 = vpop.permute.xlu0 %569
    %571 = vset.pattern.permute.xlu0 0
    %572 = vperm.xlu0 %571, %v372
    %v573 = vpop.permute.xlu0 %572
    %574 = vset.pattern.permute.xlu0 0
    %575 = vperm.xlu0 %574, %v374
    %v576 = vpop.permute.xlu0 %575
    %577 = vset.pattern.permute.xlu0 0
    %578 = vperm.xlu0 %577, %v376
    %v579 = vpop.permute.xlu0 %578
    %580 = vset.pattern.permute.xlu0 0
    %581 = vperm.xlu0 %580, %v378
    %v582 = vpop.permute.xlu0 %581
    %583 = vset.pattern.permute.xlu0 0
    %584 = vperm.xlu0 %583, %v380
    %v585 = vpop.permute.xlu0 %584
    %586 = vset.pattern.permute.xlu0 0
    %587 = vperm.xlu0 %586, %v382
    %v588 = vpop.permute.xlu0 %587
    %589 = vset.pattern.permute.xlu0 0
    %590 = vperm.xlu0 %589, %v384
    %v591 = vpop.permute.xlu0 %590
    %592 = vset.pattern.permute.xlu0 0
    %593 = vperm.xlu0 %592, %v386
    %v594 = vpop.permute.xlu0 %593
    %595 = vset.pattern.permute.xlu0 0
    %596 = vperm.xlu0 %595, %v388
    %v597 = vpop.permute.xlu0 %596
    %598 = vset.pattern.permute.xlu0 0
    %599 = vperm.xlu0 %598, %v390
    %v600 = vpop.permute.xlu0 %599
    %601 = vset.pattern.permute.xlu0 0
    %602 = vperm.xlu0 %601, %v392
    %v603 = vpop.permute.xlu0 %602
    %604 = vset.pattern.permute.xlu0 0
    %605 = vperm.xlu0 %604, %v394
    %v606 = vpop.permute.xlu0 %605
    %607 = vset.pattern.permute.xlu0 0
    %608 = vperm.xlu0 %607, %v396
    %v609 = vpop.permute.xlu0 %608
    %vm610 = vcmp.eq.s32.totalorder %v498, %v516
    %vm611 = vcmp.eq.s32.totalorder %v499, %v516
    %vm612 = vcmp.eq.s32.totalorder %v500, %v516
    %vm613 = vcmp.eq.s32.totalorder %v501, %v516
    %vm614 = vcmp.eq.s32.totalorder %v498, %v519
    %vm615 = vcmp.eq.s32.totalorder %v499, %v519
    %vm616 = vcmp.eq.s32.totalorder %v500, %v519
    %vm617 = vcmp.eq.s32.totalorder %v501, %v519
    %vm618 = vcmp.eq.s32.totalorder %v498, %v522
    %vm619 = vcmp.eq.s32.totalorder %v499, %v522
    %vm620 = vcmp.eq.s32.totalorder %v500, %v522
    %vm621 = vcmp.eq.s32.totalorder %v501, %v522
    %vm622 = vcmp.eq.s32.totalorder %v498, %v525
    %vm623 = vcmp.eq.s32.totalorder %v499, %v525
    %vm624 = vcmp.eq.s32.totalorder %v500, %v525
    %vm625 = vcmp.eq.s32.totalorder %v501, %v525
    %vm626 = vcmp.eq.s32.totalorder %v498, %v528
    %vm627 = vcmp.eq.s32.totalorder %v499, %v528
    %vm628 = vcmp.eq.s32.totalorder %v500, %v528
    %vm629 = vcmp.eq.s32.totalorder %v501, %v528
    %vm630 = vcmp.eq.s32.totalorder %v498, %v531
    %vm631 = vcmp.eq.s32.totalorder %v499, %v531
    %vm632 = vcmp.eq.s32.totalorder %v500, %v531
    %vm633 = vcmp.eq.s32.totalorder %v501, %v531
    %vm634 = vcmp.eq.s32.totalorder %v498, %v534
    %vm635 = vcmp.eq.s32.totalorder %v499, %v534
    %vm636 = vcmp.eq.s32.totalorder %v500, %v534
    %vm637 = vcmp.eq.s32.totalorder %v501, %v534
    %vm638 = vcmp.eq.s32.totalorder %v498, %v537
    %vm639 = vcmp.eq.s32.totalorder %v499, %v537
    %vm640 = vcmp.eq.s32.totalorder %v500, %v537
    %vm641 = vcmp.eq.s32.totalorder %v501, %v537
    %vm642 = vcmp.eq.s32.totalorder %v498, %v540
    %vm643 = vcmp.eq.s32.totalorder %v499, %v540
    %vm644 = vcmp.eq.s32.totalorder %v500, %v540
    %vm645 = vcmp.eq.s32.totalorder %v501, %v540
    %vm646 = vcmp.eq.s32.totalorder %v498, %v543
    %vm647 = vcmp.eq.s32.totalorder %v499, %v543
    %vm648 = vcmp.eq.s32.totalorder %v500, %v543
    %vm649 = vcmp.eq.s32.totalorder %v501, %v543
    %vm650 = vcmp.eq.s32.totalorder %v498, %v546
    %vm651 = vcmp.eq.s32.totalorder %v499, %v546
    %vm652 = vcmp.eq.s32.totalorder %v500, %v546
    %vm653 = vcmp.eq.s32.totalorder %v501, %v546
    %vm654 = vcmp.eq.s32.totalorder %v498, %v549
    %vm655 = vcmp.eq.s32.totalorder %v499, %v549
    %vm656 = vcmp.eq.s32.totalorder %v500, %v549
    %vm657 = vcmp.eq.s32.totalorder %v501, %v549
    %vm658 = vcmp.eq.s32.totalorder %v498, %v552
    %vm659 = vcmp.eq.s32.totalorder %v499, %v552
    %vm660 = vcmp.eq.s32.totalorder %v500, %v552
    %vm661 = vcmp.eq.s32.totalorder %v501, %v552
    %vm662 = vcmp.eq.s32.totalorder %v498, %v555
    %vm663 = vcmp.eq.s32.totalorder %v499, %v555
    %vm664 = vcmp.eq.s32.totalorder %v500, %v555
    %vm665 = vcmp.eq.s32.totalorder %v501, %v555
    %vm666 = vcmp.eq.s32.totalorder %v498, %v558
    %vm667 = vcmp.eq.s32.totalorder %v499, %v558
    %vm668 = vcmp.eq.s32.totalorder %v500, %v558
    %vm669 = vcmp.eq.s32.totalorder %v501, %v558
    %vm670 = vcmp.eq.s32.totalorder %v498, %v561
    %vm671 = vcmp.eq.s32.totalorder %v499, %v561
    %vm672 = vcmp.eq.s32.totalorder %v500, %v561
    %vm673 = vcmp.eq.s32.totalorder %v501, %v561
    %vm674 = vcmp.eq.s32.totalorder %v498, %v564
    %vm675 = vcmp.eq.s32.totalorder %v499, %v564
    %vm676 = vcmp.eq.s32.totalorder %v500, %v564
    %vm677 = vcmp.eq.s32.totalorder %v501, %v564
    %vm678 = vcmp.eq.s32.totalorder %v498, %v567
    %vm679 = vcmp.eq.s32.totalorder %v499, %v567
    %vm680 = vcmp.eq.s32.totalorder %v500, %v567
    %vm681 = vcmp.eq.s32.totalorder %v501, %v567
    %vm682 = vcmp.eq.s32.totalorder %v498, %v570
    %vm683 = vcmp.eq.s32.totalorder %v499, %v570
    %vm684 = vcmp.eq.s32.totalorder %v500, %v570
    %vm685 = vcmp.eq.s32.totalorder %v501, %v570
    %vm686 = vcmp.eq.s32.totalorder %v498, %v573
    %vm687 = vcmp.eq.s32.totalorder %v499, %v573
    %vm688 = vcmp.eq.s32.totalorder %v500, %v573
    %vm689 = vcmp.eq.s32.totalorder %v501, %v573
    %vm690 = vcmp.eq.s32.totalorder %v498, %v576
    %vm691 = vcmp.eq.s32.totalorder %v499, %v576
    %vm692 = vcmp.eq.s32.totalorder %v500, %v576
    %vm693 = vcmp.eq.s32.totalorder %v501, %v576
    %vm694 = vcmp.eq.s32.totalorder %v498, %v579
    %vm695 = vcmp.eq.s32.totalorder %v499, %v579
    %vm696 = vcmp.eq.s32.totalorder %v500, %v579
    %vm697 = vcmp.eq.s32.totalorder %v501, %v579
    %vm698 = vcmp.eq.s32.totalorder %v498, %v582
    %vm699 = vcmp.eq.s32.totalorder %v499, %v582
    %vm700 = vcmp.eq.s32.totalorder %v500, %v582
    %vm701 = vcmp.eq.s32.totalorder %v501, %v582
    %vm702 = vcmp.eq.s32.totalorder %v498, %v585
    %vm703 = vcmp.eq.s32.totalorder %v499, %v585
    %vm704 = vcmp.eq.s32.totalorder %v500, %v585
    %vm705 = vcmp.eq.s32.totalorder %v501, %v585
    %vm706 = vcmp.eq.s32.totalorder %v498, %v588
    %vm707 = vcmp.eq.s32.totalorder %v499, %v588
    %vm708 = vcmp.eq.s32.totalorder %v500, %v588
    %vm709 = vcmp.eq.s32.totalorder %v501, %v588
    %vm710 = vcmp.eq.s32.totalorder %v498, %v591
    %vm711 = vcmp.eq.s32.totalorder %v499, %v591
    %vm712 = vcmp.eq.s32.totalorder %v500, %v591
    %vm713 = vcmp.eq.s32.totalorder %v501, %v591
    %vm714 = vcmp.eq.s32.totalorder %v498, %v594
    %vm715 = vcmp.eq.s32.totalorder %v499, %v594
    %vm716 = vcmp.eq.s32.totalorder %v500, %v594
    %vm717 = vcmp.eq.s32.totalorder %v501, %v594
    %vm718 = vcmp.eq.s32.totalorder %v498, %v597
    %vm719 = vcmp.eq.s32.totalorder %v499, %v597
    %vm720 = vcmp.eq.s32.totalorder %v500, %v597
    %vm721 = vcmp.eq.s32.totalorder %v501, %v597
    %vm722 = vcmp.eq.s32.totalorder %v498, %v600
    %vm723 = vcmp.eq.s32.totalorder %v499, %v600
    %vm724 = vcmp.eq.s32.totalorder %v500, %v600
    %vm725 = vcmp.eq.s32.totalorder %v501, %v600
    %vm726 = vcmp.eq.s32.totalorder %v498, %v603
    %vm727 = vcmp.eq.s32.totalorder %v499, %v603
    %vm728 = vcmp.eq.s32.totalorder %v500, %v603
    %vm729 = vcmp.eq.s32.totalorder %v501, %v603
    %vm730 = vcmp.eq.s32.totalorder %v498, %v606
    %vm731 = vcmp.eq.s32.totalorder %v499, %v606
    %vm732 = vcmp.eq.s32.totalorder %v500, %v606
    %vm733 = vcmp.eq.s32.totalorder %v501, %v606
    %vm734 = vcmp.eq.s32.totalorder %v498, %v609
    %vm735 = vcmp.eq.s32.totalorder %v499, %v609
    %vm736 = vcmp.eq.s32.totalorder %v500, %v609
    %vm737 = vcmp.eq.s32.totalorder %v501, %v609
    %v738 = vsub.f32 1.0, %v205
    %v739 = vsub.f32 1.0, %v206
    %v740 = vsub.f32 1.0, %v207
    %v741 = vsub.f32 1.0, %v208
    %v742 = vsub.f32 1.0, %v209
    %v743 = vsub.f32 1.0, %v210
    %v744 = vsub.f32 1.0, %v211
    %v745 = vsub.f32 1.0, %v212
    %v746 = vsub.f32 1.0, %v213
    %v747 = vsub.f32 1.0, %v214
    %v748 = vsub.f32 1.0, %v215
    %v749 = vsub.f32 1.0, %v216
    %v750 = vsub.f32 1.0, %v217
    %v751 = vsub.f32 1.0, %v218
    %v752 = vsub.f32 1.0, %v219
    %v753 = vsub.f32 1.0, %v220
    %v754 = vsub.f32 1.0, %v221
    %v755 = vsub.f32 1.0, %v222
    %v756 = vsub.f32 1.0, %v223
    %v757 = vsub.f32 1.0, %v224
    %v758 = vsub.f32 1.0, %v225
    %v759 = vsub.f32 1.0, %v226
    %v760 = vsub.f32 1.0, %v227
    %v761 = vsub.f32 1.0, %v228
    %v762 = vsub.f32 1.0, %v229
    %v763 = vsub.f32 1.0, %v230
    %v764 = vsub.f32 1.0, %v231
    %v765 = vsub.f32 1.0, %v232
    %v766 = vsub.f32 1.0, %v233
    %v767 = vsub.f32 1.0, %v234
    %v768 = vsub.f32 1.0, %v235
    %v769 = vsub.f32 1.0, %v236
    %771 = vset.pattern.permute.xlu0 0
    %772 = vperm.xlu0 %771, %v738
    %v773 = vpop.permute.xlu0 %772
    %776 = vset.pattern.permute.xlu0 0
    %777 = vperm.xlu0 %776, %v739
    %v778 = vpop.permute.xlu0 %777
    %781 = vset.pattern.permute.xlu0 0
    %782 = vperm.xlu0 %781, %v740
    %v783 = vpop.permute.xlu0 %782
    %786 = vset.pattern.permute.xlu0 0
    %787 = vperm.xlu0 %786, %v741
    %v788 = vpop.permute.xlu0 %787
    %791 = vset.pattern.permute.xlu0 0
    %792 = vperm.xlu0 %791, %v742
    %v793 = vpop.permute.xlu0 %792
    %796 = vset.pattern.permute.xlu0 0
    %797 = vperm.xlu0 %796, %v743
    %v798 = vpop.permute.xlu0 %797
    %801 = vset.pattern.permute.xlu0 0
    %802 = vperm.xlu0 %801, %v744
    %v803 = vpop.permute.xlu0 %802
    %806 = vset.pattern.permute.xlu0 0
    %807 = vperm.xlu0 %806, %v745
    %v808 = vpop.permute.xlu0 %807
    %811 = vset.pattern.permute.xlu0 0
    %812 = vperm.xlu0 %811, %v746
    %v813 = vpop.permute.xlu0 %812
    %816 = vset.pattern.permute.xlu0 0
    %817 = vperm.xlu0 %816, %v747
    %v818 = vpop.permute.xlu0 %817
    %821 = vset.pattern.permute.xlu0 0
    %822 = vperm.xlu0 %821, %v748
    %v823 = vpop.permute.xlu0 %822
    %826 = vset.pattern.permute.xlu0 0
    %827 = vperm.xlu0 %826, %v749
    %v828 = vpop.permute.xlu0 %827
    %831 = vset.pattern.permute.xlu0 0
    %832 = vperm.xlu0 %831, %v750
    %v833 = vpop.permute.xlu0 %832
    %836 = vset.pattern.permute.xlu0 0
    %837 = vperm.xlu0 %836, %v751
    %v838 = vpop.permute.xlu0 %837
    %841 = vset.pattern.permute.xlu0 0
    %842 = vperm.xlu0 %841, %v752
    %v843 = vpop.permute.xlu0 %842
    %846 = vset.pattern.permute.xlu0 0
    %847 = vperm.xlu0 %846, %v753
    %v848 = vpop.permute.xlu0 %847
    %851 = vset.pattern.permute.xlu0 0
    %852 = vperm.xlu0 %851, %v754
    %v853 = vpop.permute.xlu0 %852
    %856 = vset.pattern.permute.xlu0 0
    %857 = vperm.xlu0 %856, %v755
    %v858 = vpop.permute.xlu0 %857
    %861 = vset.pattern.permute.xlu0 0
    %862 = vperm.xlu0 %861, %v756
    %v863 = vpop.permute.xlu0 %862
    %866 = vset.pattern.permute.xlu0 0
    %867 = vperm.xlu0 %866, %v757
    %v868 = vpop.permute.xlu0 %867
    %871 = vset.pattern.permute.xlu0 0
    %872 = vperm.xlu0 %871, %v758
    %v873 = vpop.permute.xlu0 %872
    %876 = vset.pattern.permute.xlu0 0
    %877 = vperm.xlu0 %876, %v759
    %v878 = vpop.permute.xlu0 %877
    %881 = vset.pattern.permute.xlu0 0
    %882 = vperm.xlu0 %881, %v760
    %v883 = vpop.permute.xlu0 %882
    %886 = vset.pattern.permute.xlu0 0
    %887 = vperm.xlu0 %886, %v761
    %v888 = vpop.permute.xlu0 %887
    %891 = vset.pattern.permute.xlu0 0
    %892 = vperm.xlu0 %891, %v762
    %v893 = vpop.permute.xlu0 %892
    %896 = vset.pattern.permute.xlu0 0
    %897 = vperm.xlu0 %896, %v763
    %v898 = vpop.permute.xlu0 %897
    %901 = vset.pattern.permute.xlu0 0
    %902 = vperm.xlu0 %901, %v764
    %v903 = vpop.permute.xlu0 %902
    %906 = vset.pattern.permute.xlu0 0
    %907 = vperm.xlu0 %906, %v765
    %v908 = vpop.permute.xlu0 %907
    %911 = vset.pattern.permute.xlu0 0
    %912 = vperm.xlu0 %911, %v766
    %v913 = vpop.permute.xlu0 %912
    %916 = vset.pattern.permute.xlu0 0
    %917 = vperm.xlu0 %916, %v767
    %v918 = vpop.permute.xlu0 %917
    %921 = vset.pattern.permute.xlu0 0
    %922 = vperm.xlu0 %921, %v768
    %v923 = vpop.permute.xlu0 %922
    %926 = vset.pattern.permute.xlu0 0
    %927 = vperm.xlu0 %926, %v769
    %v928 = vpop.permute.xlu0 %927
    %v930 = vsel %vm610, %v773, 0.0
    %v931 = vsel %vm611, %v773, 0.0
    %v932 = vsel %vm612, %v773, 0.0
    %v933 = vsel %vm613, %v773, 0.0
    %v934 = vsel %vm614, %v778, 0.0
    %v935 = vsel %vm615, %v778, 0.0
    %v936 = vsel %vm616, %v778, 0.0
    %v937 = vsel %vm617, %v778, 0.0
    %v938 = vsel %vm618, %v783, 0.0
    %v939 = vsel %vm619, %v783, 0.0
    %v940 = vsel %vm620, %v783, 0.0
    %v941 = vsel %vm621, %v783, 0.0
    %v942 = vsel %vm622, %v788, 0.0
    %v943 = vsel %vm623, %v788, 0.0
    %v944 = vsel %vm624, %v788, 0.0
    %v945 = vsel %vm625, %v788, 0.0
    %v946 = vsel %vm626, %v793, 0.0
    %v947 = vsel %vm627, %v793, 0.0
    %v948 = vsel %vm628, %v793, 0.0
    %v949 = vsel %vm629, %v793, 0.0
    %v950 = vsel %vm630, %v798, 0.0
    %v951 = vsel %vm631, %v798, 0.0
    %v952 = vsel %vm632, %v798, 0.0
    %v953 = vsel %vm633, %v798, 0.0
    %v954 = vsel %vm634, %v803, 0.0
    %v955 = vsel %vm635, %v803, 0.0
    %v956 = vsel %vm636, %v803, 0.0
    %v957 = vsel %vm637, %v803, 0.0
    %v958 = vsel %vm638, %v808, 0.0
    %v959 = vsel %vm639, %v808, 0.0
    %v960 = vsel %vm640, %v808, 0.0
    %v961 = vsel %vm641, %v808, 0.0
    %v962 = vsel %vm642, %v813, 0.0
    %v963 = vsel %vm643, %v813, 0.0
    %v964 = vsel %vm644, %v813, 0.0
    %v965 = vsel %vm645, %v813, 0.0
    %v966 = vsel %vm646, %v818, 0.0
    %v967 = vsel %vm647, %v818, 0.0
    %v968 = vsel %vm648, %v818, 0.0
    %v969 = vsel %vm649, %v818, 0.0
    %v970 = vsel %vm650, %v823, 0.0
    %v971 = vsel %vm651, %v823, 0.0
    %v972 = vsel %vm652, %v823, 0.0
    %v973 = vsel %vm653, %v823, 0.0
    %v974 = vsel %vm654, %v828, 0.0
    %v975 = vsel %vm655, %v828, 0.0
    %v976 = vsel %vm656, %v828, 0.0
    %v977 = vsel %vm657, %v828, 0.0
    %v978 = vsel %vm658, %v833, 0.0
    %v979 = vsel %vm659, %v833, 0.0
    %v980 = vsel %vm660, %v833, 0.0
    %v981 = vsel %vm661, %v833, 0.0
    %v982 = vsel %vm662, %v838, 0.0
    %v983 = vsel %vm663, %v838, 0.0
    %v984 = vsel %vm664, %v838, 0.0
    %v985 = vsel %vm665, %v838, 0.0
    %v986 = vsel %vm666, %v843, 0.0
    %v987 = vsel %vm667, %v843, 0.0
    %v988 = vsel %vm668, %v843, 0.0
    %v989 = vsel %vm669, %v843, 0.0
    %v990 = vsel %vm670, %v848, 0.0
    %v991 = vsel %vm671, %v848, 0.0
    %v992 = vsel %vm672, %v848, 0.0
    %v993 = vsel %vm673, %v848, 0.0
    %v994 = vsel %vm674, %v853, 0.0
    %v995 = vsel %vm675, %v853, 0.0
    %v996 = vsel %vm676, %v853, 0.0
    %v997 = vsel %vm677, %v853, 0.0
    %v998 = vsel %vm678, %v858, 0.0
    %v999 = vsel %vm679, %v858, 0.0
    %v1000 = vsel %vm680, %v858, 0.0
    %v1001 = vsel %vm681, %v858, 0.0
    %v1002 = vsel %vm682, %v863, 0.0
    %v1003 = vsel %vm683, %v863, 0.0
    %v1004 = vsel %vm684, %v863, 0.0
    %v1005 = vsel %vm685, %v863, 0.0
    %v1006 = vsel %vm686, %v868, 0.0
    %v1007 = vsel %vm687, %v868, 0.0
    %v1008 = vsel %vm688, %v868, 0.0
    %v1009 = vsel %vm689, %v868, 0.0
    %v1010 = vsel %vm690, %v873, 0.0
    %v1011 = vsel %vm691, %v873, 0.0
    %v1012 = vsel %vm692, %v873, 0.0
    %v1013 = vsel %vm693, %v873, 0.0
    %v1014 = vsel %vm694, %v878, 0.0
    %v1015 = vsel %vm695, %v878, 0.0
    %v1016 = vsel %vm696, %v878, 0.0
    %v1017 = vsel %vm697, %v878, 0.0
    %v1018 = vsel %vm698, %v883, 0.0
    %v1019 = vsel %vm699, %v883, 0.0
    %v1020 = vsel %vm700, %v883, 0.0
    %v1021 = vsel %vm701, %v883, 0.0
    %v1022 = vsel %vm702, %v888, 0.0
    %v1023 = vsel %vm703, %v888, 0.0
    %v1024 = vsel %vm704, %v888, 0.0
    %v1025 = vsel %vm705, %v888, 0.0
    %v1026 = vsel %vm706, %v893, 0.0
    %v1027 = vsel %vm707, %v893, 0.0
    %v1028 = vsel %vm708, %v893, 0.0
    %v1029 = vsel %vm709, %v893, 0.0
    %v1030 = vsel %vm710, %v898, 0.0
    %v1031 = vsel %vm711, %v898, 0.0
    %v1032 = vsel %vm712, %v898, 0.0
    %v1033 = vsel %vm713, %v898, 0.0
    %v1034 = vsel %vm714, %v903, 0.0
    %v1035 = vsel %vm715, %v903, 0.0
    %v1036 = vsel %vm716, %v903, 0.0
    %v1037 = vsel %vm717, %v903, 0.0
    %v1038 = vsel %vm718, %v908, 0.0
    %v1039 = vsel %vm719, %v908, 0.0
    %v1040 = vsel %vm720, %v908, 0.0
    %v1041 = vsel %vm721, %v908, 0.0
    %v1042 = vsel %vm722, %v913, 0.0
    %v1043 = vsel %vm723, %v913, 0.0
    %v1044 = vsel %vm724, %v913, 0.0
    %v1045 = vsel %vm725, %v913, 0.0
    %v1046 = vsel %vm726, %v918, 0.0
    %v1047 = vsel %vm727, %v918, 0.0
    %v1048 = vsel %vm728, %v918, 0.0
    %v1049 = vsel %vm729, %v918, 0.0
    %v1050 = vsel %vm730, %v923, 0.0
    %v1051 = vsel %vm731, %v923, 0.0
    %v1052 = vsel %vm732, %v923, 0.0
    %v1053 = vsel %vm733, %v923, 0.0
    %v1054 = vsel %vm734, %v928, 0.0
    %v1055 = vsel %vm735, %v928, 0.0
    %v1056 = vsel %vm736, %v928, 0.0
    %v1057 = vsel %vm737, %v928, 0.0
    %1058 = vset.pattern.permute.xlu0 0
    %1059 = vperm.xlu0 %1058, %v430
    %v1060 = vpop.permute.xlu0 %1059
    %1061 = vset.pattern.permute.xlu0 0
    %1062 = vperm.xlu0 %1061, %v432
    %v1063 = vpop.permute.xlu0 %1062
    %1064 = vset.pattern.permute.xlu0 0
    %1065 = vperm.xlu0 %1064, %v434
    %v1066 = vpop.permute.xlu0 %1065
    %1067 = vset.pattern.permute.xlu0 0
    %1068 = vperm.xlu0 %1067, %v436
    %v1069 = vpop.permute.xlu0 %1068
    %1070 = vset.pattern.permute.xlu0 0
    %1071 = vperm.xlu0 %1070, %v438
    %v1072 = vpop.permute.xlu0 %1071
    %1073 = vset.pattern.permute.xlu0 0
    %1074 = vperm.xlu0 %1073, %v440
    %v1075 = vpop.permute.xlu0 %1074
    %1076 = vset.pattern.permute.xlu0 0
    %1077 = vperm.xlu0 %1076, %v442
    %v1078 = vpop.permute.xlu0 %1077
    %1079 = vset.pattern.permute.xlu0 0
    %1080 = vperm.xlu0 %1079, %v444
    %v1081 = vpop.permute.xlu0 %1080
    %1082 = vset.pattern.permute.xlu0 0
    %1083 = vperm.xlu0 %1082, %v446
    %v1084 = vpop.permute.xlu0 %1083
    %1085 = vset.pattern.permute.xlu0 0
    %1086 = vperm.xlu0 %1085, %v448
    %v1087 = vpop.permute.xlu0 %1086
    %1088 = vset.pattern.permute.xlu0 0
    %1089 = vperm.xlu0 %1088, %v450
    %v1090 = vpop.permute.xlu0 %1089
    %1091 = vset.pattern.permute.xlu0 0
    %1092 = vperm.xlu0 %1091, %v452
    %v1093 = vpop.permute.xlu0 %1092
    %1094 = vset.pattern.permute.xlu0 0
    %1095 = vperm.xlu0 %1094, %v454
    %v1096 = vpop.permute.xlu0 %1095
    %1097 = vset.pattern.permute.xlu0 0
    %1098 = vperm.xlu0 %1097, %v456
    %v1099 = vpop.permute.xlu0 %1098
    %1100 = vset.pattern.permute.xlu0 0
    %1101 = vperm.xlu0 %1100, %v458
    %v1102 = vpop.permute.xlu0 %1101
    %1103 = vset.pattern.permute.xlu0 0
    %1104 = vperm.xlu0 %1103, %v460
    %v1105 = vpop.permute.xlu0 %1104
    %1106 = vset.pattern.permute.xlu0 0
    %1107 = vperm.xlu0 %1106, %v462
    %v1108 = vpop.permute.xlu0 %1107
    %1109 = vset.pattern.permute.xlu0 0
    %1110 = vperm.xlu0 %1109, %v464
    %v1111 = vpop.permute.xlu0 %1110
    %1112 = vset.pattern.permute.xlu0 0
    %1113 = vperm.xlu0 %1112, %v466
    %v1114 = vpop.permute.xlu0 %1113
    %1115 = vset.pattern.permute.xlu0 0
    %1116 = vperm.xlu0 %1115, %v468
    %v1117 = vpop.permute.xlu0 %1116
    %1118 = vset.pattern.permute.xlu0 0
    %1119 = vperm.xlu0 %1118, %v470
    %v1120 = vpop.permute.xlu0 %1119
    %1121 = vset.pattern.permute.xlu0 0
    %1122 = vperm.xlu0 %1121, %v472
    %v1123 = vpop.permute.xlu0 %1122
    %1124 = vset.pattern.permute.xlu0 0
    %1125 = vperm.xlu0 %1124, %v474
    %v1126 = vpop.permute.xlu0 %1125
    %1127 = vset.pattern.permute.xlu0 0
    %1128 = vperm.xlu0 %1127, %v476
    %v1129 = vpop.permute.xlu0 %1128
    %1130 = vset.pattern.permute.xlu0 0
    %1131 = vperm.xlu0 %1130, %v478
    %v1132 = vpop.permute.xlu0 %1131
    %1133 = vset.pattern.permute.xlu0 0
    %1134 = vperm.xlu0 %1133, %v480
    %v1135 = vpop.permute.xlu0 %1134
    %1136 = vset.pattern.permute.xlu0 0
    %1137 = vperm.xlu0 %1136, %v482
    %v1138 = vpop.permute.xlu0 %1137
    %1139 = vset.pattern.permute.xlu0 0
    %1140 = vperm.xlu0 %1139, %v484
    %v1141 = vpop.permute.xlu0 %1140
    %1142 = vset.pattern.permute.xlu0 0
    %1143 = vperm.xlu0 %1142, %v486
    %v1144 = vpop.permute.xlu0 %1143
    %1145 = vset.pattern.permute.xlu0 0
    %1146 = vperm.xlu0 %1145, %v488
    %v1147 = vpop.permute.xlu0 %1146
    %1148 = vset.pattern.permute.xlu0 0
    %1149 = vperm.xlu0 %1148, %v490
    %v1150 = vpop.permute.xlu0 %1149
    %1151 = vset.pattern.permute.xlu0 0
    %1152 = vperm.xlu0 %1151, %v492
    %v1153 = vpop.permute.xlu0 %1152
    %vm1154 = vcmp.eq.s32.totalorder %v498, %v1060
    %vm1155 = vcmp.eq.s32.totalorder %v499, %v1060
    %vm1156 = vcmp.eq.s32.totalorder %v500, %v1060
    %vm1157 = vcmp.eq.s32.totalorder %v501, %v1060
    %vm1158 = vcmp.eq.s32.totalorder %v498, %v1063
    %vm1159 = vcmp.eq.s32.totalorder %v499, %v1063
    %vm1160 = vcmp.eq.s32.totalorder %v500, %v1063
    %vm1161 = vcmp.eq.s32.totalorder %v501, %v1063
    %vm1162 = vcmp.eq.s32.totalorder %v498, %v1066
    %vm1163 = vcmp.eq.s32.totalorder %v499, %v1066
    %vm1164 = vcmp.eq.s32.totalorder %v500, %v1066
    %vm1165 = vcmp.eq.s32.totalorder %v501, %v1066
    %vm1166 = vcmp.eq.s32.totalorder %v498, %v1069
    %vm1167 = vcmp.eq.s32.totalorder %v499, %v1069
    %vm1168 = vcmp.eq.s32.totalorder %v500, %v1069
    %vm1169 = vcmp.eq.s32.totalorder %v501, %v1069
    %vm1170 = vcmp.eq.s32.totalorder %v498, %v1072
    %vm1171 = vcmp.eq.s32.totalorder %v499, %v1072
    %vm1172 = vcmp.eq.s32.totalorder %v500, %v1072
    %vm1173 = vcmp.eq.s32.totalorder %v501, %v1072
    %vm1174 = vcmp.eq.s32.totalorder %v498, %v1075
    %vm1175 = vcmp.eq.s32.totalorder %v499, %v1075
    %vm1176 = vcmp.eq.s32.totalorder %v500, %v1075
    %vm1177 = vcmp.eq.s32.totalorder %v501, %v1075
    %vm1178 = vcmp.eq.s32.totalorder %v498, %v1078
    %vm1179 = vcmp.eq.s32.totalorder %v499, %v1078
    %vm1180 = vcmp.eq.s32.totalorder %v500, %v1078
    %vm1181 = vcmp.eq.s32.totalorder %v501, %v1078
    %vm1182 = vcmp.eq.s32.totalorder %v498, %v1081
    %vm1183 = vcmp.eq.s32.totalorder %v499, %v1081
    %vm1184 = vcmp.eq.s32.totalorder %v500, %v1081
    %vm1185 = vcmp.eq.s32.totalorder %v501, %v1081
    %vm1186 = vcmp.eq.s32.totalorder %v498, %v1084
    %vm1187 = vcmp.eq.s32.totalorder %v499, %v1084
    %vm1188 = vcmp.eq.s32.totalorder %v500, %v1084
    %vm1189 = vcmp.eq.s32.totalorder %v501, %v1084
    %vm1190 = vcmp.eq.s32.totalorder %v498, %v1087
    %vm1191 = vcmp.eq.s32.totalorder %v499, %v1087
    %vm1192 = vcmp.eq.s32.totalorder %v500, %v1087
    %vm1193 = vcmp.eq.s32.totalorder %v501, %v1087
    %vm1194 = vcmp.eq.s32.totalorder %v498, %v1090
    %vm1195 = vcmp.eq.s32.totalorder %v499, %v1090
    %vm1196 = vcmp.eq.s32.totalorder %v500, %v1090
    %vm1197 = vcmp.eq.s32.totalorder %v501, %v1090
    %vm1198 = vcmp.eq.s32.totalorder %v498, %v1093
    %vm1199 = vcmp.eq.s32.totalorder %v499, %v1093
    %vm1200 = vcmp.eq.s32.totalorder %v500, %v1093
    %vm1201 = vcmp.eq.s32.totalorder %v501, %v1093
    %vm1202 = vcmp.eq.s32.totalorder %v498, %v1096
    %vm1203 = vcmp.eq.s32.totalorder %v499, %v1096
    %vm1204 = vcmp.eq.s32.totalorder %v500, %v1096
    %vm1205 = vcmp.eq.s32.totalorder %v501, %v1096
    %vm1206 = vcmp.eq.s32.totalorder %v498, %v1099
    %vm1207 = vcmp.eq.s32.totalorder %v499, %v1099
    %vm1208 = vcmp.eq.s32.totalorder %v500, %v1099
    %vm1209 = vcmp.eq.s32.totalorder %v501, %v1099
    %vm1210 = vcmp.eq.s32.totalorder %v498, %v1102
    %vm1211 = vcmp.eq.s32.totalorder %v499, %v1102
    %vm1212 = vcmp.eq.s32.totalorder %v500, %v1102
    %vm1213 = vcmp.eq.s32.totalorder %v501, %v1102
    %vm1214 = vcmp.eq.s32.totalorder %v498, %v1105
    %vm1215 = vcmp.eq.s32.totalorder %v499, %v1105
    %vm1216 = vcmp.eq.s32.totalorder %v500, %v1105
    %vm1217 = vcmp.eq.s32.totalorder %v501, %v1105
    %vm1218 = vcmp.eq.s32.totalorder %v498, %v1108
    %vm1219 = vcmp.eq.s32.totalorder %v499, %v1108
    %vm1220 = vcmp.eq.s32.totalorder %v500, %v1108
    %vm1221 = vcmp.eq.s32.totalorder %v501, %v1108
    %vm1222 = vcmp.eq.s32.totalorder %v498, %v1111
    %vm1223 = vcmp.eq.s32.totalorder %v499, %v1111
    %vm1224 = vcmp.eq.s32.totalorder %v500, %v1111
    %vm1225 = vcmp.eq.s32.totalorder %v501, %v1111
    %vm1226 = vcmp.eq.s32.totalorder %v498, %v1114
    %vm1227 = vcmp.eq.s32.totalorder %v499, %v1114
    %vm1228 = vcmp.eq.s32.totalorder %v500, %v1114
    %vm1229 = vcmp.eq.s32.totalorder %v501, %v1114
    %vm1230 = vcmp.eq.s32.totalorder %v498, %v1117
    %vm1231 = vcmp.eq.s32.totalorder %v499, %v1117
    %vm1232 = vcmp.eq.s32.totalorder %v500, %v1117
    %vm1233 = vcmp.eq.s32.totalorder %v501, %v1117
    %vm1234 = vcmp.eq.s32.totalorder %v498, %v1120
    %vm1235 = vcmp.eq.s32.totalorder %v499, %v1120
    %vm1236 = vcmp.eq.s32.totalorder %v500, %v1120
    %vm1237 = vcmp.eq.s32.totalorder %v501, %v1120
    %vm1238 = vcmp.eq.s32.totalorder %v498, %v1123
    %vm1239 = vcmp.eq.s32.totalorder %v499, %v1123
    %vm1240 = vcmp.eq.s32.totalorder %v500, %v1123
    %vm1241 = vcmp.eq.s32.totalorder %v501, %v1123
    %vm1242 = vcmp.eq.s32.totalorder %v498, %v1126
    %vm1243 = vcmp.eq.s32.totalorder %v499, %v1126
    %vm1244 = vcmp.eq.s32.totalorder %v500, %v1126
    %vm1245 = vcmp.eq.s32.totalorder %v501, %v1126
    %vm1246 = vcmp.eq.s32.totalorder %v498, %v1129
    %vm1247 = vcmp.eq.s32.totalorder %v499, %v1129
    %vm1248 = vcmp.eq.s32.totalorder %v500, %v1129
    %vm1249 = vcmp.eq.s32.totalorder %v501, %v1129
    %vm1250 = vcmp.eq.s32.totalorder %v498, %v1132
    %vm1251 = vcmp.eq.s32.totalorder %v499, %v1132
    %vm1252 = vcmp.eq.s32.totalorder %v500, %v1132
    %vm1253 = vcmp.eq.s32.totalorder %v501, %v1132
    %vm1254 = vcmp.eq.s32.totalorder %v498, %v1135
    %vm1255 = vcmp.eq.s32.totalorder %v499, %v1135
    %vm1256 = vcmp.eq.s32.totalorder %v500, %v1135
    %vm1257 = vcmp.eq.s32.totalorder %v501, %v1135
    %vm1258 = vcmp.eq.s32.totalorder %v498, %v1138
    %vm1259 = vcmp.eq.s32.totalorder %v499, %v1138
    %vm1260 = vcmp.eq.s32.totalorder %v500, %v1138
    %vm1261 = vcmp.eq.s32.totalorder %v501, %v1138
    %vm1262 = vcmp.eq.s32.totalorder %v498, %v1141
    %vm1263 = vcmp.eq.s32.totalorder %v499, %v1141
    %vm1264 = vcmp.eq.s32.totalorder %v500, %v1141
    %vm1265 = vcmp.eq.s32.totalorder %v501, %v1141
    %vm1266 = vcmp.eq.s32.totalorder %v498, %v1144
    %vm1267 = vcmp.eq.s32.totalorder %v499, %v1144
    %vm1268 = vcmp.eq.s32.totalorder %v500, %v1144
    %vm1269 = vcmp.eq.s32.totalorder %v501, %v1144
    %vm1270 = vcmp.eq.s32.totalorder %v498, %v1147
    %vm1271 = vcmp.eq.s32.totalorder %v499, %v1147
    %vm1272 = vcmp.eq.s32.totalorder %v500, %v1147
    %vm1273 = vcmp.eq.s32.totalorder %v501, %v1147
    %vm1274 = vcmp.eq.s32.totalorder %v498, %v1150
    %vm1275 = vcmp.eq.s32.totalorder %v499, %v1150
    %vm1276 = vcmp.eq.s32.totalorder %v500, %v1150
    %vm1277 = vcmp.eq.s32.totalorder %v501, %v1150
    %vm1278 = vcmp.eq.s32.totalorder %v498, %v1153
    %vm1279 = vcmp.eq.s32.totalorder %v499, %v1153
    %vm1280 = vcmp.eq.s32.totalorder %v500, %v1153
    %vm1281 = vcmp.eq.s32.totalorder %v501, %v1153
    %1283 = vset.pattern.permute.xlu0 0
    %1284 = vperm.xlu0 %1283, %v205
    %v1285 = vpop.permute.xlu0 %1284
    %1288 = vset.pattern.permute.xlu0 0
    %1289 = vperm.xlu0 %1288, %v206
    %v1290 = vpop.permute.xlu0 %1289
    %1293 = vset.pattern.permute.xlu0 0
    %1294 = vperm.xlu0 %1293, %v207
    %v1295 = vpop.permute.xlu0 %1294
    %1298 = vset.pattern.permute.xlu0 0
    %1299 = vperm.xlu0 %1298, %v208
    %v1300 = vpop.permute.xlu0 %1299
    %1303 = vset.pattern.permute.xlu0 0
    %1304 = vperm.xlu0 %1303, %v209
    %v1305 = vpop.permute.xlu0 %1304
    %1308 = vset.pattern.permute.xlu0 0
    %1309 = vperm.xlu0 %1308, %v210
    %v1310 = vpop.permute.xlu0 %1309
    %1313 = vset.pattern.permute.xlu0 0
    %1314 = vperm.xlu0 %1313, %v211
    %v1315 = vpop.permute.xlu0 %1314
    %1318 = vset.pattern.permute.xlu0 0
    %1319 = vperm.xlu0 %1318, %v212
    %v1320 = vpop.permute.xlu0 %1319
    %1323 = vset.pattern.permute.xlu0 0
    %1324 = vperm.xlu0 %1323, %v213
    %v1325 = vpop.permute.xlu0 %1324
    %1328 = vset.pattern.permute.xlu0 0
    %1329 = vperm.xlu0 %1328, %v214
    %v1330 = vpop.permute.xlu0 %1329
    %1333 = vset.pattern.permute.xlu0 0
    %1334 = vperm.xlu0 %1333, %v215
    %v1335 = vpop.permute.xlu0 %1334
    %1338 = vset.pattern.permute.xlu0 0
    %1339 = vperm.xlu0 %1338, %v216
    %v1340 = vpop.permute.xlu0 %1339
    %1343 = vset.pattern.permute.xlu0 0
    %1344 = vperm.xlu0 %1343, %v217
    %v1345 = vpop.permute.xlu0 %1344
    %1348 = vset.pattern.permute.xlu0 0
    %1349 = vperm.xlu0 %1348, %v218
    %v1350 = vpop.permute.xlu0 %1349
    %1353 = vset.pattern.permute.xlu0 0
    %1354 = vperm.xlu0 %1353, %v219
    %v1355 = vpop.permute.xlu0 %1354
    %1358 = vset.pattern.permute.xlu0 0
    %1359 = vperm.xlu0 %1358, %v220
    %v1360 = vpop.permute.xlu0 %1359
    %1363 = vset.pattern.permute.xlu0 0
    %1364 = vperm.xlu0 %1363, %v221
    %v1365 = vpop.permute.xlu0 %1364
    %1368 = vset.pattern.permute.xlu0 0
    %1369 = vperm.xlu0 %1368, %v222
    %v1370 = vpop.permute.xlu0 %1369
    %1373 = vset.pattern.permute.xlu0 0
    %1374 = vperm.xlu0 %1373, %v223
    %v1375 = vpop.permute.xlu0 %1374
    %1378 = vset.pattern.permute.xlu0 0
    %1379 = vperm.xlu0 %1378, %v224
    %v1380 = vpop.permute.xlu0 %1379
    %1383 = vset.pattern.permute.xlu0 0
    %1384 = vperm.xlu0 %1383, %v225
    %v1385 = vpop.permute.xlu0 %1384
    %1388 = vset.pattern.permute.xlu0 0
    %1389 = vperm.xlu0 %1388, %v226
    %v1390 = vpop.permute.xlu0 %1389
    %1393 = vset.pattern.permute.xlu0 0
    %1394 = vperm.xlu0 %1393, %v227
    %v1395 = vpop.permute.xlu0 %1394
    %1398 = vset.pattern.permute.xlu0 0
    %1399 = vperm.xlu0 %1398, %v228
    %v1400 = vpop.permute.xlu0 %1399
    %1403 = vset.pattern.permute.xlu0 0
    %1404 = vperm.xlu0 %1403, %v229
    %v1405 = vpop.permute.xlu0 %1404
    %1408 = vset.pattern.permute.xlu0 0
    %1409 = vperm.xlu0 %1408, %v230
    %v1410 = vpop.permute.xlu0 %1409
    %1413 = vset.pattern.permute.xlu0 0
    %1414 = vperm.xlu0 %1413, %v231
    %v1415 = vpop.permute.xlu0 %1414
    %1418 = vset.pattern.permute.xlu0 0
    %1419 = vperm.xlu0 %1418, %v232
    %v1420 = vpop.permute.xlu0 %1419
    %1423 = vset.pattern.permute.xlu0 0
    %1424 = vperm.xlu0 %1423, %v233
    %v1425 = vpop.permute.xlu0 %1424
    %1428 = vset.pattern.permute.xlu0 0
    %1429 = vperm.xlu0 %1428, %v234
    %v1430 = vpop.permute.xlu0 %1429
    %1433 = vset.pattern.permute.xlu0 0
    %1434 = vperm.xlu0 %1433, %v235
    %v1435 = vpop.permute.xlu0 %1434
    %1438 = vset.pattern.permute.xlu0 0
    %1439 = vperm.xlu0 %1438, %v236
    %v1440 = vpop.permute.xlu0 %1439
    %v1442 = vsel %vm1154, %v1285, 0.0
    %v1443 = vsel %vm1155, %v1285, 0.0
    %v1444 = vsel %vm1156, %v1285, 0.0
    %v1445 = vsel %vm1157, %v1285, 0.0
    %v1446 = vsel %vm1158, %v1290, 0.0
    %v1447 = vsel %vm1159, %v1290, 0.0
    %v1448 = vsel %vm1160, %v1290, 0.0
    %v1449 = vsel %vm1161, %v1290, 0.0
    %v1450 = vsel %vm1162, %v1295, 0.0
    %v1451 = vsel %vm1163, %v1295, 0.0
    %v1452 = vsel %vm1164, %v1295, 0.0
    %v1453 = vsel %vm1165, %v1295, 0.0
    %v1454 = vsel %vm1166, %v1300, 0.0
    %v1455 = vsel %vm1167, %v1300, 0.0
    %v1456 = vsel %vm1168, %v1300, 0.0
    %v1457 = vsel %vm1169, %v1300, 0.0
    %v1458 = vsel %vm1170, %v1305, 0.0
    %v1459 = vsel %vm1171, %v1305, 0.0
    %v1460 = vsel %vm1172, %v1305, 0.0
    %v1461 = vsel %vm1173, %v1305, 0.0
    %v1462 = vsel %vm1174, %v1310, 0.0
    %v1463 = vsel %vm1175, %v1310, 0.0
    %v1464 = vsel %vm1176, %v1310, 0.0
    %v1465 = vsel %vm1177, %v1310, 0.0
    %v1466 = vsel %vm1178, %v1315, 0.0
    %v1467 = vsel %vm1179, %v1315, 0.0
    %v1468 = vsel %vm1180, %v1315, 0.0
    %v1469 = vsel %vm1181, %v1315, 0.0
    %v1470 = vsel %vm1182, %v1320, 0.0
    %v1471 = vsel %vm1183, %v1320, 0.0
    %v1472 = vsel %vm1184, %v1320, 0.0
    %v1473 = vsel %vm1185, %v1320, 0.0
    %v1474 = vsel %vm1186, %v1325, 0.0
    %v1475 = vsel %vm1187, %v1325, 0.0
    %v1476 = vsel %vm1188, %v1325, 0.0
    %v1477 = vsel %vm1189, %v1325, 0.0
    %v1478 = vsel %vm1190, %v1330, 0.0
    %v1479 = vsel %vm1191, %v1330, 0.0
    %v1480 = vsel %vm1192, %v1330, 0.0
    %v1481 = vsel %vm1193, %v1330, 0.0
    %v1482 = vsel %vm1194, %v1335, 0.0
    %v1483 = vsel %vm1195, %v1335, 0.0
    %v1484 = vsel %vm1196, %v1335, 0.0
    %v1485 = vsel %vm1197, %v1335, 0.0
    %v1486 = vsel %vm1198, %v1340, 0.0
    %v1487 = vsel %vm1199, %v1340, 0.0
    %v1488 = vsel %vm1200, %v1340, 0.0
    %v1489 = vsel %vm1201, %v1340, 0.0
    %v1490 = vsel %vm1202, %v1345, 0.0
    %v1491 = vsel %vm1203, %v1345, 0.0
    %v1492 = vsel %vm1204, %v1345, 0.0
    %v1493 = vsel %vm1205, %v1345, 0.0
    %v1494 = vsel %vm1206, %v1350, 0.0
    %v1495 = vsel %vm1207, %v1350, 0.0
    %v1496 = vsel %vm1208, %v1350, 0.0
    %v1497 = vsel %vm1209, %v1350, 0.0
    %v1498 = vsel %vm1210, %v1355, 0.0
    %v1499 = vsel %vm1211, %v1355, 0.0
    %v1500 = vsel %vm1212, %v1355, 0.0
    %v1501 = vsel %vm1213, %v1355, 0.0
    %v1502 = vsel %vm1214, %v1360, 0.0
    %v1503 = vsel %vm1215, %v1360, 0.0
    %v1504 = vsel %vm1216, %v1360, 0.0
    %v1505 = vsel %vm1217, %v1360, 0.0
    %v1506 = vsel %vm1218, %v1365, 0.0
    %v1507 = vsel %vm1219, %v1365, 0.0
    %v1508 = vsel %vm1220, %v1365, 0.0
    %v1509 = vsel %vm1221, %v1365, 0.0
    %v1510 = vsel %vm1222, %v1370, 0.0
    %v1511 = vsel %vm1223, %v1370, 0.0
    %v1512 = vsel %vm1224, %v1370, 0.0
    %v1513 = vsel %vm1225, %v1370, 0.0
    %v1514 = vsel %vm1226, %v1375, 0.0
    %v1515 = vsel %vm1227, %v1375, 0.0
    %v1516 = vsel %vm1228, %v1375, 0.0
    %v1517 = vsel %vm1229, %v1375, 0.0
    %v1518 = vsel %vm1230, %v1380, 0.0
    %v1519 = vsel %vm1231, %v1380, 0.0
    %v1520 = vsel %vm1232, %v1380, 0.0
    %v1521 = vsel %vm1233, %v1380, 0.0
    %v1522 = vsel %vm1234, %v1385, 0.0
    %v1523 = vsel %vm1235, %v1385, 0.0
    %v1524 = vsel %vm1236, %v1385, 0.0
    %v1525 = vsel %vm1237, %v1385, 0.0
    %v1526 = vsel %vm1238, %v1390, 0.0
    %v1527 = vsel %vm1239, %v1390, 0.0
    %v1528 = vsel %vm1240, %v1390, 0.0
    %v1529 = vsel %vm1241, %v1390, 0.0
    %v1530 = vsel %vm1242, %v1395, 0.0
    %v1531 = vsel %vm1243, %v1395, 0.0
    %v1532 = vsel %vm1244, %v1395, 0.0
    %v1533 = vsel %vm1245, %v1395, 0.0
    %v1534 = vsel %vm1246, %v1400, 0.0
    %v1535 = vsel %vm1247, %v1400, 0.0
    %v1536 = vsel %vm1248, %v1400, 0.0
    %v1537 = vsel %vm1249, %v1400, 0.0
    %v1538 = vsel %vm1250, %v1405, 0.0
    %v1539 = vsel %vm1251, %v1405, 0.0
    %v1540 = vsel %vm1252, %v1405, 0.0
    %v1541 = vsel %vm1253, %v1405, 0.0
    %v1542 = vsel %vm1254, %v1410, 0.0
    %v1543 = vsel %vm1255, %v1410, 0.0
    %v1544 = vsel %vm1256, %v1410, 0.0
    %v1545 = vsel %vm1257, %v1410, 0.0
    %v1546 = vsel %vm1258, %v1415, 0.0
    %v1547 = vsel %vm1259, %v1415, 0.0
    %v1548 = vsel %vm1260, %v1415, 0.0
    %v1549 = vsel %vm1261, %v1415, 0.0
    %v1550 = vsel %vm1262, %v1420, 0.0
    %v1551 = vsel %vm1263, %v1420, 0.0
    %v1552 = vsel %vm1264, %v1420, 0.0
    %v1553 = vsel %vm1265, %v1420, 0.0
    %v1554 = vsel %vm1266, %v1425, 0.0
    %v1555 = vsel %vm1267, %v1425, 0.0
    %v1556 = vsel %vm1268, %v1425, 0.0
    %v1557 = vsel %vm1269, %v1425, 0.0
    %v1558 = vsel %vm1270, %v1430, 0.0
    %v1559 = vsel %vm1271, %v1430, 0.0
    %v1560 = vsel %vm1272, %v1430, 0.0
    %v1561 = vsel %vm1273, %v1430, 0.0
    %v1562 = vsel %vm1274, %v1435, 0.0
    %v1563 = vsel %vm1275, %v1435, 0.0
    %v1564 = vsel %vm1276, %v1435, 0.0
    %v1565 = vsel %vm1277, %v1435, 0.0
    %v1566 = vsel %vm1278, %v1440, 0.0
    %v1567 = vsel %vm1279, %v1440, 0.0
    %v1568 = vsel %vm1280, %v1440, 0.0
    %v1569 = vsel %vm1281, %v1440, 0.0
    %v1570 = vadd.f32 %v930, %v1442
    %v1571 = vadd.f32 %v931, %v1443
    %v1572 = vadd.f32 %v932, %v1444
    %v1573 = vadd.f32 %v933, %v1445
    %v1574 = vadd.f32 %v934, %v1446
    %v1575 = vadd.f32 %v935, %v1447
    %v1576 = vadd.f32 %v936, %v1448
    %v1577 = vadd.f32 %v937, %v1449
    %v1578 = vadd.f32 %v938, %v1450
    %v1579 = vadd.f32 %v939, %v1451
    %v1580 = vadd.f32 %v940, %v1452
    %v1581 = vadd.f32 %v941, %v1453
    %v1582 = vadd.f32 %v942, %v1454
    %v1583 = vadd.f32 %v943, %v1455
    %v1584 = vadd.f32 %v944, %v1456
    %v1585 = vadd.f32 %v945, %v1457
    %v1586 = vadd.f32 %v946, %v1458
    %v1587 = vadd.f32 %v947, %v1459
    %v1588 = vadd.f32 %v948, %v1460
    %v1589 = vadd.f32 %v949, %v1461
    %v1590 = vadd.f32 %v950, %v1462
    %v1591 = vadd.f32 %v951, %v1463
    %v1592 = vadd.f32 %v952, %v1464
    %v1593 = vadd.f32 %v953, %v1465
    %v1594 = vadd.f32 %v954, %v1466
    %v1595 = vadd.f32 %v955, %v1467
    %v1596 = vadd.f32 %v956, %v1468
    %v1597 = vadd.f32 %v957, %v1469
    %v1598 = vadd.f32 %v958, %v1470
    %v1599 = vadd.f32 %v959, %v1471
    %v1600 = vadd.f32 %v960, %v1472
    %v1601 = vadd.f32 %v961, %v1473
    %v1602 = vadd.f32 %v962, %v1474
    %v1603 = vadd.f32 %v963, %v1475
    %v1604 = vadd.f32 %v964, %v1476
    %v1605 = vadd.f32 %v965, %v1477
    %v1606 = vadd.f32 %v966, %v1478
    %v1607 = vadd.f32 %v967, %v1479
    %v1608 = vadd.f32 %v968, %v1480
    %v1609 = vadd.f32 %v969, %v1481
    %v1610 = vadd.f32 %v970, %v1482
    %v1611 = vadd.f32 %v971, %v1483
    %v1612 = vadd.f32 %v972, %v1484
    %v1613 = vadd.f32 %v973, %v1485
    %v1614 = vadd.f32 %v974, %v1486
    %v1615 = vadd.f32 %v975, %v1487
    %v1616 = vadd.f32 %v976, %v1488
    %v1617 = vadd.f32 %v977, %v1489
    %v1618 = vadd.f32 %v978, %v1490
    %v1619 = vadd.f32 %v979, %v1491
    %v1620 = vadd.f32 %v980, %v1492
    %v1621 = vadd.f32 %v981, %v1493
    %v1622 = vadd.f32 %v982, %v1494
    %v1623 = vadd.f32 %v983, %v1495
    %v1624 = vadd.f32 %v984, %v1496
    %v1625 = vadd.f32 %v985, %v1497
    %v1626 = vadd.f32 %v986, %v1498
    %v1627 = vadd.f32 %v987, %v1499
    %v1628 = vadd.f32 %v988, %v1500
    %v1629 = vadd.f32 %v989, %v1501
    %v1630 = vadd.f32 %v990, %v1502
    %v1631 = vadd.f32 %v991, %v1503
    %v1632 = vadd.f32 %v992, %v1504
    %v1633 = vadd.f32 %v993, %v1505
    %v1634 = vadd.f32 %v994, %v1506
    %v1635 = vadd.f32 %v995, %v1507
    %v1636 = vadd.f32 %v996, %v1508
    %v1637 = vadd.f32 %v997, %v1509
    %v1638 = vadd.f32 %v998, %v1510
    %v1639 = vadd.f32 %v999, %v1511
    %v1640 = vadd.f32 %v1000, %v1512
    %v1641 = vadd.f32 %v1001, %v1513
    %v1642 = vadd.f32 %v1002, %v1514
    %v1643 = vadd.f32 %v1003, %v1515
    %v1644 = vadd.f32 %v1004, %v1516
    %v1645 = vadd.f32 %v1005, %v1517
    %v1646 = vadd.f32 %v1006, %v1518
    %v1647 = vadd.f32 %v1007, %v1519
    %v1648 = vadd.f32 %v1008, %v1520
    %v1649 = vadd.f32 %v1009, %v1521
    %v1650 = vadd.f32 %v1010, %v1522
    %v1651 = vadd.f32 %v1011, %v1523
    %v1652 = vadd.f32 %v1012, %v1524
    %v1653 = vadd.f32 %v1013, %v1525
    %v1654 = vadd.f32 %v1014, %v1526
    %v1655 = vadd.f32 %v1015, %v1527
    %v1656 = vadd.f32 %v1016, %v1528
    %v1657 = vadd.f32 %v1017, %v1529
    %v1658 = vadd.f32 %v1018, %v1530
    %v1659 = vadd.f32 %v1019, %v1531
    %v1660 = vadd.f32 %v1020, %v1532
    %v1661 = vadd.f32 %v1021, %v1533
    %v1662 = vadd.f32 %v1022, %v1534
    %v1663 = vadd.f32 %v1023, %v1535
    %v1664 = vadd.f32 %v1024, %v1536
    %v1665 = vadd.f32 %v1025, %v1537
    %v1666 = vadd.f32 %v1026, %v1538
    %v1667 = vadd.f32 %v1027, %v1539
    %v1668 = vadd.f32 %v1028, %v1540
    %v1669 = vadd.f32 %v1029, %v1541
    %v1670 = vadd.f32 %v1030, %v1542
    %v1671 = vadd.f32 %v1031, %v1543
    %v1672 = vadd.f32 %v1032, %v1544
    %v1673 = vadd.f32 %v1033, %v1545
    %v1674 = vadd.f32 %v1034, %v1546
    %v1675 = vadd.f32 %v1035, %v1547
    %v1676 = vadd.f32 %v1036, %v1548
    %v1677 = vadd.f32 %v1037, %v1549
    %v1678 = vadd.f32 %v1038, %v1550
    %v1679 = vadd.f32 %v1039, %v1551
    %v1680 = vadd.f32 %v1040, %v1552
    %v1681 = vadd.f32 %v1041, %v1553
    %v1682 = vadd.f32 %v1042, %v1554
    %v1683 = vadd.f32 %v1043, %v1555
    %v1684 = vadd.f32 %v1044, %v1556
    %v1685 = vadd.f32 %v1045, %v1557
    %v1686 = vadd.f32 %v1046, %v1558
    %v1687 = vadd.f32 %v1047, %v1559
    %v1688 = vadd.f32 %v1048, %v1560
    %v1689 = vadd.f32 %v1049, %v1561
    %v1690 = vadd.f32 %v1050, %v1562
    %v1691 = vadd.f32 %v1051, %v1563
    %v1692 = vadd.f32 %v1052, %v1564
    %v1693 = vadd.f32 %v1053, %v1565
    %v1694 = vadd.f32 %v1054, %v1566
    %v1695 = vadd.f32 %v1055, %v1567
    %v1696 = vadd.f32 %v1056, %v1568
    %v1697 = vadd.f32 %v1057, %v1569
    %1698 = vset.pattern.permute.xlu0 1
    %1699 = vperm.xlu0 %1698, %v334
    %v1700 = vpop.permute.xlu0 %1699
    %1701 = vset.pattern.permute.xlu0 1
    %1702 = vperm.xlu0 %1701, %v336
    %v1703 = vpop.permute.xlu0 %1702
    %1704 = vset.pattern.permute.xlu0 1
    %1705 = vperm.xlu0 %1704, %v338
    %v1706 = vpop.permute.xlu0 %1705
    %1707 = vset.pattern.permute.xlu0 1
    %1708 = vperm.xlu0 %1707, %v340
    %v1709 = vpop.permute.xlu0 %1708
    %1710 = vset.pattern.permute.xlu0 1
    %1711 = vperm.xlu0 %1710, %v342
    %v1712 = vpop.permute.xlu0 %1711
    %1713 = vset.pattern.permute.xlu0 1
    %1714 = vperm.xlu0 %1713, %v344
    %v1715 = vpop.permute.xlu0 %1714
    %1716 = vset.pattern.permute.xlu0 1
    %1717 = vperm.xlu0 %1716, %v346
    %v1718 = vpop.permute.xlu0 %1717
    %1719 = vset.pattern.permute.xlu0 1
    %1720 = vperm.xlu0 %1719, %v348
    %v1721 = vpop.permute.xlu0 %1720
    %1722 = vset.pattern.permute.xlu0 1
    %1723 = vperm.xlu0 %1722, %v350
    %v1724 = vpop.permute.xlu0 %1723
    %1725 = vset.pattern.permute.xlu0 1
    %1726 = vperm.xlu0 %1725, %v352
    %v1727 = vpop.permute.xlu0 %1726
    %1728 = vset.pattern.permute.xlu0 1
    %1729 = vperm.xlu0 %1728, %v354
    %v1730 = vpop.permute.xlu0 %1729
    %1731 = vset.pattern.permute.xlu0 1
    %1732 = vperm.xlu0 %1731, %v356
    %v1733 = vpop.permute.xlu0 %1732
    %1734 = vset.pattern.permute.xlu0 1
    %1735 = vperm.xlu0 %1734, %v358
    %v1736 = vpop.permute.xlu0 %1735
    %1737 = vset.pattern.permute.xlu0 1
    %1738 = vperm.xlu0 %1737, %v360
    %v1739 = vpop.permute.xlu0 %1738
    %1740 = vset.pattern.permute.xlu0 1
    %1741 = vperm.xlu0 %1740, %v362
    %v1742 = vpop.permute.xlu0 %1741
    %1743 = vset.pattern.permute.xlu0 1
    %1744 = vperm.xlu0 %1743, %v364
    %v1745 = vpop.permute.xlu0 %1744
    %1746 = vset.pattern.permute.xlu0 1
    %1747 = vperm.xlu0 %1746, %v366
    %v1748 = vpop.permute.xlu0 %1747
    %1749 = vset.pattern.permute.xlu0 1
    %1750 = vperm.xlu0 %1749, %v368
    %v1751 = vpop.permute.xlu0 %1750
    %1752 = vset.pattern.permute.xlu0 1
    %1753 = vperm.xlu0 %1752, %v370
    %v1754 = vpop.permute.xlu0 %1753
    %1755 = vset.pattern.permute.xlu0 1
    %1756 = vperm.xlu0 %1755, %v372
    %v1757 = vpop.permute.xlu0 %1756
    %1758 = vset.pattern.permute.xlu0 1
    %1759 = vperm.xlu0 %1758, %v374
    %v1760 = vpop.permute.xlu0 %1759
    %1761 = vset.pattern.permute.xlu0 1
    %1762 = vperm.xlu0 %1761, %v376
    %v1763 = vpop.permute.xlu0 %1762
    %1764 = vset.pattern.permute.xlu0 1
    %1765 = vperm.xlu0 %1764, %v378
    %v1766 = vpop.permute.xlu0 %1765
    %1767 = vset.pattern.permute.xlu0 1
    %1768 = vperm.xlu0 %1767, %v380
    %v1769 = vpop.permute.xlu0 %1768
    %1770 = vset.pattern.permute.xlu0 1
    %1771 = vperm.xlu0 %1770, %v382
    %v1772 = vpop.permute.xlu0 %1771
    %1773 = vset.pattern.permute.xlu0 1
    %1774 = vperm.xlu0 %1773, %v384
    %v1775 = vpop.permute.xlu0 %1774
    %1776 = vset.pattern.permute.xlu0 1
    %1777 = vperm.xlu0 %1776, %v386
    %v1778 = vpop.permute.xlu0 %1777
    %1779 = vset.pattern.permute.xlu0 1
    %1780 = vperm.xlu0 %1779, %v388
    %v1781 = vpop.permute.xlu0 %1780
    %1782 = vset.pattern.permute.xlu0 1
    %1783 = vperm.xlu0 %1782, %v390
    %v1784 = vpop.permute.xlu0 %1783
    %1785 = vset.pattern.permute.xlu0 1
    %1786 = vperm.xlu0 %1785, %v392
    %v1787 = vpop.permute.xlu0 %1786
    %1788 = vset.pattern.permute.xlu0 1
    %1789 = vperm.xlu0 %1788, %v394
    %v1790 = vpop.permute.xlu0 %1789
    %1791 = vset.pattern.permute.xlu0 1
    %1792 = vperm.xlu0 %1791, %v396
    %v1793 = vpop.permute.xlu0 %1792
    %vm1794 = vcmp.eq.s32.totalorder %v506, %v1700
    %vm1795 = vcmp.eq.s32.totalorder %v507, %v1700
    %vm1796 = vcmp.eq.s32.totalorder %v508, %v1700
    %vm1797 = vcmp.eq.s32.totalorder %v509, %v1700
    %vm1798 = vcmp.eq.s32.totalorder %v506, %v1703
    %vm1799 = vcmp.eq.s32.totalorder %v507, %v1703
    %vm1800 = vcmp.eq.s32.totalorder %v508, %v1703
    %vm1801 = vcmp.eq.s32.totalorder %v509, %v1703
    %vm1802 = vcmp.eq.s32.totalorder %v506, %v1706
    %vm1803 = vcmp.eq.s32.totalorder %v507, %v1706
    %vm1804 = vcmp.eq.s32.totalorder %v508, %v1706
    %vm1805 = vcmp.eq.s32.totalorder %v509, %v1706
    %vm1806 = vcmp.eq.s32.totalorder %v506, %v1709
    %vm1807 = vcmp.eq.s32.totalorder %v507, %v1709
    %vm1808 = vcmp.eq.s32.totalorder %v508, %v1709
    %vm1809 = vcmp.eq.s32.totalorder %v509, %v1709
    %vm1810 = vcmp.eq.s32.totalorder %v506, %v1712
    %vm1811 = vcmp.eq.s32.totalorder %v507, %v1712
    %vm1812 = vcmp.eq.s32.totalorder %v508, %v1712
    %vm1813 = vcmp.eq.s32.totalorder %v509, %v1712
    %vm1814 = vcmp.eq.s32.totalorder %v506, %v1715
    %vm1815 = vcmp.eq.s32.totalorder %v507, %v1715
    %vm1816 = vcmp.eq.s32.totalorder %v508, %v1715
    %vm1817 = vcmp.eq.s32.totalorder %v509, %v1715
    %vm1818 = vcmp.eq.s32.totalorder %v506, %v1718
    %vm1819 = vcmp.eq.s32.totalorder %v507, %v1718
    %vm1820 = vcmp.eq.s32.totalorder %v508, %v1718
    %vm1821 = vcmp.eq.s32.totalorder %v509, %v1718
    %vm1822 = vcmp.eq.s32.totalorder %v506, %v1721
    %vm1823 = vcmp.eq.s32.totalorder %v507, %v1721
    %vm1824 = vcmp.eq.s32.totalorder %v508, %v1721
    %vm1825 = vcmp.eq.s32.totalorder %v509, %v1721
    %vm1826 = vcmp.eq.s32.totalorder %v506, %v1724
    %vm1827 = vcmp.eq.s32.totalorder %v507, %v1724
    %vm1828 = vcmp.eq.s32.totalorder %v508, %v1724
    %vm1829 = vcmp.eq.s32.totalorder %v509, %v1724
    %vm1830 = vcmp.eq.s32.totalorder %v506, %v1727
    %vm1831 = vcmp.eq.s32.totalorder %v507, %v1727
    %vm1832 = vcmp.eq.s32.totalorder %v508, %v1727
    %vm1833 = vcmp.eq.s32.totalorder %v509, %v1727
    %vm1834 = vcmp.eq.s32.totalorder %v506, %v1730
    %vm1835 = vcmp.eq.s32.totalorder %v507, %v1730
    %vm1836 = vcmp.eq.s32.totalorder %v508, %v1730
    %vm1837 = vcmp.eq.s32.totalorder %v509, %v1730
    %vm1838 = vcmp.eq.s32.totalorder %v506, %v1733
    %vm1839 = vcmp.eq.s32.totalorder %v507, %v1733
    %vm1840 = vcmp.eq.s32.totalorder %v508, %v1733
    %vm1841 = vcmp.eq.s32.totalorder %v509, %v1733
    %vm1842 = vcmp.eq.s32.totalorder %v506, %v1736
    %vm1843 = vcmp.eq.s32.totalorder %v507, %v1736
    %vm1844 = vcmp.eq.s32.totalorder %v508, %v1736
    %vm1845 = vcmp.eq.s32.totalorder %v509, %v1736
    %vm1846 = vcmp.eq.s32.totalorder %v506, %v1739
    %vm1847 = vcmp.eq.s32.totalorder %v507, %v1739
    %vm1848 = vcmp.eq.s32.totalorder %v508, %v1739
    %vm1849 = vcmp.eq.s32.totalorder %v509, %v1739
    %vm1850 = vcmp.eq.s32.totalorder %v506, %v1742
    %vm1851 = vcmp.eq.s32.totalorder %v507, %v1742
    %vm1852 = vcmp.eq.s32.totalorder %v508, %v1742
    %vm1853 = vcmp.eq.s32.totalorder %v509, %v1742
    %vm1854 = vcmp.eq.s32.totalorder %v506, %v1745
    %vm1855 = vcmp.eq.s32.totalorder %v507, %v1745
    %vm1856 = vcmp.eq.s32.totalorder %v508, %v1745
    %vm1857 = vcmp.eq.s32.totalorder %v509, %v1745
    %vm1858 = vcmp.eq.s32.totalorder %v506, %v1748
    %vm1859 = vcmp.eq.s32.totalorder %v507, %v1748
    %vm1860 = vcmp.eq.s32.totalorder %v508, %v1748
    %vm1861 = vcmp.eq.s32.totalorder %v509, %v1748
    %vm1862 = vcmp.eq.s32.totalorder %v506, %v1751
    %vm1863 = vcmp.eq.s32.totalorder %v507, %v1751
    %vm1864 = vcmp.eq.s32.totalorder %v508, %v1751
    %vm1865 = vcmp.eq.s32.totalorder %v509, %v1751
    %vm1866 = vcmp.eq.s32.totalorder %v506, %v1754
    %vm1867 = vcmp.eq.s32.totalorder %v507, %v1754
    %vm1868 = vcmp.eq.s32.totalorder %v508, %v1754
    %vm1869 = vcmp.eq.s32.totalorder %v509, %v1754
    %vm1870 = vcmp.eq.s32.totalorder %v506, %v1757
    %vm1871 = vcmp.eq.s32.totalorder %v507, %v1757
    %vm1872 = vcmp.eq.s32.totalorder %v508, %v1757
    %vm1873 = vcmp.eq.s32.totalorder %v509, %v1757
    %vm1874 = vcmp.eq.s32.totalorder %v506, %v1760
    %vm1875 = vcmp.eq.s32.totalorder %v507, %v1760
    %vm1876 = vcmp.eq.s32.totalorder %v508, %v1760
    %vm1877 = vcmp.eq.s32.totalorder %v509, %v1760
    %vm1878 = vcmp.eq.s32.totalorder %v506, %v1763
    %vm1879 = vcmp.eq.s32.totalorder %v507, %v1763
    %vm1880 = vcmp.eq.s32.totalorder %v508, %v1763
    %vm1881 = vcmp.eq.s32.totalorder %v509, %v1763
    %vm1882 = vcmp.eq.s32.totalorder %v506, %v1766
    %vm1883 = vcmp.eq.s32.totalorder %v507, %v1766
    %vm1884 = vcmp.eq.s32.totalorder %v508, %v1766
    %vm1885 = vcmp.eq.s32.totalorder %v509, %v1766
    %vm1886 = vcmp.eq.s32.totalorder %v506, %v1769
    %vm1887 = vcmp.eq.s32.totalorder %v507, %v1769
    %vm1888 = vcmp.eq.s32.totalorder %v508, %v1769
    %vm1889 = vcmp.eq.s32.totalorder %v509, %v1769
    %vm1890 = vcmp.eq.s32.totalorder %v506, %v1772
    %vm1891 = vcmp.eq.s32.totalorder %v507, %v1772
    %vm1892 = vcmp.eq.s32.totalorder %v508, %v1772
    %vm1893 = vcmp.eq.s32.totalorder %v509, %v1772
    %vm1894 = vcmp.eq.s32.totalorder %v506, %v1775
    %vm1895 = vcmp.eq.s32.totalorder %v507, %v1775
    %vm1896 = vcmp.eq.s32.totalorder %v508, %v1775
    %vm1897 = vcmp.eq.s32.totalorder %v509, %v1775
    %vm1898 = vcmp.eq.s32.totalorder %v506, %v1778
    %vm1899 = vcmp.eq.s32.totalorder %v507, %v1778
    %vm1900 = vcmp.eq.s32.totalorder %v508, %v1778
    %vm1901 = vcmp.eq.s32.totalorder %v509, %v1778
    %vm1902 = vcmp.eq.s32.totalorder %v506, %v1781
    %vm1903 = vcmp.eq.s32.totalorder %v507, %v1781
    %vm1904 = vcmp.eq.s32.totalorder %v508, %v1781
    %vm1905 = vcmp.eq.s32.totalorder %v509, %v1781
    %vm1906 = vcmp.eq.s32.totalorder %v506, %v1784
    %vm1907 = vcmp.eq.s32.totalorder %v507, %v1784
    %vm1908 = vcmp.eq.s32.totalorder %v508, %v1784
    %vm1909 = vcmp.eq.s32.totalorder %v509, %v1784
    %vm1910 = vcmp.eq.s32.totalorder %v506, %v1787
    %vm1911 = vcmp.eq.s32.totalorder %v507, %v1787
    %vm1912 = vcmp.eq.s32.totalorder %v508, %v1787
    %vm1913 = vcmp.eq.s32.totalorder %v509, %v1787
    %vm1914 = vcmp.eq.s32.totalorder %v506, %v1790
    %vm1915 = vcmp.eq.s32.totalorder %v507, %v1790
    %vm1916 = vcmp.eq.s32.totalorder %v508, %v1790
    %vm1917 = vcmp.eq.s32.totalorder %v509, %v1790
    %vm1918 = vcmp.eq.s32.totalorder %v506, %v1793
    %vm1919 = vcmp.eq.s32.totalorder %v507, %v1793
    %vm1920 = vcmp.eq.s32.totalorder %v508, %v1793
    %vm1921 = vcmp.eq.s32.totalorder %v509, %v1793
    %1922 = vset.pattern.permute.xlu0 1
    %1923 = vperm.xlu0 %1922, %v738
    %v1924 = vpop.permute.xlu0 %1923
    %1926 = vset.pattern.permute.xlu0 1
    %1927 = vperm.xlu0 %1926, %v739
    %v1928 = vpop.permute.xlu0 %1927
    %1930 = vset.pattern.permute.xlu0 1
    %1931 = vperm.xlu0 %1930, %v740
    %v1932 = vpop.permute.xlu0 %1931
    %1934 = vset.pattern.permute.xlu0 1
    %1935 = vperm.xlu0 %1934, %v741
    %v1936 = vpop.permute.xlu0 %1935
    %1938 = vset.pattern.permute.xlu0 1
    %1939 = vperm.xlu0 %1938, %v742
    %v1940 = vpop.permute.xlu0 %1939
    %1942 = vset.pattern.permute.xlu0 1
    %1943 = vperm.xlu0 %1942, %v743
    %v1944 = vpop.permute.xlu0 %1943
    %1946 = vset.pattern.permute.xlu0 1
    %1947 = vperm.xlu0 %1946, %v744
    %v1948 = vpop.permute.xlu0 %1947
    %1950 = vset.pattern.permute.xlu0 1
    %1951 = vperm.xlu0 %1950, %v745
    %v1952 = vpop.permute.xlu0 %1951
    %1954 = vset.pattern.permute.xlu0 1
    %1955 = vperm.xlu0 %1954, %v746
    %v1956 = vpop.permute.xlu0 %1955
    %1958 = vset.pattern.permute.xlu0 1
    %1959 = vperm.xlu0 %1958, %v747
    %v1960 = vpop.permute.xlu0 %1959
    %1962 = vset.pattern.permute.xlu0 1
    %1963 = vperm.xlu0 %1962, %v748
    %v1964 = vpop.permute.xlu0 %1963
    %1966 = vset.pattern.permute.xlu0 1
    %1967 = vperm.xlu0 %1966, %v749
    %v1968 = vpop.permute.xlu0 %1967
    %1970 = vset.pattern.permute.xlu0 1
    %1971 = vperm.xlu0 %1970, %v750
    %v1972 = vpop.permute.xlu0 %1971
    %1974 = vset.pattern.permute.xlu0 1
    %1975 = vperm.xlu0 %1974, %v751
    %v1976 = vpop.permute.xlu0 %1975
    %1978 = vset.pattern.permute.xlu0 1
    %1979 = vperm.xlu0 %1978, %v752
    %v1980 = vpop.permute.xlu0 %1979
    %1982 = vset.pattern.permute.xlu0 1
    %1983 = vperm.xlu0 %1982, %v753
    %v1984 = vpop.permute.xlu0 %1983
    %1986 = vset.pattern.permute.xlu0 1
    %1987 = vperm.xlu0 %1986, %v754
    %v1988 = vpop.permute.xlu0 %1987
    %1990 = vset.pattern.permute.xlu0 1
    %1991 = vperm.xlu0 %1990, %v755
    %v1992 = vpop.permute.xlu0 %1991
    %1994 = vset.pattern.permute.xlu0 1
    %1995 = vperm.xlu0 %1994, %v756
    %v1996 = vpop.permute.xlu0 %1995
    %1998 = vset.pattern.permute.xlu0 1
    %1999 = vperm.xlu0 %1998, %v757
    %v2000 = vpop.permute.xlu0 %1999
    %2002 = vset.pattern.permute.xlu0 1
    %2003 = vperm.xlu0 %2002, %v758
    %v2004 = vpop.permute.xlu0 %2003
    %2006 = vset.pattern.permute.xlu0 1
    %2007 = vperm.xlu0 %2006, %v759
    %v2008 = vpop.permute.xlu0 %2007
    %2010 = vset.pattern.permute.xlu0 1
    %2011 = vperm.xlu0 %2010, %v760
    %v2012 = vpop.permute.xlu0 %2011
    %2014 = vset.pattern.permute.xlu0 1
    %2015 = vperm.xlu0 %2014, %v761
    %v2016 = vpop.permute.xlu0 %2015
    %2018 = vset.pattern.permute.xlu0 1
    %2019 = vperm.xlu0 %2018, %v762
    %v2020 = vpop.permute.xlu0 %2019
    %2022 = vset.pattern.permute.xlu0 1
    %2023 = vperm.xlu0 %2022, %v763
    %v2024 = vpop.permute.xlu0 %2023
    %2026 = vset.pattern.permute.xlu0 1
    %2027 = vperm.xlu0 %2026, %v764
    %v2028 = vpop.permute.xlu0 %2027
    %2030 = vset.pattern.permute.xlu0 1
    %2031 = vperm.xlu0 %2030, %v765
    %v2032 = vpop.permute.xlu0 %2031
    %2034 = vset.pattern.permute.xlu0 1
    %2035 = vperm.xlu0 %2034, %v766
    %v2036 = vpop.permute.xlu0 %2035
    %2038 = vset.pattern.permute.xlu0 1
    %2039 = vperm.xlu0 %2038, %v767
    %v2040 = vpop.permute.xlu0 %2039
    %2042 = vset.pattern.permute.xlu0 1
    %2043 = vperm.xlu0 %2042, %v768
    %v2044 = vpop.permute.xlu0 %2043
    %2046 = vset.pattern.permute.xlu0 1
    %2047 = vperm.xlu0 %2046, %v769
    %v2048 = vpop.permute.xlu0 %2047
    %v2050 = vsel %vm1794, %v1924, 0.0
    %v2051 = vsel %vm1795, %v1924, 0.0
    %v2052 = vsel %vm1796, %v1924, 0.0
    %v2053 = vsel %vm1797, %v1924, 0.0
    %v2054 = vsel %vm1798, %v1928, 0.0
    %v2055 = vsel %vm1799, %v1928, 0.0
    %v2056 = vsel %vm1800, %v1928, 0.0
    %v2057 = vsel %vm1801, %v1928, 0.0
    %v2058 = vsel %vm1802, %v1932, 0.0
    %v2059 = vsel %vm1803, %v1932, 0.0
    %v2060 = vsel %vm1804, %v1932, 0.0
    %v2061 = vsel %vm1805, %v1932, 0.0
    %v2062 = vsel %vm1806, %v1936, 0.0
    %v2063 = vsel %vm1807, %v1936, 0.0
    %v2064 = vsel %vm1808, %v1936, 0.0
    %v2065 = vsel %vm1809, %v1936, 0.0
    %v2066 = vsel %vm1810, %v1940, 0.0
    %v2067 = vsel %vm1811, %v1940, 0.0
    %v2068 = vsel %vm1812, %v1940, 0.0
    %v2069 = vsel %vm1813, %v1940, 0.0
    %v2070 = vsel %vm1814, %v1944, 0.0
    %v2071 = vsel %vm1815, %v1944, 0.0
    %v2072 = vsel %vm1816, %v1944, 0.0
    %v2073 = vsel %vm1817, %v1944, 0.0
    %v2074 = vsel %vm1818, %v1948, 0.0
    %v2075 = vsel %vm1819, %v1948, 0.0
    %v2076 = vsel %vm1820, %v1948, 0.0
    %v2077 = vsel %vm1821, %v1948, 0.0
    %v2078 = vsel %vm1822, %v1952, 0.0
    %v2079 = vsel %vm1823, %v1952, 0.0
    %v2080 = vsel %vm1824, %v1952, 0.0
    %v2081 = vsel %vm1825, %v1952, 0.0
    %v2082 = vsel %vm1826, %v1956, 0.0
    %v2083 = vsel %vm1827, %v1956, 0.0
    %v2084 = vsel %vm1828, %v1956, 0.0
    %v2085 = vsel %vm1829, %v1956, 0.0
    %v2086 = vsel %vm1830, %v1960, 0.0
    %v2087 = vsel %vm1831, %v1960, 0.0
    %v2088 = vsel %vm1832, %v1960, 0.0
    %v2089 = vsel %vm1833, %v1960, 0.0
    %v2090 = vsel %vm1834, %v1964, 0.0
    %v2091 = vsel %vm1835, %v1964, 0.0
    %v2092 = vsel %vm1836, %v1964, 0.0
    %v2093 = vsel %vm1837, %v1964, 0.0
    %v2094 = vsel %vm1838, %v1968, 0.0
    %v2095 = vsel %vm1839, %v1968, 0.0
    %v2096 = vsel %vm1840, %v1968, 0.0
    %v2097 = vsel %vm1841, %v1968, 0.0
    %v2098 = vsel %vm1842, %v1972, 0.0
    %v2099 = vsel %vm1843, %v1972, 0.0
    %v2100 = vsel %vm1844, %v1972, 0.0
    %v2101 = vsel %vm1845, %v1972, 0.0
    %v2102 = vsel %vm1846, %v1976, 0.0
    %v2103 = vsel %vm1847, %v1976, 0.0
    %v2104 = vsel %vm1848, %v1976, 0.0
    %v2105 = vsel %vm1849, %v1976, 0.0
    %v2106 = vsel %vm1850, %v1980, 0.0
    %v2107 = vsel %vm1851, %v1980, 0.0
    %v2108 = vsel %vm1852, %v1980, 0.0
    %v2109 = vsel %vm1853, %v1980, 0.0
    %v2110 = vsel %vm1854, %v1984, 0.0
    %v2111 = vsel %vm1855, %v1984, 0.0
    %v2112 = vsel %vm1856, %v1984, 0.0
    %v2113 = vsel %vm1857, %v1984, 0.0
    %v2114 = vsel %vm1858, %v1988, 0.0
    %v2115 = vsel %vm1859, %v1988, 0.0
    %v2116 = vsel %vm1860, %v1988, 0.0
    %v2117 = vsel %vm1861, %v1988, 0.0
    %v2118 = vsel %vm1862, %v1992, 0.0
    %v2119 = vsel %vm1863, %v1992, 0.0
    %v2120 = vsel %vm1864, %v1992, 0.0
    %v2121 = vsel %vm1865, %v1992, 0.0
    %v2122 = vsel %vm1866, %v1996, 0.0
    %v2123 = vsel %vm1867, %v1996, 0.0
    %v2124 = vsel %vm1868, %v1996, 0.0
    %v2125 = vsel %vm1869, %v1996, 0.0
    %v2126 = vsel %vm1870, %v2000, 0.0
    %v2127 = vsel %vm1871, %v2000, 0.0
    %v2128 = vsel %vm1872, %v2000, 0.0
    %v2129 = vsel %vm1873, %v2000, 0.0
    %v2130 = vsel %vm1874, %v2004, 0.0
    %v2131 = vsel %vm1875, %v2004, 0.0
    %v2132 = vsel %vm1876, %v2004, 0.0
    %v2133 = vsel %vm1877, %v2004, 0.0
    %v2134 = vsel %vm1878, %v2008, 0.0
    %v2135 = vsel %vm1879, %v2008, 0.0
    %v2136 = vsel %vm1880, %v2008, 0.0
    %v2137 = vsel %vm1881, %v2008, 0.0
    %v2138 = vsel %vm1882, %v2012, 0.0
    %v2139 = vsel %vm1883, %v2012, 0.0
    %v2140 = vsel %vm1884, %v2012, 0.0
    %v2141 = vsel %vm1885, %v2012, 0.0
    %v2142 = vsel %vm1886, %v2016, 0.0
    %v2143 = vsel %vm1887, %v2016, 0.0
    %v2144 = vsel %vm1888, %v2016, 0.0
    %v2145 = vsel %vm1889, %v2016, 0.0
    %v2146 = vsel %vm1890, %v2020, 0.0
    %v2147 = vsel %vm1891, %v2020, 0.0
    %v2148 = vsel %vm1892, %v2020, 0.0
    %v2149 = vsel %vm1893, %v2020, 0.0
    %v2150 = vsel %vm1894, %v2024, 0.0
    %v2151 = vsel %vm1895, %v2024, 0.0
    %v2152 = vsel %vm1896, %v2024, 0.0
    %v2153 = vsel %vm1897, %v2024, 0.0
    %v2154 = vsel %vm1898, %v2028, 0.0
    %v2155 = vsel %vm1899, %v2028, 0.0
    %v2156 = vsel %vm1900, %v2028, 0.0
    %v2157 = vsel %vm1901, %v2028, 0.0
    %v2158 = vsel %vm1902, %v2032, 0.0
    %v2159 = vsel %vm1903, %v2032, 0.0
    %v2160 = vsel %vm1904, %v2032, 0.0
    %v2161 = vsel %vm1905, %v2032, 0.0
    %v2162 = vsel %vm1906, %v2036, 0.0
    %v2163 = vsel %vm1907, %v2036, 0.0
    %v2164 = vsel %vm1908, %v2036, 0.0
    %v2165 = vsel %vm1909, %v2036, 0.0
    %v2166 = vsel %vm1910, %v2040, 0.0
    %v2167 = vsel %vm1911, %v2040, 0.0
    %v2168 = vsel %vm1912, %v2040, 0.0
    %v2169 = vsel %vm1913, %v2040, 0.0
    %v2170 = vsel %vm1914, %v2044, 0.0
    %v2171 = vsel %vm1915, %v2044, 0.0
    %v2172 = vsel %vm1916, %v2044, 0.0
    %v2173 = vsel %vm1917, %v2044, 0.0
    %v2174 = vsel %vm1918, %v2048, 0.0
    %v2175 = vsel %vm1919, %v2048, 0.0
    %v2176 = vsel %vm1920, %v2048, 0.0
    %v2177 = vsel %vm1921, %v2048, 0.0
    %2178 = vset.pattern.permute.xlu0 1
    %2179 = vperm.xlu0 %2178, %v430
    %v2180 = vpop.permute.xlu0 %2179
    %2181 = vset.pattern.permute.xlu0 1
    %2182 = vperm.xlu0 %2181, %v432
    %v2183 = vpop.permute.xlu0 %2182
    %2184 = vset.pattern.permute.xlu0 1
    %2185 = vperm.xlu0 %2184, %v434
    %v2186 = vpop.permute.xlu0 %2185
    %2187 = vset.pattern.permute.xlu0 1
    %2188 = vperm.xlu0 %2187, %v436
    %v2189 = vpop.permute.xlu0 %2188
    %2190 = vset.pattern.permute.xlu0 1
    %2191 = vperm.xlu0 %2190, %v438
    %v2192 = vpop.permute.xlu0 %2191
    %2193 = vset.pattern.permute.xlu0 1
    %2194 = vperm.xlu0 %2193, %v440
    %v2195 = vpop.permute.xlu0 %2194
    %2196 = vset.pattern.permute.xlu0 1
    %2197 = vperm.xlu0 %2196, %v442
    %v2198 = vpop.permute.xlu0 %2197
    %2199 = vset.pattern.permute.xlu0 1
    %2200 = vperm.xlu0 %2199, %v444
    %v2201 = vpop.permute.xlu0 %2200
    %2202 = vset.pattern.permute.xlu0 1
    %2203 = vperm.xlu0 %2202, %v446
    %v2204 = vpop.permute.xlu0 %2203
    %2205 = vset.pattern.permute.xlu0 1
    %2206 = vperm.xlu0 %2205, %v448
    %v2207 = vpop.permute.xlu0 %2206
    %2208 = vset.pattern.permute.xlu0 1
    %2209 = vperm.xlu0 %2208, %v450
    %v2210 = vpop.permute.xlu0 %2209
    %2211 = vset.pattern.permute.xlu0 1
    %2212 = vperm.xlu0 %2211, %v452
    %v2213 = vpop.permute.xlu0 %2212
    %2214 = vset.pattern.permute.xlu0 1
    %2215 = vperm.xlu0 %2214, %v454
    %v2216 = vpop.permute.xlu0 %2215
    %2217 = vset.pattern.permute.xlu0 1
    %2218 = vperm.xlu0 %2217, %v456
    %v2219 = vpop.permute.xlu0 %2218
    %2220 = vset.pattern.permute.xlu0 1
    %2221 = vperm.xlu0 %2220, %v458
    %v2222 = vpop.permute.xlu0 %2221
    %2223 = vset.pattern.permute.xlu0 1
    %2224 = vperm.xlu0 %2223, %v460
    %v2225 = vpop.permute.xlu0 %2224
    %2226 = vset.pattern.permute.xlu0 1
    %2227 = vperm.xlu0 %2226, %v462
    %v2228 = vpop.permute.xlu0 %2227
    %2229 = vset.pattern.permute.xlu0 1
    %2230 = vperm.xlu0 %2229, %v464
    %v2231 = vpop.permute.xlu0 %2230
    %2232 = vset.pattern.permute.xlu0 1
    %2233 = vperm.xlu0 %2232, %v466
    %v2234 = vpop.permute.xlu0 %2233
    %2235 = vset.pattern.permute.xlu0 1
    %2236 = vperm.xlu0 %2235, %v468
    %v2237 = vpop.permute.xlu0 %2236
    %2238 = vset.pattern.permute.xlu0 1
    %2239 = vperm.xlu0 %2238, %v470
    %v2240 = vpop.permute.xlu0 %2239
    %2241 = vset.pattern.permute.xlu0 1
    %2242 = vperm.xlu0 %2241, %v472
    %v2243 = vpop.permute.xlu0 %2242
    %2244 = vset.pattern.permute.xlu0 1
    %2245 = vperm.xlu0 %2244, %v474
    %v2246 = vpop.permute.xlu0 %2245
    %2247 = vset.pattern.permute.xlu0 1
    %2248 = vperm.xlu0 %2247, %v476
    %v2249 = vpop.permute.xlu0 %2248
    %2250 = vset.pattern.permute.xlu0 1
    %2251 = vperm.xlu0 %2250, %v478
    %v2252 = vpop.permute.xlu0 %2251
    %2253 = vset.pattern.permute.xlu0 1
    %2254 = vperm.xlu0 %2253, %v480
    %v2255 = vpop.permute.xlu0 %2254
    %2256 = vset.pattern.permute.xlu0 1
    %2257 = vperm.xlu0 %2256, %v482
    %v2258 = vpop.permute.xlu0 %2257
    %2259 = vset.pattern.permute.xlu0 1
    %2260 = vperm.xlu0 %2259, %v484
    %v2261 = vpop.permute.xlu0 %2260
    %2262 = vset.pattern.permute.xlu0 1
    %2263 = vperm.xlu0 %2262, %v486
    %v2264 = vpop.permute.xlu0 %2263
    %2265 = vset.pattern.permute.xlu0 1
    %2266 = vperm.xlu0 %2265, %v488
    %v2267 = vpop.permute.xlu0 %2266
    %2268 = vset.pattern.permute.xlu0 1
    %2269 = vperm.xlu0 %2268, %v490
    %v2270 = vpop.permute.xlu0 %2269
    %2271 = vset.pattern.permute.xlu0 1
    %2272 = vperm.xlu0 %2271, %v492
    %v2273 = vpop.permute.xlu0 %2272
    %vm2274 = vcmp.eq.s32.totalorder %v506, %v2180
    %vm2275 = vcmp.eq.s32.totalorder %v507, %v2180
    %vm2276 = vcmp.eq.s32.totalorder %v508, %v2180
    %vm2277 = vcmp.eq.s32.totalorder %v509, %v2180
    %vm2278 = vcmp.eq.s32.totalorder %v506, %v2183
    %vm2279 = vcmp.eq.s32.totalorder %v507, %v2183
    %vm2280 = vcmp.eq.s32.totalorder %v508, %v2183
    %vm2281 = vcmp.eq.s32.totalorder %v509, %v2183
    %vm2282 = vcmp.eq.s32.totalorder %v506, %v2186
    %vm2283 = vcmp.eq.s32.totalorder %v507, %v2186
    %vm2284 = vcmp.eq.s32.totalorder %v508, %v2186
    %vm2285 = vcmp.eq.s32.totalorder %v509, %v2186
    %vm2286 = vcmp.eq.s32.totalorder %v506, %v2189
    %vm2287 = vcmp.eq.s32.totalorder %v507, %v2189
    %vm2288 = vcmp.eq.s32.totalorder %v508, %v2189
    %vm2289 = vcmp.eq.s32.totalorder %v509, %v2189
    %vm2290 = vcmp.eq.s32.totalorder %v506, %v2192
    %vm2291 = vcmp.eq.s32.totalorder %v507, %v2192
    %vm2292 = vcmp.eq.s32.totalorder %v508, %v2192
    %vm2293 = vcmp.eq.s32.totalorder %v509, %v2192
    %vm2294 = vcmp.eq.s32.totalorder %v506, %v2195
    %vm2295 = vcmp.eq.s32.totalorder %v507, %v2195
    %vm2296 = vcmp.eq.s32.totalorder %v508, %v2195
    %vm2297 = vcmp.eq.s32.totalorder %v509, %v2195
    %vm2298 = vcmp.eq.s32.totalorder %v506, %v2198
    %vm2299 = vcmp.eq.s32.totalorder %v507, %v2198
    %vm2300 = vcmp.eq.s32.totalorder %v508, %v2198
    %vm2301 = vcmp.eq.s32.totalorder %v509, %v2198
    %vm2302 = vcmp.eq.s32.totalorder %v506, %v2201
    %vm2303 = vcmp.eq.s32.totalorder %v507, %v2201
    %vm2304 = vcmp.eq.s32.totalorder %v508, %v2201
    %vm2305 = vcmp.eq.s32.totalorder %v509, %v2201
    %vm2306 = vcmp.eq.s32.totalorder %v506, %v2204
    %vm2307 = vcmp.eq.s32.totalorder %v507, %v2204
    %vm2308 = vcmp.eq.s32.totalorder %v508, %v2204
    %vm2309 = vcmp.eq.s32.totalorder %v509, %v2204
    %vm2310 = vcmp.eq.s32.totalorder %v506, %v2207
    %vm2311 = vcmp.eq.s32.totalorder %v507, %v2207
    %vm2312 = vcmp.eq.s32.totalorder %v508, %v2207
    %vm2313 = vcmp.eq.s32.totalorder %v509, %v2207
    %vm2314 = vcmp.eq.s32.totalorder %v506, %v2210
    %vm2315 = vcmp.eq.s32.totalorder %v507, %v2210
    %vm2316 = vcmp.eq.s32.totalorder %v508, %v2210
    %vm2317 = vcmp.eq.s32.totalorder %v509, %v2210
    %vm2318 = vcmp.eq.s32.totalorder %v506, %v2213
    %vm2319 = vcmp.eq.s32.totalorder %v507, %v2213
    %vm2320 = vcmp.eq.s32.totalorder %v508, %v2213
    %vm2321 = vcmp.eq.s32.totalorder %v509, %v2213
    %vm2322 = vcmp.eq.s32.totalorder %v506, %v2216
    %vm2323 = vcmp.eq.s32.totalorder %v507, %v2216
    %vm2324 = vcmp.eq.s32.totalorder %v508, %v2216
    %vm2325 = vcmp.eq.s32.totalorder %v509, %v2216
    %vm2326 = vcmp.eq.s32.totalorder %v506, %v2219
    %vm2327 = vcmp.eq.s32.totalorder %v507, %v2219
    %vm2328 = vcmp.eq.s32.totalorder %v508, %v2219
    %vm2329 = vcmp.eq.s32.totalorder %v509, %v2219
    %vm2330 = vcmp.eq.s32.totalorder %v506, %v2222
    %vm2331 = vcmp.eq.s32.totalorder %v507, %v2222
    %vm2332 = vcmp.eq.s32.totalorder %v508, %v2222
    %vm2333 = vcmp.eq.s32.totalorder %v509, %v2222
    %vm2334 = vcmp.eq.s32.totalorder %v506, %v2225
    %vm2335 = vcmp.eq.s32.totalorder %v507, %v2225
    %vm2336 = vcmp.eq.s32.totalorder %v508, %v2225
    %vm2337 = vcmp.eq.s32.totalorder %v509, %v2225
    %vm2338 = vcmp.eq.s32.totalorder %v506, %v2228
    %vm2339 = vcmp.eq.s32.totalorder %v507, %v2228
    %vm2340 = vcmp.eq.s32.totalorder %v508, %v2228
    %vm2341 = vcmp.eq.s32.totalorder %v509, %v2228
    %vm2342 = vcmp.eq.s32.totalorder %v506, %v2231
    %vm2343 = vcmp.eq.s32.totalorder %v507, %v2231
    %vm2344 = vcmp.eq.s32.totalorder %v508, %v2231
    %vm2345 = vcmp.eq.s32.totalorder %v509, %v2231
    %vm2346 = vcmp.eq.s32.totalorder %v506, %v2234
    %vm2347 = vcmp.eq.s32.totalorder %v507, %v2234
    %vm2348 = vcmp.eq.s32.totalorder %v508, %v2234
    %vm2349 = vcmp.eq.s32.totalorder %v509, %v2234
    %vm2350 = vcmp.eq.s32.totalorder %v506, %v2237
    %vm2351 = vcmp.eq.s32.totalorder %v507, %v2237
    %vm2352 = vcmp.eq.s32.totalorder %v508, %v2237
    %vm2353 = vcmp.eq.s32.totalorder %v509, %v2237
    %vm2354 = vcmp.eq.s32.totalorder %v506, %v2240
    %vm2355 = vcmp.eq.s32.totalorder %v507, %v2240
    %vm2356 = vcmp.eq.s32.totalorder %v508, %v2240
    %vm2357 = vcmp.eq.s32.totalorder %v509, %v2240
    %vm2358 = vcmp.eq.s32.totalorder %v506, %v2243
    %vm2359 = vcmp.eq.s32.totalorder %v507, %v2243
    %vm2360 = vcmp.eq.s32.totalorder %v508, %v2243
    %vm2361 = vcmp.eq.s32.totalorder %v509, %v2243
    %vm2362 = vcmp.eq.s32.totalorder %v506, %v2246
    %vm2363 = vcmp.eq.s32.totalorder %v507, %v2246
    %vm2364 = vcmp.eq.s32.totalorder %v508, %v2246
    %vm2365 = vcmp.eq.s32.totalorder %v509, %v2246
    %vm2366 = vcmp.eq.s32.totalorder %v506, %v2249
    %vm2367 = vcmp.eq.s32.totalorder %v507, %v2249
    %vm2368 = vcmp.eq.s32.totalorder %v508, %v2249
    %vm2369 = vcmp.eq.s32.totalorder %v509, %v2249
    %vm2370 = vcmp.eq.s32.totalorder %v506, %v2252
    %vm2371 = vcmp.eq.s32.totalorder %v507, %v2252
    %vm2372 = vcmp.eq.s32.totalorder %v508, %v2252
    %vm2373 = vcmp.eq.s32.totalorder %v509, %v2252
    %vm2374 = vcmp.eq.s32.totalorder %v506, %v2255
    %vm2375 = vcmp.eq.s32.totalorder %v507, %v2255
    %vm2376 = vcmp.eq.s32.totalorder %v508, %v2255
    %vm2377 = vcmp.eq.s32.totalorder %v509, %v2255
    %vm2378 = vcmp.eq.s32.totalorder %v506, %v2258
    %vm2379 = vcmp.eq.s32.totalorder %v507, %v2258
    %vm2380 = vcmp.eq.s32.totalorder %v508, %v2258
    %vm2381 = vcmp.eq.s32.totalorder %v509, %v2258
    %vm2382 = vcmp.eq.s32.totalorder %v506, %v2261
    %vm2383 = vcmp.eq.s32.totalorder %v507, %v2261
    %vm2384 = vcmp.eq.s32.totalorder %v508, %v2261
    %vm2385 = vcmp.eq.s32.totalorder %v509, %v2261
    %vm2386 = vcmp.eq.s32.totalorder %v506, %v2264
    %vm2387 = vcmp.eq.s32.totalorder %v507, %v2264
    %vm2388 = vcmp.eq.s32.totalorder %v508, %v2264
    %vm2389 = vcmp.eq.s32.totalorder %v509, %v2264
    %vm2390 = vcmp.eq.s32.totalorder %v506, %v2267
    %vm2391 = vcmp.eq.s32.totalorder %v507, %v2267
    %vm2392 = vcmp.eq.s32.totalorder %v508, %v2267
    %vm2393 = vcmp.eq.s32.totalorder %v509, %v2267
    %vm2394 = vcmp.eq.s32.totalorder %v506, %v2270
    %vm2395 = vcmp.eq.s32.totalorder %v507, %v2270
    %vm2396 = vcmp.eq.s32.totalorder %v508, %v2270
    %vm2397 = vcmp.eq.s32.totalorder %v509, %v2270
    %vm2398 = vcmp.eq.s32.totalorder %v506, %v2273
    %vm2399 = vcmp.eq.s32.totalorder %v507, %v2273
    %vm2400 = vcmp.eq.s32.totalorder %v508, %v2273
    %vm2401 = vcmp.eq.s32.totalorder %v509, %v2273
    %2402 = vset.pattern.permute.xlu0 1
    %2403 = vperm.xlu0 %2402, %v205
    %v2404 = vpop.permute.xlu0 %2403
    %2406 = vset.pattern.permute.xlu0 1
    %2407 = vperm.xlu0 %2406, %v206
    %v2408 = vpop.permute.xlu0 %2407
    %2410 = vset.pattern.permute.xlu0 1
    %2411 = vperm.xlu0 %2410, %v207
    %v2412 = vpop.permute.xlu0 %2411
    %2414 = vset.pattern.permute.xlu0 1
    %2415 = vperm.xlu0 %2414, %v208
    %v2416 = vpop.permute.xlu0 %2415
    %2418 = vset.pattern.permute.xlu0 1
    %2419 = vperm.xlu0 %2418, %v209
    %v2420 = vpop.permute.xlu0 %2419
    %2422 = vset.pattern.permute.xlu0 1
    %2423 = vperm.xlu0 %2422, %v210
    %v2424 = vpop.permute.xlu0 %2423
    %2426 = vset.pattern.permute.xlu0 1
    %2427 = vperm.xlu0 %2426, %v211
    %v2428 = vpop.permute.xlu0 %2427
    %2430 = vset.pattern.permute.xlu0 1
    %2431 = vperm.xlu0 %2430, %v212
    %v2432 = vpop.permute.xlu0 %2431
    %2434 = vset.pattern.permute.xlu0 1
    %2435 = vperm.xlu0 %2434, %v213
    %v2436 = vpop.permute.xlu0 %2435
    %2438 = vset.pattern.permute.xlu0 1
    %2439 = vperm.xlu0 %2438, %v214
    %v2440 = vpop.permute.xlu0 %2439
    %2442 = vset.pattern.permute.xlu0 1
    %2443 = vperm.xlu0 %2442, %v215
    %v2444 = vpop.permute.xlu0 %2443
    %2446 = vset.pattern.permute.xlu0 1
    %2447 = vperm.xlu0 %2446, %v216
    %v2448 = vpop.permute.xlu0 %2447
    %2450 = vset.pattern.permute.xlu0 1
    %2451 = vperm.xlu0 %2450, %v217
    %v2452 = vpop.permute.xlu0 %2451
    %2454 = vset.pattern.permute.xlu0 1
    %2455 = vperm.xlu0 %2454, %v218
    %v2456 = vpop.permute.xlu0 %2455
    %2458 = vset.pattern.permute.xlu0 1
    %2459 = vperm.xlu0 %2458, %v219
    %v2460 = vpop.permute.xlu0 %2459
    %2462 = vset.pattern.permute.xlu0 1
    %2463 = vperm.xlu0 %2462, %v220
    %v2464 = vpop.permute.xlu0 %2463
    %2466 = vset.pattern.permute.xlu0 1
    %2467 = vperm.xlu0 %2466, %v221
    %v2468 = vpop.permute.xlu0 %2467
    %2470 = vset.pattern.permute.xlu0 1
    %2471 = vperm.xlu0 %2470, %v222
    %v2472 = vpop.permute.xlu0 %2471
    %2474 = vset.pattern.permute.xlu0 1
    %2475 = vperm.xlu0 %2474, %v223
    %v2476 = vpop.permute.xlu0 %2475
    %2478 = vset.pattern.permute.xlu0 1
    %2479 = vperm.xlu0 %2478, %v224
    %v2480 = vpop.permute.xlu0 %2479
    %2482 = vset.pattern.permute.xlu0 1
    %2483 = vperm.xlu0 %2482, %v225
    %v2484 = vpop.permute.xlu0 %2483
    %2486 = vset.pattern.permute.xlu0 1
    %2487 = vperm.xlu0 %2486, %v226
    %v2488 = vpop.permute.xlu0 %2487
    %2490 = vset.pattern.permute.xlu0 1
    %2491 = vperm.xlu0 %2490, %v227
    %v2492 = vpop.permute.xlu0 %2491
    %2494 = vset.pattern.permute.xlu0 1
    %2495 = vperm.xlu0 %2494, %v228
    %v2496 = vpop.permute.xlu0 %2495
    %2498 = vset.pattern.permute.xlu0 1
    %2499 = vperm.xlu0 %2498, %v229
    %v2500 = vpop.permute.xlu0 %2499
    %2502 = vset.pattern.permute.xlu0 1
    %2503 = vperm.xlu0 %2502, %v230
    %v2504 = vpop.permute.xlu0 %2503
    %2506 = vset.pattern.permute.xlu0 1
    %2507 = vperm.xlu0 %2506, %v231
    %v2508 = vpop.permute.xlu0 %2507
    %2510 = vset.pattern.permute.xlu0 1
    %2511 = vperm.xlu0 %2510, %v232
    %v2512 = vpop.permute.xlu0 %2511
    %2514 = vset.pattern.permute.xlu0 1
    %2515 = vperm.xlu0 %2514, %v233
    %v2516 = vpop.permute.xlu0 %2515
    %2518 = vset.pattern.permute.xlu0 1
    %2519 = vperm.xlu0 %2518, %v234
    %v2520 = vpop.permute.xlu0 %2519
    %2522 = vset.pattern.permute.xlu0 1
    %2523 = vperm.xlu0 %2522, %v235
    %v2524 = vpop.permute.xlu0 %2523
    %2526 = vset.pattern.permute.xlu0 1
    %2527 = vperm.xlu0 %2526, %v236
    %v2528 = vpop.permute.xlu0 %2527
    %v2530 = vsel %vm2274, %v2404, 0.0
    %v2531 = vsel %vm2275, %v2404, 0.0
    %v2532 = vsel %vm2276, %v2404, 0.0
    %v2533 = vsel %vm2277, %v2404, 0.0
    %v2534 = vsel %vm2278, %v2408, 0.0
    %v2535 = vsel %vm2279, %v2408, 0.0
    %v2536 = vsel %vm2280, %v2408, 0.0
    %v2537 = vsel %vm2281, %v2408, 0.0
    %v2538 = vsel %vm2282, %v2412, 0.0
    %v2539 = vsel %vm2283, %v2412, 0.0
    %v2540 = vsel %vm2284, %v2412, 0.0
    %v2541 = vsel %vm2285, %v2412, 0.0
    %v2542 = vsel %vm2286, %v2416, 0.0
    %v2543 = vsel %vm2287, %v2416, 0.0
    %v2544 = vsel %vm2288, %v2416, 0.0
    %v2545 = vsel %vm2289, %v2416, 0.0
    %v2546 = vsel %vm2290, %v2420, 0.0
    %v2547 = vsel %vm2291, %v2420, 0.0
    %v2548 = vsel %vm2292, %v2420, 0.0
    %v2549 = vsel %vm2293, %v2420, 0.0
    %v2550 = vsel %vm2294, %v2424, 0.0
    %v2551 = vsel %vm2295, %v2424, 0.0
    %v2552 = vsel %vm2296, %v2424, 0.0
    %v2553 = vsel %vm2297, %v2424, 0.0
    %v2554 = vsel %vm2298, %v2428, 0.0
    %v2555 = vsel %vm2299, %v2428, 0.0
    %v2556 = vsel %vm2300, %v2428, 0.0
    %v2557 = vsel %vm2301, %v2428, 0.0
    %v2558 = vsel %vm2302, %v2432, 0.0
    %v2559 = vsel %vm2303, %v2432, 0.0
    %v2560 = vsel %vm2304, %v2432, 0.0
    %v2561 = vsel %vm2305, %v2432, 0.0
    %v2562 = vsel %vm2306, %v2436, 0.0
    %v2563 = vsel %vm2307, %v2436, 0.0
    %v2564 = vsel %vm2308, %v2436, 0.0
    %v2565 = vsel %vm2309, %v2436, 0.0
    %v2566 = vsel %vm2310, %v2440, 0.0
    %v2567 = vsel %vm2311, %v2440, 0.0
    %v2568 = vsel %vm2312, %v2440, 0.0
    %v2569 = vsel %vm2313, %v2440, 0.0
    %v2570 = vsel %vm2314, %v2444, 0.0
    %v2571 = vsel %vm2315, %v2444, 0.0
    %v2572 = vsel %vm2316, %v2444, 0.0
    %v2573 = vsel %vm2317, %v2444, 0.0
    %v2574 = vsel %vm2318, %v2448, 0.0
    %v2575 = vsel %vm2319, %v2448, 0.0
    %v2576 = vsel %vm2320, %v2448, 0.0
    %v2577 = vsel %vm2321, %v2448, 0.0
    %v2578 = vsel %vm2322, %v2452, 0.0
    %v2579 = vsel %vm2323, %v2452, 0.0
    %v2580 = vsel %vm2324, %v2452, 0.0
    %v2581 = vsel %vm2325, %v2452, 0.0
    %v2582 = vsel %vm2326, %v2456, 0.0
    %v2583 = vsel %vm2327, %v2456, 0.0
    %v2584 = vsel %vm2328, %v2456, 0.0
    %v2585 = vsel %vm2329, %v2456, 0.0
    %v2586 = vsel %vm2330, %v2460, 0.0
    %v2587 = vsel %vm2331, %v2460, 0.0
    %v2588 = vsel %vm2332, %v2460, 0.0
    %v2589 = vsel %vm2333, %v2460, 0.0
    %v2590 = vsel %vm2334, %v2464, 0.0
    %v2591 = vsel %vm2335, %v2464, 0.0
    %v2592 = vsel %vm2336, %v2464, 0.0
    %v2593 = vsel %vm2337, %v2464, 0.0
    %v2594 = vsel %vm2338, %v2468, 0.0
    %v2595 = vsel %vm2339, %v2468, 0.0
    %v2596 = vsel %vm2340, %v2468, 0.0
    %v2597 = vsel %vm2341, %v2468, 0.0
    %v2598 = vsel %vm2342, %v2472, 0.0
    %v2599 = vsel %vm2343, %v2472, 0.0
    %v2600 = vsel %vm2344, %v2472, 0.0
    %v2601 = vsel %vm2345, %v2472, 0.0
    %v2602 = vsel %vm2346, %v2476, 0.0
    %v2603 = vsel %vm2347, %v2476, 0.0
    %v2604 = vsel %vm2348, %v2476, 0.0
    %v2605 = vsel %vm2349, %v2476, 0.0
    %v2606 = vsel %vm2350, %v2480, 0.0
    %v2607 = vsel %vm2351, %v2480, 0.0
    %v2608 = vsel %vm2352, %v2480, 0.0
    %v2609 = vsel %vm2353, %v2480, 0.0
    %v2610 = vsel %vm2354, %v2484, 0.0
    %v2611 = vsel %vm2355, %v2484, 0.0
    %v2612 = vsel %vm2356, %v2484, 0.0
    %v2613 = vsel %vm2357, %v2484, 0.0
    %v2614 = vsel %vm2358, %v2488, 0.0
    %v2615 = vsel %vm2359, %v2488, 0.0
    %v2616 = vsel %vm2360, %v2488, 0.0
    %v2617 = vsel %vm2361, %v2488, 0.0
    %v2618 = vsel %vm2362, %v2492, 0.0
    %v2619 = vsel %vm2363, %v2492, 0.0
    %v2620 = vsel %vm2364, %v2492, 0.0
    %v2621 = vsel %vm2365, %v2492, 0.0
    %v2622 = vsel %vm2366, %v2496, 0.0
    %v2623 = vsel %vm2367, %v2496, 0.0
    %v2624 = vsel %vm2368, %v2496, 0.0
    %v2625 = vsel %vm2369, %v2496, 0.0
    %v2626 = vsel %vm2370, %v2500, 0.0
    %v2627 = vsel %vm2371, %v2500, 0.0
    %v2628 = vsel %vm2372, %v2500, 0.0
    %v2629 = vsel %vm2373, %v2500, 0.0
    %v2630 = vsel %vm2374, %v2504, 0.0
    %v2631 = vsel %vm2375, %v2504, 0.0
    %v2632 = vsel %vm2376, %v2504, 0.0
    %v2633 = vsel %vm2377, %v2504, 0.0
    %v2634 = vsel %vm2378, %v2508, 0.0
    %v2635 = vsel %vm2379, %v2508, 0.0
    %v2636 = vsel %vm2380, %v2508, 0.0
    %v2637 = vsel %vm2381, %v2508, 0.0
    %v2638 = vsel %vm2382, %v2512, 0.0
    %v2639 = vsel %vm2383, %v2512, 0.0
    %v2640 = vsel %vm2384, %v2512, 0.0
    %v2641 = vsel %vm2385, %v2512, 0.0
    %v2642 = vsel %vm2386, %v2516, 0.0
    %v2643 = vsel %vm2387, %v2516, 0.0
    %v2644 = vsel %vm2388, %v2516, 0.0
    %v2645 = vsel %vm2389, %v2516, 0.0
    %v2646 = vsel %vm2390, %v2520, 0.0
    %v2647 = vsel %vm2391, %v2520, 0.0
    %v2648 = vsel %vm2392, %v2520, 0.0
    %v2649 = vsel %vm2393, %v2520, 0.0
    %v2650 = vsel %vm2394, %v2524, 0.0
    %v2651 = vsel %vm2395, %v2524, 0.0
    %v2652 = vsel %vm2396, %v2524, 0.0
    %v2653 = vsel %vm2397, %v2524, 0.0
    %v2654 = vsel %vm2398, %v2528, 0.0
    %v2655 = vsel %vm2399, %v2528, 0.0
    %v2656 = vsel %vm2400, %v2528, 0.0
    %v2657 = vsel %vm2401, %v2528, 0.0
    %v2658 = vadd.f32 %v2050, %v2530
    %v2659 = vadd.f32 %v2051, %v2531
    %v2660 = vadd.f32 %v2052, %v2532
    %v2661 = vadd.f32 %v2053, %v2533
    %v2662 = vadd.f32 %v2054, %v2534
    %v2663 = vadd.f32 %v2055, %v2535
    %v2664 = vadd.f32 %v2056, %v2536
    %v2665 = vadd.f32 %v2057, %v2537
    %v2666 = vadd.f32 %v2058, %v2538
    %v2667 = vadd.f32 %v2059, %v2539
    %v2668 = vadd.f32 %v2060, %v2540
    %v2669 = vadd.f32 %v2061, %v2541
    %v2670 = vadd.f32 %v2062, %v2542
    %v2671 = vadd.f32 %v2063, %v2543
    %v2672 = vadd.f32 %v2064, %v2544
    %v2673 = vadd.f32 %v2065, %v2545
    %v2674 = vadd.f32 %v2066, %v2546
    %v2675 = vadd.f32 %v2067, %v2547
    %v2676 = vadd.f32 %v2068, %v2548
    %v2677 = vadd.f32 %v2069, %v2549
    %v2678 = vadd.f32 %v2070, %v2550
    %v2679 = vadd.f32 %v2071, %v2551
    %v2680 = vadd.f32 %v2072, %v2552
    %v2681 = vadd.f32 %v2073, %v2553
    %v2682 = vadd.f32 %v2074, %v2554
    %v2683 = vadd.f32 %v2075, %v2555
    %v2684 = vadd.f32 %v2076, %v2556
    %v2685 = vadd.f32 %v2077, %v2557
    %v2686 = vadd.f32 %v2078, %v2558
    %v2687 = vadd.f32 %v2079, %v2559
    %v2688 = vadd.f32 %v2080, %v2560
    %v2689 = vadd.f32 %v2081, %v2561
    %v2690 = vadd.f32 %v2082, %v2562
    %v2691 = vadd.f32 %v2083, %v2563
    %v2692 = vadd.f32 %v2084, %v2564
    %v2693 = vadd.f32 %v2085, %v2565
    %v2694 = vadd.f32 %v2086, %v2566
    %v2695 = vadd.f32 %v2087, %v2567
    %v2696 = vadd.f32 %v2088, %v2568
    %v2697 = vadd.f32 %v2089, %v2569
    %v2698 = vadd.f32 %v2090, %v2570
    %v2699 = vadd.f32 %v2091, %v2571
    %v2700 = vadd.f32 %v2092, %v2572
    %v2701 = vadd.f32 %v2093, %v2573
    %v2702 = vadd.f32 %v2094, %v2574
    %v2703 = vadd.f32 %v2095, %v2575
    %v2704 = vadd.f32 %v2096, %v2576
    %v2705 = vadd.f32 %v2097, %v2577
    %v2706 = vadd.f32 %v2098, %v2578
    %v2707 = vadd.f32 %v2099, %v2579
    %v2708 = vadd.f32 %v2100, %v2580
    %v2709 = vadd.f32 %v2101, %v2581
    %v2710 = vadd.f32 %v2102, %v2582
    %v2711 = vadd.f32 %v2103, %v2583
    %v2712 = vadd.f32 %v2104, %v2584
    %v2713 = vadd.f32 %v2105, %v2585
    %v2714 = vadd.f32 %v2106, %v2586
    %v2715 = vadd.f32 %v2107, %v2587
    %v2716 = vadd.f32 %v2108, %v2588
    %v2717 = vadd.f32 %v2109, %v2589
    %v2718 = vadd.f32 %v2110, %v2590
    %v2719 = vadd.f32 %v2111, %v2591
    %v2720 = vadd.f32 %v2112, %v2592
    %v2721 = vadd.f32 %v2113, %v2593
    %v2722 = vadd.f32 %v2114, %v2594
    %v2723 = vadd.f32 %v2115, %v2595
    %v2724 = vadd.f32 %v2116, %v2596
    %v2725 = vadd.f32 %v2117, %v2597
    %v2726 = vadd.f32 %v2118, %v2598
    %v2727 = vadd.f32 %v2119, %v2599
    %v2728 = vadd.f32 %v2120, %v2600
    %v2729 = vadd.f32 %v2121, %v2601
    %v2730 = vadd.f32 %v2122, %v2602
    %v2731 = vadd.f32 %v2123, %v2603
    %v2732 = vadd.f32 %v2124, %v2604
    %v2733 = vadd.f32 %v2125, %v2605
    %v2734 = vadd.f32 %v2126, %v2606
    %v2735 = vadd.f32 %v2127, %v2607
    %v2736 = vadd.f32 %v2128, %v2608
    %v2737 = vadd.f32 %v2129, %v2609
    %v2738 = vadd.f32 %v2130, %v2610
    %v2739 = vadd.f32 %v2131, %v2611
    %v2740 = vadd.f32 %v2132, %v2612
    %v2741 = vadd.f32 %v2133, %v2613
    %v2742 = vadd.f32 %v2134, %v2614
    %v2743 = vadd.f32 %v2135, %v2615
    %v2744 = vadd.f32 %v2136, %v2616
    %v2745 = vadd.f32 %v2137, %v2617
    %v2746 = vadd.f32 %v2138, %v2618
    %v2747 = vadd.f32 %v2139, %v2619
    %v2748 = vadd.f32 %v2140, %v2620
    %v2749 = vadd.f32 %v2141, %v2621
    %v2750 = vadd.f32 %v2142, %v2622
    %v2751 = vadd.f32 %v2143, %v2623
    %v2752 = vadd.f32 %v2144, %v2624
    %v2753 = vadd.f32 %v2145, %v2625
    %v2754 = vadd.f32 %v2146, %v2626
    %v2755 = vadd.f32 %v2147, %v2627
    %v2756 = vadd.f32 %v2148, %v2628
    %v2757 = vadd.f32 %v2149, %v2629
    %v2758 = vadd.f32 %v2150, %v2630
    %v2759 = vadd.f32 %v2151, %v2631
    %v2760 = vadd.f32 %v2152, %v2632
    %v2761 = vadd.f32 %v2153, %v2633
    %v2762 = vadd.f32 %v2154, %v2634
    %v2763 = vadd.f32 %v2155, %v2635
    %v2764 = vadd.f32 %v2156, %v2636
    %v2765 = vadd.f32 %v2157, %v2637
    %v2766 = vadd.f32 %v2158, %v2638
    %v2767 = vadd.f32 %v2159, %v2639
    %v2768 = vadd.f32 %v2160, %v2640
    %v2769 = vadd.f32 %v2161, %v2641
    %v2770 = vadd.f32 %v2162, %v2642
    %v2771 = vadd.f32 %v2163, %v2643
    %v2772 = vadd.f32 %v2164, %v2644
    %v2773 = vadd.f32 %v2165, %v2645
    %v2774 = vadd.f32 %v2166, %v2646
    %v2775 = vadd.f32 %v2167, %v2647
    %v2776 = vadd.f32 %v2168, %v2648
    %v2777 = vadd.f32 %v2169, %v2649
    %v2778 = vadd.f32 %v2170, %v2650
    %v2779 = vadd.f32 %v2171, %v2651
    %v2780 = vadd.f32 %v2172, %v2652
    %v2781 = vadd.f32 %v2173, %v2653
    %v2782 = vadd.f32 %v2174, %v2654
    %v2783 = vadd.f32 %v2175, %v2655
    %v2784 = vadd.f32 %v2176, %v2656
    %v2785 = vadd.f32 %v2177, %v2657
    %2786 = vset.pattern.permute.xlu0 2
    %2787 = vperm.xlu0 %2786, %v334
    %v2788 = vpop.permute.xlu0 %2787
    %2789 = vset.pattern.permute.xlu0 2
    %2790 = vperm.xlu0 %2789, %v336
    %v2791 = vpop.permute.xlu0 %2790
    %2792 = vset.pattern.permute.xlu0 2
    %2793 = vperm.xlu0 %2792, %v338
    %v2794 = vpop.permute.xlu0 %2793
    %2795 = vset.pattern.permute.xlu0 2
    %2796 = vperm.xlu0 %2795, %v340
    %v2797 = vpop.permute.xlu0 %2796
    %2798 = vset.pattern.permute.xlu0 2
    %2799 = vperm.xlu0 %2798, %v342
    %v2800 = vpop.permute.xlu0 %2799
    %2801 = vset.pattern.permute.xlu0 2
    %2802 = vperm.xlu0 %2801, %v344
    %v2803 = vpop.permute.xlu0 %2802
    %2804 = vset.pattern.permute.xlu0 2
    %2805 = vperm.xlu0 %2804, %v346
    %v2806 = vpop.permute.xlu0 %2805
    %2807 = vset.pattern.permute.xlu0 2
    %2808 = vperm.xlu0 %2807, %v348
    %v2809 = vpop.permute.xlu0 %2808
    %2810 = vset.pattern.permute.xlu0 2
    %2811 = vperm.xlu0 %2810, %v350
    %v2812 = vpop.permute.xlu0 %2811
    %2813 = vset.pattern.permute.xlu0 2
    %2814 = vperm.xlu0 %2813, %v352
    %v2815 = vpop.permute.xlu0 %2814
    %2816 = vset.pattern.permute.xlu0 2
    %2817 = vperm.xlu0 %2816, %v354
    %v2818 = vpop.permute.xlu0 %2817
    %2819 = vset.pattern.permute.xlu0 2
    %2820 = vperm.xlu0 %2819, %v356
    %v2821 = vpop.permute.xlu0 %2820
    %2822 = vset.pattern.permute.xlu0 2
    %2823 = vperm.xlu0 %2822, %v358
    %v2824 = vpop.permute.xlu0 %2823
    %2825 = vset.pattern.permute.xlu0 2
    %2826 = vperm.xlu0 %2825, %v360
    %v2827 = vpop.permute.xlu0 %2826
    %2828 = vset.pattern.permute.xlu0 2
    %2829 = vperm.xlu0 %2828, %v362
    %v2830 = vpop.permute.xlu0 %2829
    %2831 = vset.pattern.permute.xlu0 2
    %2832 = vperm.xlu0 %2831, %v364
    %v2833 = vpop.permute.xlu0 %2832
    %2834 = vset.pattern.permute.xlu0 2
    %2835 = vperm.xlu0 %2834, %v366
    %v2836 = vpop.permute.xlu0 %2835
    %2837 = vset.pattern.permute.xlu0 2
    %2838 = vperm.xlu0 %2837, %v368
    %v2839 = vpop.permute.xlu0 %2838
    %2840 = vset.pattern.permute.xlu0 2
    %2841 = vperm.xlu0 %2840, %v370
    %v2842 = vpop.permute.xlu0 %2841
    %2843 = vset.pattern.permute.xlu0 2
    %2844 = vperm.xlu0 %2843, %v372
    %v2845 = vpop.permute.xlu0 %2844
    %2846 = vset.pattern.permute.xlu0 2
    %2847 = vperm.xlu0 %2846, %v374
    %v2848 = vpop.permute.xlu0 %2847
    %2849 = vset.pattern.permute.xlu0 2
    %2850 = vperm.xlu0 %2849, %v376
    %v2851 = vpop.permute.xlu0 %2850
    %2852 = vset.pattern.permute.xlu0 2
    %2853 = vperm.xlu0 %2852, %v378
    %v2854 = vpop.permute.xlu0 %2853
    %2855 = vset.pattern.permute.xlu0 2
    %2856 = vperm.xlu0 %2855, %v380
    %v2857 = vpop.permute.xlu0 %2856
    %2858 = vset.pattern.permute.xlu0 2
    %2859 = vperm.xlu0 %2858, %v382
    %v2860 = vpop.permute.xlu0 %2859
    %2861 = vset.pattern.permute.xlu0 2
    %2862 = vperm.xlu0 %2861, %v384
    %v2863 = vpop.permute.xlu0 %2862
    %2864 = vset.pattern.permute.xlu0 2
    %2865 = vperm.xlu0 %2864, %v386
    %v2866 = vpop.permute.xlu0 %2865
    %2867 = vset.pattern.permute.xlu0 2
    %2868 = vperm.xlu0 %2867, %v388
    %v2869 = vpop.permute.xlu0 %2868
    %2870 = vset.pattern.permute.xlu0 2
    %2871 = vperm.xlu0 %2870, %v390
    %v2872 = vpop.permute.xlu0 %2871
    %2873 = vset.pattern.permute.xlu0 2
    %2874 = vperm.xlu0 %2873, %v392
    %v2875 = vpop.permute.xlu0 %2874
    %2876 = vset.pattern.permute.xlu0 2
    %2877 = vperm.xlu0 %2876, %v394
    %v2878 = vpop.permute.xlu0 %2877
    %2879 = vset.pattern.permute.xlu0 2
    %2880 = vperm.xlu0 %2879, %v396
    %v2881 = vpop.permute.xlu0 %2880
    %vm2882 = vcmp.eq.s32.totalorder %v510, %v2788
    %vm2883 = vcmp.eq.s32.totalorder %v511, %v2788
    %vm2884 = vcmp.eq.s32.totalorder %v512, %v2788
    %vm2885 = vcmp.eq.s32.totalorder %v513, %v2788
    %vm2886 = vcmp.eq.s32.totalorder %v510, %v2791
    %vm2887 = vcmp.eq.s32.totalorder %v511, %v2791
    %vm2888 = vcmp.eq.s32.totalorder %v512, %v2791
    %vm2889 = vcmp.eq.s32.totalorder %v513, %v2791
    %vm2890 = vcmp.eq.s32.totalorder %v510, %v2794
    %vm2891 = vcmp.eq.s32.totalorder %v511, %v2794
    %vm2892 = vcmp.eq.s32.totalorder %v512, %v2794
    %vm2893 = vcmp.eq.s32.totalorder %v513, %v2794
    %vm2894 = vcmp.eq.s32.totalorder %v510, %v2797
    %vm2895 = vcmp.eq.s32.totalorder %v511, %v2797
    %vm2896 = vcmp.eq.s32.totalorder %v512, %v2797
    %vm2897 = vcmp.eq.s32.totalorder %v513, %v2797
    %vm2898 = vcmp.eq.s32.totalorder %v510, %v2800
    %vm2899 = vcmp.eq.s32.totalorder %v511, %v2800
    %vm2900 = vcmp.eq.s32.totalorder %v512, %v2800
    %vm2901 = vcmp.eq.s32.totalorder %v513, %v2800
    %vm2902 = vcmp.eq.s32.totalorder %v510, %v2803
    %vm2903 = vcmp.eq.s32.totalorder %v511, %v2803
    %vm2904 = vcmp.eq.s32.totalorder %v512, %v2803
    %vm2905 = vcmp.eq.s32.totalorder %v513, %v2803
    %vm2906 = vcmp.eq.s32.totalorder %v510, %v2806
    %vm2907 = vcmp.eq.s32.totalorder %v511, %v2806
    %vm2908 = vcmp.eq.s32.totalorder %v512, %v2806
    %vm2909 = vcmp.eq.s32.totalorder %v513, %v2806
    %vm2910 = vcmp.eq.s32.totalorder %v510, %v2809
    %vm2911 = vcmp.eq.s32.totalorder %v511, %v2809
    %vm2912 = vcmp.eq.s32.totalorder %v512, %v2809
    %vm2913 = vcmp.eq.s32.totalorder %v513, %v2809
    %vm2914 = vcmp.eq.s32.totalorder %v510, %v2812
    %vm2915 = vcmp.eq.s32.totalorder %v511, %v2812
    %vm2916 = vcmp.eq.s32.totalorder %v512, %v2812
    %vm2917 = vcmp.eq.s32.totalorder %v513, %v2812
    %vm2918 = vcmp.eq.s32.totalorder %v510, %v2815
    %vm2919 = vcmp.eq.s32.totalorder %v511, %v2815
    %vm2920 = vcmp.eq.s32.totalorder %v512, %v2815
    %vm2921 = vcmp.eq.s32.totalorder %v513, %v2815
    %vm2922 = vcmp.eq.s32.totalorder %v510, %v2818
    %vm2923 = vcmp.eq.s32.totalorder %v511, %v2818
    %vm2924 = vcmp.eq.s32.totalorder %v512, %v2818
    %vm2925 = vcmp.eq.s32.totalorder %v513, %v2818
    %vm2926 = vcmp.eq.s32.totalorder %v510, %v2821
    %vm2927 = vcmp.eq.s32.totalorder %v511, %v2821
    %vm2928 = vcmp.eq.s32.totalorder %v512, %v2821
    %vm2929 = vcmp.eq.s32.totalorder %v513, %v2821
    %vm2930 = vcmp.eq.s32.totalorder %v510, %v2824
    %vm2931 = vcmp.eq.s32.totalorder %v511, %v2824
    %vm2932 = vcmp.eq.s32.totalorder %v512, %v2824
    %vm2933 = vcmp.eq.s32.totalorder %v513, %v2824
    %vm2934 = vcmp.eq.s32.totalorder %v510, %v2827
    %vm2935 = vcmp.eq.s32.totalorder %v511, %v2827
    %vm2936 = vcmp.eq.s32.totalorder %v512, %v2827
    %vm2937 = vcmp.eq.s32.totalorder %v513, %v2827
    %vm2938 = vcmp.eq.s32.totalorder %v510, %v2830
    %vm2939 = vcmp.eq.s32.totalorder %v511, %v2830
    %vm2940 = vcmp.eq.s32.totalorder %v512, %v2830
    %vm2941 = vcmp.eq.s32.totalorder %v513, %v2830
    %vm2942 = vcmp.eq.s32.totalorder %v510, %v2833
    %vm2943 = vcmp.eq.s32.totalorder %v511, %v2833
    %vm2944 = vcmp.eq.s32.totalorder %v512, %v2833
    %vm2945 = vcmp.eq.s32.totalorder %v513, %v2833
    %vm2946 = vcmp.eq.s32.totalorder %v510, %v2836
    %vm2947 = vcmp.eq.s32.totalorder %v511, %v2836
    %vm2948 = vcmp.eq.s32.totalorder %v512, %v2836
    %vm2949 = vcmp.eq.s32.totalorder %v513, %v2836
    %vm2950 = vcmp.eq.s32.totalorder %v510, %v2839
    %vm2951 = vcmp.eq.s32.totalorder %v511, %v2839
    %vm2952 = vcmp.eq.s32.totalorder %v512, %v2839
    %vm2953 = vcmp.eq.s32.totalorder %v513, %v2839
    %vm2954 = vcmp.eq.s32.totalorder %v510, %v2842
    %vm2955 = vcmp.eq.s32.totalorder %v511, %v2842
    %vm2956 = vcmp.eq.s32.totalorder %v512, %v2842
    %vm2957 = vcmp.eq.s32.totalorder %v513, %v2842
    %vm2958 = vcmp.eq.s32.totalorder %v510, %v2845
    %vm2959 = vcmp.eq.s32.totalorder %v511, %v2845
    %vm2960 = vcmp.eq.s32.totalorder %v512, %v2845
    %vm2961 = vcmp.eq.s32.totalorder %v513, %v2845
    %vm2962 = vcmp.eq.s32.totalorder %v510, %v2848
    %vm2963 = vcmp.eq.s32.totalorder %v511, %v2848
    %vm2964 = vcmp.eq.s32.totalorder %v512, %v2848
    %vm2965 = vcmp.eq.s32.totalorder %v513, %v2848
    %vm2966 = vcmp.eq.s32.totalorder %v510, %v2851
    %vm2967 = vcmp.eq.s32.totalorder %v511, %v2851
    %vm2968 = vcmp.eq.s32.totalorder %v512, %v2851
    %vm2969 = vcmp.eq.s32.totalorder %v513, %v2851
    %vm2970 = vcmp.eq.s32.totalorder %v510, %v2854
    %vm2971 = vcmp.eq.s32.totalorder %v511, %v2854
    %vm2972 = vcmp.eq.s32.totalorder %v512, %v2854
    %vm2973 = vcmp.eq.s32.totalorder %v513, %v2854
    %vm2974 = vcmp.eq.s32.totalorder %v510, %v2857
    %vm2975 = vcmp.eq.s32.totalorder %v511, %v2857
    %vm2976 = vcmp.eq.s32.totalorder %v512, %v2857
    %vm2977 = vcmp.eq.s32.totalorder %v513, %v2857
    %vm2978 = vcmp.eq.s32.totalorder %v510, %v2860
    %vm2979 = vcmp.eq.s32.totalorder %v511, %v2860
    %vm2980 = vcmp.eq.s32.totalorder %v512, %v2860
    %vm2981 = vcmp.eq.s32.totalorder %v513, %v2860
    %vm2982 = vcmp.eq.s32.totalorder %v510, %v2863
    %vm2983 = vcmp.eq.s32.totalorder %v511, %v2863
    %vm2984 = vcmp.eq.s32.totalorder %v512, %v2863
    %vm2985 = vcmp.eq.s32.totalorder %v513, %v2863
    %vm2986 = vcmp.eq.s32.totalorder %v510, %v2866
    %vm2987 = vcmp.eq.s32.totalorder %v511, %v2866
    %vm2988 = vcmp.eq.s32.totalorder %v512, %v2866
    %vm2989 = vcmp.eq.s32.totalorder %v513, %v2866
    %vm2990 = vcmp.eq.s32.totalorder %v510, %v2869
    %vm2991 = vcmp.eq.s32.totalorder %v511, %v2869
    %vm2992 = vcmp.eq.s32.totalorder %v512, %v2869
    %vm2993 = vcmp.eq.s32.totalorder %v513, %v2869
    %vm2994 = vcmp.eq.s32.totalorder %v510, %v2872
    %vm2995 = vcmp.eq.s32.totalorder %v511, %v2872
    %vm2996 = vcmp.eq.s32.totalorder %v512, %v2872
    %vm2997 = vcmp.eq.s32.totalorder %v513, %v2872
    %vm2998 = vcmp.eq.s32.totalorder %v510, %v2875
    %vm2999 = vcmp.eq.s32.totalorder %v511, %v2875
    %vm3000 = vcmp.eq.s32.totalorder %v512, %v2875
    %vm3001 = vcmp.eq.s32.totalorder %v513, %v2875
    %vm3002 = vcmp.eq.s32.totalorder %v510, %v2878
    %vm3003 = vcmp.eq.s32.totalorder %v511, %v2878
    %vm3004 = vcmp.eq.s32.totalorder %v512, %v2878
    %vm3005 = vcmp.eq.s32.totalorder %v513, %v2878
    %vm3006 = vcmp.eq.s32.totalorder %v510, %v2881
    %vm3007 = vcmp.eq.s32.totalorder %v511, %v2881
    %vm3008 = vcmp.eq.s32.totalorder %v512, %v2881
    %vm3009 = vcmp.eq.s32.totalorder %v513, %v2881
    %3010 = vset.pattern.permute.xlu0 2
    %3011 = vperm.xlu0 %3010, %v738
    %v3012 = vpop.permute.xlu0 %3011
    %3014 = vset.pattern.permute.xlu0 2
    %3015 = vperm.xlu0 %3014, %v739
    %v3016 = vpop.permute.xlu0 %3015
    %3018 = vset.pattern.permute.xlu0 2
    %3019 = vperm.xlu0 %3018, %v740
    %v3020 = vpop.permute.xlu0 %3019
    %3022 = vset.pattern.permute.xlu0 2
    %3023 = vperm.xlu0 %3022, %v741
    %v3024 = vpop.permute.xlu0 %3023
    %3026 = vset.pattern.permute.xlu0 2
    %3027 = vperm.xlu0 %3026, %v742
    %v3028 = vpop.permute.xlu0 %3027
    %3030 = vset.pattern.permute.xlu0 2
    %3031 = vperm.xlu0 %3030, %v743
    %v3032 = vpop.permute.xlu0 %3031
    %3034 = vset.pattern.permute.xlu0 2
    %3035 = vperm.xlu0 %3034, %v744
    %v3036 = vpop.permute.xlu0 %3035
    %3038 = vset.pattern.permute.xlu0 2
    %3039 = vperm.xlu0 %3038, %v745
    %v3040 = vpop.permute.xlu0 %3039
    %3042 = vset.pattern.permute.xlu0 2
    %3043 = vperm.xlu0 %3042, %v746
    %v3044 = vpop.permute.xlu0 %3043
    %3046 = vset.pattern.permute.xlu0 2
    %3047 = vperm.xlu0 %3046, %v747
    %v3048 = vpop.permute.xlu0 %3047
    %3050 = vset.pattern.permute.xlu0 2
    %3051 = vperm.xlu0 %3050, %v748
    %v3052 = vpop.permute.xlu0 %3051
    %3054 = vset.pattern.permute.xlu0 2
    %3055 = vperm.xlu0 %3054, %v749
    %v3056 = vpop.permute.xlu0 %3055
    %3058 = vset.pattern.permute.xlu0 2
    %3059 = vperm.xlu0 %3058, %v750
    %v3060 = vpop.permute.xlu0 %3059
    %3062 = vset.pattern.permute.xlu0 2
    %3063 = vperm.xlu0 %3062, %v751
    %v3064 = vpop.permute.xlu0 %3063
    %3066 = vset.pattern.permute.xlu0 2
    %3067 = vperm.xlu0 %3066, %v752
    %v3068 = vpop.permute.xlu0 %3067
    %3070 = vset.pattern.permute.xlu0 2
    %3071 = vperm.xlu0 %3070, %v753
    %v3072 = vpop.permute.xlu0 %3071
    %3074 = vset.pattern.permute.xlu0 2
    %3075 = vperm.xlu0 %3074, %v754
    %v3076 = vpop.permute.xlu0 %3075
    %3078 = vset.pattern.permute.xlu0 2
    %3079 = vperm.xlu0 %3078, %v755
    %v3080 = vpop.permute.xlu0 %3079
    %3082 = vset.pattern.permute.xlu0 2
    %3083 = vperm.xlu0 %3082, %v756
    %v3084 = vpop.permute.xlu0 %3083
    %3086 = vset.pattern.permute.xlu0 2
    %3087 = vperm.xlu0 %3086, %v757
    %v3088 = vpop.permute.xlu0 %3087
    %3090 = vset.pattern.permute.xlu0 2
    %3091 = vperm.xlu0 %3090, %v758
    %v3092 = vpop.permute.xlu0 %3091
    %3094 = vset.pattern.permute.xlu0 2
    %3095 = vperm.xlu0 %3094, %v759
    %v3096 = vpop.permute.xlu0 %3095
    %3098 = vset.pattern.permute.xlu0 2
    %3099 = vperm.xlu0 %3098, %v760
    %v3100 = vpop.permute.xlu0 %3099
    %3102 = vset.pattern.permute.xlu0 2
    %3103 = vperm.xlu0 %3102, %v761
    %v3104 = vpop.permute.xlu0 %3103
    %3106 = vset.pattern.permute.xlu0 2
    %3107 = vperm.xlu0 %3106, %v762
    %v3108 = vpop.permute.xlu0 %3107
    %3110 = vset.pattern.permute.xlu0 2
    %3111 = vperm.xlu0 %3110, %v763
    %v3112 = vpop.permute.xlu0 %3111
    %3114 = vset.pattern.permute.xlu0 2
    %3115 = vperm.xlu0 %3114, %v764
    %v3116 = vpop.permute.xlu0 %3115
    %3118 = vset.pattern.permute.xlu0 2
    %3119 = vperm.xlu0 %3118, %v765
    %v3120 = vpop.permute.xlu0 %3119
    %3122 = vset.pattern.permute.xlu0 2
    %3123 = vperm.xlu0 %3122, %v766
    %v3124 = vpop.permute.xlu0 %3123
    %3126 = vset.pattern.permute.xlu0 2
    %3127 = vperm.xlu0 %3126, %v767
    %v3128 = vpop.permute.xlu0 %3127
    %3130 = vset.pattern.permute.xlu0 2
    %3131 = vperm.xlu0 %3130, %v768
    %v3132 = vpop.permute.xlu0 %3131
    %3134 = vset.pattern.permute.xlu0 2
    %3135 = vperm.xlu0 %3134, %v769
    %v3136 = vpop.permute.xlu0 %3135
    %v3138 = vsel %vm2882, %v3012, 0.0
    %v3139 = vsel %vm2883, %v3012, 0.0
    %v3140 = vsel %vm2884, %v3012, 0.0
    %v3141 = vsel %vm2885, %v3012, 0.0
    %v3142 = vsel %vm2886, %v3016, 0.0
    %v3143 = vsel %vm2887, %v3016, 0.0
    %v3144 = vsel %vm2888, %v3016, 0.0
    %v3145 = vsel %vm2889, %v3016, 0.0
    %v3146 = vsel %vm2890, %v3020, 0.0
    %v3147 = vsel %vm2891, %v3020, 0.0
    %v3148 = vsel %vm2892, %v3020, 0.0
    %v3149 = vsel %vm2893, %v3020, 0.0
    %v3150 = vsel %vm2894, %v3024, 0.0
    %v3151 = vsel %vm2895, %v3024, 0.0
    %v3152 = vsel %vm2896, %v3024, 0.0
    %v3153 = vsel %vm2897, %v3024, 0.0
    %v3154 = vsel %vm2898, %v3028, 0.0
    %v3155 = vsel %vm2899, %v3028, 0.0
    %v3156 = vsel %vm2900, %v3028, 0.0
    %v3157 = vsel %vm2901, %v3028, 0.0
    %v3158 = vsel %vm2902, %v3032, 0.0
    %v3159 = vsel %vm2903, %v3032, 0.0
    %v3160 = vsel %vm2904, %v3032, 0.0
    %v3161 = vsel %vm2905, %v3032, 0.0
    %v3162 = vsel %vm2906, %v3036, 0.0
    %v3163 = vsel %vm2907, %v3036, 0.0
    %v3164 = vsel %vm2908, %v3036, 0.0
    %v3165 = vsel %vm2909, %v3036, 0.0
    %v3166 = vsel %vm2910, %v3040, 0.0
    %v3167 = vsel %vm2911, %v3040, 0.0
    %v3168 = vsel %vm2912, %v3040, 0.0
    %v3169 = vsel %vm2913, %v3040, 0.0
    %v3170 = vsel %vm2914, %v3044, 0.0
    %v3171 = vsel %vm2915, %v3044, 0.0
    %v3172 = vsel %vm2916, %v3044, 0.0
    %v3173 = vsel %vm2917, %v3044, 0.0
    %v3174 = vsel %vm2918, %v3048, 0.0
    %v3175 = vsel %vm2919, %v3048, 0.0
    %v3176 = vsel %vm2920, %v3048, 0.0
    %v3177 = vsel %vm2921, %v3048, 0.0
    %v3178 = vsel %vm2922, %v3052, 0.0
    %v3179 = vsel %vm2923, %v3052, 0.0
    %v3180 = vsel %vm2924, %v3052, 0.0
    %v3181 = vsel %vm2925, %v3052, 0.0
    %v3182 = vsel %vm2926, %v3056, 0.0
    %v3183 = vsel %vm2927, %v3056, 0.0
    %v3184 = vsel %vm2928, %v3056, 0.0
    %v3185 = vsel %vm2929, %v3056, 0.0
    %v3186 = vsel %vm2930, %v3060, 0.0
    %v3187 = vsel %vm2931, %v3060, 0.0
    %v3188 = vsel %vm2932, %v3060, 0.0
    %v3189 = vsel %vm2933, %v3060, 0.0
    %v3190 = vsel %vm2934, %v3064, 0.0
    %v3191 = vsel %vm2935, %v3064, 0.0
    %v3192 = vsel %vm2936, %v3064, 0.0
    %v3193 = vsel %vm2937, %v3064, 0.0
    %v3194 = vsel %vm2938, %v3068, 0.0
    %v3195 = vsel %vm2939, %v3068, 0.0
    %v3196 = vsel %vm2940, %v3068, 0.0
    %v3197 = vsel %vm2941, %v3068, 0.0
    %v3198 = vsel %vm2942, %v3072, 0.0
    %v3199 = vsel %vm2943, %v3072, 0.0
    %v3200 = vsel %vm2944, %v3072, 0.0
    %v3201 = vsel %vm2945, %v3072, 0.0
    %v3202 = vsel %vm2946, %v3076, 0.0
    %v3203 = vsel %vm2947, %v3076, 0.0
    %v3204 = vsel %vm2948, %v3076, 0.0
    %v3205 = vsel %vm2949, %v3076, 0.0
    %v3206 = vsel %vm2950, %v3080, 0.0
    %v3207 = vsel %vm2951, %v3080, 0.0
    %v3208 = vsel %vm2952, %v3080, 0.0
    %v3209 = vsel %vm2953, %v3080, 0.0
    %v3210 = vsel %vm2954, %v3084, 0.0
    %v3211 = vsel %vm2955, %v3084, 0.0
    %v3212 = vsel %vm2956, %v3084, 0.0
    %v3213 = vsel %vm2957, %v3084, 0.0
    %v3214 = vsel %vm2958, %v3088, 0.0
    %v3215 = vsel %vm2959, %v3088, 0.0
    %v3216 = vsel %vm2960, %v3088, 0.0
    %v3217 = vsel %vm2961, %v3088, 0.0
    %v3218 = vsel %vm2962, %v3092, 0.0
    %v3219 = vsel %vm2963, %v3092, 0.0
    %v3220 = vsel %vm2964, %v3092, 0.0
    %v3221 = vsel %vm2965, %v3092, 0.0
    %v3222 = vsel %vm2966, %v3096, 0.0
    %v3223 = vsel %vm2967, %v3096, 0.0
    %v3224 = vsel %vm2968, %v3096, 0.0
    %v3225 = vsel %vm2969, %v3096, 0.0
    %v3226 = vsel %vm2970, %v3100, 0.0
    %v3227 = vsel %vm2971, %v3100, 0.0
    %v3228 = vsel %vm2972, %v3100, 0.0
    %v3229 = vsel %vm2973, %v3100, 0.0
    %v3230 = vsel %vm2974, %v3104, 0.0
    %v3231 = vsel %vm2975, %v3104, 0.0
    %v3232 = vsel %vm2976, %v3104, 0.0
    %v3233 = vsel %vm2977, %v3104, 0.0
    %v3234 = vsel %vm2978, %v3108, 0.0
    %v3235 = vsel %vm2979, %v3108, 0.0
    %v3236 = vsel %vm2980, %v3108, 0.0
    %v3237 = vsel %vm2981, %v3108, 0.0
    %v3238 = vsel %vm2982, %v3112, 0.0
    %v3239 = vsel %vm2983, %v3112, 0.0
    %v3240 = vsel %vm2984, %v3112, 0.0
    %v3241 = vsel %vm2985, %v3112, 0.0
    %v3242 = vsel %vm2986, %v3116, 0.0
    %v3243 = vsel %vm2987, %v3116, 0.0
    %v3244 = vsel %vm2988, %v3116, 0.0
    %v3245 = vsel %vm2989, %v3116, 0.0
    %v3246 = vsel %vm2990, %v3120, 0.0
    %v3247 = vsel %vm2991, %v3120, 0.0
    %v3248 = vsel %vm2992, %v3120, 0.0
    %v3249 = vsel %vm2993, %v3120, 0.0
    %v3250 = vsel %vm2994, %v3124, 0.0
    %v3251 = vsel %vm2995, %v3124, 0.0
    %v3252 = vsel %vm2996, %v3124, 0.0
    %v3253 = vsel %vm2997, %v3124, 0.0
    %v3254 = vsel %vm2998, %v3128, 0.0
    %v3255 = vsel %vm2999, %v3128, 0.0
    %v3256 = vsel %vm3000, %v3128, 0.0
    %v3257 = vsel %vm3001, %v3128, 0.0
    %v3258 = vsel %vm3002, %v3132, 0.0
    %v3259 = vsel %vm3003, %v3132, 0.0
    %v3260 = vsel %vm3004, %v3132, 0.0
    %v3261 = vsel %vm3005, %v3132, 0.0
    %v3262 = vsel %vm3006, %v3136, 0.0
    %v3263 = vsel %vm3007, %v3136, 0.0
    %v3264 = vsel %vm3008, %v3136, 0.0
    %v3265 = vsel %vm3009, %v3136, 0.0
    %3266 = vset.pattern.permute.xlu0 2
    %3267 = vperm.xlu0 %3266, %v430
    %v3268 = vpop.permute.xlu0 %3267
    %3269 = vset.pattern.permute.xlu0 2
    %3270 = vperm.xlu0 %3269, %v432
    %v3271 = vpop.permute.xlu0 %3270
    %3272 = vset.pattern.permute.xlu0 2
    %3273 = vperm.xlu0 %3272, %v434
    %v3274 = vpop.permute.xlu0 %3273
    %3275 = vset.pattern.permute.xlu0 2
    %3276 = vperm.xlu0 %3275, %v436
    %v3277 = vpop.permute.xlu0 %3276
    %3278 = vset.pattern.permute.xlu0 2
    %3279 = vperm.xlu0 %3278, %v438
    %v3280 = vpop.permute.xlu0 %3279
    %3281 = vset.pattern.permute.xlu0 2
    %3282 = vperm.xlu0 %3281, %v440
    %v3283 = vpop.permute.xlu0 %3282
    %3284 = vset.pattern.permute.xlu0 2
    %3285 = vperm.xlu0 %3284, %v442
    %v3286 = vpop.permute.xlu0 %3285
    %3287 = vset.pattern.permute.xlu0 2
    %3288 = vperm.xlu0 %3287, %v444
    %v3289 = vpop.permute.xlu0 %3288
    %3290 = vset.pattern.permute.xlu0 2
    %3291 = vperm.xlu0 %3290, %v446
    %v3292 = vpop.permute.xlu0 %3291
    %3293 = vset.pattern.permute.xlu0 2
    %3294 = vperm.xlu0 %3293, %v448
    %v3295 = vpop.permute.xlu0 %3294
    %3296 = vset.pattern.permute.xlu0 2
    %3297 = vperm.xlu0 %3296, %v450
    %v3298 = vpop.permute.xlu0 %3297
    %3299 = vset.pattern.permute.xlu0 2
    %3300 = vperm.xlu0 %3299, %v452
    %v3301 = vpop.permute.xlu0 %3300
    %3302 = vset.pattern.permute.xlu0 2
    %3303 = vperm.xlu0 %3302, %v454
    %v3304 = vpop.permute.xlu0 %3303
    %3305 = vset.pattern.permute.xlu0 2
    %3306 = vperm.xlu0 %3305, %v456
    %v3307 = vpop.permute.xlu0 %3306
    %3308 = vset.pattern.permute.xlu0 2
    %3309 = vperm.xlu0 %3308, %v458
    %v3310 = vpop.permute.xlu0 %3309
    %3311 = vset.pattern.permute.xlu0 2
    %3312 = vperm.xlu0 %3311, %v460
    %v3313 = vpop.permute.xlu0 %3312
    %3314 = vset.pattern.permute.xlu0 2
    %3315 = vperm.xlu0 %3314, %v462
    %v3316 = vpop.permute.xlu0 %3315
    %3317 = vset.pattern.permute.xlu0 2
    %3318 = vperm.xlu0 %3317, %v464
    %v3319 = vpop.permute.xlu0 %3318
    %3320 = vset.pattern.permute.xlu0 2
    %3321 = vperm.xlu0 %3320, %v466
    %v3322 = vpop.permute.xlu0 %3321
    %3323 = vset.pattern.permute.xlu0 2
    %3324 = vperm.xlu0 %3323, %v468
    %v3325 = vpop.permute.xlu0 %3324
    %3326 = vset.pattern.permute.xlu0 2
    %3327 = vperm.xlu0 %3326, %v470
    %v3328 = vpop.permute.xlu0 %3327
    %3329 = vset.pattern.permute.xlu0 2
    %3330 = vperm.xlu0 %3329, %v472
    %v3331 = vpop.permute.xlu0 %3330
    %3332 = vset.pattern.permute.xlu0 2
    %3333 = vperm.xlu0 %3332, %v474
    %v3334 = vpop.permute.xlu0 %3333
    %3335 = vset.pattern.permute.xlu0 2
    %3336 = vperm.xlu0 %3335, %v476
    %v3337 = vpop.permute.xlu0 %3336
    %3338 = vset.pattern.permute.xlu0 2
    %3339 = vperm.xlu0 %3338, %v478
    %v3340 = vpop.permute.xlu0 %3339
    %3341 = vset.pattern.permute.xlu0 2
    %3342 = vperm.xlu0 %3341, %v480
    %v3343 = vpop.permute.xlu0 %3342
    %3344 = vset.pattern.permute.xlu0 2
    %3345 = vperm.xlu0 %3344, %v482
    %v3346 = vpop.permute.xlu0 %3345
    %3347 = vset.pattern.permute.xlu0 2
    %3348 = vperm.xlu0 %3347, %v484
    %v3349 = vpop.permute.xlu0 %3348
    %3350 = vset.pattern.permute.xlu0 2
    %3351 = vperm.xlu0 %3350, %v486
    %v3352 = vpop.permute.xlu0 %3351
    %3353 = vset.pattern.permute.xlu0 2
    %3354 = vperm.xlu0 %3353, %v488
    %v3355 = vpop.permute.xlu0 %3354
    %3356 = vset.pattern.permute.xlu0 2
    %3357 = vperm.xlu0 %3356, %v490
    %v3358 = vpop.permute.xlu0 %3357
    %3359 = vset.pattern.permute.xlu0 2
    %3360 = vperm.xlu0 %3359, %v492
    %v3361 = vpop.permute.xlu0 %3360
    %vm3362 = vcmp.eq.s32.totalorder %v510, %v3268
    %vm3363 = vcmp.eq.s32.totalorder %v511, %v3268
    %vm3364 = vcmp.eq.s32.totalorder %v512, %v3268
    %vm3365 = vcmp.eq.s32.totalorder %v513, %v3268
    %vm3366 = vcmp.eq.s32.totalorder %v510, %v3271
    %vm3367 = vcmp.eq.s32.totalorder %v511, %v3271
    %vm3368 = vcmp.eq.s32.totalorder %v512, %v3271
    %vm3369 = vcmp.eq.s32.totalorder %v513, %v3271
    %vm3370 = vcmp.eq.s32.totalorder %v510, %v3274
    %vm3371 = vcmp.eq.s32.totalorder %v511, %v3274
    %vm3372 = vcmp.eq.s32.totalorder %v512, %v3274
    %vm3373 = vcmp.eq.s32.totalorder %v513, %v3274
    %vm3374 = vcmp.eq.s32.totalorder %v510, %v3277
    %vm3375 = vcmp.eq.s32.totalorder %v511, %v3277
    %vm3376 = vcmp.eq.s32.totalorder %v512, %v3277
    %vm3377 = vcmp.eq.s32.totalorder %v513, %v3277
    %vm3378 = vcmp.eq.s32.totalorder %v510, %v3280
    %vm3379 = vcmp.eq.s32.totalorder %v511, %v3280
    %vm3380 = vcmp.eq.s32.totalorder %v512, %v3280
    %vm3381 = vcmp.eq.s32.totalorder %v513, %v3280
    %vm3382 = vcmp.eq.s32.totalorder %v510, %v3283
    %vm3383 = vcmp.eq.s32.totalorder %v511, %v3283
    %vm3384 = vcmp.eq.s32.totalorder %v512, %v3283
    %vm3385 = vcmp.eq.s32.totalorder %v513, %v3283
    %vm3386 = vcmp.eq.s32.totalorder %v510, %v3286
    %vm3387 = vcmp.eq.s32.totalorder %v511, %v3286
    %vm3388 = vcmp.eq.s32.totalorder %v512, %v3286
    %vm3389 = vcmp.eq.s32.totalorder %v513, %v3286
    %vm3390 = vcmp.eq.s32.totalorder %v510, %v3289
    %vm3391 = vcmp.eq.s32.totalorder %v511, %v3289
    %vm3392 = vcmp.eq.s32.totalorder %v512, %v3289
    %vm3393 = vcmp.eq.s32.totalorder %v513, %v3289
    %vm3394 = vcmp.eq.s32.totalorder %v510, %v3292
    %vm3395 = vcmp.eq.s32.totalorder %v511, %v3292
    %vm3396 = vcmp.eq.s32.totalorder %v512, %v3292
    %vm3397 = vcmp.eq.s32.totalorder %v513, %v3292
    %vm3398 = vcmp.eq.s32.totalorder %v510, %v3295
    %vm3399 = vcmp.eq.s32.totalorder %v511, %v3295
    %vm3400 = vcmp.eq.s32.totalorder %v512, %v3295
    %vm3401 = vcmp.eq.s32.totalorder %v513, %v3295
    %vm3402 = vcmp.eq.s32.totalorder %v510, %v3298
    %vm3403 = vcmp.eq.s32.totalorder %v511, %v3298
    %vm3404 = vcmp.eq.s32.totalorder %v512, %v3298
    %vm3405 = vcmp.eq.s32.totalorder %v513, %v3298
    %vm3406 = vcmp.eq.s32.totalorder %v510, %v3301
    %vm3407 = vcmp.eq.s32.totalorder %v511, %v3301
    %vm3408 = vcmp.eq.s32.totalorder %v512, %v3301
    %vm3409 = vcmp.eq.s32.totalorder %v513, %v3301
    %vm3410 = vcmp.eq.s32.totalorder %v510, %v3304
    %vm3411 = vcmp.eq.s32.totalorder %v511, %v3304
    %vm3412 = vcmp.eq.s32.totalorder %v512, %v3304
    %vm3413 = vcmp.eq.s32.totalorder %v513, %v3304
    %vm3414 = vcmp.eq.s32.totalorder %v510, %v3307
    %vm3415 = vcmp.eq.s32.totalorder %v511, %v3307
    %vm3416 = vcmp.eq.s32.totalorder %v512, %v3307
    %vm3417 = vcmp.eq.s32.totalorder %v513, %v3307
    %vm3418 = vcmp.eq.s32.totalorder %v510, %v3310
    %vm3419 = vcmp.eq.s32.totalorder %v511, %v3310
    %vm3420 = vcmp.eq.s32.totalorder %v512, %v3310
    %vm3421 = vcmp.eq.s32.totalorder %v513, %v3310
    %vm3422 = vcmp.eq.s32.totalorder %v510, %v3313
    %vm3423 = vcmp.eq.s32.totalorder %v511, %v3313
    %vm3424 = vcmp.eq.s32.totalorder %v512, %v3313
    %vm3425 = vcmp.eq.s32.totalorder %v513, %v3313
    %vm3426 = vcmp.eq.s32.totalorder %v510, %v3316
    %vm3427 = vcmp.eq.s32.totalorder %v511, %v3316
    %vm3428 = vcmp.eq.s32.totalorder %v512, %v3316
    %vm3429 = vcmp.eq.s32.totalorder %v513, %v3316
    %vm3430 = vcmp.eq.s32.totalorder %v510, %v3319
    %vm3431 = vcmp.eq.s32.totalorder %v511, %v3319
    %vm3432 = vcmp.eq.s32.totalorder %v512, %v3319
    %vm3433 = vcmp.eq.s32.totalorder %v513, %v3319
    %vm3434 = vcmp.eq.s32.totalorder %v510, %v3322
    %vm3435 = vcmp.eq.s32.totalorder %v511, %v3322
    %vm3436 = vcmp.eq.s32.totalorder %v512, %v3322
    %vm3437 = vcmp.eq.s32.totalorder %v513, %v3322
    %vm3438 = vcmp.eq.s32.totalorder %v510, %v3325
    %vm3439 = vcmp.eq.s32.totalorder %v511, %v3325
    %vm3440 = vcmp.eq.s32.totalorder %v512, %v3325
    %vm3441 = vcmp.eq.s32.totalorder %v513, %v3325
    %vm3442 = vcmp.eq.s32.totalorder %v510, %v3328
    %vm3443 = vcmp.eq.s32.totalorder %v511, %v3328
    %vm3444 = vcmp.eq.s32.totalorder %v512, %v3328
    %vm3445 = vcmp.eq.s32.totalorder %v513, %v3328
    %vm3446 = vcmp.eq.s32.totalorder %v510, %v3331
    %vm3447 = vcmp.eq.s32.totalorder %v511, %v3331
    %vm3448 = vcmp.eq.s32.totalorder %v512, %v3331
    %vm3449 = vcmp.eq.s32.totalorder %v513, %v3331
    %vm3450 = vcmp.eq.s32.totalorder %v510, %v3334
    %vm3451 = vcmp.eq.s32.totalorder %v511, %v3334
    %vm3452 = vcmp.eq.s32.totalorder %v512, %v3334
    %vm3453 = vcmp.eq.s32.totalorder %v513, %v3334
    %vm3454 = vcmp.eq.s32.totalorder %v510, %v3337
    %vm3455 = vcmp.eq.s32.totalorder %v511, %v3337
    %vm3456 = vcmp.eq.s32.totalorder %v512, %v3337
    %vm3457 = vcmp.eq.s32.totalorder %v513, %v3337
    %vm3458 = vcmp.eq.s32.totalorder %v510, %v3340
    %vm3459 = vcmp.eq.s32.totalorder %v511, %v3340
    %vm3460 = vcmp.eq.s32.totalorder %v512, %v3340
    %vm3461 = vcmp.eq.s32.totalorder %v513, %v3340
    %vm3462 = vcmp.eq.s32.totalorder %v510, %v3343
    %vm3463 = vcmp.eq.s32.totalorder %v511, %v3343
    %vm3464 = vcmp.eq.s32.totalorder %v512, %v3343
    %vm3465 = vcmp.eq.s32.totalorder %v513, %v3343
    %vm3466 = vcmp.eq.s32.totalorder %v510, %v3346
    %vm3467 = vcmp.eq.s32.totalorder %v511, %v3346
    %vm3468 = vcmp.eq.s32.totalorder %v512, %v3346
    %vm3469 = vcmp.eq.s32.totalorder %v513, %v3346
    %vm3470 = vcmp.eq.s32.totalorder %v510, %v3349
    %vm3471 = vcmp.eq.s32.totalorder %v511, %v3349
    %vm3472 = vcmp.eq.s32.totalorder %v512, %v3349
    %vm3473 = vcmp.eq.s32.totalorder %v513, %v3349
    %vm3474 = vcmp.eq.s32.totalorder %v510, %v3352
    %vm3475 = vcmp.eq.s32.totalorder %v511, %v3352
    %vm3476 = vcmp.eq.s32.totalorder %v512, %v3352
    %vm3477 = vcmp.eq.s32.totalorder %v513, %v3352
    %vm3478 = vcmp.eq.s32.totalorder %v510, %v3355
    %vm3479 = vcmp.eq.s32.totalorder %v511, %v3355
    %vm3480 = vcmp.eq.s32.totalorder %v512, %v3355
    %vm3481 = vcmp.eq.s32.totalorder %v513, %v3355
    %vm3482 = vcmp.eq.s32.totalorder %v510, %v3358
    %vm3483 = vcmp.eq.s32.totalorder %v511, %v3358
    %vm3484 = vcmp.eq.s32.totalorder %v512, %v3358
    %vm3485 = vcmp.eq.s32.totalorder %v513, %v3358
    %vm3486 = vcmp.eq.s32.totalorder %v510, %v3361
    %vm3487 = vcmp.eq.s32.totalorder %v511, %v3361
    %vm3488 = vcmp.eq.s32.totalorder %v512, %v3361
    %vm3489 = vcmp.eq.s32.totalorder %v513, %v3361
    %3490 = vset.pattern.permute.xlu0 2
    %3491 = vperm.xlu0 %3490, %v205
    %v3492 = vpop.permute.xlu0 %3491
    %3494 = vset.pattern.permute.xlu0 2
    %3495 = vperm.xlu0 %3494, %v206
    %v3496 = vpop.permute.xlu0 %3495
    %3498 = vset.pattern.permute.xlu0 2
    %3499 = vperm.xlu0 %3498, %v207
    %v3500 = vpop.permute.xlu0 %3499
    %3502 = vset.pattern.permute.xlu0 2
    %3503 = vperm.xlu0 %3502, %v208
    %v3504 = vpop.permute.xlu0 %3503
    %3506 = vset.pattern.permute.xlu0 2
    %3507 = vperm.xlu0 %3506, %v209
    %v3508 = vpop.permute.xlu0 %3507
    %3510 = vset.pattern.permute.xlu0 2
    %3511 = vperm.xlu0 %3510, %v210
    %v3512 = vpop.permute.xlu0 %3511
    %3514 = vset.pattern.permute.xlu0 2
    %3515 = vperm.xlu0 %3514, %v211
    %v3516 = vpop.permute.xlu0 %3515
    %3518 = vset.pattern.permute.xlu0 2
    %3519 = vperm.xlu0 %3518, %v212
    %v3520 = vpop.permute.xlu0 %3519
    %3522 = vset.pattern.permute.xlu0 2
    %3523 = vperm.xlu0 %3522, %v213
    %v3524 = vpop.permute.xlu0 %3523
    %3526 = vset.pattern.permute.xlu0 2
    %3527 = vperm.xlu0 %3526, %v214
    %v3528 = vpop.permute.xlu0 %3527
    %3530 = vset.pattern.permute.xlu0 2
    %3531 = vperm.xlu0 %3530, %v215
    %v3532 = vpop.permute.xlu0 %3531
    %3534 = vset.pattern.permute.xlu0 2
    %3535 = vperm.xlu0 %3534, %v216
    %v3536 = vpop.permute.xlu0 %3535
    %3538 = vset.pattern.permute.xlu0 2
    %3539 = vperm.xlu0 %3538, %v217
    %v3540 = vpop.permute.xlu0 %3539
    %3542 = vset.pattern.permute.xlu0 2
    %3543 = vperm.xlu0 %3542, %v218
    %v3544 = vpop.permute.xlu0 %3543
    %3546 = vset.pattern.permute.xlu0 2
    %3547 = vperm.xlu0 %3546, %v219
    %v3548 = vpop.permute.xlu0 %3547
    %3550 = vset.pattern.permute.xlu0 2
    %3551 = vperm.xlu0 %3550, %v220
    %v3552 = vpop.permute.xlu0 %3551
    %3554 = vset.pattern.permute.xlu0 2
    %3555 = vperm.xlu0 %3554, %v221
    %v3556 = vpop.permute.xlu0 %3555
    %3558 = vset.pattern.permute.xlu0 2
    %3559 = vperm.xlu0 %3558, %v222
    %v3560 = vpop.permute.xlu0 %3559
    %3562 = vset.pattern.permute.xlu0 2
    %3563 = vperm.xlu0 %3562, %v223
    %v3564 = vpop.permute.xlu0 %3563
    %3566 = vset.pattern.permute.xlu0 2
    %3567 = vperm.xlu0 %3566, %v224
    %v3568 = vpop.permute.xlu0 %3567
    %3570 = vset.pattern.permute.xlu0 2
    %3571 = vperm.xlu0 %3570, %v225
    %v3572 = vpop.permute.xlu0 %3571
    %3574 = vset.pattern.permute.xlu0 2
    %3575 = vperm.xlu0 %3574, %v226
    %v3576 = vpop.permute.xlu0 %3575
    %3578 = vset.pattern.permute.xlu0 2
    %3579 = vperm.xlu0 %3578, %v227
    %v3580 = vpop.permute.xlu0 %3579
    %3582 = vset.pattern.permute.xlu0 2
    %3583 = vperm.xlu0 %3582, %v228
    %v3584 = vpop.permute.xlu0 %3583
    %3586 = vset.pattern.permute.xlu0 2
    %3587 = vperm.xlu0 %3586, %v229
    %v3588 = vpop.permute.xlu0 %3587
    %3590 = vset.pattern.permute.xlu0 2
    %3591 = vperm.xlu0 %3590, %v230
    %v3592 = vpop.permute.xlu0 %3591
    %3594 = vset.pattern.permute.xlu0 2
    %3595 = vperm.xlu0 %3594, %v231
    %v3596 = vpop.permute.xlu0 %3595
    %3598 = vset.pattern.permute.xlu0 2
    %3599 = vperm.xlu0 %3598, %v232
    %v3600 = vpop.permute.xlu0 %3599
    %3602 = vset.pattern.permute.xlu0 2
    %3603 = vperm.xlu0 %3602, %v233
    %v3604 = vpop.permute.xlu0 %3603
    %3606 = vset.pattern.permute.xlu0 2
    %3607 = vperm.xlu0 %3606, %v234
    %v3608 = vpop.permute.xlu0 %3607
    %3610 = vset.pattern.permute.xlu0 2
    %3611 = vperm.xlu0 %3610, %v235
    %v3612 = vpop.permute.xlu0 %3611
    %3614 = vset.pattern.permute.xlu0 2
    %3615 = vperm.xlu0 %3614, %v236
    %v3616 = vpop.permute.xlu0 %3615
    %v3618 = vsel %vm3362, %v3492, 0.0
    %v3619 = vsel %vm3363, %v3492, 0.0
    %v3620 = vsel %vm3364, %v3492, 0.0
    %v3621 = vsel %vm3365, %v3492, 0.0
    %v3622 = vsel %vm3366, %v3496, 0.0
    %v3623 = vsel %vm3367, %v3496, 0.0
    %v3624 = vsel %vm3368, %v3496, 0.0
    %v3625 = vsel %vm3369, %v3496, 0.0
    %v3626 = vsel %vm3370, %v3500, 0.0
    %v3627 = vsel %vm3371, %v3500, 0.0
    %v3628 = vsel %vm3372, %v3500, 0.0
    %v3629 = vsel %vm3373, %v3500, 0.0
    %v3630 = vsel %vm3374, %v3504, 0.0
    %v3631 = vsel %vm3375, %v3504, 0.0
    %v3632 = vsel %vm3376, %v3504, 0.0
    %v3633 = vsel %vm3377, %v3504, 0.0
    %v3634 = vsel %vm3378, %v3508, 0.0
    %v3635 = vsel %vm3379, %v3508, 0.0
    %v3636 = vsel %vm3380, %v3508, 0.0
    %v3637 = vsel %vm3381, %v3508, 0.0
    %v3638 = vsel %vm3382, %v3512, 0.0
    %v3639 = vsel %vm3383, %v3512, 0.0
    %v3640 = vsel %vm3384, %v3512, 0.0
    %v3641 = vsel %vm3385, %v3512, 0.0
    %v3642 = vsel %vm3386, %v3516, 0.0
    %v3643 = vsel %vm3387, %v3516, 0.0
    %v3644 = vsel %vm3388, %v3516, 0.0
    %v3645 = vsel %vm3389, %v3516, 0.0
    %v3646 = vsel %vm3390, %v3520, 0.0
    %v3647 = vsel %vm3391, %v3520, 0.0
    %v3648 = vsel %vm3392, %v3520, 0.0
    %v3649 = vsel %vm3393, %v3520, 0.0
    %v3650 = vsel %vm3394, %v3524, 0.0
    %v3651 = vsel %vm3395, %v3524, 0.0
    %v3652 = vsel %vm3396, %v3524, 0.0
    %v3653 = vsel %vm3397, %v3524, 0.0
    %v3654 = vsel %vm3398, %v3528, 0.0
    %v3655 = vsel %vm3399, %v3528, 0.0
    %v3656 = vsel %vm3400, %v3528, 0.0
    %v3657 = vsel %vm3401, %v3528, 0.0
    %v3658 = vsel %vm3402, %v3532, 0.0
    %v3659 = vsel %vm3403, %v3532, 0.0
    %v3660 = vsel %vm3404, %v3532, 0.0
    %v3661 = vsel %vm3405, %v3532, 0.0
    %v3662 = vsel %vm3406, %v3536, 0.0
    %v3663 = vsel %vm3407, %v3536, 0.0
    %v3664 = vsel %vm3408, %v3536, 0.0
    %v3665 = vsel %vm3409, %v3536, 0.0
    %v3666 = vsel %vm3410, %v3540, 0.0
    %v3667 = vsel %vm3411, %v3540, 0.0
    %v3668 = vsel %vm3412, %v3540, 0.0
    %v3669 = vsel %vm3413, %v3540, 0.0
    %v3670 = vsel %vm3414, %v3544, 0.0
    %v3671 = vsel %vm3415, %v3544, 0.0
    %v3672 = vsel %vm3416, %v3544, 0.0
    %v3673 = vsel %vm3417, %v3544, 0.0
    %v3674 = vsel %vm3418, %v3548, 0.0
    %v3675 = vsel %vm3419, %v3548, 0.0
    %v3676 = vsel %vm3420, %v3548, 0.0
    %v3677 = vsel %vm3421, %v3548, 0.0
    %v3678 = vsel %vm3422, %v3552, 0.0
    %v3679 = vsel %vm3423, %v3552, 0.0
    %v3680 = vsel %vm3424, %v3552, 0.0
    %v3681 = vsel %vm3425, %v3552, 0.0
    %v3682 = vsel %vm3426, %v3556, 0.0
    %v3683 = vsel %vm3427, %v3556, 0.0
    %v3684 = vsel %vm3428, %v3556, 0.0
    %v3685 = vsel %vm3429, %v3556, 0.0
    %v3686 = vsel %vm3430, %v3560, 0.0
    %v3687 = vsel %vm3431, %v3560, 0.0
    %v3688 = vsel %vm3432, %v3560, 0.0
    %v3689 = vsel %vm3433, %v3560, 0.0
    %v3690 = vsel %vm3434, %v3564, 0.0
    %v3691 = vsel %vm3435, %v3564, 0.0
    %v3692 = vsel %vm3436, %v3564, 0.0
    %v3693 = vsel %vm3437, %v3564, 0.0
    %v3694 = vsel %vm3438, %v3568, 0.0
    %v3695 = vsel %vm3439, %v3568, 0.0
    %v3696 = vsel %vm3440, %v3568, 0.0
    %v3697 = vsel %vm3441, %v3568, 0.0
    %v3698 = vsel %vm3442, %v3572, 0.0
    %v3699 = vsel %vm3443, %v3572, 0.0
    %v3700 = vsel %vm3444, %v3572, 0.0
    %v3701 = vsel %vm3445, %v3572, 0.0
    %v3702 = vsel %vm3446, %v3576, 0.0
    %v3703 = vsel %vm3447, %v3576, 0.0
    %v3704 = vsel %vm3448, %v3576, 0.0
    %v3705 = vsel %vm3449, %v3576, 0.0
    %v3706 = vsel %vm3450, %v3580, 0.0
    %v3707 = vsel %vm3451, %v3580, 0.0
    %v3708 = vsel %vm3452, %v3580, 0.0
    %v3709 = vsel %vm3453, %v3580, 0.0
    %v3710 = vsel %vm3454, %v3584, 0.0
    %v3711 = vsel %vm3455, %v3584, 0.0
    %v3712 = vsel %vm3456, %v3584, 0.0
    %v3713 = vsel %vm3457, %v3584, 0.0
    %v3714 = vsel %vm3458, %v3588, 0.0
    %v3715 = vsel %vm3459, %v3588, 0.0
    %v3716 = vsel %vm3460, %v3588, 0.0
    %v3717 = vsel %vm3461, %v3588, 0.0
    %v3718 = vsel %vm3462, %v3592, 0.0
    %v3719 = vsel %vm3463, %v3592, 0.0
    %v3720 = vsel %vm3464, %v3592, 0.0
    %v3721 = vsel %vm3465, %v3592, 0.0
    %v3722 = vsel %vm3466, %v3596, 0.0
    %v3723 = vsel %vm3467, %v3596, 0.0
    %v3724 = vsel %vm3468, %v3596, 0.0
    %v3725 = vsel %vm3469, %v3596, 0.0
    %v3726 = vsel %vm3470, %v3600, 0.0
    %v3727 = vsel %vm3471, %v3600, 0.0
    %v3728 = vsel %vm3472, %v3600, 0.0
    %v3729 = vsel %vm3473, %v3600, 0.0
    %v3730 = vsel %vm3474, %v3604, 0.0
    %v3731 = vsel %vm3475, %v3604, 0.0
    %v3732 = vsel %vm3476, %v3604, 0.0
    %v3733 = vsel %vm3477, %v3604, 0.0
    %v3734 = vsel %vm3478, %v3608, 0.0
    %v3735 = vsel %vm3479, %v3608, 0.0
    %v3736 = vsel %vm3480, %v3608, 0.0
    %v3737 = vsel %vm3481, %v3608, 0.0
    %v3738 = vsel %vm3482, %v3612, 0.0
    %v3739 = vsel %vm3483, %v3612, 0.0
    %v3740 = vsel %vm3484, %v3612, 0.0
    %v3741 = vsel %vm3485, %v3612, 0.0
    %v3742 = vsel %vm3486, %v3616, 0.0
    %v3743 = vsel %vm3487, %v3616, 0.0
    %v3744 = vsel %vm3488, %v3616, 0.0
    %v3745 = vsel %vm3489, %v3616, 0.0
    %v3746 = vadd.f32 %v3138, %v3618
    %v3747 = vadd.f32 %v3139, %v3619
    %v3748 = vadd.f32 %v3140, %v3620
    %v3749 = vadd.f32 %v3141, %v3621
    %v3750 = vadd.f32 %v3142, %v3622
    %v3751 = vadd.f32 %v3143, %v3623
    %v3752 = vadd.f32 %v3144, %v3624
    %v3753 = vadd.f32 %v3145, %v3625
    %v3754 = vadd.f32 %v3146, %v3626
    %v3755 = vadd.f32 %v3147, %v3627
    %v3756 = vadd.f32 %v3148, %v3628
    %v3757 = vadd.f32 %v3149, %v3629
    %v3758 = vadd.f32 %v3150, %v3630
    %v3759 = vadd.f32 %v3151, %v3631
    %v3760 = vadd.f32 %v3152, %v3632
    %v3761 = vadd.f32 %v3153, %v3633
    %v3762 = vadd.f32 %v3154, %v3634
    %v3763 = vadd.f32 %v3155, %v3635
    %v3764 = vadd.f32 %v3156, %v3636
    %v3765 = vadd.f32 %v3157, %v3637
    %v3766 = vadd.f32 %v3158, %v3638
    %v3767 = vadd.f32 %v3159, %v3639
    %v3768 = vadd.f32 %v3160, %v3640
    %v3769 = vadd.f32 %v3161, %v3641
    %v3770 = vadd.f32 %v3162, %v3642
    %v3771 = vadd.f32 %v3163, %v3643
    %v3772 = vadd.f32 %v3164, %v3644
    %v3773 = vadd.f32 %v3165, %v3645
    %v3774 = vadd.f32 %v3166, %v3646
    %v3775 = vadd.f32 %v3167, %v3647
    %v3776 = vadd.f32 %v3168, %v3648
    %v3777 = vadd.f32 %v3169, %v3649
    %v3778 = vadd.f32 %v3170, %v3650
    %v3779 = vadd.f32 %v3171, %v3651
    %v3780 = vadd.f32 %v3172, %v3652
    %v3781 = vadd.f32 %v3173, %v3653
    %v3782 = vadd.f32 %v3174, %v3654
    %v3783 = vadd.f32 %v3175, %v3655
    %v3784 = vadd.f32 %v3176, %v3656
    %v3785 = vadd.f32 %v3177, %v3657
    %v3786 = vadd.f32 %v3178, %v3658
    %v3787 = vadd.f32 %v3179, %v3659
    %v3788 = vadd.f32 %v3180, %v3660
    %v3789 = vadd.f32 %v3181, %v3661
    %v3790 = vadd.f32 %v3182, %v3662
    %v3791 = vadd.f32 %v3183, %v3663
    %v3792 = vadd.f32 %v3184, %v3664
    %v3793 = vadd.f32 %v3185, %v3665
    %v3794 = vadd.f32 %v3186, %v3666
    %v3795 = vadd.f32 %v3187, %v3667
    %v3796 = vadd.f32 %v3188, %v3668
    %v3797 = vadd.f32 %v3189, %v3669
    %v3798 = vadd.f32 %v3190, %v3670
    %v3799 = vadd.f32 %v3191, %v3671
    %v3800 = vadd.f32 %v3192, %v3672
    %v3801 = vadd.f32 %v3193, %v3673
    %v3802 = vadd.f32 %v3194, %v3674
    %v3803 = vadd.f32 %v3195, %v3675
    %v3804 = vadd.f32 %v3196, %v3676
    %v3805 = vadd.f32 %v3197, %v3677
    %v3806 = vadd.f32 %v3198, %v3678
    %v3807 = vadd.f32 %v3199, %v3679
    %v3808 = vadd.f32 %v3200, %v3680
    %v3809 = vadd.f32 %v3201, %v3681
    %v3810 = vadd.f32 %v3202, %v3682
    %v3811 = vadd.f32 %v3203, %v3683
    %v3812 = vadd.f32 %v3204, %v3684
    %v3813 = vadd.f32 %v3205, %v3685
    %v3814 = vadd.f32 %v3206, %v3686
    %v3815 = vadd.f32 %v3207, %v3687
    %v3816 = vadd.f32 %v3208, %v3688
    %v3817 = vadd.f32 %v3209, %v3689
    %v3818 = vadd.f32 %v3210, %v3690
    %v3819 = vadd.f32 %v3211, %v3691
    %v3820 = vadd.f32 %v3212, %v3692
    %v3821 = vadd.f32 %v3213, %v3693
    %v3822 = vadd.f32 %v3214, %v3694
    %v3823 = vadd.f32 %v3215, %v3695
    %v3824 = vadd.f32 %v3216, %v3696
    %v3825 = vadd.f32 %v3217, %v3697
    %v3826 = vadd.f32 %v3218, %v3698
    %v3827 = vadd.f32 %v3219, %v3699
    %v3828 = vadd.f32 %v3220, %v3700
    %v3829 = vadd.f32 %v3221, %v3701
    %v3830 = vadd.f32 %v3222, %v3702
    %v3831 = vadd.f32 %v3223, %v3703
    %v3832 = vadd.f32 %v3224, %v3704
    %v3833 = vadd.f32 %v3225, %v3705
    %v3834 = vadd.f32 %v3226, %v3706
    %v3835 = vadd.f32 %v3227, %v3707
    %v3836 = vadd.f32 %v3228, %v3708
    %v3837 = vadd.f32 %v3229, %v3709
    %v3838 = vadd.f32 %v3230, %v3710
    %v3839 = vadd.f32 %v3231, %v3711
    %v3840 = vadd.f32 %v3232, %v3712
    %v3841 = vadd.f32 %v3233, %v3713
    %v3842 = vadd.f32 %v3234, %v3714
    %v3843 = vadd.f32 %v3235, %v3715
    %v3844 = vadd.f32 %v3236, %v3716
    %v3845 = vadd.f32 %v3237, %v3717
    %v3846 = vadd.f32 %v3238, %v3718
    %v3847 = vadd.f32 %v3239, %v3719
    %v3848 = vadd.f32 %v3240, %v3720
    %v3849 = vadd.f32 %v3241, %v3721
    %v3850 = vadd.f32 %v3242, %v3722
    %v3851 = vadd.f32 %v3243, %v3723
    %v3852 = vadd.f32 %v3244, %v3724
    %v3853 = vadd.f32 %v3245, %v3725
    %v3854 = vadd.f32 %v3246, %v3726
    %v3855 = vadd.f32 %v3247, %v3727
    %v3856 = vadd.f32 %v3248, %v3728
    %v3857 = vadd.f32 %v3249, %v3729
    %v3858 = vadd.f32 %v3250, %v3730
    %v3859 = vadd.f32 %v3251, %v3731
    %v3860 = vadd.f32 %v3252, %v3732
    %v3861 = vadd.f32 %v3253, %v3733
    %v3862 = vadd.f32 %v3254, %v3734
    %v3863 = vadd.f32 %v3255, %v3735
    %v3864 = vadd.f32 %v3256, %v3736
    %v3865 = vadd.f32 %v3257, %v3737
    %v3866 = vadd.f32 %v3258, %v3738
    %v3867 = vadd.f32 %v3259, %v3739
    %v3868 = vadd.f32 %v3260, %v3740
    %v3869 = vadd.f32 %v3261, %v3741
    %v3870 = vadd.f32 %v3262, %v3742
    %v3871 = vadd.f32 %v3263, %v3743
    %v3872 = vadd.f32 %v3264, %v3744
    %v3873 = vadd.f32 %v3265, %v3745
    %v3874 = vmul.f32 %v1570, %v2658
    %v3875 = vmul.f32 %v1571, %v2659
    %v3876 = vmul.f32 %v1572, %v2660
    %v3877 = vmul.f32 %v1573, %v2661
    %v3878 = vmul.f32 %v1574, %v2662
    %v3879 = vmul.f32 %v1575, %v2663
    %v3880 = vmul.f32 %v1576, %v2664
    %v3881 = vmul.f32 %v1577, %v2665
    %v3882 = vmul.f32 %v1578, %v2666
    %v3883 = vmul.f32 %v1579, %v2667
    %v3884 = vmul.f32 %v1580, %v2668
    %v3885 = vmul.f32 %v1581, %v2669
    %v3886 = vmul.f32 %v1582, %v2670
    %v3887 = vmul.f32 %v1583, %v2671
    %v3888 = vmul.f32 %v1584, %v2672
    %v3889 = vmul.f32 %v1585, %v2673
    %v3890 = vmul.f32 %v1586, %v2674
    %v3891 = vmul.f32 %v1587, %v2675
    %v3892 = vmul.f32 %v1588, %v2676
    %v3893 = vmul.f32 %v1589, %v2677
    %v3894 = vmul.f32 %v1590, %v2678
    %v3895 = vmul.f32 %v1591, %v2679
    %v3896 = vmul.f32 %v1592, %v2680
    %v3897 = vmul.f32 %v1593, %v2681
    %v3898 = vmul.f32 %v1594, %v2682
    %v3899 = vmul.f32 %v1595, %v2683
    %v3900 = vmul.f32 %v1596, %v2684
    %v3901 = vmul.f32 %v1597, %v2685
    %v3902 = vmul.f32 %v1598, %v2686
    %v3903 = vmul.f32 %v1599, %v2687
    %v3904 = vmul.f32 %v1600, %v2688
    %v3905 = vmul.f32 %v1601, %v2689
    %v3906 = vmul.f32 %v1602, %v2690
    %v3907 = vmul.f32 %v1603, %v2691
    %v3908 = vmul.f32 %v1604, %v2692
    %v3909 = vmul.f32 %v1605, %v2693
    %v3910 = vmul.f32 %v1606, %v2694
    %v3911 = vmul.f32 %v1607, %v2695
    %v3912 = vmul.f32 %v1608, %v2696
    %v3913 = vmul.f32 %v1609, %v2697
    %v3914 = vmul.f32 %v1610, %v2698
    %v3915 = vmul.f32 %v1611, %v2699
    %v3916 = vmul.f32 %v1612, %v2700
    %v3917 = vmul.f32 %v1613, %v2701
    %v3918 = vmul.f32 %v1614, %v2702
    %v3919 = vmul.f32 %v1615, %v2703
    %v3920 = vmul.f32 %v1616, %v2704
    %v3921 = vmul.f32 %v1617, %v2705
    %v3922 = vmul.f32 %v1618, %v2706
    %v3923 = vmul.f32 %v1619, %v2707
    %v3924 = vmul.f32 %v1620, %v2708
    %v3925 = vmul.f32 %v1621, %v2709
    %v3926 = vmul.f32 %v1622, %v2710
    %v3927 = vmul.f32 %v1623, %v2711
    %v3928 = vmul.f32 %v1624, %v2712
    %v3929 = vmul.f32 %v1625, %v2713
    %v3930 = vmul.f32 %v1626, %v2714
    %v3931 = vmul.f32 %v1627, %v2715
    %v3932 = vmul.f32 %v1628, %v2716
    %v3933 = vmul.f32 %v1629, %v2717
    %v3934 = vmul.f32 %v1630, %v2718
    %v3935 = vmul.f32 %v1631, %v2719
    %v3936 = vmul.f32 %v1632, %v2720
    %v3937 = vmul.f32 %v1633, %v2721
    %v3938 = vmul.f32 %v1634, %v2722
    %v3939 = vmul.f32 %v1635, %v2723
    %v3940 = vmul.f32 %v1636, %v2724
    %v3941 = vmul.f32 %v1637, %v2725
    %v3942 = vmul.f32 %v1638, %v2726
    %v3943 = vmul.f32 %v1639, %v2727
    %v3944 = vmul.f32 %v1640, %v2728
    %v3945 = vmul.f32 %v1641, %v2729
    %v3946 = vmul.f32 %v1642, %v2730
    %v3947 = vmul.f32 %v1643, %v2731
    %v3948 = vmul.f32 %v1644, %v2732
    %v3949 = vmul.f32 %v1645, %v2733
    %v3950 = vmul.f32 %v1646, %v2734
    %v3951 = vmul.f32 %v1647, %v2735
    %v3952 = vmul.f32 %v1648, %v2736
    %v3953 = vmul.f32 %v1649, %v2737
    %v3954 = vmul.f32 %v1650, %v2738
    %v3955 = vmul.f32 %v1651, %v2739
    %v3956 = vmul.f32 %v1652, %v2740
    %v3957 = vmul.f32 %v1653, %v2741
    %v3958 = vmul.f32 %v1654, %v2742
    %v3959 = vmul.f32 %v1655, %v2743
    %v3960 = vmul.f32 %v1656, %v2744
    %v3961 = vmul.f32 %v1657, %v2745
    %v3962 = vmul.f32 %v1658, %v2746
    %v3963 = vmul.f32 %v1659, %v2747
    %v3964 = vmul.f32 %v1660, %v2748
    %v3965 = vmul.f32 %v1661, %v2749
    %v3966 = vmul.f32 %v1662, %v2750
    %v3967 = vmul.f32 %v1663, %v2751
    %v3968 = vmul.f32 %v1664, %v2752
    %v3969 = vmul.f32 %v1665, %v2753
    %v3970 = vmul.f32 %v1666, %v2754
    %v3971 = vmul.f32 %v1667, %v2755
    %v3972 = vmul.f32 %v1668, %v2756
    %v3973 = vmul.f32 %v1669, %v2757
    %v3974 = vmul.f32 %v1670, %v2758
    %v3975 = vmul.f32 %v1671, %v2759
    %v3976 = vmul.f32 %v1672, %v2760
    %v3977 = vmul.f32 %v1673, %v2761
    %v3978 = vmul.f32 %v1674, %v2762
    %v3979 = vmul.f32 %v1675, %v2763
    %v3980 = vmul.f32 %v1676, %v2764
    %v3981 = vmul.f32 %v1677, %v2765
    %v3982 = vmul.f32 %v1678, %v2766
    %v3983 = vmul.f32 %v1679, %v2767
    %v3984 = vmul.f32 %v1680, %v2768
    %v3985 = vmul.f32 %v1681, %v2769
    %v3986 = vmul.f32 %v1682, %v2770
    %v3987 = vmul.f32 %v1683, %v2771
    %v3988 = vmul.f32 %v1684, %v2772
    %v3989 = vmul.f32 %v1685, %v2773
    %v3990 = vmul.f32 %v1686, %v2774
    %v3991 = vmul.f32 %v1687, %v2775
    %v3992 = vmul.f32 %v1688, %v2776
    %v3993 = vmul.f32 %v1689, %v2777
    %v3994 = vmul.f32 %v1690, %v2778
    %v3995 = vmul.f32 %v1691, %v2779
    %v3996 = vmul.f32 %v1692, %v2780
    %v3997 = vmul.f32 %v1693, %v2781
    %v3998 = vmul.f32 %v1694, %v2782
    %v3999 = vmul.f32 %v1695, %v2783
    %v4000 = vmul.f32 %v1696, %v2784
    %v4001 = vmul.f32 %v1697, %v2785
    %v4002 = vmul.f32 %v3874, %v3746
    %v4003 = vmul.f32 %v3875, %v3747
    %v4004 = vmul.f32 %v3876, %v3748
    %v4005 = vmul.f32 %v3877, %v3749
    %v4006 = vmul.f32 %v3878, %v3750
    %v4007 = vmul.f32 %v3879, %v3751
    %v4008 = vmul.f32 %v3880, %v3752
    %v4009 = vmul.f32 %v3881, %v3753
    %v4010 = vmul.f32 %v3882, %v3754
    %v4011 = vmul.f32 %v3883, %v3755
    %v4012 = vmul.f32 %v3884, %v3756
    %v4013 = vmul.f32 %v3885, %v3757
    %v4014 = vmul.f32 %v3886, %v3758
    %v4015 = vmul.f32 %v3887, %v3759
    %v4016 = vmul.f32 %v3888, %v3760
    %v4017 = vmul.f32 %v3889, %v3761
    %v4018 = vmul.f32 %v3890, %v3762
    %v4019 = vmul.f32 %v3891, %v3763
    %v4020 = vmul.f32 %v3892, %v3764
    %v4021 = vmul.f32 %v3893, %v3765
    %v4022 = vmul.f32 %v3894, %v3766
    %v4023 = vmul.f32 %v3895, %v3767
    %v4024 = vmul.f32 %v3896, %v3768
    %v4025 = vmul.f32 %v3897, %v3769
    %v4026 = vmul.f32 %v3898, %v3770
    %v4027 = vmul.f32 %v3899, %v3771
    %v4028 = vmul.f32 %v3900, %v3772
    %v4029 = vmul.f32 %v3901, %v3773
    %v4030 = vmul.f32 %v3902, %v3774
    %v4031 = vmul.f32 %v3903, %v3775
    %v4032 = vmul.f32 %v3904, %v3776
    %v4033 = vmul.f32 %v3905, %v3777
    %v4034 = vmul.f32 %v3906, %v3778
    %v4035 = vmul.f32 %v3907, %v3779
    %v4036 = vmul.f32 %v3908, %v3780
    %v4037 = vmul.f32 %v3909, %v3781
    %v4038 = vmul.f32 %v3910, %v3782
    %v4039 = vmul.f32 %v3911, %v3783
    %v4040 = vmul.f32 %v3912, %v3784
    %v4041 = vmul.f32 %v3913, %v3785
    %v4042 = vmul.f32 %v3914, %v3786
    %v4043 = vmul.f32 %v3915, %v3787
    %v4044 = vmul.f32 %v3916, %v3788
    %v4045 = vmul.f32 %v3917, %v3789
    %v4046 = vmul.f32 %v3918, %v3790
    %v4047 = vmul.f32 %v3919, %v3791
    %v4048 = vmul.f32 %v3920, %v3792
    %v4049 = vmul.f32 %v3921, %v3793
    %v4050 = vmul.f32 %v3922, %v3794
    %v4051 = vmul.f32 %v3923, %v3795
    %v4052 = vmul.f32 %v3924, %v3796
    %v4053 = vmul.f32 %v3925, %v3797
    %v4054 = vmul.f32 %v3926, %v3798
    %v4055 = vmul.f32 %v3927, %v3799
    %v4056 = vmul.f32 %v3928, %v3800
    %v4057 = vmul.f32 %v3929, %v3801
    %v4058 = vmul.f32 %v3930, %v3802
    %v4059 = vmul.f32 %v3931, %v3803
    %v4060 = vmul.f32 %v3932, %v3804
    %v4061 = vmul.f32 %v3933, %v3805
    %v4062 = vmul.f32 %v3934, %v3806
    %v4063 = vmul.f32 %v3935, %v3807
    %v4064 = vmul.f32 %v3936, %v3808
    %v4065 = vmul.f32 %v3937, %v3809
    %v4066 = vmul.f32 %v3938, %v3810
    %v4067 = vmul.f32 %v3939, %v3811
    %v4068 = vmul.f32 %v3940, %v3812
    %v4069 = vmul.f32 %v3941, %v3813
    %v4070 = vmul.f32 %v3942, %v3814
    %v4071 = vmul.f32 %v3943, %v3815
    %v4072 = vmul.f32 %v3944, %v3816
    %v4073 = vmul.f32 %v3945, %v3817
    %v4074 = vmul.f32 %v3946, %v3818
    %v4075 = vmul.f32 %v3947, %v3819
    %v4076 = vmul.f32 %v3948, %v3820
    %v4077 = vmul.f32 %v3949, %v3821
    %v4078 = vmul.f32 %v3950, %v3822
    %v4079 = vmul.f32 %v3951, %v3823
    %v4080 = vmul.f32 %v3952, %v3824
    %v4081 = vmul.f32 %v3953, %v3825
    %v4082 = vmul.f32 %v3954, %v3826
    %v4083 = vmul.f32 %v3955, %v3827
    %v4084 = vmul.f32 %v3956, %v3828
    %v4085 = vmul.f32 %v3957, %v3829
    %v4086 = vmul.f32 %v3958, %v3830
    %v4087 = vmul.f32 %v3959, %v3831
    %v4088 = vmul.f32 %v3960, %v3832
    %v4089 = vmul.f32 %v3961, %v3833
    %v4090 = vmul.f32 %v3962, %v3834
    %v4091 = vmul.f32 %v3963, %v3835
    %v4092 = vmul.f32 %v3964, %v3836
    %v4093 = vmul.f32 %v3965, %v3837
    %v4094 = vmul.f32 %v3966, %v3838
    %v4095 = vmul.f32 %v3967, %v3839
    %v4096 = vmul.f32 %v3968, %v3840
    %v4097 = vmul.f32 %v3969, %v3841
    %v4098 = vmul.f32 %v3970, %v3842
    %v4099 = vmul.f32 %v3971, %v3843
    %v4100 = vmul.f32 %v3972, %v3844
    %v4101 = vmul.f32 %v3973, %v3845
    %v4102 = vmul.f32 %v3974, %v3846
    %v4103 = vmul.f32 %v3975, %v3847
    %v4104 = vmul.f32 %v3976, %v3848
    %v4105 = vmul.f32 %v3977, %v3849
    %v4106 = vmul.f32 %v3978, %v3850
    %v4107 = vmul.f32 %v3979, %v3851
    %v4108 = vmul.f32 %v3980, %v3852
    %v4109 = vmul.f32 %v3981, %v3853
    %v4110 = vmul.f32 %v3982, %v3854
    %v4111 = vmul.f32 %v3983, %v3855
    %v4112 = vmul.f32 %v3984, %v3856
    %v4113 = vmul.f32 %v3985, %v3857
    %v4114 = vmul.f32 %v3986, %v3858
    %v4115 = vmul.f32 %v3987, %v3859
    %v4116 = vmul.f32 %v3988, %v3860
    %v4117 = vmul.f32 %v3989, %v3861
    %v4118 = vmul.f32 %v3990, %v3862
    %v4119 = vmul.f32 %v3991, %v3863
    %v4120 = vmul.f32 %v3992, %v3864
    %v4121 = vmul.f32 %v3993, %v3865
    %v4122 = vmul.f32 %v3994, %v3866
    %v4123 = vmul.f32 %v3995, %v3867
    %v4124 = vmul.f32 %v3996, %v3868
    %v4125 = vmul.f32 %v3997, %v3869
    %v4126 = vmul.f32 %v3998, %v3870
    %v4127 = vmul.f32 %v3999, %v3871
    %v4128 = vmul.f32 %v4000, %v3872
    %v4129 = vmul.f32 %v4001, %v3873
    %v4130 = vpack.c.bf16 %v4006, %v4002
    %v4131 = vpack.c.bf16 %v4007, %v4003
    %v4132 = vpack.c.bf16 %v4008, %v4004
    %v4133 = vpack.c.bf16 %v4009, %v4005
    %v4134 = vpack.c.bf16 %v4014, %v4010
    %v4135 = vpack.c.bf16 %v4015, %v4011
    %v4136 = vpack.c.bf16 %v4016, %v4012
    %v4137 = vpack.c.bf16 %v4017, %v4013
    %v4138 = vpack.c.bf16 %v4022, %v4018
    %v4139 = vpack.c.bf16 %v4023, %v4019
    %v4140 = vpack.c.bf16 %v4024, %v4020
    %v4141 = vpack.c.bf16 %v4025, %v4021
    %v4142 = vpack.c.bf16 %v4030, %v4026
    %v4143 = vpack.c.bf16 %v4031, %v4027
    %v4144 = vpack.c.bf16 %v4032, %v4028
    %v4145 = vpack.c.bf16 %v4033, %v4029
    %v4146 = vpack.c.bf16 %v4038, %v4034
    %v4147 = vpack.c.bf16 %v4039, %v4035
    %v4148 = vpack.c.bf16 %v4040, %v4036
    %v4149 = vpack.c.bf16 %v4041, %v4037
    %v4150 = vpack.c.bf16 %v4046, %v4042
    %v4151 = vpack.c.bf16 %v4047, %v4043
    %v4152 = vpack.c.bf16 %v4048, %v4044
    %v4153 = vpack.c.bf16 %v4049, %v4045
    %v4154 = vpack.c.bf16 %v4054, %v4050
    %v4155 = vpack.c.bf16 %v4055, %v4051
    %v4156 = vpack.c.bf16 %v4056, %v4052
    %v4157 = vpack.c.bf16 %v4057, %v4053
    %v4158 = vpack.c.bf16 %v4062, %v4058
    %v4159 = vpack.c.bf16 %v4063, %v4059
    %v4160 = vpack.c.bf16 %v4064, %v4060
    %v4161 = vpack.c.bf16 %v4065, %v4061
    %v4162 = vpack.c.bf16 %v4070, %v4066
    %v4163 = vpack.c.bf16 %v4071, %v4067
    %v4164 = vpack.c.bf16 %v4072, %v4068
    %v4165 = vpack.c.bf16 %v4073, %v4069
    %v4166 = vpack.c.bf16 %v4078, %v4074
    %v4167 = vpack.c.bf16 %v4079, %v4075
    %v4168 = vpack.c.bf16 %v4080, %v4076
    %v4169 = vpack.c.bf16 %v4081, %v4077
    %v4170 = vpack.c.bf16 %v4086, %v4082
    %v4171 = vpack.c.bf16 %v4087, %v4083
    %v4172 = vpack.c.bf16 %v4088, %v4084
    %v4173 = vpack.c.bf16 %v4089, %v4085
    %v4174 = vpack.c.bf16 %v4094, %v4090
    %v4175 = vpack.c.bf16 %v4095, %v4091
    %v4176 = vpack.c.bf16 %v4096, %v4092
    %v4177 = vpack.c.bf16 %v4097, %v4093
    %v4178 = vpack.c.bf16 %v4102, %v4098
    %v4179 = vpack.c.bf16 %v4103, %v4099
    %v4180 = vpack.c.bf16 %v4104, %v4100
    %v4181 = vpack.c.bf16 %v4105, %v4101
    %v4182 = vpack.c.bf16 %v4110, %v4106
    %v4183 = vpack.c.bf16 %v4111, %v4107
    %v4184 = vpack.c.bf16 %v4112, %v4108
    %v4185 = vpack.c.bf16 %v4113, %v4109
    %v4186 = vpack.c.bf16 %v4118, %v4114
    %v4187 = vpack.c.bf16 %v4119, %v4115
    %v4188 = vpack.c.bf16 %v4120, %v4116
    %v4189 = vpack.c.bf16 %v4121, %v4117
    %v4190 = vpack.c.bf16 %v4126, %v4122
    %v4191 = vpack.c.bf16 %v4127, %v4123
    %v4192 = vpack.c.bf16 %v4128, %v4124
    %v4193 = vpack.c.bf16 %v4129, %v4125
    %v4194 = vld [vmem:[#allocation3] sm:$0xff]
    %v4195 = vld [vmem:[#allocation3 + $0x8] sm:$0xff]
    %v4196 = vld [vmem:[#allocation3 + $0x10] sm:$0xff]
    %v4197 = vld [vmem:[#allocation3 + $0x18] sm:$0xff]
    %v4198 = vld [vmem:[#allocation3 + $0x20] sm:$0xff]
    %v4199 = vld [vmem:[#allocation3 + $0x28] sm:$0xff]
    %v4200 = vld [vmem:[#allocation3 + $0x30] sm:$0xff]
    %v4201 = vld [vmem:[#allocation3 + $0x38] sm:$0xff]
    %v4202 = vld [vmem:[#allocation3 + $0x40] sm:$0xff]
    %v4203 = vld [vmem:[#allocation3 + $0x48] sm:$0xff]
    %v4204 = vld [vmem:[#allocation3 + $0x50] sm:$0xff]
    %v4205 = vld [vmem:[#allocation3 + $0x58] sm:$0xff]
    %v4206 = vld [vmem:[#allocation3 + $0x60] sm:$0xff]
    %v4207 = vld [vmem:[#allocation3 + $0x68] sm:$0xff]
    %v4208 = vld [vmem:[#allocation3 + $0x70] sm:$0xff]
    %v4209 = vld [vmem:[#allocation3 + $0x78] sm:$0xff]
    %v4210 = vld [vmem:[#allocation3 + $0x80] sm:$0xff]
    %v4211 = vld [vmem:[#allocation3 + $0x88] sm:$0xff]
    %v4212 = vld [vmem:[#allocation3 + $0x90] sm:$0xff]
    %v4213 = vld [vmem:[#allocation3 + $0x98] sm:$0xff]
    %v4214 = vld [vmem:[#allocation3 + $0xa0] sm:$0xff]
    %v4215 = vld [vmem:[#allocation3 + $0xa8] sm:$0xff]
    %v4216 = vld [vmem:[#allocation3 + $0xb0] sm:$0xff]
    %v4217 = vld [vmem:[#allocation3 + $0xb8] sm:$0xff]
    %v4218 = vld [vmem:[#allocation3 + $0xc0] sm:$0xff]
    %v4219 = vld [vmem:[#allocation3 + $0xc8] sm:$0xff]
    %v4220 = vld [vmem:[#allocation3 + $0xd0] sm:$0xff]
    %v4221 = vld [vmem:[#allocation3 + $0xd8] sm:$0xff]
    %v4222 = vld [vmem:[#allocation3 + $0xe0] sm:$0xff]
    %v4223 = vld [vmem:[#allocation3 + $0xe8] sm:$0xff]
    %v4224 = vld [vmem:[#allocation3 + $0xf0] sm:$0xff]
    %v4225 = vld [vmem:[#allocation3 + $0xf8] sm:$0xff]
    %v4226 = vld [vmem:[#allocation3 + $0x100] sm:$0xff]
    %v4227 = vld [vmem:[#allocation3 + $0x108] sm:$0xff]
    %v4228 = vld [vmem:[#allocation3 + $0x110] sm:$0xff]
    %v4229 = vld [vmem:[#allocation3 + $0x118] sm:$0xff]
    %v4230 = vld [vmem:[#allocation3 + $0x120] sm:$0xff]
    %v4231 = vld [vmem:[#allocation3 + $0x128] sm:$0xff]
    %v4232 = vld [vmem:[#allocation3 + $0x130] sm:$0xff]
    %v4233 = vld [vmem:[#allocation3 + $0x138] sm:$0xff]
    %v4234 = vld [vmem:[#allocation3 + $0x140] sm:$0xff]
    %v4235 = vld [vmem:[#allocation3 + $0x148] sm:$0xff]
    %v4236 = vld [vmem:[#allocation3 + $0x150] sm:$0xff]
    %v4237 = vld [vmem:[#allocation3 + $0x158] sm:$0xff]
    %v4238 = vld [vmem:[#allocation3 + $0x160] sm:$0xff]
    %v4239 = vld [vmem:[#allocation3 + $0x168] sm:$0xff]
    %v4240 = vld [vmem:[#allocation3 + $0x170] sm:$0xff]
    %v4241 = vld [vmem:[#allocation3 + $0x178] sm:$0xff]
    %v4242 = vld [vmem:[#allocation3 + $0x180] sm:$0xff]
    %v4243 = vld [vmem:[#allocation3 + $0x188] sm:$0xff]
    %v4244 = vld [vmem:[#allocation3 + $0x190] sm:$0xff]
    %v4245 = vld [vmem:[#allocation3 + $0x198] sm:$0xff]
    %v4246 = vld [vmem:[#allocation3 + $0x1a0] sm:$0xff]
    %v4247 = vld [vmem:[#allocation3 + $0x1a8] sm:$0xff]
    %v4248 = vld [vmem:[#allocation3 + $0x1b0] sm:$0xff]
    %v4249 = vld [vmem:[#allocation3 + $0x1b8] sm:$0xff]
    %v4250 = vld [vmem:[#allocation3 + $0x1c0] sm:$0xff]
    %v4251 = vld [vmem:[#allocation3 + $0x1c8] sm:$0xff]
    %v4252 = vld [vmem:[#allocation3 + $0x1d0] sm:$0xff]
    %v4253 = vld [vmem:[#allocation3 + $0x1d8] sm:$0xff]
    %v4254 = vld [vmem:[#allocation3 + $0x1e0] sm:$0xff]
    %v4255 = vld [vmem:[#allocation3 + $0x1e8] sm:$0xff]
    %v4256 = vld [vmem:[#allocation3 + $0x1f0] sm:$0xff]
    %v4257 = vld [vmem:[#allocation3 + $0x1f8] sm:$0xff]
    %v4258 = vld [vmem:[%s2] ss:$4 sm:$0x3]
    %4260 = vset.pattern.permute.xlu0 0
    %4261 = vperm.xlu0 %4260, %v45
    %v4262 = vpop.permute.xlu0 %4261
    %4265 = vset.pattern.permute.xlu0 0
    %4266 = vperm.xlu0 %4265, %v46
    %v4267 = vpop.permute.xlu0 %4266
    %4270 = vset.pattern.permute.xlu0 0
    %4271 = vperm.xlu0 %4270, %v47
    %v4272 = vpop.permute.xlu0 %4271
    %4275 = vset.pattern.permute.xlu0 0
    %4276 = vperm.xlu0 %4275, %v48
    %v4277 = vpop.permute.xlu0 %4276
    %4280 = vset.pattern.permute.xlu0 0
    %4281 = vperm.xlu0 %4280, %v49
    %v4282 = vpop.permute.xlu0 %4281
    %4285 = vset.pattern.permute.xlu0 0
    %4286 = vperm.xlu0 %4285, %v50
    %v4287 = vpop.permute.xlu0 %4286
    %4290 = vset.pattern.permute.xlu0 0
    %4291 = vperm.xlu0 %4290, %v51
    %v4292 = vpop.permute.xlu0 %4291
    %4295 = vset.pattern.permute.xlu0 0
    %4296 = vperm.xlu0 %4295, %v52
    %v4297 = vpop.permute.xlu0 %4296
    %4300 = vset.pattern.permute.xlu0 0
    %4301 = vperm.xlu0 %4300, %v53
    %v4302 = vpop.permute.xlu0 %4301
    %4305 = vset.pattern.permute.xlu0 0
    %4306 = vperm.xlu0 %4305, %v54
    %v4307 = vpop.permute.xlu0 %4306
    %4310 = vset.pattern.permute.xlu0 0
    %4311 = vperm.xlu0 %4310, %v55
    %v4312 = vpop.permute.xlu0 %4311
    %4315 = vset.pattern.permute.xlu0 0
    %4316 = vperm.xlu0 %4315, %v56
    %v4317 = vpop.permute.xlu0 %4316
    %4320 = vset.pattern.permute.xlu0 0
    %4321 = vperm.xlu0 %4320, %v57
    %v4322 = vpop.permute.xlu0 %4321
    %4325 = vset.pattern.permute.xlu0 0
    %4326 = vperm.xlu0 %4325, %v58
    %v4327 = vpop.permute.xlu0 %4326
    %4330 = vset.pattern.permute.xlu0 0
    %4331 = vperm.xlu0 %4330, %v59
    %v4332 = vpop.permute.xlu0 %4331
    %4335 = vset.pattern.permute.xlu0 0
    %4336 = vperm.xlu0 %4335, %v60
    %v4337 = vpop.permute.xlu0 %4336
    %4340 = vset.pattern.permute.xlu0 0
    %4341 = vperm.xlu0 %4340, %v61
    %v4342 = vpop.permute.xlu0 %4341
    %4345 = vset.pattern.permute.xlu0 0
    %4346 = vperm.xlu0 %4345, %v62
    %v4347 = vpop.permute.xlu0 %4346
    %4350 = vset.pattern.permute.xlu0 0
    %4351 = vperm.xlu0 %4350, %v63
    %v4352 = vpop.permute.xlu0 %4351
    %4355 = vset.pattern.permute.xlu0 0
    %4356 = vperm.xlu0 %4355, %v64
    %v4357 = vpop.permute.xlu0 %4356
    %4360 = vset.pattern.permute.xlu0 0
    %4361 = vperm.xlu0 %4360, %v65
    %v4362 = vpop.permute.xlu0 %4361
    %4365 = vset.pattern.permute.xlu0 0
    %4366 = vperm.xlu0 %4365, %v66
    %v4367 = vpop.permute.xlu0 %4366
    %4370 = vset.pattern.permute.xlu0 0
    %4371 = vperm.xlu0 %4370, %v67
    %v4372 = vpop.permute.xlu0 %4371
    %4375 = vset.pattern.permute.xlu0 0
    %4376 = vperm.xlu0 %4375, %v68
    %v4377 = vpop.permute.xlu0 %4376
    %4380 = vset.pattern.permute.xlu0 0
    %4381 = vperm.xlu0 %4380, %v69
    %v4382 = vpop.permute.xlu0 %4381
    %4385 = vset.pattern.permute.xlu0 0
    %4386 = vperm.xlu0 %4385, %v70
    %v4387 = vpop.permute.xlu0 %4386
    %4390 = vset.pattern.permute.xlu0 0
    %4391 = vperm.xlu0 %4390, %v71
    %v4392 = vpop.permute.xlu0 %4391
    %4395 = vset.pattern.permute.xlu0 0
    %4396 = vperm.xlu0 %4395, %v72
    %v4397 = vpop.permute.xlu0 %4396
    %4400 = vset.pattern.permute.xlu0 0
    %4401 = vperm.xlu0 %4400, %v73
    %v4402 = vpop.permute.xlu0 %4401
    %4405 = vset.pattern.permute.xlu0 0
    %4406 = vperm.xlu0 %4405, %v74
    %v4407 = vpop.permute.xlu0 %4406
    %4410 = vset.pattern.permute.xlu0 0
    %4411 = vperm.xlu0 %4410, %v75
    %v4412 = vpop.permute.xlu0 %4411
    %4415 = vset.pattern.permute.xlu0 0
    %4416 = vperm.xlu0 %4415, %v76
    %v4417 = vpop.permute.xlu0 %4416
    %v4420 = vlaneseq
    %v4421 = vshrl.u32 %v4420, 7
    %v4422 = vsub.s32 0, %v4421
    %v4423 = vrot.slane %v4258, %v4422
    %v4424 = vlaneseq
    %v4425 = vshrl.u32 %v4424, 7
    %v4426 = vsub.s32 1, %v4425
    %v4427 = vrot.slane %v4258, %v4426
    %v4430 = vmul.f32 %v4262, %v4423
    %v4431 = vmul.f32 %v4262, %v4427
    %v4432 = vmul.f32 %v4267, %v4423
    %v4433 = vmul.f32 %v4267, %v4427
    %v4434 = vmul.f32 %v4272, %v4423
    %v4435 = vmul.f32 %v4272, %v4427
    %v4436 = vmul.f32 %v4277, %v4423
    %v4437 = vmul.f32 %v4277, %v4427
    %v4438 = vmul.f32 %v4282, %v4423
    %v4439 = vmul.f32 %v4282, %v4427
    %v4440 = vmul.f32 %v4287, %v4423
    %v4441 = vmul.f32 %v4287, %v4427
    %v4442 = vmul.f32 %v4292, %v4423
    %v4443 = vmul.f32 %v4292, %v4427
    %v4444 = vmul.f32 %v4297, %v4423
    %v4445 = vmul.f32 %v4297, %v4427
    %v4446 = vmul.f32 %v4302, %v4423
    %v4447 = vmul.f32 %v4302, %v4427
    %v4448 = vmul.f32 %v4307, %v4423
    %v4449 = vmul.f32 %v4307, %v4427
    %v4450 = vmul.f32 %v4312, %v4423
    %v4451 = vmul.f32 %v4312, %v4427
    %v4452 = vmul.f32 %v4317, %v4423
    %v4453 = vmul.f32 %v4317, %v4427
    %v4454 = vmul.f32 %v4322, %v4423
    %v4455 = vmul.f32 %v4322, %v4427
    %v4456 = vmul.f32 %v4327, %v4423
    %v4457 = vmul.f32 %v4327, %v4427
    %v4458 = vmul.f32 %v4332, %v4423
    %v4459 = vmul.f32 %v4332, %v4427
    %v4460 = vmul.f32 %v4337, %v4423
    %v4461 = vmul.f32 %v4337, %v4427
    %v4462 = vmul.f32 %v4342, %v4423
    %v4463 = vmul.f32 %v4342, %v4427
    %v4464 = vmul.f32 %v4347, %v4423
    %v4465 = vmul.f32 %v4347, %v4427
    %v4466 = vmul.f32 %v4352, %v4423
    %v4467 = vmul.f32 %v4352, %v4427
    %v4468 = vmul.f32 %v4357, %v4423
    %v4469 = vmul.f32 %v4357, %v4427
    %v4470 = vmul.f32 %v4362, %v4423
    %v4471 = vmul.f32 %v4362, %v4427
    %v4472 = vmul.f32 %v4367, %v4423
    %v4473 = vmul.f32 %v4367, %v4427
    %v4474 = vmul.f32 %v4372, %v4423
    %v4475 = vmul.f32 %v4372, %v4427
    %v4476 = vmul.f32 %v4377, %v4423
    %v4477 = vmul.f32 %v4377, %v4427
    %v4478 = vmul.f32 %v4382, %v4423
    %v4479 = vmul.f32 %v4382, %v4427
    %v4480 = vmul.f32 %v4387, %v4423
    %v4481 = vmul.f32 %v4387, %v4427
    %v4482 = vmul.f32 %v4392, %v4423
    %v4483 = vmul.f32 %v4392, %v4427
    %v4484 = vmul.f32 %v4397, %v4423
    %v4485 = vmul.f32 %v4397, %v4427
    %v4486 = vmul.f32 %v4402, %v4423
    %v4487 = vmul.f32 %v4402, %v4427
    %v4488 = vmul.f32 %v4407, %v4423
    %v4489 = vmul.f32 %v4407, %v4427
    %v4490 = vmul.f32 %v4412, %v4423
    %v4491 = vmul.f32 %v4412, %v4427
    %v4492 = vmul.f32 %v4417, %v4423
    %v4493 = vmul.f32 %v4417, %v4427
    %v4558 = vunpack.c.l.b16 %v4194
    %v4559 = vunpack.c.h.b16 %v4194
    %v4560 = vunpack.c.l.b16 %v4195
    %v4561 = vunpack.c.h.b16 %v4195
    %v4562 = vunpack.c.l.b16 %v4196
    %v4563 = vunpack.c.h.b16 %v4196
    %v4564 = vunpack.c.l.b16 %v4197
    %v4565 = vunpack.c.h.b16 %v4197
    %v4566 = vunpack.c.l.b16 %v4198
    %v4567 = vunpack.c.h.b16 %v4198
    %v4568 = vunpack.c.l.b16 %v4199
    %v4569 = vunpack.c.h.b16 %v4199
    %v4570 = vunpack.c.l.b16 %v4200
    %v4571 = vunpack.c.h.b16 %v4200
    %v4572 = vunpack.c.l.b16 %v4201
    %v4573 = vunpack.c.h.b16 %v4201
    %v4574 = vunpack.c.l.b16 %v4202
    %v4575 = vunpack.c.h.b16 %v4202
    %v4576 = vunpack.c.l.b16 %v4203
    %v4577 = vunpack.c.h.b16 %v4203
    %v4578 = vunpack.c.l.b16 %v4204
    %v4579 = vunpack.c.h.b16 %v4204
    %v4580 = vunpack.c.l.b16 %v4205
    %v4581 = vunpack.c.h.b16 %v4205
    %v4582 = vunpack.c.l.b16 %v4206
    %v4583 = vunpack.c.h.b16 %v4206
    %v4584 = vunpack.c.l.b16 %v4207
    %v4585 = vunpack.c.h.b16 %v4207
    %v4586 = vunpack.c.l.b16 %v4208
    %v4587 = vunpack.c.h.b16 %v4208
    %v4588 = vunpack.c.l.b16 %v4209
    %v4589 = vunpack.c.h.b16 %v4209
    %v4590 = vunpack.c.l.b16 %v4210
    %v4591 = vunpack.c.h.b16 %v4210
    %v4592 = vunpack.c.l.b16 %v4211
    %v4593 = vunpack.c.h.b16 %v4211
    %v4594 = vunpack.c.l.b16 %v4212
    %v4595 = vunpack.c.h.b16 %v4212
    %v4596 = vunpack.c.l.b16 %v4213
    %v4597 = vunpack.c.h.b16 %v4213
    %v4598 = vunpack.c.l.b16 %v4214
    %v4599 = vunpack.c.h.b16 %v4214
    %v4600 = vunpack.c.l.b16 %v4215
    %v4601 = vunpack.c.h.b16 %v4215
    %v4602 = vunpack.c.l.b16 %v4216
    %v4603 = vunpack.c.h.b16 %v4216
    %v4604 = vunpack.c.l.b16 %v4217
    %v4605 = vunpack.c.h.b16 %v4217
    %v4606 = vunpack.c.l.b16 %v4218
    %v4607 = vunpack.c.h.b16 %v4218
    %v4608 = vunpack.c.l.b16 %v4219
    %v4609 = vunpack.c.h.b16 %v4219
    %v4610 = vunpack.c.l.b16 %v4220
    %v4611 = vunpack.c.h.b16 %v4220
    %v4612 = vunpack.c.l.b16 %v4221
    %v4613 = vunpack.c.h.b16 %v4221
    %v4614 = vunpack.c.l.b16 %v4222
    %v4615 = vunpack.c.h.b16 %v4222
    %v4616 = vunpack.c.l.b16 %v4223
    %v4617 = vunpack.c.h.b16 %v4223
    %v4618 = vunpack.c.l.b16 %v4224
    %v4619 = vunpack.c.h.b16 %v4224
    %v4620 = vunpack.c.l.b16 %v4225
    %v4621 = vunpack.c.h.b16 %v4225
    %v4622 = vunpack.c.l.b16 %v4226
    %v4623 = vunpack.c.h.b16 %v4226
    %v4624 = vunpack.c.l.b16 %v4227
    %v4625 = vunpack.c.h.b16 %v4227
    %v4626 = vunpack.c.l.b16 %v4228
    %v4627 = vunpack.c.h.b16 %v4228
    %v4628 = vunpack.c.l.b16 %v4229
    %v4629 = vunpack.c.h.b16 %v4229
    %v4630 = vunpack.c.l.b16 %v4230
    %v4631 = vunpack.c.h.b16 %v4230
    %v4632 = vunpack.c.l.b16 %v4231
    %v4633 = vunpack.c.h.b16 %v4231
    %v4634 = vunpack.c.l.b16 %v4232
    %v4635 = vunpack.c.h.b16 %v4232
    %v4636 = vunpack.c.l.b16 %v4233
    %v4637 = vunpack.c.h.b16 %v4233
    %v4638 = vunpack.c.l.b16 %v4234
    %v4639 = vunpack.c.h.b16 %v4234
    %v4640 = vunpack.c.l.b16 %v4235
    %v4641 = vunpack.c.h.b16 %v4235
    %v4642 = vunpack.c.l.b16 %v4236
    %v4643 = vunpack.c.h.b16 %v4236
    %v4644 = vunpack.c.l.b16 %v4237
    %v4645 = vunpack.c.h.b16 %v4237
    %v4646 = vunpack.c.l.b16 %v4238
    %v4647 = vunpack.c.h.b16 %v4238
    %v4648 = vunpack.c.l.b16 %v4239
    %v4649 = vunpack.c.h.b16 %v4239
    %v4650 = vunpack.c.l.b16 %v4240
    %v4651 = vunpack.c.h.b16 %v4240
    %v4652 = vunpack.c.l.b16 %v4241
    %v4653 = vunpack.c.h.b16 %v4241
    %v4654 = vunpack.c.l.b16 %v4242
    %v4655 = vunpack.c.h.b16 %v4242
    %v4656 = vunpack.c.l.b16 %v4243
    %v4657 = vunpack.c.h.b16 %v4243
    %v4658 = vunpack.c.l.b16 %v4244
    %v4659 = vunpack.c.h.b16 %v4244
    %v4660 = vunpack.c.l.b16 %v4245
    %v4661 = vunpack.c.h.b16 %v4245
    %v4662 = vunpack.c.l.b16 %v4246
    %v4663 = vunpack.c.h.b16 %v4246
    %v4664 = vunpack.c.l.b16 %v4247
    %v4665 = vunpack.c.h.b16 %v4247
    %v4666 = vunpack.c.l.b16 %v4248
    %v4667 = vunpack.c.h.b16 %v4248
    %v4668 = vunpack.c.l.b16 %v4249
    %v4669 = vunpack.c.h.b16 %v4249
    %v4670 = vunpack.c.l.b16 %v4250
    %v4671 = vunpack.c.h.b16 %v4250
    %v4672 = vunpack.c.l.b16 %v4251
    %v4673 = vunpack.c.h.b16 %v4251
    %v4674 = vunpack.c.l.b16 %v4252
    %v4675 = vunpack.c.h.b16 %v4252
    %v4676 = vunpack.c.l.b16 %v4253
    %v4677 = vunpack.c.h.b16 %v4253
    %v4678 = vunpack.c.l.b16 %v4254
    %v4679 = vunpack.c.h.b16 %v4254
    %v4680 = vunpack.c.l.b16 %v4255
    %v4681 = vunpack.c.h.b16 %v4255
    %v4682 = vunpack.c.l.b16 %v4256
    %v4683 = vunpack.c.h.b16 %v4256
    %v4684 = vunpack.c.l.b16 %v4257
    %v4685 = vunpack.c.h.b16 %v4257
    %v4686 = vpack.c.b16 %v4560, %v4558
    %v4687 = vpack.c.b16 %v4561, %v4559
    %v4688 = vpack.c.b16 %v4564, %v4562
    %v4689 = vpack.c.b16 %v4565, %v4563
    %v4690 = vpack.c.b16 %v4568, %v4566
    %v4691 = vpack.c.b16 %v4569, %v4567
    %v4692 = vpack.c.b16 %v4572, %v4570
    %v4693 = vpack.c.b16 %v4573, %v4571
    %v4694 = vpack.c.b16 %v4576, %v4574
    %v4695 = vpack.c.b16 %v4577, %v4575
    %v4696 = vpack.c.b16 %v4580, %v4578
    %v4697 = vpack.c.b16 %v4581, %v4579
    %v4698 = vpack.c.b16 %v4584, %v4582
    %v4699 = vpack.c.b16 %v4585, %v4583
    %v4700 = vpack.c.b16 %v4588, %v4586
    %v4701 = vpack.c.b16 %v4589, %v4587
    %v4702 = vpack.c.b16 %v4592, %v4590
    %v4703 = vpack.c.b16 %v4593, %v4591
    %v4704 = vpack.c.b16 %v4596, %v4594
    %v4705 = vpack.c.b16 %v4597, %v4595
    %v4706 = vpack.c.b16 %v4600, %v4598
    %v4707 = vpack.c.b16 %v4601, %v4599
    %v4708 = vpack.c.b16 %v4604, %v4602
    %v4709 = vpack.c.b16 %v4605, %v4603
    %v4710 = vpack.c.b16 %v4608, %v4606
    %v4711 = vpack.c.b16 %v4609, %v4607
    %v4712 = vpack.c.b16 %v4612, %v4610
    %v4713 = vpack.c.b16 %v4613, %v4611
    %v4714 = vpack.c.b16 %v4616, %v4614
    %v4715 = vpack.c.b16 %v4617, %v4615
    %v4716 = vpack.c.b16 %v4620, %v4618
    %v4717 = vpack.c.b16 %v4621, %v4619
    %v4718 = vpack.c.b16 %v4624, %v4622
    %v4719 = vpack.c.b16 %v4625, %v4623
    %v4720 = vpack.c.b16 %v4628, %v4626
    %v4721 = vpack.c.b16 %v4629, %v4627
    %v4722 = vpack.c.b16 %v4632, %v4630
    %v4723 = vpack.c.b16 %v4633, %v4631
    %v4724 = vpack.c.b16 %v4636, %v4634
    %v4725 = vpack.c.b16 %v4637, %v4635
    %v4726 = vpack.c.b16 %v4640, %v4638
    %v4727 = vpack.c.b16 %v4641, %v4639
    %v4728 = vpack.c.b16 %v4644, %v4642
    %v4729 = vpack.c.b16 %v4645, %v4643
    %v4730 = vpack.c.b16 %v4648, %v4646
    %v4731 = vpack.c.b16 %v4649, %v4647
    %v4732 = vpack.c.b16 %v4652, %v4650
    %v4733 = vpack.c.b16 %v4653, %v4651
    %v4734 = vpack.c.b16 %v4656, %v4654
    %v4735 = vpack.c.b16 %v4657, %v4655
    %v4736 = vpack.c.b16 %v4660, %v4658
    %v4737 = vpack.c.b16 %v4661, %v4659
    %v4738 = vpack.c.b16 %v4664, %v4662
    %v4739 = vpack.c.b16 %v4665, %v4663
    %v4740 = vpack.c.b16 %v4668, %v4666
    %v4741 = vpack.c.b16 %v4669, %v4667
    %v4742 = vpack.c.b16 %v4672, %v4670
    %v4743 = vpack.c.b16 %v4673, %v4671
    %v4744 = vpack.c.b16 %v4676, %v4674
    %v4745 = vpack.c.b16 %v4677, %v4675
    %v4746 = vpack.c.b16 %v4680, %v4678
    %v4747 = vpack.c.b16 %v4681, %v4679
    %v4748 = vpack.c.b16 %v4684, %v4682
    %v4749 = vpack.c.b16 %v4685, %v4683
    %4814 = vmatprep.subr.bf16.mxu0 %v4701
    %4815 = vmatpush1.bf16.msra.mxu0 %v4700
    %4816 = vmatprep.subr.bf16.mxu0 %v4699
    %4817 = vmatpush1.bf16.msra.mxu0 %v4698
    %4818 = vmatprep.subr.bf16.mxu0 %v4697
    %4819 = vmatpush1.bf16.msra.mxu0 %v4696
    %4820 = vmatprep.subr.bf16.mxu0 %v4695
    %4821 = vmatpush1.bf16.msra.mxu0 %v4694
    %4822 = vmatprep.subr.bf16.mxu0 %v4693
    %4823 = vmatpush1.bf16.msra.mxu0 %v4692
    %4824 = vmatprep.subr.bf16.mxu0 %v4691
    %4825 = vmatpush1.bf16.msra.mxu0 %v4690
    %4826 = vmatprep.subr.bf16.mxu0 %v4689
    %4827 = vmatpush1.bf16.msra.mxu0 %v4688
    %4828 = vmatprep.subr.bf16.mxu0 %v4687
    %4829 = vmatpush1.bf16.msra.mxu0 %v4686
    %4830 = vmatprep.subr.bf16.mxu0 %v4717
    %4831 = vmatpush2.bf16.msra.mxu0 %v4716
    %4832 = vmatprep.subr.bf16.mxu0 %v4715
    %4833 = vmatpush2.bf16.msra.mxu0 %v4714
    %4834 = vmatprep.subr.bf16.mxu0 %v4713
    %4835 = vmatpush2.bf16.msra.mxu0 %v4712
    %4836 = vmatprep.subr.bf16.mxu0 %v4711
    %4837 = vmatpush2.bf16.msra.mxu0 %v4710
    %4838 = vmatprep.subr.bf16.mxu0 %v4709
    %4839 = vmatpush2.bf16.msra.mxu0 %v4708
    %4840 = vmatprep.subr.bf16.mxu0 %v4707
    %4841 = vmatpush2.bf16.msra.mxu0 %v4706
    %4842 = vmatprep.subr.bf16.mxu0 %v4705
    %4843 = vmatpush2.bf16.msra.mxu0 %v4704
    %4844 = vmatprep.subr.bf16.mxu0 %v4703
    %4845 = vmatpush2.bf16.msra.mxu0 %v4702
    %4846 = vmatprep.mubr.bf16.mxu0 %v4131
    %4847 = vmatmul.mubr.bf16.gmra.mxu0 %v4130
    %v4848 = vpop.f32.mrf.mxu0
    %v4849 = vadd.f32 %v4430, %v4848
    %v4850 = vpop.f32.mrf.mxu0
    %v4851 = vadd.f32 %v4431, %v4850
    %v4852 = vpop.f32.mrf.mxu0
    %v4853 = vadd.f32 %v4432, %v4852
    %v4854 = vpop.f32.mrf.mxu0
    %v4855 = vadd.f32 %v4433, %v4854
    %4856 = vmatprep.mubr.bf16.mxu0 %v4135
    %4857 = vmatmul.mubr.bf16.gmra.mxu0 %v4134
    %v4858 = vpop.f32.mrf.mxu0
    %v4859 = vadd.f32 %v4434, %v4858
    %v4860 = vpop.f32.mrf.mxu0
    %v4861 = vadd.f32 %v4435, %v4860
    %v4862 = vpop.f32.mrf.mxu0
    %v4863 = vadd.f32 %v4436, %v4862
    %v4864 = vpop.f32.mrf.mxu0
    %v4865 = vadd.f32 %v4437, %v4864
    %4866 = vmatprep.mubr.bf16.mxu0 %v4139
    %4867 = vmatmul.mubr.bf16.gmra.mxu0 %v4138
    %v4868 = vpop.f32.mrf.mxu0
    %v4869 = vadd.f32 %v4438, %v4868
    %v4870 = vpop.f32.mrf.mxu0
    %v4871 = vadd.f32 %v4439, %v4870
    %v4872 = vpop.f32.mrf.mxu0
    %v4873 = vadd.f32 %v4440, %v4872
    %v4874 = vpop.f32.mrf.mxu0
    %v4875 = vadd.f32 %v4441, %v4874
    %4876 = vmatprep.mubr.bf16.mxu0 %v4143
    %4877 = vmatmul.mubr.bf16.gmra.mxu0 %v4142
    %v4878 = vpop.f32.mrf.mxu0
    %v4879 = vadd.f32 %v4442, %v4878
    %v4880 = vpop.f32.mrf.mxu0
    %v4881 = vadd.f32 %v4443, %v4880
    %v4882 = vpop.f32.mrf.mxu0
    %v4883 = vadd.f32 %v4444, %v4882
    %v4884 = vpop.f32.mrf.mxu0
    %v4885 = vadd.f32 %v4445, %v4884
    %4886 = vmatprep.mubr.bf16.mxu0 %v4147
    %4887 = vmatmul.mubr.bf16.gmra.mxu0 %v4146
    %v4888 = vpop.f32.mrf.mxu0
    %v4889 = vadd.f32 %v4446, %v4888
    %v4890 = vpop.f32.mrf.mxu0
    %v4891 = vadd.f32 %v4447, %v4890
    %v4892 = vpop.f32.mrf.mxu0
    %v4893 = vadd.f32 %v4448, %v4892
    %v4894 = vpop.f32.mrf.mxu0
    %v4895 = vadd.f32 %v4449, %v4894
    %4896 = vmatprep.mubr.bf16.mxu0 %v4151
    %4897 = vmatmul.mubr.bf16.gmra.mxu0 %v4150
    %v4898 = vpop.f32.mrf.mxu0
    %v4899 = vadd.f32 %v4450, %v4898
    %v4900 = vpop.f32.mrf.mxu0
    %v4901 = vadd.f32 %v4451, %v4900
    %v4902 = vpop.f32.mrf.mxu0
    %v4903 = vadd.f32 %v4452, %v4902
    %v4904 = vpop.f32.mrf.mxu0
    %v4905 = vadd.f32 %v4453, %v4904
    %4906 = vmatprep.mubr.bf16.mxu0 %v4155
    %4907 = vmatmul.mubr.bf16.gmra.mxu0 %v4154
    %v4908 = vpop.f32.mrf.mxu0
    %v4909 = vadd.f32 %v4454, %v4908
    %v4910 = vpop.f32.mrf.mxu0
    %v4911 = vadd.f32 %v4455, %v4910
    %v4912 = vpop.f32.mrf.mxu0
    %v4913 = vadd.f32 %v4456, %v4912
    %v4914 = vpop.f32.mrf.mxu0
    %v4915 = vadd.f32 %v4457, %v4914
    %4916 = vmatprep.mubr.bf16.mxu0 %v4159
    %4917 = vmatmul.mubr.bf16.gmra.mxu0 %v4158
    %v4918 = vpop.f32.mrf.mxu0
    %v4919 = vadd.f32 %v4458, %v4918
    %v4920 = vpop.f32.mrf.mxu0
    %v4921 = vadd.f32 %v4459, %v4920
    %v4922 = vpop.f32.mrf.mxu0
    %v4923 = vadd.f32 %v4460, %v4922
    %v4924 = vpop.f32.mrf.mxu0
    %v4925 = vadd.f32 %v4461, %v4924
    %4926 = vmatprep.mubr.bf16.mxu0 %v4163
    %4927 = vmatmul.mubr.bf16.gmra.mxu0 %v4162
    %v4928 = vpop.f32.mrf.mxu0
    %v4929 = vadd.f32 %v4462, %v4928
    %v4930 = vpop.f32.mrf.mxu0
    %v4931 = vadd.f32 %v4463, %v4930
    %v4932 = vpop.f32.mrf.mxu0
    %v4933 = vadd.f32 %v4464, %v4932
    %v4934 = vpop.f32.mrf.mxu0
    %v4935 = vadd.f32 %v4465, %v4934
    %4936 = vmatprep.mubr.bf16.mxu0 %v4167
    %4937 = vmatmul.mubr.bf16.gmra.mxu0 %v4166
    %v4938 = vpop.f32.mrf.mxu0
    %v4939 = vadd.f32 %v4466, %v4938
    %v4940 = vpop.f32.mrf.mxu0
    %v4941 = vadd.f32 %v4467, %v4940
    %v4942 = vpop.f32.mrf.mxu0
    %v4943 = vadd.f32 %v4468, %v4942
    %v4944 = vpop.f32.mrf.mxu0
    %v4945 = vadd.f32 %v4469, %v4944
    %4946 = vmatprep.mubr.bf16.mxu0 %v4171
    %4947 = vmatmul.mubr.bf16.gmra.mxu0 %v4170
    %v4948 = vpop.f32.mrf.mxu0
    %v4949 = vadd.f32 %v4470, %v4948
    %v4950 = vpop.f32.mrf.mxu0
    %v4951 = vadd.f32 %v4471, %v4950
    %v4952 = vpop.f32.mrf.mxu0
    %v4953 = vadd.f32 %v4472, %v4952
    %v4954 = vpop.f32.mrf.mxu0
    %v4955 = vadd.f32 %v4473, %v4954
    %4956 = vmatprep.mubr.bf16.mxu0 %v4175
    %4957 = vmatmul.mubr.bf16.gmra.mxu0 %v4174
    %v4958 = vpop.f32.mrf.mxu0
    %v4959 = vadd.f32 %v4474, %v4958
    %v4960 = vpop.f32.mrf.mxu0
    %v4961 = vadd.f32 %v4475, %v4960
    %v4962 = vpop.f32.mrf.mxu0
    %v4963 = vadd.f32 %v4476, %v4962
    %v4964 = vpop.f32.mrf.mxu0
    %v4965 = vadd.f32 %v4477, %v4964
    %4966 = vmatprep.mubr.bf16.mxu0 %v4179
    %4967 = vmatmul.mubr.bf16.gmra.mxu0 %v4178
    %v4968 = vpop.f32.mrf.mxu0
    %v4969 = vadd.f32 %v4478, %v4968
    %v4970 = vpop.f32.mrf.mxu0
    %v4971 = vadd.f32 %v4479, %v4970
    %v4972 = vpop.f32.mrf.mxu0
    %v4973 = vadd.f32 %v4480, %v4972
    %v4974 = vpop.f32.mrf.mxu0
    %v4975 = vadd.f32 %v4481, %v4974
    %4976 = vmatprep.mubr.bf16.mxu0 %v4183
    %4977 = vmatmul.mubr.bf16.gmra.mxu0 %v4182
    %v4978 = vpop.f32.mrf.mxu0
    %v4979 = vadd.f32 %v4482, %v4978
    %v4980 = vpop.f32.mrf.mxu0
    %v4981 = vadd.f32 %v4483, %v4980
    %v4982 = vpop.f32.mrf.mxu0
    %v4983 = vadd.f32 %v4484, %v4982
    %v4984 = vpop.f32.mrf.mxu0
    %v4985 = vadd.f32 %v4485, %v4984
    %4986 = vmatprep.mubr.bf16.mxu0 %v4187
    %4987 = vmatmul.mubr.bf16.gmra.mxu0 %v4186
    %v4988 = vpop.f32.mrf.mxu0
    %v4989 = vadd.f32 %v4486, %v4988
    %v4990 = vpop.f32.mrf.mxu0
    %v4991 = vadd.f32 %v4487, %v4990
    %v4992 = vpop.f32.mrf.mxu0
    %v4993 = vadd.f32 %v4488, %v4992
    %v4994 = vpop.f32.mrf.mxu0
    %v4995 = vadd.f32 %v4489, %v4994
    %4996 = vmatprep.mubr.bf16.mxu0 %v4191
    %4997 = vmatmul.mubr.bf16.gmra.mxu0 %v4190
    %v4998 = vpop.f32.mrf.mxu0
    %v4999 = vadd.f32 %v4490, %v4998
    %v5000 = vpop.f32.mrf.mxu0
    %v5001 = vadd.f32 %v4491, %v5000
    %v5002 = vpop.f32.mrf.mxu0
    %v5003 = vadd.f32 %v4492, %v5002
    %v5004 = vpop.f32.mrf.mxu0
    %v5005 = vadd.f32 %v4493, %v5004
    %5006 = vdwg.mxu0
    %5007 = vmatprep.subr.bf16.mxu0 %v4733
    %5008 = vmatpush1.bf16.msra.mxu0 %v4732
    %5009 = vmatprep.subr.bf16.mxu0 %v4731
    %5010 = vmatpush1.bf16.msra.mxu0 %v4730
    %5011 = vmatprep.subr.bf16.mxu0 %v4729
    %5012 = vmatpush1.bf16.msra.mxu0 %v4728
    %5013 = vmatprep.subr.bf16.mxu0 %v4727
    %5014 = vmatpush1.bf16.msra.mxu0 %v4726
    %5015 = vmatprep.subr.bf16.mxu0 %v4725
    %5016 = vmatpush1.bf16.msra.mxu0 %v4724
    %5017 = vmatprep.subr.bf16.mxu0 %v4723
    %5018 = vmatpush1.bf16.msra.mxu0 %v4722
    %5019 = vmatprep.subr.bf16.mxu0 %v4721
    %5020 = vmatpush1.bf16.msra.mxu0 %v4720
    %5021 = vmatprep.subr.bf16.mxu0 %v4719
    %5022 = vmatpush1.bf16.msra.mxu0 %v4718
    %5023 = vmatprep.subr.bf16.mxu0 %v4749
    %5024 = vmatpush2.bf16.msra.mxu0 %v4748
    %5025 = vmatprep.subr.bf16.mxu0 %v4747
    %5026 = vmatpush2.bf16.msra.mxu0 %v4746
    %5027 = vmatprep.subr.bf16.mxu0 %v4745
    %5028 = vmatpush2.bf16.msra.mxu0 %v4744
    %5029 = vmatprep.subr.bf16.mxu0 %v4743
    %5030 = vmatpush2.bf16.msra.mxu0 %v4742
    %5031 = vmatprep.subr.bf16.mxu0 %v4741
    %5032 = vmatpush2.bf16.msra.mxu0 %v4740
    %5033 = vmatprep.subr.bf16.mxu0 %v4739
    %5034 = vmatpush2.bf16.msra.mxu0 %v4738
    %5035 = vmatprep.subr.bf16.mxu0 %v4737
    %5036 = vmatpush2.bf16.msra.mxu0 %v4736
    %5037 = vmatprep.subr.bf16.mxu0 %v4735
    %5038 = vmatpush2.bf16.msra.mxu0 %v4734
    %5039 = vmatprep.mubr.bf16.mxu0 %v4133
    %5040 = vmatmul.mubr.bf16.gmra.mxu0 %v4132
    %v5041 = vpop.f32.mrf.mxu0
    %v5042 = vadd.f32 %v4849, %v5041
    %v5043 = vpop.f32.mrf.mxu0
    %v5044 = vadd.f32 %v4851, %v5043
    %v5045 = vpop.f32.mrf.mxu0
    %v5046 = vadd.f32 %v4853, %v5045
    %v5047 = vpop.f32.mrf.mxu0
    %v5048 = vadd.f32 %v4855, %v5047
    %5049 = vmatprep.mubr.bf16.mxu0 %v4137
    %5050 = vmatmul.mubr.bf16.gmra.mxu0 %v4136
    %v5051 = vpop.f32.mrf.mxu0
    %v5052 = vadd.f32 %v4859, %v5051
    %v5053 = vpop.f32.mrf.mxu0
    %v5054 = vadd.f32 %v4861, %v5053
    %v5055 = vpop.f32.mrf.mxu0
    %v5056 = vadd.f32 %v4863, %v5055
    %v5057 = vpop.f32.mrf.mxu0
    %v5058 = vadd.f32 %v4865, %v5057
    %5059 = vmatprep.mubr.bf16.mxu0 %v4141
    %5060 = vmatmul.mubr.bf16.gmra.mxu0 %v4140
    %v5061 = vpop.f32.mrf.mxu0
    %v5062 = vadd.f32 %v4869, %v5061
    %v5063 = vpop.f32.mrf.mxu0
    %v5064 = vadd.f32 %v4871, %v5063
    %v5065 = vpop.f32.mrf.mxu0
    %v5066 = vadd.f32 %v4873, %v5065
    %v5067 = vpop.f32.mrf.mxu0
    %v5068 = vadd.f32 %v4875, %v5067
    %5069 = vmatprep.mubr.bf16.mxu0 %v4145
    %5070 = vmatmul.mubr.bf16.gmra.mxu0 %v4144
    %v5071 = vpop.f32.mrf.mxu0
    %v5072 = vadd.f32 %v4879, %v5071
    %v5073 = vpop.f32.mrf.mxu0
    %v5074 = vadd.f32 %v4881, %v5073
    %v5075 = vpop.f32.mrf.mxu0
    %v5076 = vadd.f32 %v4883, %v5075
    %v5077 = vpop.f32.mrf.mxu0
    %v5078 = vadd.f32 %v4885, %v5077
    %5079 = vmatprep.mubr.bf16.mxu0 %v4149
    %5080 = vmatmul.mubr.bf16.gmra.mxu0 %v4148
    %v5081 = vpop.f32.mrf.mxu0
    %v5082 = vadd.f32 %v4889, %v5081
    %v5083 = vpop.f32.mrf.mxu0
    %v5084 = vadd.f32 %v4891, %v5083
    %v5085 = vpop.f32.mrf.mxu0
    %v5086 = vadd.f32 %v4893, %v5085
    %v5087 = vpop.f32.mrf.mxu0
    %v5088 = vadd.f32 %v4895, %v5087
    %5089 = vmatprep.mubr.bf16.mxu0 %v4153
    %5090 = vmatmul.mubr.bf16.gmra.mxu0 %v4152
    %v5091 = vpop.f32.mrf.mxu0
    %v5092 = vadd.f32 %v4899, %v5091
    %v5093 = vpop.f32.mrf.mxu0
    %v5094 = vadd.f32 %v4901, %v5093
    %v5095 = vpop.f32.mrf.mxu0
    %v5096 = vadd.f32 %v4903, %v5095
    %v5097 = vpop.f32.mrf.mxu0
    %v5098 = vadd.f32 %v4905, %v5097
    %5099 = vmatprep.mubr.bf16.mxu0 %v4157
    %5100 = vmatmul.mubr.bf16.gmra.mxu0 %v4156
    %v5101 = vpop.f32.mrf.mxu0
    %v5102 = vadd.f32 %v4909, %v5101
    %v5103 = vpop.f32.mrf.mxu0
    %v5104 = vadd.f32 %v4911, %v5103
    %v5105 = vpop.f32.mrf.mxu0
    %v5106 = vadd.f32 %v4913, %v5105
    %v5107 = vpop.f32.mrf.mxu0
    %v5108 = vadd.f32 %v4915, %v5107
    %5109 = vmatprep.mubr.bf16.mxu0 %v4161
    %5110 = vmatmul.mubr.bf16.gmra.mxu0 %v4160
    %v5111 = vpop.f32.mrf.mxu0
    %v5112 = vadd.f32 %v4919, %v5111
    %v5113 = vpop.f32.mrf.mxu0
    %v5114 = vadd.f32 %v4921, %v5113
    %v5115 = vpop.f32.mrf.mxu0
    %v5116 = vadd.f32 %v4923, %v5115
    %v5117 = vpop.f32.mrf.mxu0
    %v5118 = vadd.f32 %v4925, %v5117
    %5119 = vmatprep.mubr.bf16.mxu0 %v4165
    %5120 = vmatmul.mubr.bf16.gmra.mxu0 %v4164
    %v5121 = vpop.f32.mrf.mxu0
    %v5122 = vadd.f32 %v4929, %v5121
    %v5123 = vpop.f32.mrf.mxu0
    %v5124 = vadd.f32 %v4931, %v5123
    %v5125 = vpop.f32.mrf.mxu0
    %v5126 = vadd.f32 %v4933, %v5125
    %v5127 = vpop.f32.mrf.mxu0
    %v5128 = vadd.f32 %v4935, %v5127
    %5129 = vmatprep.mubr.bf16.mxu0 %v4169
    %5130 = vmatmul.mubr.bf16.gmra.mxu0 %v4168
    %v5131 = vpop.f32.mrf.mxu0
    %v5132 = vadd.f32 %v4939, %v5131
    %v5133 = vpop.f32.mrf.mxu0
    %v5134 = vadd.f32 %v4941, %v5133
    %v5135 = vpop.f32.mrf.mxu0
    %v5136 = vadd.f32 %v4943, %v5135
    %v5137 = vpop.f32.mrf.mxu0
    %v5138 = vadd.f32 %v4945, %v5137
    %5139 = vmatprep.mubr.bf16.mxu0 %v4173
    %5140 = vmatmul.mubr.bf16.gmra.mxu0 %v4172
    %v5141 = vpop.f32.mrf.mxu0
    %v5142 = vadd.f32 %v4949, %v5141
    %v5143 = vpop.f32.mrf.mxu0
    %v5144 = vadd.f32 %v4951, %v5143
    %v5145 = vpop.f32.mrf.mxu0
    %v5146 = vadd.f32 %v4953, %v5145
    %v5147 = vpop.f32.mrf.mxu0
    %v5148 = vadd.f32 %v4955, %v5147
    %5149 = vmatprep.mubr.bf16.mxu0 %v4177
    %5150 = vmatmul.mubr.bf16.gmra.mxu0 %v4176
    %v5151 = vpop.f32.mrf.mxu0
    %v5152 = vadd.f32 %v4959, %v5151
    %v5153 = vpop.f32.mrf.mxu0
    %v5154 = vadd.f32 %v4961, %v5153
    %v5155 = vpop.f32.mrf.mxu0
    %v5156 = vadd.f32 %v4963, %v5155
    %v5157 = vpop.f32.mrf.mxu0
    %v5158 = vadd.f32 %v4965, %v5157
    %5159 = vmatprep.mubr.bf16.mxu0 %v4181
    %5160 = vmatmul.mubr.bf16.gmra.mxu0 %v4180
    %v5161 = vpop.f32.mrf.mxu0
    %v5162 = vadd.f32 %v4969, %v5161
    %v5163 = vpop.f32.mrf.mxu0
    %v5164 = vadd.f32 %v4971, %v5163
    %v5165 = vpop.f32.mrf.mxu0
    %v5166 = vadd.f32 %v4973, %v5165
    %v5167 = vpop.f32.mrf.mxu0
    %v5168 = vadd.f32 %v4975, %v5167
    %5169 = vmatprep.mubr.bf16.mxu0 %v4185
    %5170 = vmatmul.mubr.bf16.gmra.mxu0 %v4184
    %v5171 = vpop.f32.mrf.mxu0
    %v5172 = vadd.f32 %v4979, %v5171
    %v5173 = vpop.f32.mrf.mxu0
    %v5174 = vadd.f32 %v4981, %v5173
    %v5175 = vpop.f32.mrf.mxu0
    %v5176 = vadd.f32 %v4983, %v5175
    %v5177 = vpop.f32.mrf.mxu0
    %v5178 = vadd.f32 %v4985, %v5177
    %5179 = vmatprep.mubr.bf16.mxu0 %v4189
    %5180 = vmatmul.mubr.bf16.gmra.mxu0 %v4188
    %v5181 = vpop.f32.mrf.mxu0
    %v5182 = vadd.f32 %v4989, %v5181
    %v5183 = vpop.f32.mrf.mxu0
    %v5184 = vadd.f32 %v4991, %v5183
    %v5185 = vpop.f32.mrf.mxu0
    %v5186 = vadd.f32 %v4993, %v5185
    %v5187 = vpop.f32.mrf.mxu0
    %v5188 = vadd.f32 %v4995, %v5187
    %5189 = vmatprep.mubr.bf16.mxu0 %v4193
    %5190 = vmatmul.mubr.bf16.gmra.mxu0 %v4192
    %v5191 = vpop.f32.mrf.mxu0
    %v5192 = vadd.f32 %v4999, %v5191
    %v5193 = vpop.f32.mrf.mxu0
    %v5194 = vadd.f32 %v5001, %v5193
    %v5195 = vpop.f32.mrf.mxu0
    %v5196 = vadd.f32 %v5003, %v5195
    %v5197 = vpop.f32.mrf.mxu0
    %v5198 = vadd.f32 %v5005, %v5197
    %5199 = vdwg.mxu0
    %s5200 = scalar_lea.vmem %s2, 1
    %v5201 = vld [vmem:[%s5200] ss:$4 sm:$0x3]
    %5202 = vset.pattern.permute.xlu0 1
    %5203 = vperm.xlu0 %5202, %v45
    %v5204 = vpop.permute.xlu0 %5203
    %5206 = vset.pattern.permute.xlu0 1
    %5207 = vperm.xlu0 %5206, %v46
    %v5208 = vpop.permute.xlu0 %5207
    %5210 = vset.pattern.permute.xlu0 1
    %5211 = vperm.xlu0 %5210, %v47
    %v5212 = vpop.permute.xlu0 %5211
    %5214 = vset.pattern.permute.xlu0 1
    %5215 = vperm.xlu0 %5214, %v48
    %v5216 = vpop.permute.xlu0 %5215
    %5218 = vset.pattern.permute.xlu0 1
    %5219 = vperm.xlu0 %5218, %v49
    %v5220 = vpop.permute.xlu0 %5219
    %5222 = vset.pattern.permute.xlu0 1
    %5223 = vperm.xlu0 %5222, %v50
    %v5224 = vpop.permute.xlu0 %5223
    %5226 = vset.pattern.permute.xlu0 1
    %5227 = vperm.xlu0 %5226, %v51
    %v5228 = vpop.permute.xlu0 %5227
    %5230 = vset.pattern.permute.xlu0 1
    %5231 = vperm.xlu0 %5230, %v52
    %v5232 = vpop.permute.xlu0 %5231
    %5234 = vset.pattern.permute.xlu0 1
    %5235 = vperm.xlu0 %5234, %v53
    %v5236 = vpop.permute.xlu0 %5235
    %5238 = vset.pattern.permute.xlu0 1
    %5239 = vperm.xlu0 %5238, %v54
    %v5240 = vpop.permute.xlu0 %5239
    %5242 = vset.pattern.permute.xlu0 1
    %5243 = vperm.xlu0 %5242, %v55
    %v5244 = vpop.permute.xlu0 %5243
    %5246 = vset.pattern.permute.xlu0 1
    %5247 = vperm.xlu0 %5246, %v56
    %v5248 = vpop.permute.xlu0 %5247
    %5250 = vset.pattern.permute.xlu0 1
    %5251 = vperm.xlu0 %5250, %v57
    %v5252 = vpop.permute.xlu0 %5251
    %5254 = vset.pattern.permute.xlu0 1
    %5255 = vperm.xlu0 %5254, %v58
    %v5256 = vpop.permute.xlu0 %5255
    %5258 = vset.pattern.permute.xlu0 1
    %5259 = vperm.xlu0 %5258, %v59
    %v5260 = vpop.permute.xlu0 %5259
    %5262 = vset.pattern.permute.xlu0 1
    %5263 = vperm.xlu0 %5262, %v60
    %v5264 = vpop.permute.xlu0 %5263
    %5266 = vset.pattern.permute.xlu0 1
    %5267 = vperm.xlu0 %5266, %v61
    %v5268 = vpop.permute.xlu0 %5267
    %5270 = vset.pattern.permute.xlu0 1
    %5271 = vperm.xlu0 %5270, %v62
    %v5272 = vpop.permute.xlu0 %5271
    %5274 = vset.pattern.permute.xlu0 1
    %5275 = vperm.xlu0 %5274, %v63
    %v5276 = vpop.permute.xlu0 %5275
    %5278 = vset.pattern.permute.xlu0 1
    %5279 = vperm.xlu0 %5278, %v64
    %v5280 = vpop.permute.xlu0 %5279
    %5282 = vset.pattern.permute.xlu0 1
    %5283 = vperm.xlu0 %5282, %v65
    %v5284 = vpop.permute.xlu0 %5283
    %5286 = vset.pattern.permute.xlu0 1
    %5287 = vperm.xlu0 %5286, %v66
    %v5288 = vpop.permute.xlu0 %5287
    %5290 = vset.pattern.permute.xlu0 1
    %5291 = vperm.xlu0 %5290, %v67
    %v5292 = vpop.permute.xlu0 %5291
    %5294 = vset.pattern.permute.xlu0 1
    %5295 = vperm.xlu0 %5294, %v68
    %v5296 = vpop.permute.xlu0 %5295
    %5298 = vset.pattern.permute.xlu0 1
    %5299 = vperm.xlu0 %5298, %v69
    %v5300 = vpop.permute.xlu0 %5299
    %5302 = vset.pattern.permute.xlu0 1
    %5303 = vperm.xlu0 %5302, %v70
    %v5304 = vpop.permute.xlu0 %5303
    %5306 = vset.pattern.permute.xlu0 1
    %5307 = vperm.xlu0 %5306, %v71
    %v5308 = vpop.permute.xlu0 %5307
    %5310 = vset.pattern.permute.xlu0 1
    %5311 = vperm.xlu0 %5310, %v72
    %v5312 = vpop.permute.xlu0 %5311
    %5314 = vset.pattern.permute.xlu0 1
    %5315 = vperm.xlu0 %5314, %v73
    %v5316 = vpop.permute.xlu0 %5315
    %5318 = vset.pattern.permute.xlu0 1
    %5319 = vperm.xlu0 %5318, %v74
    %v5320 = vpop.permute.xlu0 %5319
    %5322 = vset.pattern.permute.xlu0 1
    %5323 = vperm.xlu0 %5322, %v75
    %v5324 = vpop.permute.xlu0 %5323
    %5326 = vset.pattern.permute.xlu0 1
    %5327 = vperm.xlu0 %5326, %v76
    %v5328 = vpop.permute.xlu0 %5327
    %v5331 = vlaneseq
    %v5332 = vshrl.u32 %v5331, 7
    %v5333 = vsub.s32 0, %v5332
    %v5334 = vrot.slane %v5201, %v5333
    %v5335 = vlaneseq
    %v5336 = vshrl.u32 %v5335, 7
    %v5337 = vsub.s32 1, %v5336
    %v5338 = vrot.slane %v5201, %v5337
    %v5341 = vmul.f32 %v5204, %v5334
    %v5342 = vmul.f32 %v5204, %v5338
    %v5343 = vmul.f32 %v5208, %v5334
    %v5344 = vmul.f32 %v5208, %v5338
    %v5345 = vmul.f32 %v5212, %v5334
    %v5346 = vmul.f32 %v5212, %v5338
    %v5347 = vmul.f32 %v5216, %v5334
    %v5348 = vmul.f32 %v5216, %v5338
    %v5349 = vmul.f32 %v5220, %v5334
    %v5350 = vmul.f32 %v5220, %v5338
    %v5351 = vmul.f32 %v5224, %v5334
    %v5352 = vmul.f32 %v5224, %v5338
    %v5353 = vmul.f32 %v5228, %v5334
    %v5354 = vmul.f32 %v5228, %v5338
    %v5355 = vmul.f32 %v5232, %v5334
    %v5356 = vmul.f32 %v5232, %v5338
    %v5357 = vmul.f32 %v5236, %v5334
    %v5358 = vmul.f32 %v5236, %v5338
    %v5359 = vmul.f32 %v5240, %v5334
    %v5360 = vmul.f32 %v5240, %v5338
    %v5361 = vmul.f32 %v5244, %v5334
    %v5362 = vmul.f32 %v5244, %v5338
    %v5363 = vmul.f32 %v5248, %v5334
    %v5364 = vmul.f32 %v5248, %v5338
    %v5365 = vmul.f32 %v5252, %v5334
    %v5366 = vmul.f32 %v5252, %v5338
    %v5367 = vmul.f32 %v5256, %v5334
    %v5368 = vmul.f32 %v5256, %v5338
    %v5369 = vmul.f32 %v5260, %v5334
    %v5370 = vmul.f32 %v5260, %v5338
    %v5371 = vmul.f32 %v5264, %v5334
    %v5372 = vmul.f32 %v5264, %v5338
    %v5373 = vmul.f32 %v5268, %v5334
    %v5374 = vmul.f32 %v5268, %v5338
    %v5375 = vmul.f32 %v5272, %v5334
    %v5376 = vmul.f32 %v5272, %v5338
    %v5377 = vmul.f32 %v5276, %v5334
    %v5378 = vmul.f32 %v5276, %v5338
    %v5379 = vmul.f32 %v5280, %v5334
    %v5380 = vmul.f32 %v5280, %v5338
    %v5381 = vmul.f32 %v5284, %v5334
    %v5382 = vmul.f32 %v5284, %v5338
    %v5383 = vmul.f32 %v5288, %v5334
    %v5384 = vmul.f32 %v5288, %v5338
    %v5385 = vmul.f32 %v5292, %v5334
    %v5386 = vmul.f32 %v5292, %v5338
    %v5387 = vmul.f32 %v5296, %v5334
    %v5388 = vmul.f32 %v5296, %v5338
    %v5389 = vmul.f32 %v5300, %v5334
    %v5390 = vmul.f32 %v5300, %v5338
    %v5391 = vmul.f32 %v5304, %v5334
    %v5392 = vmul.f32 %v5304, %v5338
    %v5393 = vmul.f32 %v5308, %v5334
    %v5394 = vmul.f32 %v5308, %v5338
    %v5395 = vmul.f32 %v5312, %v5334
    %v5396 = vmul.f32 %v5312, %v5338
    %v5397 = vmul.f32 %v5316, %v5334
    %v5398 = vmul.f32 %v5316, %v5338
    %v5399 = vmul.f32 %v5320, %v5334
    %v5400 = vmul.f32 %v5320, %v5338
    %v5401 = vmul.f32 %v5324, %v5334
    %v5402 = vmul.f32 %v5324, %v5338
    %v5403 = vmul.f32 %v5328, %v5334
    %v5404 = vmul.f32 %v5328, %v5338
    %v5405 = vadd.f32 %v5042, %v5341
    %v5406 = vadd.f32 %v5044, %v5342
    %v5407 = vadd.f32 %v5046, %v5343
    %v5408 = vadd.f32 %v5048, %v5344
    %v5409 = vadd.f32 %v5052, %v5345
    %v5410 = vadd.f32 %v5054, %v5346
    %v5411 = vadd.f32 %v5056, %v5347
    %v5412 = vadd.f32 %v5058, %v5348
    %v5413 = vadd.f32 %v5062, %v5349
    %v5414 = vadd.f32 %v5064, %v5350
    %v5415 = vadd.f32 %v5066, %v5351
    %v5416 = vadd.f32 %v5068, %v5352
    %v5417 = vadd.f32 %v5072, %v5353
    %v5418 = vadd.f32 %v5074, %v5354
    %v5419 = vadd.f32 %v5076, %v5355
    %v5420 = vadd.f32 %v5078, %v5356
    %v5421 = vadd.f32 %v5082, %v5357
    %v5422 = vadd.f32 %v5084, %v5358
    %v5423 = vadd.f32 %v5086, %v5359
    %v5424 = vadd.f32 %v5088, %v5360
    %v5425 = vadd.f32 %v5092, %v5361
    %v5426 = vadd.f32 %v5094, %v5362
    %v5427 = vadd.f32 %v5096, %v5363
    %v5428 = vadd.f32 %v5098, %v5364
    %v5429 = vadd.f32 %v5102, %v5365
    %v5430 = vadd.f32 %v5104, %v5366
    %v5431 = vadd.f32 %v5106, %v5367
    %v5432 = vadd.f32 %v5108, %v5368
    %v5433 = vadd.f32 %v5112, %v5369
    %v5434 = vadd.f32 %v5114, %v5370
    %v5435 = vadd.f32 %v5116, %v5371
    %v5436 = vadd.f32 %v5118, %v5372
    %v5437 = vadd.f32 %v5122, %v5373
    %v5438 = vadd.f32 %v5124, %v5374
    %v5439 = vadd.f32 %v5126, %v5375
    %v5440 = vadd.f32 %v5128, %v5376
    %v5441 = vadd.f32 %v5132, %v5377
    %v5442 = vadd.f32 %v5134, %v5378
    %v5443 = vadd.f32 %v5136, %v5379
    %v5444 = vadd.f32 %v5138, %v5380
    %v5445 = vadd.f32 %v5142, %v5381
    %v5446 = vadd.f32 %v5144, %v5382
    %v5447 = vadd.f32 %v5146, %v5383
    %v5448 = vadd.f32 %v5148, %v5384
    %v5449 = vadd.f32 %v5152, %v5385
    %v5450 = vadd.f32 %v5154, %v5386
    %v5451 = vadd.f32 %v5156, %v5387
    %v5452 = vadd.f32 %v5158, %v5388
    %v5453 = vadd.f32 %v5162, %v5389
    %v5454 = vadd.f32 %v5164, %v5390
    %v5455 = vadd.f32 %v5166, %v5391
    %v5456 = vadd.f32 %v5168, %v5392
    %v5457 = vadd.f32 %v5172, %v5393
    %v5458 = vadd.f32 %v5174, %v5394
    %v5459 = vadd.f32 %v5176, %v5395
    %v5460 = vadd.f32 %v5178, %v5396
    %v5461 = vadd.f32 %v5182, %v5397
    %v5462 = vadd.f32 %v5184, %v5398
    %v5463 = vadd.f32 %v5186, %v5399
    %v5464 = vadd.f32 %v5188, %v5400
    %v5465 = vadd.f32 %v5192, %v5401
    %v5466 = vadd.f32 %v5194, %v5402
    %v5467 = vadd.f32 %v5196, %v5403
    %v5468 = vadd.f32 %v5198, %v5404
    %s5469 = scalar_lea.vmem %s2, 2
    %v5470 = vld [vmem:[%s5469] ss:$4 sm:$0x3]
    %5471 = vset.pattern.permute.xlu0 2
    %5472 = vperm.xlu0 %5471, %v45
    %v5473 = vpop.permute.xlu0 %5472
    %5475 = vset.pattern.permute.xlu0 2
    %5476 = vperm.xlu0 %5475, %v46
    %v5477 = vpop.permute.xlu0 %5476
    %5479 = vset.pattern.permute.xlu0 2
    %5480 = vperm.xlu0 %5479, %v47
    %v5481 = vpop.permute.xlu0 %5480
    %5483 = vset.pattern.permute.xlu0 2
    %5484 = vperm.xlu0 %5483, %v48
    %v5485 = vpop.permute.xlu0 %5484
    %5487 = vset.pattern.permute.xlu0 2
    %5488 = vperm.xlu0 %5487, %v49
    %v5489 = vpop.permute.xlu0 %5488
    %5491 = vset.pattern.permute.xlu0 2
    %5492 = vperm.xlu0 %5491, %v50
    %v5493 = vpop.permute.xlu0 %5492
    %5495 = vset.pattern.permute.xlu0 2
    %5496 = vperm.xlu0 %5495, %v51
    %v5497 = vpop.permute.xlu0 %5496
    %5499 = vset.pattern.permute.xlu0 2
    %5500 = vperm.xlu0 %5499, %v52
    %v5501 = vpop.permute.xlu0 %5500
    %5503 = vset.pattern.permute.xlu0 2
    %5504 = vperm.xlu0 %5503, %v53
    %v5505 = vpop.permute.xlu0 %5504
    %5507 = vset.pattern.permute.xlu0 2
    %5508 = vperm.xlu0 %5507, %v54
    %v5509 = vpop.permute.xlu0 %5508
    %5511 = vset.pattern.permute.xlu0 2
    %5512 = vperm.xlu0 %5511, %v55
    %v5513 = vpop.permute.xlu0 %5512
    %5515 = vset.pattern.permute.xlu0 2
    %5516 = vperm.xlu0 %5515, %v56
    %v5517 = vpop.permute.xlu0 %5516
    %5519 = vset.pattern.permute.xlu0 2
    %5520 = vperm.xlu0 %5519, %v57
    %v5521 = vpop.permute.xlu0 %5520
    %5523 = vset.pattern.permute.xlu0 2
    %5524 = vperm.xlu0 %5523, %v58
    %v5525 = vpop.permute.xlu0 %5524
    %5527 = vset.pattern.permute.xlu0 2
    %5528 = vperm.xlu0 %5527, %v59
    %v5529 = vpop.permute.xlu0 %5528
    %5531 = vset.pattern.permute.xlu0 2
    %5532 = vperm.xlu0 %5531, %v60
    %v5533 = vpop.permute.xlu0 %5532
    %5535 = vset.pattern.permute.xlu0 2
    %5536 = vperm.xlu0 %5535, %v61
    %v5537 = vpop.permute.xlu0 %5536
    %5539 = vset.pattern.permute.xlu0 2
    %5540 = vperm.xlu0 %5539, %v62
    %v5541 = vpop.permute.xlu0 %5540
    %5543 = vset.pattern.permute.xlu0 2
    %5544 = vperm.xlu0 %5543, %v63
    %v5545 = vpop.permute.xlu0 %5544
    %5547 = vset.pattern.permute.xlu0 2
    %5548 = vperm.xlu0 %5547, %v64
    %v5549 = vpop.permute.xlu0 %5548
    %5551 = vset.pattern.permute.xlu0 2
    %5552 = vperm.xlu0 %5551, %v65
    %v5553 = vpop.permute.xlu0 %5552
    %5555 = vset.pattern.permute.xlu0 2
    %5556 = vperm.xlu0 %5555, %v66
    %v5557 = vpop.permute.xlu0 %5556
    %5559 = vset.pattern.permute.xlu0 2
    %5560 = vperm.xlu0 %5559, %v67
    %v5561 = vpop.permute.xlu0 %5560
    %5563 = vset.pattern.permute.xlu0 2
    %5564 = vperm.xlu0 %5563, %v68
    %v5565 = vpop.permute.xlu0 %5564
    %5567 = vset.pattern.permute.xlu0 2
    %5568 = vperm.xlu0 %5567, %v69
    %v5569 = vpop.permute.xlu0 %5568
    %5571 = vset.pattern.permute.xlu0 2
    %5572 = vperm.xlu0 %5571, %v70
    %v5573 = vpop.permute.xlu0 %5572
    %5575 = vset.pattern.permute.xlu0 2
    %5576 = vperm.xlu0 %5575, %v71
    %v5577 = vpop.permute.xlu0 %5576
    %5579 = vset.pattern.permute.xlu0 2
    %5580 = vperm.xlu0 %5579, %v72
    %v5581 = vpop.permute.xlu0 %5580
    %5583 = vset.pattern.permute.xlu0 2
    %5584 = vperm.xlu0 %5583, %v73
    %v5585 = vpop.permute.xlu0 %5584
    %5587 = vset.pattern.permute.xlu0 2
    %5588 = vperm.xlu0 %5587, %v74
    %v5589 = vpop.permute.xlu0 %5588
    %5591 = vset.pattern.permute.xlu0 2
    %5592 = vperm.xlu0 %5591, %v75
    %v5593 = vpop.permute.xlu0 %5592
    %5595 = vset.pattern.permute.xlu0 2
    %5596 = vperm.xlu0 %5595, %v76
    %v5597 = vpop.permute.xlu0 %5596
    %v5600 = vlaneseq
    %v5601 = vshrl.u32 %v5600, 7
    %v5602 = vsub.s32 0, %v5601
    %v5603 = vrot.slane %v5470, %v5602
    %v5604 = vlaneseq
    %v5605 = vshrl.u32 %v5604, 7
    %v5606 = vsub.s32 1, %v5605
    %v5607 = vrot.slane %v5470, %v5606
    %v5610 = vmul.f32 %v5473, %v5603
    %v5611 = vmul.f32 %v5473, %v5607
    %v5612 = vmul.f32 %v5477, %v5603
    %v5613 = vmul.f32 %v5477, %v5607
    %v5614 = vmul.f32 %v5481, %v5603
    %v5615 = vmul.f32 %v5481, %v5607
    %v5616 = vmul.f32 %v5485, %v5603
    %v5617 = vmul.f32 %v5485, %v5607
    %v5618 = vmul.f32 %v5489, %v5603
    %v5619 = vmul.f32 %v5489, %v5607
    %v5620 = vmul.f32 %v5493, %v5603
    %v5621 = vmul.f32 %v5493, %v5607
    %v5622 = vmul.f32 %v5497, %v5603
    %v5623 = vmul.f32 %v5497, %v5607
    %v5624 = vmul.f32 %v5501, %v5603
    %v5625 = vmul.f32 %v5501, %v5607
    %v5626 = vmul.f32 %v5505, %v5603
    %v5627 = vmul.f32 %v5505, %v5607
    %v5628 = vmul.f32 %v5509, %v5603
    %v5629 = vmul.f32 %v5509, %v5607
    %v5630 = vmul.f32 %v5513, %v5603
    %v5631 = vmul.f32 %v5513, %v5607
    %v5632 = vmul.f32 %v5517, %v5603
    %v5633 = vmul.f32 %v5517, %v5607
    %v5634 = vmul.f32 %v5521, %v5603
    %v5635 = vmul.f32 %v5521, %v5607
    %v5636 = vmul.f32 %v5525, %v5603
    %v5637 = vmul.f32 %v5525, %v5607
    %v5638 = vmul.f32 %v5529, %v5603
    %v5639 = vmul.f32 %v5529, %v5607
    %v5640 = vmul.f32 %v5533, %v5603
    %v5641 = vmul.f32 %v5533, %v5607
    %v5642 = vmul.f32 %v5537, %v5603
    %v5643 = vmul.f32 %v5537, %v5607
    %v5644 = vmul.f32 %v5541, %v5603
    %v5645 = vmul.f32 %v5541, %v5607
    %v5646 = vmul.f32 %v5545, %v5603
    %v5647 = vmul.f32 %v5545, %v5607
    %v5648 = vmul.f32 %v5549, %v5603
    %v5649 = vmul.f32 %v5549, %v5607
    %v5650 = vmul.f32 %v5553, %v5603
    %v5651 = vmul.f32 %v5553, %v5607
    %v5652 = vmul.f32 %v5557, %v5603
    %v5653 = vmul.f32 %v5557, %v5607
    %v5654 = vmul.f32 %v5561, %v5603
    %v5655 = vmul.f32 %v5561, %v5607
    %v5656 = vmul.f32 %v5565, %v5603
    %v5657 = vmul.f32 %v5565, %v5607
    %v5658 = vmul.f32 %v5569, %v5603
    %v5659 = vmul.f32 %v5569, %v5607
    %v5660 = vmul.f32 %v5573, %v5603
    %v5661 = vmul.f32 %v5573, %v5607
    %v5662 = vmul.f32 %v5577, %v5603
    %v5663 = vmul.f32 %v5577, %v5607
    %v5664 = vmul.f32 %v5581, %v5603
    %v5665 = vmul.f32 %v5581, %v5607
    %v5666 = vmul.f32 %v5585, %v5603
    %v5667 = vmul.f32 %v5585, %v5607
    %v5668 = vmul.f32 %v5589, %v5603
    %v5669 = vmul.f32 %v5589, %v5607
    %v5670 = vmul.f32 %v5593, %v5603
    %v5671 = vmul.f32 %v5593, %v5607
    %v5672 = vmul.f32 %v5597, %v5603
    %v5673 = vmul.f32 %v5597, %v5607
    %v5674 = vadd.f32 %v5405, %v5610
    %v5675 = vadd.f32 %v5406, %v5611
    %v5676 = vadd.f32 %v5407, %v5612
    %v5677 = vadd.f32 %v5408, %v5613
    %v5678 = vadd.f32 %v5409, %v5614
    %v5679 = vadd.f32 %v5410, %v5615
    %v5680 = vadd.f32 %v5411, %v5616
    %v5681 = vadd.f32 %v5412, %v5617
    %v5682 = vadd.f32 %v5413, %v5618
    %v5683 = vadd.f32 %v5414, %v5619
    %v5684 = vadd.f32 %v5415, %v5620
    %v5685 = vadd.f32 %v5416, %v5621
    %v5686 = vadd.f32 %v5417, %v5622
    %v5687 = vadd.f32 %v5418, %v5623
    %v5688 = vadd.f32 %v5419, %v5624
    %v5689 = vadd.f32 %v5420, %v5625
    %v5690 = vadd.f32 %v5421, %v5626
    %v5691 = vadd.f32 %v5422, %v5627
    %v5692 = vadd.f32 %v5423, %v5628
    %v5693 = vadd.f32 %v5424, %v5629
    %v5694 = vadd.f32 %v5425, %v5630
    %v5695 = vadd.f32 %v5426, %v5631
    %v5696 = vadd.f32 %v5427, %v5632
    %v5697 = vadd.f32 %v5428, %v5633
    %v5698 = vadd.f32 %v5429, %v5634
    %v5699 = vadd.f32 %v5430, %v5635
    %v5700 = vadd.f32 %v5431, %v5636
    %v5701 = vadd.f32 %v5432, %v5637
    %v5702 = vadd.f32 %v5433, %v5638
    %v5703 = vadd.f32 %v5434, %v5639
    %v5704 = vadd.f32 %v5435, %v5640
    %v5705 = vadd.f32 %v5436, %v5641
    %v5706 = vadd.f32 %v5437, %v5642
    %v5707 = vadd.f32 %v5438, %v5643
    %v5708 = vadd.f32 %v5439, %v5644
    %v5709 = vadd.f32 %v5440, %v5645
    %v5710 = vadd.f32 %v5441, %v5646
    %v5711 = vadd.f32 %v5442, %v5647
    %v5712 = vadd.f32 %v5443, %v5648
    %v5713 = vadd.f32 %v5444, %v5649
    %v5714 = vadd.f32 %v5445, %v5650
    %v5715 = vadd.f32 %v5446, %v5651
    %v5716 = vadd.f32 %v5447, %v5652
    %v5717 = vadd.f32 %v5448, %v5653
    %v5718 = vadd.f32 %v5449, %v5654
    %v5719 = vadd.f32 %v5450, %v5655
    %v5720 = vadd.f32 %v5451, %v5656
    %v5721 = vadd.f32 %v5452, %v5657
    %v5722 = vadd.f32 %v5453, %v5658
    %v5723 = vadd.f32 %v5454, %v5659
    %v5724 = vadd.f32 %v5455, %v5660
    %v5725 = vadd.f32 %v5456, %v5661
    %v5726 = vadd.f32 %v5457, %v5662
    %v5727 = vadd.f32 %v5458, %v5663
    %v5728 = vadd.f32 %v5459, %v5664
    %v5729 = vadd.f32 %v5460, %v5665
    %v5730 = vadd.f32 %v5461, %v5666
    %v5731 = vadd.f32 %v5462, %v5667
    %v5732 = vadd.f32 %v5463, %v5668
    %v5733 = vadd.f32 %v5464, %v5669
    %v5734 = vadd.f32 %v5465, %v5670
    %v5735 = vadd.f32 %v5466, %v5671
    %v5736 = vadd.f32 %v5467, %v5672
    %v5737 = vadd.f32 %v5468, %v5673
    %v5738 = vld [vmem:[%s3] sm:$0x3]
    %v5740 = vlaneseq
    %v5741 = vshrl.u32 %v5740, 7
    %v5742 = vsub.s32 0, %v5741
    %v5743 = vrot.slane %v5738, %v5742
    %v5744 = vlaneseq
    %v5745 = vshrl.u32 %v5744, 7
    %v5746 = vsub.s32 1, %v5745
    %v5747 = vrot.slane %v5738, %v5746
    %v5750 = vadd.f32 %v5674, %v5743
    %v5751 = vadd.f32 %v5675, %v5747
    %v5752 = vadd.f32 %v5676, %v5743
    %v5753 = vadd.f32 %v5677, %v5747
    %v5754 = vadd.f32 %v5678, %v5743
    %v5755 = vadd.f32 %v5679, %v5747
    %v5756 = vadd.f32 %v5680, %v5743
    %v5757 = vadd.f32 %v5681, %v5747
    %v5758 = vadd.f32 %v5682, %v5743
    %v5759 = vadd.f32 %v5683, %v5747
    %v5760 = vadd.f32 %v5684, %v5743
    %v5761 = vadd.f32 %v5685, %v5747
    %v5762 = vadd.f32 %v5686, %v5743
    %v5763 = vadd.f32 %v5687, %v5747
    %v5764 = vadd.f32 %v5688, %v5743
    %v5765 = vadd.f32 %v5689, %v5747
    %v5766 = vadd.f32 %v5690, %v5743
    %v5767 = vadd.f32 %v5691, %v5747
    %v5768 = vadd.f32 %v5692, %v5743
    %v5769 = vadd.f32 %v5693, %v5747
    %v5770 = vadd.f32 %v5694, %v5743
    %v5771 = vadd.f32 %v5695, %v5747
    %v5772 = vadd.f32 %v5696, %v5743
    %v5773 = vadd.f32 %v5697, %v5747
    %v5774 = vadd.f32 %v5698, %v5743
    %v5775 = vadd.f32 %v5699, %v5747
    %v5776 = vadd.f32 %v5700, %v5743
    %v5777 = vadd.f32 %v5701, %v5747
    %v5778 = vadd.f32 %v5702, %v5743
    %v5779 = vadd.f32 %v5703, %v5747
    %v5780 = vadd.f32 %v5704, %v5743
    %v5781 = vadd.f32 %v5705, %v5747
    %v5782 = vadd.f32 %v5706, %v5743
    %v5783 = vadd.f32 %v5707, %v5747
    %v5784 = vadd.f32 %v5708, %v5743
    %v5785 = vadd.f32 %v5709, %v5747
    %v5786 = vadd.f32 %v5710, %v5743
    %v5787 = vadd.f32 %v5711, %v5747
    %v5788 = vadd.f32 %v5712, %v5743
    %v5789 = vadd.f32 %v5713, %v5747
    %v5790 = vadd.f32 %v5714, %v5743
    %v5791 = vadd.f32 %v5715, %v5747
    %v5792 = vadd.f32 %v5716, %v5743
    %v5793 = vadd.f32 %v5717, %v5747
    %v5794 = vadd.f32 %v5718, %v5743
    %v5795 = vadd.f32 %v5719, %v5747
    %v5796 = vadd.f32 %v5720, %v5743
    %v5797 = vadd.f32 %v5721, %v5747
    %v5798 = vadd.f32 %v5722, %v5743
    %v5799 = vadd.f32 %v5723, %v5747
    %v5800 = vadd.f32 %v5724, %v5743
    %v5801 = vadd.f32 %v5725, %v5747
    %v5802 = vadd.f32 %v5726, %v5743
    %v5803 = vadd.f32 %v5727, %v5747
    %v5804 = vadd.f32 %v5728, %v5743
    %v5805 = vadd.f32 %v5729, %v5747
    %v5806 = vadd.f32 %v5730, %v5743
    %v5807 = vadd.f32 %v5731, %v5747
    %v5808 = vadd.f32 %v5732, %v5743
    %v5809 = vadd.f32 %v5733, %v5747
    %v5810 = vadd.f32 %v5734, %v5743
    %v5811 = vadd.f32 %v5735, %v5747
    %v5812 = vadd.f32 %v5736, %v5743
    %v5813 = vadd.f32 %v5737, %v5747
    %v5814 = vmax.f32 %v5750, 0.0
    %v5815 = vmax.f32 %v5751, 0.0
    %v5816 = vmax.f32 %v5752, 0.0
    %v5817 = vmax.f32 %v5753, 0.0
    %v5818 = vmax.f32 %v5754, 0.0
    %v5819 = vmax.f32 %v5755, 0.0
    %v5820 = vmax.f32 %v5756, 0.0
    %v5821 = vmax.f32 %v5757, 0.0
    %v5822 = vmax.f32 %v5758, 0.0
    %v5823 = vmax.f32 %v5759, 0.0
    %v5824 = vmax.f32 %v5760, 0.0
    %v5825 = vmax.f32 %v5761, 0.0
    %v5826 = vmax.f32 %v5762, 0.0
    %v5827 = vmax.f32 %v5763, 0.0
    %v5828 = vmax.f32 %v5764, 0.0
    %v5829 = vmax.f32 %v5765, 0.0
    %v5830 = vmax.f32 %v5766, 0.0
    %v5831 = vmax.f32 %v5767, 0.0
    %v5832 = vmax.f32 %v5768, 0.0
    %v5833 = vmax.f32 %v5769, 0.0
    %v5834 = vmax.f32 %v5770, 0.0
    %v5835 = vmax.f32 %v5771, 0.0
    %v5836 = vmax.f32 %v5772, 0.0
    %v5837 = vmax.f32 %v5773, 0.0
    %v5838 = vmax.f32 %v5774, 0.0
    %v5839 = vmax.f32 %v5775, 0.0
    %v5840 = vmax.f32 %v5776, 0.0
    %v5841 = vmax.f32 %v5777, 0.0
    %v5842 = vmax.f32 %v5778, 0.0
    %v5843 = vmax.f32 %v5779, 0.0
    %v5844 = vmax.f32 %v5780, 0.0
    %v5845 = vmax.f32 %v5781, 0.0
    %v5846 = vmax.f32 %v5782, 0.0
    %v5847 = vmax.f32 %v5783, 0.0
    %v5848 = vmax.f32 %v5784, 0.0
    %v5849 = vmax.f32 %v5785, 0.0
    %v5850 = vmax.f32 %v5786, 0.0
    %v5851 = vmax.f32 %v5787, 0.0
    %v5852 = vmax.f32 %v5788, 0.0
    %v5853 = vmax.f32 %v5789, 0.0
    %v5854 = vmax.f32 %v5790, 0.0
    %v5855 = vmax.f32 %v5791, 0.0
    %v5856 = vmax.f32 %v5792, 0.0
    %v5857 = vmax.f32 %v5793, 0.0
    %v5858 = vmax.f32 %v5794, 0.0
    %v5859 = vmax.f32 %v5795, 0.0
    %v5860 = vmax.f32 %v5796, 0.0
    %v5861 = vmax.f32 %v5797, 0.0
    %v5862 = vmax.f32 %v5798, 0.0
    %v5863 = vmax.f32 %v5799, 0.0
    %v5864 = vmax.f32 %v5800, 0.0
    %v5865 = vmax.f32 %v5801, 0.0
    %v5866 = vmax.f32 %v5802, 0.0
    %v5867 = vmax.f32 %v5803, 0.0
    %v5868 = vmax.f32 %v5804, 0.0
    %v5869 = vmax.f32 %v5805, 0.0
    %v5870 = vmax.f32 %v5806, 0.0
    %v5871 = vmax.f32 %v5807, 0.0
    %v5872 = vmax.f32 %v5808, 0.0
    %v5873 = vmax.f32 %v5809, 0.0
    %v5874 = vmax.f32 %v5810, 0.0
    %v5875 = vmax.f32 %v5811, 0.0
    %v5876 = vmax.f32 %v5812, 0.0
    %v5877 = vmax.f32 %v5813, 0.0
    %v5878 = vpack.c.bf16 %v5816, %v5814
    %v5879 = vpack.c.bf16 %v5817, %v5815
    %v5880 = vpack.c.bf16 %v5820, %v5818
    %v5881 = vpack.c.bf16 %v5821, %v5819
    %v5882 = vpack.c.bf16 %v5824, %v5822
    %v5883 = vpack.c.bf16 %v5825, %v5823
    %v5884 = vpack.c.bf16 %v5828, %v5826
    %v5885 = vpack.c.bf16 %v5829, %v5827
    %v5886 = vpack.c.bf16 %v5832, %v5830
    %v5887 = vpack.c.bf16 %v5833, %v5831
    %v5888 = vpack.c.bf16 %v5836, %v5834
    %v5889 = vpack.c.bf16 %v5837, %v5835
    %v5890 = vpack.c.bf16 %v5840, %v5838
    %v5891 = vpack.c.bf16 %v5841, %v5839
    %v5892 = vpack.c.bf16 %v5844, %v5842
    %v5893 = vpack.c.bf16 %v5845, %v5843
    %v5894 = vpack.c.bf16 %v5848, %v5846
    %v5895 = vpack.c.bf16 %v5849, %v5847
    %v5896 = vpack.c.bf16 %v5852, %v5850
    %v5897 = vpack.c.bf16 %v5853, %v5851
    %v5898 = vpack.c.bf16 %v5856, %v5854
    %v5899 = vpack.c.bf16 %v5857, %v5855
    %v5900 = vpack.c.bf16 %v5860, %v5858
    %v5901 = vpack.c.bf16 %v5861, %v5859
    %v5902 = vpack.c.bf16 %v5864, %v5862
    %v5903 = vpack.c.bf16 %v5865, %v5863
    %v5904 = vpack.c.bf16 %v5868, %v5866
    %v5905 = vpack.c.bf16 %v5869, %v5867
    %v5906 = vpack.c.bf16 %v5872, %v5870
    %v5907 = vpack.c.bf16 %v5873, %v5871
    %v5908 = vpack.c.bf16 %v5876, %v5874
    %v5909 = vpack.c.bf16 %v5877, %v5875
    %v5910 = vld [vmem:[%s4] sm:$0xff]
    %v5911 = vld [vmem:[%s4 + $0x8] sm:$0xff]
    %v5912 = vld [vmem:[%s4 + $0x10] sm:$0xff]
    %v5913 = vld [vmem:[%s4 + $0x18] sm:$0xff]
    %v5914 = vld [vmem:[%s4 + $0x20] sm:$0xff]
    %v5915 = vld [vmem:[%s4 + $0x28] sm:$0xff]
    %v5916 = vld [vmem:[%s4 + $0x30] sm:$0xff]
    %v5917 = vld [vmem:[%s4 + $0x38] sm:$0xff]
    %v5918 = vld [vmem:[%s4 + $0x40] sm:$0xff]
    %v5919 = vld [vmem:[%s4 + $0x48] sm:$0xff]
    %v5920 = vld [vmem:[%s4 + $0x50] sm:$0xff]
    %v5921 = vld [vmem:[%s4 + $0x58] sm:$0xff]
    %v5922 = vld [vmem:[%s4 + $0x60] sm:$0xff]
    %v5923 = vld [vmem:[%s4 + $0x68] sm:$0xff]
    %v5924 = vld [vmem:[%s4 + $0x70] sm:$0xff]
    %v5925 = vld [vmem:[%s4 + $0x78] sm:$0xff]
    %v5926 = vld [vmem:[%s4 + $0x80] sm:$0xff]
    %v5927 = vld [vmem:[%s4 + $0x88] sm:$0xff]
    %v5928 = vld [vmem:[%s4 + $0x90] sm:$0xff]
    %v5929 = vld [vmem:[%s4 + $0x98] sm:$0xff]
    %v5930 = vld [vmem:[%s4 + $0xa0] sm:$0xff]
    %v5931 = vld [vmem:[%s4 + $0xa8] sm:$0xff]
    %v5932 = vld [vmem:[%s4 + $0xb0] sm:$0xff]
    %v5933 = vld [vmem:[%s4 + $0xb8] sm:$0xff]
    %v5934 = vld [vmem:[%s4 + $0xc0] sm:$0xff]
    %v5935 = vld [vmem:[%s4 + $0xc8] sm:$0xff]
    %v5936 = vld [vmem:[%s4 + $0xd0] sm:$0xff]
    %v5937 = vld [vmem:[%s4 + $0xd8] sm:$0xff]
    %v5938 = vld [vmem:[%s4 + $0xe0] sm:$0xff]
    %v5939 = vld [vmem:[%s4 + $0xe8] sm:$0xff]
    %v5940 = vld [vmem:[%s4 + $0xf0] sm:$0xff]
    %v5941 = vld [vmem:[%s4 + $0xf8] sm:$0xff]
    %v5942 = vld [vmem:[%s5] sm:$0x3]
    %v5944 = vlaneseq
    %v5945 = vshrl.u32 %v5944, 7
    %v5946 = vsub.s32 0, %v5945
    %v5947 = vrot.slane %v5942, %v5946
    %v5948 = vlaneseq
    %v5949 = vshrl.u32 %v5948, 7
    %v5950 = vsub.s32 1, %v5949
    %v5951 = vrot.slane %v5942, %v5950
    %v5986 = vunpack.c.l.b16 %v5910
    %v5987 = vunpack.c.h.b16 %v5910
    %v5988 = vunpack.c.l.b16 %v5911
    %v5989 = vunpack.c.h.b16 %v5911
    %v5990 = vunpack.c.l.b16 %v5912
    %v5991 = vunpack.c.h.b16 %v5912
    %v5992 = vunpack.c.l.b16 %v5913
    %v5993 = vunpack.c.h.b16 %v5913
    %v5994 = vunpack.c.l.b16 %v5914
    %v5995 = vunpack.c.h.b16 %v5914
    %v5996 = vunpack.c.l.b16 %v5915
    %v5997 = vunpack.c.h.b16 %v5915
    %v5998 = vunpack.c.l.b16 %v5916
    %v5999 = vunpack.c.h.b16 %v5916
    %v6000 = vunpack.c.l.b16 %v5917
    %v6001 = vunpack.c.h.b16 %v5917
    %v6002 = vunpack.c.l.b16 %v5918
    %v6003 = vunpack.c.h.b16 %v5918
    %v6004 = vunpack.c.l.b16 %v5919
    %v6005 = vunpack.c.h.b16 %v5919
    %v6006 = vunpack.c.l.b16 %v5920
    %v6007 = vunpack.c.h.b16 %v5920
    %v6008 = vunpack.c.l.b16 %v5921
    %v6009 = vunpack.c.h.b16 %v5921
    %v6010 = vunpack.c.l.b16 %v5922
    %v6011 = vunpack.c.h.b16 %v5922
    %v6012 = vunpack.c.l.b16 %v5923
    %v6013 = vunpack.c.h.b16 %v5923
    %v6014 = vunpack.c.l.b16 %v5924
    %v6015 = vunpack.c.h.b16 %v5924
    %v6016 = vunpack.c.l.b16 %v5925
    %v6017 = vunpack.c.h.b16 %v5925
    %v6018 = vunpack.c.l.b16 %v5926
    %v6019 = vunpack.c.h.b16 %v5926
    %v6020 = vunpack.c.l.b16 %v5927
    %v6021 = vunpack.c.h.b16 %v5927
    %v6022 = vunpack.c.l.b16 %v5928
    %v6023 = vunpack.c.h.b16 %v5928
    %v6024 = vunpack.c.l.b16 %v5929
    %v6025 = vunpack.c.h.b16 %v5929
    %v6026 = vunpack.c.l.b16 %v5930
    %v6027 = vunpack.c.h.b16 %v5930
    %v6028 = vunpack.c.l.b16 %v5931
    %v6029 = vunpack.c.h.b16 %v5931
    %v6030 = vunpack.c.l.b16 %v5932
    %v6031 = vunpack.c.h.b16 %v5932
    %v6032 = vunpack.c.l.b16 %v5933
    %v6033 = vunpack.c.h.b16 %v5933
    %v6034 = vunpack.c.l.b16 %v5934
    %v6035 = vunpack.c.h.b16 %v5934
    %v6036 = vunpack.c.l.b16 %v5935
    %v6037 = vunpack.c.h.b16 %v5935
    %v6038 = vunpack.c.l.b16 %v5936
    %v6039 = vunpack.c.h.b16 %v5936
    %v6040 = vunpack.c.l.b16 %v5937
    %v6041 = vunpack.c.h.b16 %v5937
    %v6042 = vunpack.c.l.b16 %v5938
    %v6043 = vunpack.c.h.b16 %v5938
    %v6044 = vunpack.c.l.b16 %v5939
    %v6045 = vunpack.c.h.b16 %v5939
    %v6046 = vunpack.c.l.b16 %v5940
    %v6047 = vunpack.c.h.b16 %v5940
    %v6048 = vunpack.c.l.b16 %v5941
    %v6049 = vunpack.c.h.b16 %v5941
    %v6050 = vpack.c.b16 %v5988, %v5986
    %v6051 = vpack.c.b16 %v5989, %v5987
    %v6052 = vpack.c.b16 %v5992, %v5990
    %v6053 = vpack.c.b16 %v5993, %v5991
    %v6054 = vpack.c.b16 %v5996, %v5994
    %v6055 = vpack.c.b16 %v5997, %v5995
    %v6056 = vpack.c.b16 %v6000, %v5998
    %v6057 = vpack.c.b16 %v6001, %v5999
    %v6058 = vpack.c.b16 %v6004, %v6002
    %v6059 = vpack.c.b16 %v6005, %v6003
    %v6060 = vpack.c.b16 %v6008, %v6006
    %v6061 = vpack.c.b16 %v6009, %v6007
    %v6062 = vpack.c.b16 %v6012, %v6010
    %v6063 = vpack.c.b16 %v6013, %v6011
    %v6064 = vpack.c.b16 %v6016, %v6014
    %v6065 = vpack.c.b16 %v6017, %v6015
    %v6066 = vpack.c.b16 %v6020, %v6018
    %v6067 = vpack.c.b16 %v6021, %v6019
    %v6068 = vpack.c.b16 %v6024, %v6022
    %v6069 = vpack.c.b16 %v6025, %v6023
    %v6070 = vpack.c.b16 %v6028, %v6026
    %v6071 = vpack.c.b16 %v6029, %v6027
    %v6072 = vpack.c.b16 %v6032, %v6030
    %v6073 = vpack.c.b16 %v6033, %v6031
    %v6074 = vpack.c.b16 %v6036, %v6034
    %v6075 = vpack.c.b16 %v6037, %v6035
    %v6076 = vpack.c.b16 %v6040, %v6038
    %v6077 = vpack.c.b16 %v6041, %v6039
    %v6078 = vpack.c.b16 %v6044, %v6042
    %v6079 = vpack.c.b16 %v6045, %v6043
    %v6080 = vpack.c.b16 %v6048, %v6046
    %v6081 = vpack.c.b16 %v6049, %v6047
    %6114 = vmatprep.subr.bf16.mxu0 %v6065
    %6115 = vmatpush1.bf16.msra.mxu0 %v6064
    %6116 = vmatprep.subr.bf16.mxu0 %v6063
    %6117 = vmatpush1.bf16.msra.mxu0 %v6062
    %6118 = vmatprep.subr.bf16.mxu0 %v6061
    %6119 = vmatpush1.bf16.msra.mxu0 %v6060
    %6120 = vmatprep.subr.bf16.mxu0 %v6059
    %6121 = vmatpush1.bf16.msra.mxu0 %v6058
    %6122 = vmatprep.subr.bf16.mxu0 %v6057
    %6123 = vmatpush1.bf16.msra.mxu0 %v6056
    %6124 = vmatprep.subr.bf16.mxu0 %v6055
    %6125 = vmatpush1.bf16.msra.mxu0 %v6054
    %6126 = vmatprep.subr.bf16.mxu0 %v6053
    %6127 = vmatpush1.bf16.msra.mxu0 %v6052
    %6128 = vmatprep.subr.bf16.mxu0 %v6051
    %6129 = vmatpush1.bf16.msra.mxu0 %v6050
    %6130 = vmatprep.subr.bf16.mxu0 %v6081
    %6131 = vmatpush2.bf16.msra.mxu0 %v6080
    %6132 = vmatprep.subr.bf16.mxu0 %v6079
    %6133 = vmatpush2.bf16.msra.mxu0 %v6078
    %6134 = vmatprep.subr.bf16.mxu0 %v6077
    %6135 = vmatpush2.bf16.msra.mxu0 %v6076
    %6136 = vmatprep.subr.bf16.mxu0 %v6075
    %6137 = vmatpush2.bf16.msra.mxu0 %v6074
    %6138 = vmatprep.subr.bf16.mxu0 %v6073
    %6139 = vmatpush2.bf16.msra.mxu0 %v6072
    %6140 = vmatprep.subr.bf16.mxu0 %v6071
    %6141 = vmatpush2.bf16.msra.mxu0 %v6070
    %6142 = vmatprep.subr.bf16.mxu0 %v6069
    %6143 = vmatpush2.bf16.msra.mxu0 %v6068
    %6144 = vmatprep.subr.bf16.mxu0 %v6067
    %6145 = vmatpush2.bf16.msra.mxu0 %v6066
    %6146 = vmatprep.mubr.bf16.mxu0 %v5879
    %6147 = vmatmul.mubr.bf16.gmra.mxu0 %v5878
    %v6148 = vpop.f32.mrf.mxu0
    %v6149 = vadd.f32 %v5947, %v6148
    %v6150 = vpop.f32.mrf.mxu0
    %v6151 = vadd.f32 %v5951, %v6150
    %v6152 = vpop.f32.mrf.mxu0
    %v6153 = vadd.f32 %v5947, %v6152
    %v6154 = vpop.f32.mrf.mxu0
    %v6155 = vadd.f32 %v5951, %v6154
    %6156 = vmatprep.mubr.bf16.mxu0 %v5881
    %6157 = vmatmul.mubr.bf16.gmra.mxu0 %v5880
    %v6158 = vpop.f32.mrf.mxu0
    %v6159 = vadd.f32 %v5947, %v6158
    %v6160 = vpop.f32.mrf.mxu0
    %v6161 = vadd.f32 %v5951, %v6160
    %v6162 = vpop.f32.mrf.mxu0
    %v6163 = vadd.f32 %v5947, %v6162
    %v6164 = vpop.f32.mrf.mxu0
    %v6165 = vadd.f32 %v5951, %v6164
    %6166 = vmatprep.mubr.bf16.mxu0 %v5883
    %6167 = vmatmul.mubr.bf16.gmra.mxu0 %v5882
    %v6168 = vpop.f32.mrf.mxu0
    %v6169 = vadd.f32 %v5947, %v6168
    %v6170 = vpop.f32.mrf.mxu0
    %v6171 = vadd.f32 %v5951, %v6170
    %v6172 = vpop.f32.mrf.mxu0
    %v6173 = vadd.f32 %v5947, %v6172
    %v6174 = vpop.f32.mrf.mxu0
    %v6175 = vadd.f32 %v5951, %v6174
    %6176 = vmatprep.mubr.bf16.mxu0 %v5885
    %6177 = vmatmul.mubr.bf16.gmra.mxu0 %v5884
    %v6178 = vpop.f32.mrf.mxu0
    %v6179 = vadd.f32 %v5947, %v6178
    %v6180 = vpop.f32.mrf.mxu0
    %v6181 = vadd.f32 %v5951, %v6180
    %v6182 = vpop.f32.mrf.mxu0
    %v6183 = vadd.f32 %v5947, %v6182
    %v6184 = vpop.f32.mrf.mxu0
    %v6185 = vadd.f32 %v5951, %v6184
    %6186 = vmatprep.mubr.bf16.mxu0 %v5887
    %6187 = vmatmul.mubr.bf16.gmra.mxu0 %v5886
    %v6188 = vpop.f32.mrf.mxu0
    %v6189 = vadd.f32 %v5947, %v6188
    %v6190 = vpop.f32.mrf.mxu0
    %v6191 = vadd.f32 %v5951, %v6190
    %v6192 = vpop.f32.mrf.mxu0
    %v6193 = vadd.f32 %v5947, %v6192
    %v6194 = vpop.f32.mrf.mxu0
    %v6195 = vadd.f32 %v5951, %v6194
    %6196 = vmatprep.mubr.bf16.mxu0 %v5889
    %6197 = vmatmul.mubr.bf16.gmra.mxu0 %v5888
    %v6198 = vpop.f32.mrf.mxu0
    %v6199 = vadd.f32 %v5947, %v6198
    %v6200 = vpop.f32.mrf.mxu0
    %v6201 = vadd.f32 %v5951, %v6200
    %v6202 = vpop.f32.mrf.mxu0
    %v6203 = vadd.f32 %v5947, %v6202
    %v6204 = vpop.f32.mrf.mxu0
    %v6205 = vadd.f32 %v5951, %v6204
    %6206 = vmatprep.mubr.bf16.mxu0 %v5891
    %6207 = vmatmul.mubr.bf16.gmra.mxu0 %v5890
    %v6208 = vpop.f32.mrf.mxu0
    %v6209 = vadd.f32 %v5947, %v6208
    %v6210 = vpop.f32.mrf.mxu0
    %v6211 = vadd.f32 %v5951, %v6210
    %v6212 = vpop.f32.mrf.mxu0
    %v6213 = vadd.f32 %v5947, %v6212
    %v6214 = vpop.f32.mrf.mxu0
    %v6215 = vadd.f32 %v5951, %v6214
    %6216 = vmatprep.mubr.bf16.mxu0 %v5893
    %6217 = vmatmul.mubr.bf16.gmra.mxu0 %v5892
    %v6218 = vpop.f32.mrf.mxu0
    %v6219 = vadd.f32 %v5947, %v6218
    %v6220 = vpop.f32.mrf.mxu0
    %v6221 = vadd.f32 %v5951, %v6220
    %v6222 = vpop.f32.mrf.mxu0
    %v6223 = vadd.f32 %v5947, %v6222
    %v6224 = vpop.f32.mrf.mxu0
    %v6225 = vadd.f32 %v5951, %v6224
    %6226 = vmatprep.mubr.bf16.mxu0 %v5895
    %6227 = vmatmul.mubr.bf16.gmra.mxu0 %v5894
    %v6228 = vpop.f32.mrf.mxu0
    %v6229 = vadd.f32 %v5947, %v6228
    %v6230 = vpop.f32.mrf.mxu0
    %v6231 = vadd.f32 %v5951, %v6230
    %v6232 = vpop.f32.mrf.mxu0
    %v6233 = vadd.f32 %v5947, %v6232
    %v6234 = vpop.f32.mrf.mxu0
    %v6235 = vadd.f32 %v5951, %v6234
    %6236 = vmatprep.mubr.bf16.mxu0 %v5897
    %6237 = vmatmul.mubr.bf16.gmra.mxu0 %v5896
    %v6238 = vpop.f32.mrf.mxu0
    %v6239 = vadd.f32 %v5947, %v6238
    %v6240 = vpop.f32.mrf.mxu0
    %v6241 = vadd.f32 %v5951, %v6240
    %v6242 = vpop.f32.mrf.mxu0
    %v6243 = vadd.f32 %v5947, %v6242
    %v6244 = vpop.f32.mrf.mxu0
    %v6245 = vadd.f32 %v5951, %v6244
    %6246 = vmatprep.mubr.bf16.mxu0 %v5899
    %6247 = vmatmul.mubr.bf16.gmra.mxu0 %v5898
    %v6248 = vpop.f32.mrf.mxu0
    %v6249 = vadd.f32 %v5947, %v6248
    %v6250 = vpop.f32.mrf.mxu0
    %v6251 = vadd.f32 %v5951, %v6250
    %v6252 = vpop.f32.mrf.mxu0
    %v6253 = vadd.f32 %v5947, %v6252
    %v6254 = vpop.f32.mrf.mxu0
    %v6255 = vadd.f32 %v5951, %v6254
    %6256 = vmatprep.mubr.bf16.mxu0 %v5901
    %6257 = vmatmul.mubr.bf16.gmra.mxu0 %v5900
    %v6258 = vpop.f32.mrf.mxu0
    %v6259 = vadd.f32 %v5947, %v6258
    %v6260 = vpop.f32.mrf.mxu0
    %v6261 = vadd.f32 %v5951, %v6260
    %v6262 = vpop.f32.mrf.mxu0
    %v6263 = vadd.f32 %v5947, %v6262
    %v6264 = vpop.f32.mrf.mxu0
    %v6265 = vadd.f32 %v5951, %v6264
    %6266 = vmatprep.mubr.bf16.mxu0 %v5903
    %6267 = vmatmul.mubr.bf16.gmra.mxu0 %v5902
    %v6268 = vpop.f32.mrf.mxu0
    %v6269 = vadd.f32 %v5947, %v6268
    %v6270 = vpop.f32.mrf.mxu0
    %v6271 = vadd.f32 %v5951, %v6270
    %v6272 = vpop.f32.mrf.mxu0
    %v6273 = vadd.f32 %v5947, %v6272
    %v6274 = vpop.f32.mrf.mxu0
    %v6275 = vadd.f32 %v5951, %v6274
    %6276 = vmatprep.mubr.bf16.mxu0 %v5905
    %6277 = vmatmul.mubr.bf16.gmra.mxu0 %v5904
    %v6278 = vpop.f32.mrf.mxu0
    %v6279 = vadd.f32 %v5947, %v6278
    %v6280 = vpop.f32.mrf.mxu0
    %v6281 = vadd.f32 %v5951, %v6280
    %v6282 = vpop.f32.mrf.mxu0
    %v6283 = vadd.f32 %v5947, %v6282
    %v6284 = vpop.f32.mrf.mxu0
    %v6285 = vadd.f32 %v5951, %v6284
    %6286 = vmatprep.mubr.bf16.mxu0 %v5907
    %6287 = vmatmul.mubr.bf16.gmra.mxu0 %v5906
    %v6288 = vpop.f32.mrf.mxu0
    %v6289 = vadd.f32 %v5947, %v6288
    %v6290 = vpop.f32.mrf.mxu0
    %v6291 = vadd.f32 %v5951, %v6290
    %v6292 = vpop.f32.mrf.mxu0
    %v6293 = vadd.f32 %v5947, %v6292
    %v6294 = vpop.f32.mrf.mxu0
    %v6295 = vadd.f32 %v5951, %v6294
    %6296 = vmatprep.mubr.bf16.mxu0 %v5909
    %6297 = vmatmul.mubr.bf16.gmra.mxu0 %v5908
    %v6298 = vpop.f32.mrf.mxu0
    %v6299 = vadd.f32 %v5947, %v6298
    %v6300 = vpop.f32.mrf.mxu0
    %v6301 = vadd.f32 %v5951, %v6300
    %v6302 = vpop.f32.mrf.mxu0
    %v6303 = vadd.f32 %v5947, %v6302
    %v6304 = vpop.f32.mrf.mxu0
    %v6305 = vadd.f32 %v5951, %v6304
    %6306 = vdwg.mxu0
    %v6307 = vmax.f32 %v6149, 0.0
    %v6308 = vmax.f32 %v6151, 0.0
    %v6309 = vmax.f32 %v6153, 0.0
    %v6310 = vmax.f32 %v6155, 0.0
    %v6311 = vmax.f32 %v6159, 0.0
    %v6312 = vmax.f32 %v6161, 0.0
    %v6313 = vmax.f32 %v6163, 0.0
    %v6314 = vmax.f32 %v6165, 0.0
    %v6315 = vmax.f32 %v6169, 0.0
    %v6316 = vmax.f32 %v6171, 0.0
    %v6317 = vmax.f32 %v6173, 0.0
    %v6318 = vmax.f32 %v6175, 0.0
    %v6319 = vmax.f32 %v6179, 0.0
    %v6320 = vmax.f32 %v6181, 0.0
    %v6321 = vmax.f32 %v6183, 0.0
    %v6322 = vmax.f32 %v6185, 0.0
    %v6323 = vmax.f32 %v6189, 0.0
    %v6324 = vmax.f32 %v6191, 0.0
    %v6325 = vmax.f32 %v6193, 0.0
    %v6326 = vmax.f32 %v6195, 0.0
    %v6327 = vmax.f32 %v6199, 0.0
    %v6328 = vmax.f32 %v6201, 0.0
    %v6329 = vmax.f32 %v6203, 0.0
    %v6330 = vmax.f32 %v6205, 0.0
    %v6331 = vmax.f32 %v6209, 0.0
    %v6332 = vmax.f32 %v6211, 0.0
    %v6333 = vmax.f32 %v6213, 0.0
    %v6334 = vmax.f32 %v6215, 0.0
    %v6335 = vmax.f32 %v6219, 0.0
    %v6336 = vmax.f32 %v6221, 0.0
    %v6337 = vmax.f32 %v6223, 0.0
    %v6338 = vmax.f32 %v6225, 0.0
    %v6339 = vmax.f32 %v6229, 0.0
    %v6340 = vmax.f32 %v6231, 0.0
    %v6341 = vmax.f32 %v6233, 0.0
    %v6342 = vmax.f32 %v6235, 0.0
    %v6343 = vmax.f32 %v6239, 0.0
    %v6344 = vmax.f32 %v6241, 0.0
    %v6345 = vmax.f32 %v6243, 0.0
    %v6346 = vmax.f32 %v6245, 0.0
    %v6347 = vmax.f32 %v6249, 0.0
    %v6348 = vmax.f32 %v6251, 0.0
    %v6349 = vmax.f32 %v6253, 0.0
    %v6350 = vmax.f32 %v6255, 0.0
    %v6351 = vmax.f32 %v6259, 0.0
    %v6352 = vmax.f32 %v6261, 0.0
    %v6353 = vmax.f32 %v6263, 0.0
    %v6354 = vmax.f32 %v6265, 0.0
    %v6355 = vmax.f32 %v6269, 0.0
    %v6356 = vmax.f32 %v6271, 0.0
    %v6357 = vmax.f32 %v6273, 0.0
    %v6358 = vmax.f32 %v6275, 0.0
    %v6359 = vmax.f32 %v6279, 0.0
    %v6360 = vmax.f32 %v6281, 0.0
    %v6361 = vmax.f32 %v6283, 0.0
    %v6362 = vmax.f32 %v6285, 0.0
    %v6363 = vmax.f32 %v6289, 0.0
    %v6364 = vmax.f32 %v6291, 0.0
    %v6365 = vmax.f32 %v6293, 0.0
    %v6366 = vmax.f32 %v6295, 0.0
    %v6367 = vmax.f32 %v6299, 0.0
    %v6368 = vmax.f32 %v6301, 0.0
    %v6369 = vmax.f32 %v6303, 0.0
    %v6370 = vmax.f32 %v6305, 0.0
    %v6371 = vld [vmem:[%s6] sm:$0x3]
    %v6373 = vlaneseq
    %v6374 = vshrl.u32 %v6373, 7
    %v6375 = vsub.s32 0, %v6374
    %v6376 = vrot.slane %v6371, %v6375
    %v6377 = vlaneseq
    %v6378 = vshrl.u32 %v6377, 7
    %v6379 = vsub.s32 1, %v6378
    %v6380 = vrot.slane %v6371, %v6379
    %v6383 = vmul.f32 %v6307, %v6376
    %v6384 = vmul.f32 %v6308, %v6380
    %v6385 = vmul.f32 %v6309, %v6376
    %v6386 = vmul.f32 %v6310, %v6380
    %v6387 = vmul.f32 %v6311, %v6376
    %v6388 = vmul.f32 %v6312, %v6380
    %v6389 = vmul.f32 %v6313, %v6376
    %v6390 = vmul.f32 %v6314, %v6380
    %v6391 = vmul.f32 %v6315, %v6376
    %v6392 = vmul.f32 %v6316, %v6380
    %v6393 = vmul.f32 %v6317, %v6376
    %v6394 = vmul.f32 %v6318, %v6380
    %v6395 = vmul.f32 %v6319, %v6376
    %v6396 = vmul.f32 %v6320, %v6380
    %v6397 = vmul.f32 %v6321, %v6376
    %v6398 = vmul.f32 %v6322, %v6380
    %v6399 = vmul.f32 %v6323, %v6376
    %v6400 = vmul.f32 %v6324, %v6380
    %v6401 = vmul.f32 %v6325, %v6376
    %v6402 = vmul.f32 %v6326, %v6380
    %v6403 = vmul.f32 %v6327, %v6376
    %v6404 = vmul.f32 %v6328, %v6380
    %v6405 = vmul.f32 %v6329, %v6376
    %v6406 = vmul.f32 %v6330, %v6380
    %v6407 = vmul.f32 %v6331, %v6376
    %v6408 = vmul.f32 %v6332, %v6380
    %v6409 = vmul.f32 %v6333, %v6376
    %v6410 = vmul.f32 %v6334, %v6380
    %v6411 = vmul.f32 %v6335, %v6376
    %v6412 = vmul.f32 %v6336, %v6380
    %v6413 = vmul.f32 %v6337, %v6376
    %v6414 = vmul.f32 %v6338, %v6380
    %v6415 = vmul.f32 %v6339, %v6376
    %v6416 = vmul.f32 %v6340, %v6380
    %v6417 = vmul.f32 %v6341, %v6376
    %v6418 = vmul.f32 %v6342, %v6380
    %v6419 = vmul.f32 %v6343, %v6376
    %v6420 = vmul.f32 %v6344, %v6380
    %v6421 = vmul.f32 %v6345, %v6376
    %v6422 = vmul.f32 %v6346, %v6380
    %v6423 = vmul.f32 %v6347, %v6376
    %v6424 = vmul.f32 %v6348, %v6380
    %v6425 = vmul.f32 %v6349, %v6376
    %v6426 = vmul.f32 %v6350, %v6380
    %v6427 = vmul.f32 %v6351, %v6376
    %v6428 = vmul.f32 %v6352, %v6380
    %v6429 = vmul.f32 %v6353, %v6376
    %v6430 = vmul.f32 %v6354, %v6380
    %v6431 = vmul.f32 %v6355, %v6376
    %v6432 = vmul.f32 %v6356, %v6380
    %v6433 = vmul.f32 %v6357, %v6376
    %v6434 = vmul.f32 %v6358, %v6380
    %v6435 = vmul.f32 %v6359, %v6376
    %v6436 = vmul.f32 %v6360, %v6380
    %v6437 = vmul.f32 %v6361, %v6376
    %v6438 = vmul.f32 %v6362, %v6380
    %v6439 = vmul.f32 %v6363, %v6376
    %v6440 = vmul.f32 %v6364, %v6380
    %v6441 = vmul.f32 %v6365, %v6376
    %v6442 = vmul.f32 %v6366, %v6380
    %v6443 = vmul.f32 %v6367, %v6376
    %v6444 = vmul.f32 %v6368, %v6380
    %v6445 = vmul.f32 %v6369, %v6376
    %v6446 = vmul.f32 %v6370, %v6380
    %v6447 = vadd.f32 %v6383, %v6384
    %6448 = vadd.xlane.f32.xlu0 %v6447
    %v6449 = vpop.xlane.xlu0 %6448
    %v6450 = vadd.f32 %v6385, %v6386
    %6451 = vadd.xlane.f32.xlu0 %v6450
    %v6452 = vpop.xlane.xlu0 %6451
    %v6453 = vadd.f32 %v6387, %v6388
    %6454 = vadd.xlane.f32.xlu0 %v6453
    %v6455 = vpop.xlane.xlu0 %6454
    %v6456 = vadd.f32 %v6389, %v6390
    %6457 = vadd.xlane.f32.xlu0 %v6456
    %v6458 = vpop.xlane.xlu0 %6457
    %v6459 = vadd.f32 %v6391, %v6392
    %6460 = vadd.xlane.f32.xlu0 %v6459
    %v6461 = vpop.xlane.xlu0 %6460
    %v6462 = vadd.f32 %v6393, %v6394
    %6463 = vadd.xlane.f32.xlu0 %v6462
    %v6464 = vpop.xlane.xlu0 %6463
    %v6465 = vadd.f32 %v6395, %v6396
    %6466 = vadd.xlane.f32.xlu0 %v6465
    %v6467 = vpop.xlane.xlu0 %6466
    %v6468 = vadd.f32 %v6397, %v6398
    %6469 = vadd.xlane.f32.xlu0 %v6468
    %v6470 = vpop.xlane.xlu0 %6469
    %v6471 = vadd.f32 %v6399, %v6400
    %6472 = vadd.xlane.f32.xlu0 %v6471
    %v6473 = vpop.xlane.xlu0 %6472
    %v6474 = vadd.f32 %v6401, %v6402
    %6475 = vadd.xlane.f32.xlu0 %v6474
    %v6476 = vpop.xlane.xlu0 %6475
    %v6477 = vadd.f32 %v6403, %v6404
    %6478 = vadd.xlane.f32.xlu0 %v6477
    %v6479 = vpop.xlane.xlu0 %6478
    %v6480 = vadd.f32 %v6405, %v6406
    %6481 = vadd.xlane.f32.xlu0 %v6480
    %v6482 = vpop.xlane.xlu0 %6481
    %v6483 = vadd.f32 %v6407, %v6408
    %6484 = vadd.xlane.f32.xlu0 %v6483
    %v6485 = vpop.xlane.xlu0 %6484
    %v6486 = vadd.f32 %v6409, %v6410
    %6487 = vadd.xlane.f32.xlu0 %v6486
    %v6488 = vpop.xlane.xlu0 %6487
    %v6489 = vadd.f32 %v6411, %v6412
    %6490 = vadd.xlane.f32.xlu0 %v6489
    %v6491 = vpop.xlane.xlu0 %6490
    %v6492 = vadd.f32 %v6413, %v6414
    %6493 = vadd.xlane.f32.xlu0 %v6492
    %v6494 = vpop.xlane.xlu0 %6493
    %v6495 = vadd.f32 %v6415, %v6416
    %6496 = vadd.xlane.f32.xlu0 %v6495
    %v6497 = vpop.xlane.xlu0 %6496
    %v6498 = vadd.f32 %v6417, %v6418
    %6499 = vadd.xlane.f32.xlu0 %v6498
    %v6500 = vpop.xlane.xlu0 %6499
    %v6501 = vadd.f32 %v6419, %v6420
    %6502 = vadd.xlane.f32.xlu0 %v6501
    %v6503 = vpop.xlane.xlu0 %6502
    %v6504 = vadd.f32 %v6421, %v6422
    %6505 = vadd.xlane.f32.xlu0 %v6504
    %v6506 = vpop.xlane.xlu0 %6505
    %v6507 = vadd.f32 %v6423, %v6424
    %6508 = vadd.xlane.f32.xlu0 %v6507
    %v6509 = vpop.xlane.xlu0 %6508
    %v6510 = vadd.f32 %v6425, %v6426
    %6511 = vadd.xlane.f32.xlu0 %v6510
    %v6512 = vpop.xlane.xlu0 %6511
    %v6513 = vadd.f32 %v6427, %v6428
    %6514 = vadd.xlane.f32.xlu0 %v6513
    %v6515 = vpop.xlane.xlu0 %6514
    %v6516 = vadd.f32 %v6429, %v6430
    %6517 = vadd.xlane.f32.xlu0 %v6516
    %v6518 = vpop.xlane.xlu0 %6517
    %v6519 = vadd.f32 %v6431, %v6432
    %6520 = vadd.xlane.f32.xlu0 %v6519
    %v6521 = vpop.xlane.xlu0 %6520
    %v6522 = vadd.f32 %v6433, %v6434
    %6523 = vadd.xlane.f32.xlu0 %v6522
    %v6524 = vpop.xlane.xlu0 %6523
    %v6525 = vadd.f32 %v6435, %v6436
    %6526 = vadd.xlane.f32.xlu0 %v6525
    %v6527 = vpop.xlane.xlu0 %6526
    %v6528 = vadd.f32 %v6437, %v6438
    %6529 = vadd.xlane.f32.xlu0 %v6528
    %v6530 = vpop.xlane.xlu0 %6529
    %v6531 = vadd.f32 %v6439, %v6440
    %6532 = vadd.xlane.f32.xlu0 %v6531
    %v6533 = vpop.xlane.xlu0 %6532
    %v6534 = vadd.f32 %v6441, %v6442
    %6535 = vadd.xlane.f32.xlu0 %v6534
    %v6536 = vpop.xlane.xlu0 %6535
    %v6537 = vadd.f32 %v6443, %v6444
    %6538 = vadd.xlane.f32.xlu0 %v6537
    %v6539 = vpop.xlane.xlu0 %6538
    %v6540 = vadd.f32 %v6445, %v6446
    %6541 = vadd.xlane.f32.xlu0 %v6540
    %v6542 = vpop.xlane.xlu0 %6541
    %v6543 = vld [vmem:[#allocation2] sm:$0x1]
    %v6545 = vlaneseq
    %v6546 = vshrl.u32 %v6545, 7
    %v6547 = vsub.s32 0, %v6546
    %v6548 = vrot.slane %v6543, %v6547
    %v6550 = vadd.f32 %v6449, %v6548
    %v6551 = vadd.f32 %v6452, %v6548
    %v6552 = vadd.f32 %v6455, %v6548
    %v6553 = vadd.f32 %v6458, %v6548
    %v6554 = vadd.f32 %v6461, %v6548
    %v6555 = vadd.f32 %v6464, %v6548
    %v6556 = vadd.f32 %v6467, %v6548
    %v6557 = vadd.f32 %v6470, %v6548
    %v6558 = vadd.f32 %v6473, %v6548
    %v6559 = vadd.f32 %v6476, %v6548
    %v6560 = vadd.f32 %v6479, %v6548
    %v6561 = vadd.f32 %v6482, %v6548
    %v6562 = vadd.f32 %v6485, %v6548
    %v6563 = vadd.f32 %v6488, %v6548
    %v6564 = vadd.f32 %v6491, %v6548
    %v6565 = vadd.f32 %v6494, %v6548
    %v6566 = vadd.f32 %v6497, %v6548
    %v6567 = vadd.f32 %v6500, %v6548
    %v6568 = vadd.f32 %v6503, %v6548
    %v6569 = vadd.f32 %v6506, %v6548
    %v6570 = vadd.f32 %v6509, %v6548
    %v6571 = vadd.f32 %v6512, %v6548
    %v6572 = vadd.f32 %v6515, %v6548
    %v6573 = vadd.f32 %v6518, %v6548
    %v6574 = vadd.f32 %v6521, %v6548
    %v6575 = vadd.f32 %v6524, %v6548
    %v6576 = vadd.f32 %v6527, %v6548
    %v6577 = vadd.f32 %v6530, %v6548
    %v6578 = vadd.f32 %v6533, %v6548
    %v6579 = vadd.f32 %v6536, %v6548
    %v6580 = vadd.f32 %v6539, %v6548
    %v6581 = vadd.f32 %v6542, %v6548
    %v6582 = vtanh.pop %v6550
    %v6583 = vtanh.pop %v6551
    %v6584 = vtanh.pop %v6552
    %v6585 = vtanh.pop %v6553
    %v6586 = vtanh.pop %v6554
    %v6587 = vtanh.pop %v6555
    %v6588 = vtanh.pop %v6556
    %v6589 = vtanh.pop %v6557
    %v6590 = vtanh.pop %v6558
    %v6591 = vtanh.pop %v6559
    %v6592 = vtanh.pop %v6560
    %v6593 = vtanh.pop %v6561
    %v6594 = vtanh.pop %v6562
    %v6595 = vtanh.pop %v6563
    %v6596 = vtanh.pop %v6564
    %v6597 = vtanh.pop %v6565
    %v6598 = vtanh.pop %v6566
    %v6599 = vtanh.pop %v6567
    %v6600 = vtanh.pop %v6568
    %v6601 = vtanh.pop %v6569
    %v6602 = vtanh.pop %v6570
    %v6603 = vtanh.pop %v6571
    %v6604 = vtanh.pop %v6572
    %v6605 = vtanh.pop %v6573
    %v6606 = vtanh.pop %v6574
    %v6607 = vtanh.pop %v6575
    %v6608 = vtanh.pop %v6576
    %v6609 = vtanh.pop %v6577
    %v6610 = vtanh.pop %v6578
    %v6611 = vtanh.pop %v6579
    %v6612 = vtanh.pop %v6580
    %v6613 = vtanh.pop %v6581
    %vm6614 = vcmask 7168
    %6615 = vst.msk [vmem:[%s8] sm:$0xff] %vm6614, %v6582
    %6616 = vst.msk [vmem:[%s8 + $0x8] sm:$0xff] %vm6614, %v6583
    %6617 = vst.msk [vmem:[%s8 + $0x10] sm:$0xff] %vm6614, %v6584
    %6618 = vst.msk [vmem:[%s8 + $0x18] sm:$0xff] %vm6614, %v6585
    %6619 = vst.msk [vmem:[%s8 + $0x20] sm:$0xff] %vm6614, %v6586
    %6620 = vst.msk [vmem:[%s8 + $0x28] sm:$0xff] %vm6614, %v6587
    %6621 = vst.msk [vmem:[%s8 + $0x30] sm:$0xff] %vm6614, %v6588
    %6622 = vst.msk [vmem:[%s8 + $0x38] sm:$0xff] %vm6614, %v6589
    %6623 = vst.msk [vmem:[%s8 + $0x40] sm:$0xff] %vm6614, %v6590
    %6624 = vst.msk [vmem:[%s8 + $0x48] sm:$0xff] %vm6614, %v6591
    %6625 = vst.msk [vmem:[%s8 + $0x50] sm:$0xff] %vm6614, %v6592
    %6626 = vst.msk [vmem:[%s8 + $0x58] sm:$0xff] %vm6614, %v6593
    %6627 = vst.msk [vmem:[%s8 + $0x60] sm:$0xff] %vm6614, %v6594
    %6628 = vst.msk [vmem:[%s8 + $0x68] sm:$0xff] %vm6614, %v6595
    %6629 = vst.msk [vmem:[%s8 + $0x70] sm:$0xff] %vm6614, %v6596
    %6630 = vst.msk [vmem:[%s8 + $0x78] sm:$0xff] %vm6614, %v6597
    %6631 = vst.msk [vmem:[%s8 + $0x80] sm:$0xff] %vm6614, %v6598
    %6632 = vst.msk [vmem:[%s8 + $0x88] sm:$0xff] %vm6614, %v6599
    %6633 = vst.msk [vmem:[%s8 + $0x90] sm:$0xff] %vm6614, %v6600
    %6634 = vst.msk [vmem:[%s8 + $0x98] sm:$0xff] %vm6614, %v6601
    %6635 = vst.msk [vmem:[%s8 + $0xa0] sm:$0xff] %vm6614, %v6602
    %6636 = vst.msk [vmem:[%s8 + $0xa8] sm:$0xff] %vm6614, %v6603
    %6637 = vst.msk [vmem:[%s8 + $0xb0] sm:$0xff] %vm6614, %v6604
    %6638 = vst.msk [vmem:[%s8 + $0xb8] sm:$0xff] %vm6614, %v6605
    %6639 = vst.msk [vmem:[%s8 + $0xc0] sm:$0xff] %vm6614, %v6606
    %6640 = vst.msk [vmem:[%s8 + $0xc8] sm:$0xff] %vm6614, %v6607
    %6641 = vst.msk [vmem:[%s8 + $0xd0] sm:$0xff] %vm6614, %v6608
    %6642 = vst.msk [vmem:[%s8 + $0xd8] sm:$0xff] %vm6614, %v6609
    %6643 = vst.msk [vmem:[%s8 + $0xe0] sm:$0xff] %vm6614, %v6610
    %6644 = vst.msk [vmem:[%s8 + $0xe8] sm:$0xff] %vm6614, %v6611
    %6645 = vst.msk [vmem:[%s8 + $0xf0] sm:$0xff] %vm6614, %v6612
    %6646 = vst.msk [vmem:[%s8 + $0xf8] sm:$0xff] %vm6614, %v6613
    // Predicated region
    $region38: #{deepsdf_pallas.1} parent=1 // pred_check
      _
    $region39: #{deepsdf_pallas.1} parent=1 // pred_check_branch
      %6648 = sbr.rel (0) target = $region41
    $region40: #{deepsdf_pallas.1} parent=1 // pred_region
      _
    $region41: #{deepsdf_pallas.1} parent=1 // pred_fallthru
      _
    // Predicated region
    $region42: #{deepsdf_pallas.1} parent=1 // pred_check
      _
    $region43: #{deepsdf_pallas.1} parent=1 // pred_check_branch
      %6650 = sbr.rel (0) target = $region45
    $region44: #{deepsdf_pallas.1} parent=1 // pred_region
      _
    $region45: #{deepsdf_pallas.1} parent=1 // pred_fallthru
      _
    %6651 = vsyncpa [#allocation4], 1

</llo_original>
